<compile_context>
chip_gen: v7x
topology: tpu7x:2x2x1
jax: 0.10.0
libtpu: 0.0.40
codegen_flags: <defaults>
</compile_context>

<pallas_src>
import functools

import jax
import jax.numpy as jnp
from jax import lax
from jax.experimental import pallas as pl
from jax.experimental.pallas import tpu as pltpu


# ----------------------------------------------------------------------------
# Fused kernel: all LSTM layers + (eval-mode) dropout identity in one call.
# ----------------------------------------------------------------------------
def _fused_lstm_kernel(num_layers, x_ref, *args):
    # x_ref:   (B, T, Din)                               float32
    # args:    for each layer l: w_ih_l (4, Din_l, H), w_hh_l (4, H, H), b_l (4, 1, H)
    #          then out_ref (B, T, H)
    weight_refs = args[: 3 * num_layers]
    out_ref = args[3 * num_layers]

    B, T, _ = x_ref.shape
    H = out_ref.shape[-1]

    seq = x_ref[...]  # (B, T, Din), batch-first throughout

    for layer in range(num_layers):
        w_ih = weight_refs[3 * layer][...]      # (4, Din_l, H)
        w_hh = weight_refs[3 * layer + 1][...]  # (4, H, H)
        b = weight_refs[3 * layer + 2][...]     # (4, 1, H)
        din = w_ih.shape[1]

        # --- Hoisted input projection: one matmul per gate over ALL timesteps ---
        seq2d = seq.reshape(B * T, din)
        # Gate order (PyTorch): 0=i, 1=f, 2=g(cell), 3=o
        xg = [
            (jnp.dot(seq2d, w_ih[g], preferred_element_type=jnp.float32) + b[g]
             ).reshape(B, T, H)
            for g in range(4)
        ]

        # --- t = 0: h0 = c0 = 0  ->  skip the recurrent matmuls (f*c0 == 0) ---
        c = jax.nn.sigmoid(xg[0][:, 0, :]) * jnp.tanh(xg[2][:, 0, :])
        h = jax.nn.sigmoid(xg[3][:, 0, :]) * jnp.tanh(c)
        hs = [h]

        # --- Fully unrolled time recurrence (T is small & static) ---
        for t in range(1, T):
            i_g = jax.nn.sigmoid(
                xg[0][:, t, :] + jnp.dot(h, w_hh[0], preferred_element_type=jnp.float32))
            f_g = jax.nn.sigmoid(
                xg[1][:, t, :] + jnp.dot(h, w_hh[1], preferred_element_type=jnp.float32))
            g_g = jnp.tanh(
                xg[2][:, t, :] + jnp.dot(h, w_hh[2], preferred_element_type=jnp.float32))
            o_g = jax.nn.sigmoid(
                xg[3][:, t, :] + jnp.dot(h, w_hh[3], preferred_element_type=jnp.float32))
            c = f_g * c + i_g * g_g
            h = o_g * jnp.tanh(c)
            hs.append(h)

        # (B, T, H): next layer's input, or the final output.
        seq = jnp.stack(hs, axis=1)

    # nn.Dropout in eval mode is the identity.
    # TODO(synk): training-mode dropout (pltpu.prng_random_bits mask) not implemented.
    out_ref[...] = seq.astype(out_ref.dtype)


def lstm_forward(x, params):
    """x: (B, T, input_size) f32; params: list of (w_ih (4,Din,H), w_hh (4,H,H), b (4,1,H))."""
    B, T, _ = x.shape
    num_layers = len(params)
    H = params[0][1].shape[-1]

    flat = []
    for (w_ih, w_hh, b) in params:
        flat += [w_ih, w_hh, b]

    kernel = functools.partial(_fused_lstm_kernel, num_layers)
    return pl.pallas_call(
        kernel,
        out_shape=jax.ShapeDtypeStruct((B, T, H), jnp.float32),
        in_specs=[pl.BlockSpec(memory_space=pltpu.MemorySpace.VMEM)] * (1 + 3 * num_layers),
        out_specs=pl.BlockSpec(memory_space=pltpu.MemorySpace.VMEM),
    )(x, *flat)


# ----------------------------------------------------------------------------
# Parameter init (PyTorch nn.LSTM default: U(-1/sqrt(H), 1/sqrt(H))),
# reorganized into per-gate stacks so the kernel never slices the gate axis.
# ----------------------------------------------------------------------------
def init_lstm_params(key, input_size, hidden_size, num_layers):
    k = 1.0 / jnp.sqrt(jnp.float32(hidden_size))
    params = []
    for layer in range(num_layers):
        din = input_size if layer == 0 else hidden_size
        key, k1, k2, k3, k4 = jax.random.split(key, 5)
        w_ih = jax.random.uniform(k1, (4 * hidden_size, din), jnp.float32, -k, k)
        w_hh = jax.random.uniform(k2, (4 * hidden_size, hidden_size), jnp.float32, -k, k)
        b_ih = jax.random.uniform(k3, (4 * hidden_size,), jnp.float32, -k, k)
        b_hh = jax.random.uniform(k4, (4 * hidden_size,), jnp.float32, -k, k)
        # Split per gate (PyTorch row order i, f, g, o) and transpose for x @ W.
        w_ih_s = jnp.transpose(w_ih.reshape(4, hidden_size, din), (0, 2, 1))       # (4, Din, H)
        w_hh_s = jnp.transpose(w_hh.reshape(4, hidden_size, hidden_size), (0, 2, 1))  # (4, H, H)
        b_s = (b_ih + b_hh).reshape(4, 1, hidden_size)                              # (4, 1, H)
        params.append((w_ih_s, w_hh_s, b_s))
    return params, key


# ----------------------------------------------------------------------------
# Pure-JAX reference (for correctness check)
# ----------------------------------------------------------------------------
def ref_lstm(x, params):
    B, T, _ = x.shape
    h_seq = x
    for (w_ih, w_hh, b) in params:
        H = w_hh.shape[-1]

        def step(carry, x_t):
            h, c = carry
            pre = [x_t @ w_ih[g] + h @ w_hh[g] + b[g] for g in range(4)]
            i_g = jax.nn.sigmoid(pre[0])
            f_g = jax.nn.sigmoid(pre[1])
            g_g = jnp.tanh(pre[2])
            o_g = jax.nn.sigmoid(pre[3])
            c = f_g * c + i_g * g_g
            h = o_g * jnp.tanh(c)
            return (h, c), h

        init = (jnp.zeros((B, H), jnp.float32), jnp.zeros((B, H), jnp.float32))
        _, ys = lax.scan(step, init, jnp.transpose(h_seq, (1, 0, 2)))
        h_seq = jnp.transpose(ys, (1, 0, 2))
    return h_seq  # dropout in eval mode is identity


# ----------------------------------------------------------------------------
if __name__ == "__main__":
    B, T = 2, 8
    input_size, hidden_size, num_layers = 4, 32, 2
    dropout_rate = 0.5  # eval mode -> identity

    key = jax.random.PRNGKey(0)
    params, key = init_lstm_params(key, input_size, hidden_size, num_layers)

    key, kx = jax.random.split(key)
    x = jax.random.normal(kx, (B, T, input_size), jnp.float32)

    result = jax.block_until_ready(lstm_forward(x, params))
    assert result.shape == (B, T, hidden_size), result.shape

    expected = jax.block_until_ready(ref_lstm(x, params))
    max_err = float(jnp.max(jnp.abs(result - expected)))
    assert jnp.allclose(result, expected, atol=1e-4, rtol=1e-4), max_err

    print("KERNEL_OK")
</pallas_src>

<mosaic_0001>
module attributes {stable_mosaic.version = 11 : i64} {
  func.func @_fused_lstm_kernel(%arg0: memref<2x8x4xf32, #tpu.memory_space<vmem>>, %arg1: memref<4x4x32xf32, #tpu.memory_space<vmem>>, %arg2: memref<4x32x32xf32, #tpu.memory_space<vmem>>, %arg3: memref<4x1x32xf32, #tpu.memory_space<vmem>>, %arg4: memref<4x32x32xf32, #tpu.memory_space<vmem>>, %arg5: memref<4x32x32xf32, #tpu.memory_space<vmem>>, %arg6: memref<4x1x32xf32, #tpu.memory_space<vmem>>, %arg7: memref<2x8x32xf32, #tpu.memory_space<vmem>>) attributes {dimension_semantics = [], scalar_prefetch = 0 : i64, scratch_operands = 0 : i64, tpu.core_type = #tpu.core_type<tc>} {
    %c0 = arith.constant 0 : index
    %c0_0 = arith.constant 0 : index
    %c0_1 = arith.constant 0 : index
    %0 = vector.load %arg0[%c0, %c0_0, %c0_1] : memref<2x8x4xf32, #tpu.memory_space<vmem>>, vector<2x8x4xf32>
    %c0_2 = arith.constant 0 : index
    %c0_3 = arith.constant 0 : index
    %c0_4 = arith.constant 0 : index
    %1 = vector.load %arg1[%c0_2, %c0_3, %c0_4] : memref<4x4x32xf32, #tpu.memory_space<vmem>>, vector<4x4x32xf32>
    %c0_5 = arith.constant 0 : index
    %c0_6 = arith.constant 0 : index
    %c0_7 = arith.constant 0 : index
    %2 = vector.load %arg2[%c0_5, %c0_6, %c0_7] : memref<4x32x32xf32, #tpu.memory_space<vmem>>, vector<4x32x32xf32>
    %c0_8 = arith.constant 0 : index
    %c0_9 = arith.constant 0 : index
    %c0_10 = arith.constant 0 : index
    %3 = vector.load %arg3[%c0_8, %c0_9, %c0_10] : memref<4x1x32xf32, #tpu.memory_space<vmem>>, vector<4x1x32xf32>
    %4 = vector.shape_cast %0 : vector<2x8x4xf32> to vector<16x4xf32>
    %5 = vector.extract_strided_slice %1 {offsets = [0, 0, 0], sizes = [1, 4, 32], strides = [1, 1, 1]} : vector<4x4x32xf32> to vector<1x4x32xf32>
    %6 = vector.shape_cast %5 : vector<1x4x32xf32> to vector<4x32xf32>
    %cst = arith.constant dense<0.000000e+00> : vector<16x32xf32>
    %7 = tpu.matmul %4, %6, %cst {dimension_numbers = #tpu.dot_dimension_numbers<[1], [0], [0], [1], [0, 0, 1, 1], [], []>} : vector<16x4xf32>, vector<4x32xf32>, vector<16x32xf32> -> vector<16x32xf32>
    %8 = vector.extract_strided_slice %3 {offsets = [0, 0, 0], sizes = [1, 1, 32], strides = [1, 1, 1]} : vector<4x1x32xf32> to vector<1x1x32xf32>
    %9 = vector.shape_cast %8 : vector<1x1x32xf32> to vector<1x32xf32>
    %10 = vector.broadcast %9 : vector<1x32xf32> to vector<16x32xf32>
    %11 = arith.addf %7, %10 : vector<16x32xf32>
    %12 = vector.shape_cast %11 : vector<16x32xf32> to vector<2x8x32xf32>
    %13 = vector.extract_strided_slice %1 {offsets = [1, 0, 0], sizes = [1, 4, 32], strides = [1, 1, 1]} : vector<4x4x32xf32> to vector<1x4x32xf32>
    %14 = vector.shape_cast %13 : vector<1x4x32xf32> to vector<4x32xf32>
    %cst_11 = arith.constant dense<0.000000e+00> : vector<16x32xf32>
    %15 = tpu.matmul %4, %14, %cst_11 {dimension_numbers = #tpu.dot_dimension_numbers<[1], [0], [0], [1], [0, 0, 1, 1], [], []>} : vector<16x4xf32>, vector<4x32xf32>, vector<16x32xf32> -> vector<16x32xf32>
    %16 = vector.extract_strided_slice %3 {offsets = [1, 0, 0], sizes = [1, 1, 32], strides = [1, 1, 1]} : vector<4x1x32xf32> to vector<1x1x32xf32>
    %17 = vector.shape_cast %16 : vector<1x1x32xf32> to vector<1x32xf32>
    %18 = vector.broadcast %17 : vector<1x32xf32> to vector<16x32xf32>
    %19 = arith.addf %15, %18 : vector<16x32xf32>
    %20 = vector.shape_cast %19 : vector<16x32xf32> to vector<2x8x32xf32>
    %21 = vector.extract_strided_slice %1 {offsets = [2, 0, 0], sizes = [1, 4, 32], strides = [1, 1, 1]} : vector<4x4x32xf32> to vector<1x4x32xf32>
    %22 = vector.shape_cast %21 : vector<1x4x32xf32> to vector<4x32xf32>
    %cst_12 = arith.constant dense<0.000000e+00> : vector<16x32xf32>
    %23 = tpu.matmul %4, %22, %cst_12 {dimension_numbers = #tpu.dot_dimension_numbers<[1], [0], [0], [1], [0, 0, 1, 1], [], []>} : vector<16x4xf32>, vector<4x32xf32>, vector<16x32xf32> -> vector<16x32xf32>
    %24 = vector.extract_strided_slice %3 {offsets = [2, 0, 0], sizes = [1, 1, 32], strides = [1, 1, 1]} : vector<4x1x32xf32> to vector<1x1x32xf32>
    %25 = vector.shape_cast %24 : vector<1x1x32xf32> to vector<1x32xf32>
    %26 = vector.broadcast %25 : vector<1x32xf32> to vector<16x32xf32>
    %27 = arith.addf %23, %26 : vector<16x32xf32>
    %28 = vector.shape_cast %27 : vector<16x32xf32> to vector<2x8x32xf32>
    %29 = vector.extract_strided_slice %1 {offsets = [3, 0, 0], sizes = [1, 4, 32], strides = [1, 1, 1]} : vector<4x4x32xf32> to vector<1x4x32xf32>
    %30 = vector.shape_cast %29 : vector<1x4x32xf32> to vector<4x32xf32>
    %cst_13 = arith.constant dense<0.000000e+00> : vector<16x32xf32>
    %31 = tpu.matmul %4, %30, %cst_13 {dimension_numbers = #tpu.dot_dimension_numbers<[1], [0], [0], [1], [0, 0, 1, 1], [], []>} : vector<16x4xf32>, vector<4x32xf32>, vector<16x32xf32> -> vector<16x32xf32>
    %32 = vector.extract_strided_slice %3 {offsets = [3, 0, 0], sizes = [1, 1, 32], strides = [1, 1, 1]} : vector<4x1x32xf32> to vector<1x1x32xf32>
    %33 = vector.shape_cast %32 : vector<1x1x32xf32> to vector<1x32xf32>
    %34 = vector.broadcast %33 : vector<1x32xf32> to vector<16x32xf32>
    %35 = arith.addf %31, %34 : vector<16x32xf32>
    %36 = vector.shape_cast %35 : vector<16x32xf32> to vector<2x8x32xf32>
    %37 = vector.extract_strided_slice %12 {offsets = [0, 0, 0], sizes = [2, 1, 32], strides = [1, 1, 1]} : vector<2x8x32xf32> to vector<2x1x32xf32>
    %38 = vector.shape_cast %37 : vector<2x1x32xf32> to vector<2x32xf32>
    %39 = arith.negf %38 : vector<2x32xf32>
    %40 = math.exp %39 : vector<2x32xf32>
    %cst_14 = arith.constant 1.000000e+00 : f32
    %41 = vector.broadcast %cst_14 : f32 to vector<2x32xf32>
    %42 = arith.addf %41, %40 : vector<2x32xf32>
    %43 = arith.divf %41, %42 : vector<2x32xf32>
    %44 = vector.extract_strided_slice %28 {offsets = [0, 0, 0], sizes = [2, 1, 32], strides = [1, 1, 1]} : vector<2x8x32xf32> to vector<2x1x32xf32>
    %45 = vector.shape_cast %44 : vector<2x1x32xf32> to vector<2x32xf32>
    %46 = math.tanh %45 : vector<2x32xf32>
    %47 = arith.mulf %43, %46 : vector<2x32xf32>
    %48 = vector.extract_strided_slice %36 {offsets = [0, 0, 0], sizes = [2, 1, 32], strides = [1, 1, 1]} : vector<2x8x32xf32> to vector<2x1x32xf32>
    %49 = vector.shape_cast %48 : vector<2x1x32xf32> to vector<2x32xf32>
    %50 = arith.negf %49 : vector<2x32xf32>
    %51 = math.exp %50 : vector<2x32xf32>
    %cst_15 = arith.constant 1.000000e+00 : f32
    %52 = vector.broadcast %cst_15 : f32 to vector<2x32xf32>
    %53 = arith.addf %52, %51 : vector<2x32xf32>
    %54 = arith.divf %52, %53 : vector<2x32xf32>
    %55 = math.tanh %47 : vector<2x32xf32>
    %56 = arith.mulf %54, %55 : vector<2x32xf32>
    %57 = vector.extract_strided_slice %12 {offsets = [0, 1, 0], sizes = [2, 1, 32], strides = [1, 1, 1]} : vector<2x8x32xf32> to vector<2x1x32xf32>
    %58 = vector.shape_cast %57 : vector<2x1x32xf32> to vector<2x32xf32>
    %59 = vector.extract_strided_slice %2 {offsets = [0, 0, 0], sizes = [1, 32, 32], strides = [1, 1, 1]} : vector<4x32x32xf32> to vector<1x32x32xf32>
    %60 = vector.shape_cast %59 : vector<1x32x32xf32> to vector<32x32xf32>
    %cst_16 = arith.constant dense<0.000000e+00> : vector<2x32xf32>
    %61 = tpu.matmul %56, %60, %cst_16 {dimension_numbers = #tpu.dot_dimension_numbers<[1], [0], [0], [1], [0, 0, 1, 1], [], []>} : vector<2x32xf32>, vector<32x32xf32>, vector<2x32xf32> -> vector<2x32xf32>
    %62 = arith.addf %58, %61 : vector<2x32xf32>
    %63 = arith.negf %62 : vector<2x32xf32>
    %64 = math.exp %63 : vector<2x32xf32>
    %cst_17 = arith.constant 1.000000e+00 : f32
    %65 = vector.broadcast %cst_17 : f32 to vector<2x32xf32>
    %66 = arith.addf %65, %64 : vector<2x32xf32>
    %67 = arith.divf %65, %66 : vector<2x32xf32>
    %68 = vector.extract_strided_slice %20 {offsets = [0, 1, 0], sizes = [2, 1, 32], strides = [1, 1, 1]} : vector<2x8x32xf32> to vector<2x1x32xf32>
    %69 = vector.shape_cast %68 : vector<2x1x32xf32> to vector<2x32xf32>
    %70 = vector.extract_strided_slice %2 {offsets = [1, 0, 0], sizes = [1, 32, 32], strides = [1, 1, 1]} : vector<4x32x32xf32> to vector<1x32x32xf32>
    %71 = vector.shape_cast %70 : vector<1x32x32xf32> to vector<32x32xf32>
    %cst_18 = arith.constant dense<0.000000e+00> : vector<2x32xf32>
    %72 = tpu.matmul %56, %71, %cst_18 {dimension_numbers = #tpu.dot_dimension_numbers<[1], [0], [0], [1], [0, 0, 1, 1], [], []>} : vector<2x32xf32>, vector<32x32xf32>, vector<2x32xf32> -> vector<2x32xf32>
    %73 = arith.addf %69, %72 : vector<2x32xf32>
    %74 = arith.negf %73 : vector<2x32xf32>
    %75 = math.exp %74 : vector<2x32xf32>
    %cst_19 = arith.constant 1.000000e+00 : f32
    %76 = vector.broadcast %cst_19 : f32 to vector<2x32xf32>
    %77 = arith.addf %76, %75 : vector<2x32xf32>
    %78 = arith.divf %76, %77 : vector<2x32xf32>
    %79 = vector.extract_strided_slice %28 {offsets = [0, 1, 0], sizes = [2, 1, 32], strides = [1, 1, 1]} : vector<2x8x32xf32> to vector<2x1x32xf32>
    %80 = vector.shape_cast %79 : vector<2x1x32xf32> to vector<2x32xf32>
    %81 = vector.extract_strided_slice %2 {offsets = [2, 0, 0], sizes = [1, 32, 32], strides = [1, 1, 1]} : vector<4x32x32xf32> to vector<1x32x32xf32>
    %82 = vector.shape_cast %81 : vector<1x32x32xf32> to vector<32x32xf32>
    %cst_20 = arith.constant dense<0.000000e+00> : vector<2x32xf32>
    %83 = tpu.matmul %56, %82, %cst_20 {dimension_numbers = #tpu.dot_dimension_numbers<[1], [0], [0], [1], [0, 0, 1, 1], [], []>} : vector<2x32xf32>, vector<32x32xf32>, vector<2x32xf32> -> vector<2x32xf32>
    %84 = arith.addf %80, %83 : vector<2x32xf32>
    %85 = math.tanh %84 : vector<2x32xf32>
    %86 = vector.extract_strided_slice %36 {offsets = [0, 1, 0], sizes = [2, 1, 32], strides = [1, 1, 1]} : vector<2x8x32xf32> to vector<2x1x32xf32>
    %87 = vector.shape_cast %86 : vector<2x1x32xf32> to vector<2x32xf32>
    %88 = vector.extract_strided_slice %2 {offsets = [3, 0, 0], sizes = [1, 32, 32], strides = [1, 1, 1]} : vector<4x32x32xf32> to vector<1x32x32xf32>
    %89 = vector.shape_cast %88 : vector<1x32x32xf32> to vector<32x32xf32>
    %cst_21 = arith.constant dense<0.000000e+00> : vector<2x32xf32>
    %90 = tpu.matmul %56, %89, %cst_21 {dimension_numbers = #tpu.dot_dimension_numbers<[1], [0], [0], [1], [0, 0, 1, 1], [], []>} : vector<2x32xf32>, vector<32x32xf32>, vector<2x32xf32> -> vector<2x32xf32>
    %91 = arith.addf %87, %90 : vector<2x32xf32>
    %92 = arith.negf %91 : vector<2x32xf32>
    %93 = math.exp %92 : vector<2x32xf32>
    %cst_22 = arith.constant 1.000000e+00 : f32
    %94 = vector.broadcast %cst_22 : f32 to vector<2x32xf32>
    %95 = arith.addf %94, %93 : vector<2x32xf32>
    %96 = arith.divf %94, %95 : vector<2x32xf32>
    %97 = arith.mulf %78, %47 : vector<2x32xf32>
    %98 = arith.mulf %67, %85 : vector<2x32xf32>
    %99 = arith.addf %97, %98 : vector<2x32xf32>
    %100 = math.tanh %99 : vector<2x32xf32>
    %101 = arith.mulf %96, %100 : vector<2x32xf32>
    %102 = vector.extract_strided_slice %12 {offsets = [0, 2, 0], sizes = [2, 1, 32], strides = [1, 1, 1]} : vector<2x8x32xf32> to vector<2x1x32xf32>
    %103 = vector.shape_cast %102 : vector<2x1x32xf32> to vector<2x32xf32>
    %104 = vector.extract_strided_slice %2 {offsets = [0, 0, 0], sizes = [1, 32, 32], strides = [1, 1, 1]} : vector<4x32x32xf32> to vector<1x32x32xf32>
    %105 = vector.shape_cast %104 : vector<1x32x32xf32> to vector<32x32xf32>
    %cst_23 = arith.constant dense<0.000000e+00> : vector<2x32xf32>
    %106 = tpu.matmul %101, %105, %cst_23 {dimension_numbers = #tpu.dot_dimension_numbers<[1], [0], [0], [1], [0, 0, 1, 1], [], []>} : vector<2x32xf32>, vector<32x32xf32>, vector<2x32xf32> -> vector<2x32xf32>
    %107 = arith.addf %103, %106 : vector<2x32xf32>
    %108 = arith.negf %107 : vector<2x32xf32>
    %109 = math.exp %108 : vector<2x32xf32>
    %cst_24 = arith.constant 1.000000e+00 : f32
    %110 = vector.broadcast %cst_24 : f32 to vector<2x32xf32>
    %111 = arith.addf %110, %109 : vector<2x32xf32>
    %112 = arith.divf %110, %111 : vector<2x32xf32>
    %113 = vector.extract_strided_slice %20 {offsets = [0, 2, 0], sizes = [2, 1, 32], strides = [1, 1, 1]} : vector<2x8x32xf32> to vector<2x1x32xf32>
    %114 = vector.shape_cast %113 : vector<2x1x32xf32> to vector<2x32xf32>
    %115 = vector.extract_strided_slice %2 {offsets = [1, 0, 0], sizes = [1, 32, 32], strides = [1, 1, 1]} : vector<4x32x32xf32> to vector<1x32x32xf32>
    %116 = vector.shape_cast %115 : vector<1x32x32xf32> to vector<32x32xf32>
    %cst_25 = arith.constant dense<0.000000e+00> : vector<2x32xf32>
    %117 = tpu.matmul %101, %116, %cst_25 {dimension_numbers = #tpu.dot_dimension_numbers<[1], [0], [0], [1], [0, 0, 1, 1], [], []>} : vector<2x32xf32>, vector<32x32xf32>, vector<2x32xf32> -> vector<2x32xf32>
    %118 = arith.addf %114, %117 : vector<2x32xf32>
    %119 = arith.negf %118 : vector<2x32xf32>
    %120 = math.exp %119 : vector<2x32xf32>
    %cst_26 = arith.constant 1.000000e+00 : f32
    %121 = vector.broadcast %cst_26 : f32 to vector<2x32xf32>
    %122 = arith.addf %121, %120 : vector<2x32xf32>
    %123 = arith.divf %121, %122 : vector<2x32xf32>
    %124 = vector.extract_strided_slice %28 {offsets = [0, 2, 0], sizes = [2, 1, 32], strides = [1, 1, 1]} : vector<2x8x32xf32> to vector<2x1x32xf32>
    %125 = vector.shape_cast %124 : vector<2x1x32xf32> to vector<2x32xf32>
    %126 = vector.extract_strided_slice %2 {offsets = [2, 0, 0], sizes = [1, 32, 32], strides = [1, 1, 1]} : vector<4x32x32xf32> to vector<1x32x32xf32>
    %127 = vector.shape_cast %126 : vector<1x32x32xf32> to vector<32x32xf32>
    %cst_27 = arith.constant dense<0.000000e+00> : vector<2x32xf32>
    %128 = tpu.matmul %101, %127, %cst_27 {dimension_numbers = #tpu.dot_dimension_numbers<[1], [0], [0], [1], [0, 0, 1, 1], [], []>} : vector<2x32xf32>, vector<32x32xf32>, vector<2x32xf32> -> vector<2x32xf32>
    %129 = arith.addf %125, %128 : vector<2x32xf32>
    %130 = math.tanh %129 : vector<2x32xf32>
    %131 = vector.extract_strided_slice %36 {offsets = [0, 2, 0], sizes = [2, 1, 32], strides = [1, 1, 1]} : vector<2x8x32xf32> to vector<2x1x32xf32>
    %132 = vector.shape_cast %131 : vector<2x1x32xf32> to vector<2x32xf32>
    %133 = vector.extract_strided_slice %2 {offsets = [3, 0, 0], sizes = [1, 32, 32], strides = [1, 1, 1]} : vector<4x32x32xf32> to vector<1x32x32xf32>
    %134 = vector.shape_cast %133 : vector<1x32x32xf32> to vector<32x32xf32>
    %cst_28 = arith.constant dense<0.000000e+00> : vector<2x32xf32>
    %135 = tpu.matmul %101, %134, %cst_28 {dimension_numbers = #tpu.dot_dimension_numbers<[1], [0], [0], [1], [0, 0, 1, 1], [], []>} : vector<2x32xf32>, vector<32x32xf32>, vector<2x32xf32> -> vector<2x32xf32>
    %136 = arith.addf %132, %135 : vector<2x32xf32>
    %137 = arith.negf %136 : vector<2x32xf32>
    %138 = math.exp %137 : vector<2x32xf32>
    %cst_29 = arith.constant 1.000000e+00 : f32
    %139 = vector.broadcast %cst_29 : f32 to vector<2x32xf32>
    %140 = arith.addf %139, %138 : vector<2x32xf32>
    %141 = arith.divf %139, %140 : vector<2x32xf32>
    %142 = arith.mulf %123, %99 : vector<2x32xf32>
    %143 = arith.mulf %112, %130 : vector<2x32xf32>
    %144 = arith.addf %142, %143 : vector<2x32xf32>
    %145 = math.tanh %144 : vector<2x32xf32>
    %146 = arith.mulf %141, %145 : vector<2x32xf32>
    %147 = vector.extract_strided_slice %12 {offsets = [0, 3, 0], sizes = [2, 1, 32], strides = [1, 1, 1]} : vector<2x8x32xf32> to vector<2x1x32xf32>
    %148 = vector.shape_cast %147 : vector<2x1x32xf32> to vector<2x32xf32>
    %149 = vector.extract_strided_slice %2 {offsets = [0, 0, 0], sizes = [1, 32, 32], strides = [1, 1, 1]} : vector<4x32x32xf32> to vector<1x32x32xf32>
    %150 = vector.shape_cast %149 : vector<1x32x32xf32> to vector<32x32xf32>
    %cst_30 = arith.constant dense<0.000000e+00> : vector<2x32xf32>
    %151 = tpu.matmul %146, %150, %cst_30 {dimension_numbers = #tpu.dot_dimension_numbers<[1], [0], [0], [1], [0, 0, 1, 1], [], []>} : vector<2x32xf32>, vector<32x32xf32>, vector<2x32xf32> -> vector<2x32xf32>
    %152 = arith.addf %148, %151 : vector<2x32xf32>
    %153 = arith.negf %152 : vector<2x32xf32>
    %154 = math.exp %153 : vector<2x32xf32>
    %cst_31 = arith.constant 1.000000e+00 : f32
    %155 = vector.broadcast %cst_31 : f32 to vector<2x32xf32>
    %156 = arith.addf %155, %154 : vector<2x32xf32>
    %157 = arith.divf %155, %156 : vector<2x32xf32>
    %158 = vector.extract_strided_slice %20 {offsets = [0, 3, 0], sizes = [2, 1, 32], strides = [1, 1, 1]} : vector<2x8x32xf32> to vector<2x1x32xf32>
    %159 = vector.shape_cast %158 : vector<2x1x32xf32> to vector<2x32xf32>
    %160 = vector.extract_strided_slice %2 {offsets = [1, 0, 0], sizes = [1, 32, 32], strides = [1, 1, 1]} : vector<4x32x32xf32> to vector<1x32x32xf32>
    %161 = vector.shape_cast %160 : vector<1x32x32xf32> to vector<32x32xf32>
    %cst_32 = arith.constant dense<0.000000e+00> : vector<2x32xf32>
    %162 = tpu.matmul %146, %161, %cst_32 {dimension_numbers = #tpu.dot_dimension_numbers<[1], [0], [0], [1], [0, 0, 1, 1], [], []>} : vector<2x32xf32>, vector<32x32xf32>, vector<2x32xf32> -> vector<2x32xf32>
    %163 = arith.addf %159, %162 : vector<2x32xf32>
    %164 = arith.negf %163 : vector<2x32xf32>
    %165 = math.exp %164 : vector<2x32xf32>
    %cst_33 = arith.constant 1.000000e+00 : f32
    %166 = vector.broadcast %cst_33 : f32 to vector<2x32xf32>
    %167 = arith.addf %166, %165 : vector<2x32xf32>
    %168 = arith.divf %166, %167 : vector<2x32xf32>
    %169 = vector.extract_strided_slice %28 {offsets = [0, 3, 0], sizes = [2, 1, 32], strides = [1, 1, 1]} : vector<2x8x32xf32> to vector<2x1x32xf32>
    %170 = vector.shape_cast %169 : vector<2x1x32xf32> to vector<2x32xf32>
    %171 = vector.extract_strided_slice %2 {offsets = [2, 0, 0], sizes = [1, 32, 32], strides = [1, 1, 1]} : vector<4x32x32xf32> to vector<1x32x32xf32>
    %172 = vector.shape_cast %171 : vector<1x32x32xf32> to vector<32x32xf32>
    %cst_34 = arith.constant dense<0.000000e+00> : vector<2x32xf32>
    %173 = tpu.matmul %146, %172, %cst_34 {dimension_numbers = #tpu.dot_dimension_numbers<[1], [0], [0], [1], [0, 0, 1, 1], [], []>} : vector<2x32xf32>, vector<32x32xf32>, vector<2x32xf32> -> vector<2x32xf32>
    %174 = arith.addf %170, %173 : vector<2x32xf32>
    %175 = math.tanh %174 : vector<2x32xf32>
    %176 = vector.extract_strided_slice %36 {offsets = [0, 3, 0], sizes = [2, 1, 32], strides = [1, 1, 1]} : vector<2x8x32xf32> to vector<2x1x32xf32>
    %177 = vector.shape_cast %176 : vector<2x1x32xf32> to vector<2x32xf32>
    %178 = vector.extract_strided_slice %2 {offsets = [3, 0, 0], sizes = [1, 32, 32], strides = [1, 1, 1]} : vector<4x32x32xf32> to vector<1x32x32xf32>
    %179 = vector.shape_cast %178 : vector<1x32x32xf32> to vector<32x32xf32>
    %cst_35 = arith.constant dense<0.000000e+00> : vector<2x32xf32>
    %180 = tpu.matmul %146, %179, %cst_35 {dimension_numbers = #tpu.dot_dimension_numbers<[1], [0], [0], [1], [0, 0, 1, 1], [], []>} : vector<2x32xf32>, vector<32x32xf32>, vector<2x32xf32> -> vector<2x32xf32>
    %181 = arith.addf %177, %180 : vector<2x32xf32>
    %182 = arith.negf %181 : vector<2x32xf32>
    %183 = math.exp %182 : vector<2x32xf32>
    %cst_36 = arith.constant 1.000000e+00 : f32
    %184 = vector.broadcast %cst_36 : f32 to vector<2x32xf32>
    %185 = arith.addf %184, %183 : vector<2x32xf32>
    %186 = arith.divf %184, %185 : vector<2x32xf32>
    %187 = arith.mulf %168, %144 : vector<2x32xf32>
    %188 = arith.mulf %157, %175 : vector<2x32xf32>
    %189 = arith.addf %187, %188 : vector<2x32xf32>
    %190 = math.tanh %189 : vector<2x32xf32>
    %191 = arith.mulf %186, %190 : vector<2x32xf32>
    %192 = vector.extract_strided_slice %12 {offsets = [0, 4, 0], sizes = [2, 1, 32], strides = [1, 1, 1]} : vector<2x8x32xf32> to vector<2x1x32xf32>
    %193 = vector.shape_cast %192 : vector<2x1x32xf32> to vector<2x32xf32>
    %194 = vector.extract_strided_slice %2 {offsets = [0, 0, 0], sizes = [1, 32, 32], strides = [1, 1, 1]} : vector<4x32x32xf32> to vector<1x32x32xf32>
    %195 = vector.shape_cast %194 : vector<1x32x32xf32> to vector<32x32xf32>
    %cst_37 = arith.constant dense<0.000000e+00> : vector<2x32xf32>
    %196 = tpu.matmul %191, %195, %cst_37 {dimension_numbers = #tpu.dot_dimension_numbers<[1], [0], [0], [1], [0, 0, 1, 1], [], []>} : vector<2x32xf32>, vector<32x32xf32>, vector<2x32xf32> -> vector<2x32xf32>
    %197 = arith.addf %193, %196 : vector<2x32xf32>
    %198 = arith.negf %197 : vector<2x32xf32>
    %199 = math.exp %198 : vector<2x32xf32>
    %cst_38 = arith.constant 1.000000e+00 : f32
    %200 = vector.broadcast %cst_38 : f32 to vector<2x32xf32>
    %201 = arith.addf %200, %199 : vector<2x32xf32>
    %202 = arith.divf %200, %201 : vector<2x32xf32>
    %203 = vector.extract_strided_slice %20 {offsets = [0, 4, 0], sizes = [2, 1, 32], strides = [1, 1, 1]} : vector<2x8x32xf32> to vector<2x1x32xf32>
    %204 = vector.shape_cast %203 : vector<2x1x32xf32> to vector<2x32xf32>
    %205 = vector.extract_strided_slice %2 {offsets = [1, 0, 0], sizes = [1, 32, 32], strides = [1, 1, 1]} : vector<4x32x32xf32> to vector<1x32x32xf32>
    %206 = vector.shape_cast %205 : vector<1x32x32xf32> to vector<32x32xf32>
    %cst_39 = arith.constant dense<0.000000e+00> : vector<2x32xf32>
    %207 = tpu.matmul %191, %206, %cst_39 {dimension_numbers = #tpu.dot_dimension_numbers<[1], [0], [0], [1], [0, 0, 1, 1], [], []>} : vector<2x32xf32>, vector<32x32xf32>, vector<2x32xf32> -> vector<2x32xf32>
    %208 = arith.addf %204, %207 : vector<2x32xf32>
    %209 = arith.negf %208 : vector<2x32xf32>
    %210 = math.exp %209 : vector<2x32xf32>
    %cst_40 = arith.constant 1.000000e+00 : f32
    %211 = vector.broadcast %cst_40 : f32 to vector<2x32xf32>
    %212 = arith.addf %211, %210 : vector<2x32xf32>
    %213 = arith.divf %211, %212 : vector<2x32xf32>
    %214 = vector.extract_strided_slice %28 {offsets = [0, 4, 0], sizes = [2, 1, 32], strides = [1, 1, 1]} : vector<2x8x32xf32> to vector<2x1x32xf32>
    %215 = vector.shape_cast %214 : vector<2x1x32xf32> to vector<2x32xf32>
    %216 = vector.extract_strided_slice %2 {offsets = [2, 0, 0], sizes = [1, 32, 32], strides = [1, 1, 1]} : vector<4x32x32xf32> to vector<1x32x32xf32>
    %217 = vector.shape_cast %216 : vector<1x32x32xf32> to vector<32x32xf32>
    %cst_41 = arith.constant dense<0.000000e+00> : vector<2x32xf32>
    %218 = tpu.matmul %191, %217, %cst_41 {dimension_numbers = #tpu.dot_dimension_numbers<[1], [0], [0], [1], [0, 0, 1, 1], [], []>} : vector<2x32xf32>, vector<32x32xf32>, vector<2x32xf32> -> vector<2x32xf32>
    %219 = arith.addf %215, %218 : vector<2x32xf32>
    %220 = math.tanh %219 : vector<2x32xf32>
    %221 = vector.extract_strided_slice %36 {offsets = [0, 4, 0], sizes = [2, 1, 32], strides = [1, 1, 1]} : vector<2x8x32xf32> to vector<2x1x32xf32>
    %222 = vector.shape_cast %221 : vector<2x1x32xf32> to vector<2x32xf32>
    %223 = vector.extract_strided_slice %2 {offsets = [3, 0, 0], sizes = [1, 32, 32], strides = [1, 1, 1]} : vector<4x32x32xf32> to vector<1x32x32xf32>
    %224 = vector.shape_cast %223 : vector<1x32x32xf32> to vector<32x32xf32>
    %cst_42 = arith.constant dense<0.000000e+00> : vector<2x32xf32>
    %225 = tpu.matmul %191, %224, %cst_42 {dimension_numbers = #tpu.dot_dimension_numbers<[1], [0], [0], [1], [0, 0, 1, 1], [], []>} : vector<2x32xf32>, vector<32x32xf32>, vector<2x32xf32> -> vector<2x32xf32>
    %226 = arith.addf %222, %225 : vector<2x32xf32>
    %227 = arith.negf %226 : vector<2x32xf32>
    %228 = math.exp %227 : vector<2x32xf32>
    %cst_43 = arith.constant 1.000000e+00 : f32
    %229 = vector.broadcast %cst_43 : f32 to vector<2x32xf32>
    %230 = arith.addf %229, %228 : vector<2x32xf32>
    %231 = arith.divf %229, %230 : vector<2x32xf32>
    %232 = arith.mulf %213, %189 : vector<2x32xf32>
    %233 = arith.mulf %202, %220 : vector<2x32xf32>
    %234 = arith.addf %232, %233 : vector<2x32xf32>
    %235 = math.tanh %234 : vector<2x32xf32>
    %236 = arith.mulf %231, %235 : vector<2x32xf32>
    %237 = vector.extract_strided_slice %12 {offsets = [0, 5, 0], sizes = [2, 1, 32], strides = [1, 1, 1]} : vector<2x8x32xf32> to vector<2x1x32xf32>
    %238 = vector.shape_cast %237 : vector<2x1x32xf32> to vector<2x32xf32>
    %239 = vector.extract_strided_slice %2 {offsets = [0, 0, 0], sizes = [1, 32, 32], strides = [1, 1, 1]} : vector<4x32x32xf32> to vector<1x32x32xf32>
    %240 = vector.shape_cast %239 : vector<1x32x32xf32> to vector<32x32xf32>
    %cst_44 = arith.constant dense<0.000000e+00> : vector<2x32xf32>
    %241 = tpu.matmul %236, %240, %cst_44 {dimension_numbers = #tpu.dot_dimension_numbers<[1], [0], [0], [1], [0, 0, 1, 1], [], []>} : vector<2x32xf32>, vector<32x32xf32>, vector<2x32xf32> -> vector<2x32xf32>
    %242 = arith.addf %238, %241 : vector<2x32xf32>
    %243 = arith.negf %242 : vector<2x32xf32>
    %244 = math.exp %243 : vector<2x32xf32>
    %cst_45 = arith.constant 1.000000e+00 : f32
    %245 = vector.broadcast %cst_45 : f32 to vector<2x32xf32>
    %246 = arith.addf %245, %244 : vector<2x32xf32>
    %247 = arith.divf %245, %246 : vector<2x32xf32>
    %248 = vector.extract_strided_slice %20 {offsets = [0, 5, 0], sizes = [2, 1, 32], strides = [1, 1, 1]} : vector<2x8x32xf32> to vector<2x1x32xf32>
    %249 = vector.shape_cast %248 : vector<2x1x32xf32> to vector<2x32xf32>
    %250 = vector.extract_strided_slice %2 {offsets = [1, 0, 0], sizes = [1, 32, 32], strides = [1, 1, 1]} : vector<4x32x32xf32> to vector<1x32x32xf32>
    %251 = vector.shape_cast %250 : vector<1x32x32xf32> to vector<32x32xf32>
    %cst_46 = arith.constant dense<0.000000e+00> : vector<2x32xf32>
    %252 = tpu.matmul %236, %251, %cst_46 {dimension_numbers = #tpu.dot_dimension_numbers<[1], [0], [0], [1], [0, 0, 1, 1], [], []>} : vector<2x32xf32>, vector<32x32xf32>, vector<2x32xf32> -> vector<2x32xf32>
    %253 = arith.addf %249, %252 : vector<2x32xf32>
    %254 = arith.negf %253 : vector<2x32xf32>
    %255 = math.exp %254 : vector<2x32xf32>
    %cst_47 = arith.constant 1.000000e+00 : f32
    %256 = vector.broadcast %cst_47 : f32 to vector<2x32xf32>
    %257 = arith.addf %256, %255 : vector<2x32xf32>
    %258 = arith.divf %256, %257 : vector<2x32xf32>
    %259 = vector.extract_strided_slice %28 {offsets = [0, 5, 0], sizes = [2, 1, 32], strides = [1, 1, 1]} : vector<2x8x32xf32> to vector<2x1x32xf32>
    %260 = vector.shape_cast %259 : vector<2x1x32xf32> to vector<2x32xf32>
    %261 = vector.extract_strided_slice %2 {offsets = [2, 0, 0], sizes = [1, 32, 32], strides = [1, 1, 1]} : vector<4x32x32xf32> to vector<1x32x32xf32>
    %262 = vector.shape_cast %261 : vector<1x32x32xf32> to vector<32x32xf32>
    %cst_48 = arith.constant dense<0.000000e+00> : vector<2x32xf32>
    %263 = tpu.matmul %236, %262, %cst_48 {dimension_numbers = #tpu.dot_dimension_numbers<[1], [0], [0], [1], [0, 0, 1, 1], [], []>} : vector<2x32xf32>, vector<32x32xf32>, vector<2x32xf32> -> vector<2x32xf32>
    %264 = arith.addf %260, %263 : vector<2x32xf32>
    %265 = math.tanh %264 : vector<2x32xf32>
    %266 = vector.extract_strided_slice %36 {offsets = [0, 5, 0], sizes = [2, 1, 32], strides = [1, 1, 1]} : vector<2x8x32xf32> to vector<2x1x32xf32>
    %267 = vector.shape_cast %266 : vector<2x1x32xf32> to vector<2x32xf32>
    %268 = vector.extract_strided_slice %2 {offsets = [3, 0, 0], sizes = [1, 32, 32], strides = [1, 1, 1]} : vector<4x32x32xf32> to vector<1x32x32xf32>
    %269 = vector.shape_cast %268 : vector<1x32x32xf32> to vector<32x32xf32>
    %cst_49 = arith.constant dense<0.000000e+00> : vector<2x32xf32>
    %270 = tpu.matmul %236, %269, %cst_49 {dimension_numbers = #tpu.dot_dimension_numbers<[1], [0], [0], [1], [0, 0, 1, 1], [], []>} : vector<2x32xf32>, vector<32x32xf32>, vector<2x32xf32> -> vector<2x32xf32>
    %271 = arith.addf %267, %270 : vector<2x32xf32>
    %272 = arith.negf %271 : vector<2x32xf32>
    %273 = math.exp %272 : vector<2x32xf32>
    %cst_50 = arith.constant 1.000000e+00 : f32
    %274 = vector.broadcast %cst_50 : f32 to vector<2x32xf32>
    %275 = arith.addf %274, %273 : vector<2x32xf32>
    %276 = arith.divf %274, %275 : vector<2x32xf32>
    %277 = arith.mulf %258, %234 : vector<2x32xf32>
    %278 = arith.mulf %247, %265 : vector<2x32xf32>
    %279 = arith.addf %277, %278 : vector<2x32xf32>
    %280 = math.tanh %279 : vector<2x32xf32>
    %281 = arith.mulf %276, %280 : vector<2x32xf32>
    %282 = vector.extract_strided_slice %12 {offsets = [0, 6, 0], sizes = [2, 1, 32], strides = [1, 1, 1]} : vector<2x8x32xf32> to vector<2x1x32xf32>
    %283 = vector.shape_cast %282 : vector<2x1x32xf32> to vector<2x32xf32>
    %284 = vector.extract_strided_slice %2 {offsets = [0, 0, 0], sizes = [1, 32, 32], strides = [1, 1, 1]} : vector<4x32x32xf32> to vector<1x32x32xf32>
    %285 = vector.shape_cast %284 : vector<1x32x32xf32> to vector<32x32xf32>
    %cst_51 = arith.constant dense<0.000000e+00> : vector<2x32xf32>
    %286 = tpu.matmul %281, %285, %cst_51 {dimension_numbers = #tpu.dot_dimension_numbers<[1], [0], [0], [1], [0, 0, 1, 1], [], []>} : vector<2x32xf32>, vector<32x32xf32>, vector<2x32xf32> -> vector<2x32xf32>
    %287 = arith.addf %283, %286 : vector<2x32xf32>
    %288 = arith.negf %287 : vector<2x32xf32>
    %289 = math.exp %288 : vector<2x32xf32>
    %cst_52 = arith.constant 1.000000e+00 : f32
    %290 = vector.broadcast %cst_52 : f32 to vector<2x32xf32>
    %291 = arith.addf %290, %289 : vector<2x32xf32>
    %292 = arith.divf %290, %291 : vector<2x32xf32>
    %293 = vector.extract_strided_slice %20 {offsets = [0, 6, 0], sizes = [2, 1, 32], strides = [1, 1, 1]} : vector<2x8x32xf32> to vector<2x1x32xf32>
    %294 = vector.shape_cast %293 : vector<2x1x32xf32> to vector<2x32xf32>
    %295 = vector.extract_strided_slice %2 {offsets = [1, 0, 0], sizes = [1, 32, 32], strides = [1, 1, 1]} : vector<4x32x32xf32> to vector<1x32x32xf32>
    %296 = vector.shape_cast %295 : vector<1x32x32xf32> to vector<32x32xf32>
    %cst_53 = arith.constant dense<0.000000e+00> : vector<2x32xf32>
    %297 = tpu.matmul %281, %296, %cst_53 {dimension_numbers = #tpu.dot_dimension_numbers<[1], [0], [0], [1], [0, 0, 1, 1], [], []>} : vector<2x32xf32>, vector<32x32xf32>, vector<2x32xf32> -> vector<2x32xf32>
    %298 = arith.addf %294, %297 : vector<2x32xf32>
    %299 = arith.negf %298 : vector<2x32xf32>
    %300 = math.exp %299 : vector<2x32xf32>
    %cst_54 = arith.constant 1.000000e+00 : f32
    %301 = vector.broadcast %cst_54 : f32 to vector<2x32xf32>
    %302 = arith.addf %301, %300 : vector<2x32xf32>
    %303 = arith.divf %301, %302 : vector<2x32xf32>
    %304 = vector.extract_strided_slice %28 {offsets = [0, 6, 0], sizes = [2, 1, 32], strides = [1, 1, 1]} : vector<2x8x32xf32> to vector<2x1x32xf32>
    %305 = vector.shape_cast %304 : vector<2x1x32xf32> to vector<2x32xf32>
    %306 = vector.extract_strided_slice %2 {offsets = [2, 0, 0], sizes = [1, 32, 32], strides = [1, 1, 1]} : vector<4x32x32xf32> to vector<1x32x32xf32>
    %307 = vector.shape_cast %306 : vector<1x32x32xf32> to vector<32x32xf32>
    %cst_55 = arith.constant dense<0.000000e+00> : vector<2x32xf32>
    %308 = tpu.matmul %281, %307, %cst_55 {dimension_numbers = #tpu.dot_dimension_numbers<[1], [0], [0], [1], [0, 0, 1, 1], [], []>} : vector<2x32xf32>, vector<32x32xf32>, vector<2x32xf32> -> vector<2x32xf32>
    %309 = arith.addf %305, %308 : vector<2x32xf32>
    %310 = math.tanh %309 : vector<2x32xf32>
    %311 = vector.extract_strided_slice %36 {offsets = [0, 6, 0], sizes = [2, 1, 32], strides = [1, 1, 1]} : vector<2x8x32xf32> to vector<2x1x32xf32>
    %312 = vector.shape_cast %311 : vector<2x1x32xf32> to vector<2x32xf32>
    %313 = vector.extract_strided_slice %2 {offsets = [3, 0, 0], sizes = [1, 32, 32], strides = [1, 1, 1]} : vector<4x32x32xf32> to vector<1x32x32xf32>
    %314 = vector.shape_cast %313 : vector<1x32x32xf32> to vector<32x32xf32>
    %cst_56 = arith.constant dense<0.000000e+00> : vector<2x32xf32>
    %315 = tpu.matmul %281, %314, %cst_56 {dimension_numbers = #tpu.dot_dimension_numbers<[1], [0], [0], [1], [0, 0, 1, 1], [], []>} : vector<2x32xf32>, vector<32x32xf32>, vector<2x32xf32> -> vector<2x32xf32>
    %316 = arith.addf %312, %315 : vector<2x32xf32>
    %317 = arith.negf %316 : vector<2x32xf32>
    %318 = math.exp %317 : vector<2x32xf32>
    %cst_57 = arith.constant 1.000000e+00 : f32
    %319 = vector.broadcast %cst_57 : f32 to vector<2x32xf32>
    %320 = arith.addf %319, %318 : vector<2x32xf32>
    %321 = arith.divf %319, %320 : vector<2x32xf32>
    %322 = arith.mulf %303, %279 : vector<2x32xf32>
    %323 = arith.mulf %292, %310 : vector<2x32xf32>
    %324 = arith.addf %322, %323 : vector<2x32xf32>
    %325 = math.tanh %324 : vector<2x32xf32>
    %326 = arith.mulf %321, %325 : vector<2x32xf32>
    %327 = vector.extract_strided_slice %12 {offsets = [0, 7, 0], sizes = [2, 1, 32], strides = [1, 1, 1]} : vector<2x8x32xf32> to vector<2x1x32xf32>
    %328 = vector.shape_cast %327 : vector<2x1x32xf32> to vector<2x32xf32>
    %329 = vector.extract_strided_slice %2 {offsets = [0, 0, 0], sizes = [1, 32, 32], strides = [1, 1, 1]} : vector<4x32x32xf32> to vector<1x32x32xf32>
    %330 = vector.shape_cast %329 : vector<1x32x32xf32> to vector<32x32xf32>
    %cst_58 = arith.constant dense<0.000000e+00> : vector<2x32xf32>
    %331 = tpu.matmul %326, %330, %cst_58 {dimension_numbers = #tpu.dot_dimension_numbers<[1], [0], [0], [1], [0, 0, 1, 1], [], []>} : vector<2x32xf32>, vector<32x32xf32>, vector<2x32xf32> -> vector<2x32xf32>
    %332 = arith.addf %328, %331 : vector<2x32xf32>
    %333 = arith.negf %332 : vector<2x32xf32>
    %334 = math.exp %333 : vector<2x32xf32>
    %cst_59 = arith.constant 1.000000e+00 : f32
    %335 = vector.broadcast %cst_59 : f32 to vector<2x32xf32>
    %336 = arith.addf %335, %334 : vector<2x32xf32>
    %337 = arith.divf %335, %336 : vector<2x32xf32>
    %338 = vector.extract_strided_slice %20 {offsets = [0, 7, 0], sizes = [2, 1, 32], strides = [1, 1, 1]} : vector<2x8x32xf32> to vector<2x1x32xf32>
    %339 = vector.shape_cast %338 : vector<2x1x32xf32> to vector<2x32xf32>
    %340 = vector.extract_strided_slice %2 {offsets = [1, 0, 0], sizes = [1, 32, 32], strides = [1, 1, 1]} : vector<4x32x32xf32> to vector<1x32x32xf32>
    %341 = vector.shape_cast %340 : vector<1x32x32xf32> to vector<32x32xf32>
    %cst_60 = arith.constant dense<0.000000e+00> : vector<2x32xf32>
    %342 = tpu.matmul %326, %341, %cst_60 {dimension_numbers = #tpu.dot_dimension_numbers<[1], [0], [0], [1], [0, 0, 1, 1], [], []>} : vector<2x32xf32>, vector<32x32xf32>, vector<2x32xf32> -> vector<2x32xf32>
    %343 = arith.addf %339, %342 : vector<2x32xf32>
    %344 = arith.negf %343 : vector<2x32xf32>
    %345 = math.exp %344 : vector<2x32xf32>
    %cst_61 = arith.constant 1.000000e+00 : f32
    %346 = vector.broadcast %cst_61 : f32 to vector<2x32xf32>
    %347 = arith.addf %346, %345 : vector<2x32xf32>
    %348 = arith.divf %346, %347 : vector<2x32xf32>
    %349 = vector.extract_strided_slice %28 {offsets = [0, 7, 0], sizes = [2, 1, 32], strides = [1, 1, 1]} : vector<2x8x32xf32> to vector<2x1x32xf32>
    %350 = vector.shape_cast %349 : vector<2x1x32xf32> to vector<2x32xf32>
    %351 = vector.extract_strided_slice %2 {offsets = [2, 0, 0], sizes = [1, 32, 32], strides = [1, 1, 1]} : vector<4x32x32xf32> to vector<1x32x32xf32>
    %352 = vector.shape_cast %351 : vector<1x32x32xf32> to vector<32x32xf32>
    %cst_62 = arith.constant dense<0.000000e+00> : vector<2x32xf32>
    %353 = tpu.matmul %326, %352, %cst_62 {dimension_numbers = #tpu.dot_dimension_numbers<[1], [0], [0], [1], [0, 0, 1, 1], [], []>} : vector<2x32xf32>, vector<32x32xf32>, vector<2x32xf32> -> vector<2x32xf32>
    %354 = arith.addf %350, %353 : vector<2x32xf32>
    %355 = math.tanh %354 : vector<2x32xf32>
    %356 = vector.extract_strided_slice %36 {offsets = [0, 7, 0], sizes = [2, 1, 32], strides = [1, 1, 1]} : vector<2x8x32xf32> to vector<2x1x32xf32>
    %357 = vector.shape_cast %356 : vector<2x1x32xf32> to vector<2x32xf32>
    %358 = vector.extract_strided_slice %2 {offsets = [3, 0, 0], sizes = [1, 32, 32], strides = [1, 1, 1]} : vector<4x32x32xf32> to vector<1x32x32xf32>
    %359 = vector.shape_cast %358 : vector<1x32x32xf32> to vector<32x32xf32>
    %cst_63 = arith.constant dense<0.000000e+00> : vector<2x32xf32>
    %360 = tpu.matmul %326, %359, %cst_63 {dimension_numbers = #tpu.dot_dimension_numbers<[1], [0], [0], [1], [0, 0, 1, 1], [], []>} : vector<2x32xf32>, vector<32x32xf32>, vector<2x32xf32> -> vector<2x32xf32>
    %361 = arith.addf %357, %360 : vector<2x32xf32>
    %362 = arith.negf %361 : vector<2x32xf32>
    %363 = math.exp %362 : vector<2x32xf32>
    %cst_64 = arith.constant 1.000000e+00 : f32
    %364 = vector.broadcast %cst_64 : f32 to vector<2x32xf32>
    %365 = arith.addf %364, %363 : vector<2x32xf32>
    %366 = arith.divf %364, %365 : vector<2x32xf32>
    %367 = arith.mulf %348, %324 : vector<2x32xf32>
    %368 = arith.mulf %337, %355 : vector<2x32xf32>
    %369 = arith.addf %367, %368 : vector<2x32xf32>
    %370 = math.tanh %369 : vector<2x32xf32>
    %371 = arith.mulf %366, %370 : vector<2x32xf32>
    %372 = vector.shape_cast %56 : vector<2x32xf32> to vector<2x1x32xf32>
    %373 = vector.shape_cast %101 : vector<2x32xf32> to vector<2x1x32xf32>
    %374 = vector.shape_cast %146 : vector<2x32xf32> to vector<2x1x32xf32>
    %375 = vector.shape_cast %191 : vector<2x32xf32> to vector<2x1x32xf32>
    %376 = vector.shape_cast %236 : vector<2x32xf32> to vector<2x1x32xf32>
    %377 = vector.shape_cast %281 : vector<2x32xf32> to vector<2x1x32xf32>
    %378 = vector.shape_cast %326 : vector<2x32xf32> to vector<2x1x32xf32>
    %379 = vector.shape_cast %371 : vector<2x32xf32> to vector<2x1x32xf32>
    %380 = tpu.concatenate %372, %373, %374, %375, %376, %377, %378, %379 in 1 : vector<2x1x32xf32>, vector<2x1x32xf32>, vector<2x1x32xf32>, vector<2x1x32xf32>, vector<2x1x32xf32>, vector<2x1x32xf32>, vector<2x1x32xf32>, vector<2x1x32xf32> -> vector<2x8x32xf32>
    %c0_65 = arith.constant 0 : index
    %c0_66 = arith.constant 0 : index
    %c0_67 = arith.constant 0 : index
    %381 = vector.load %arg4[%c0_65, %c0_66, %c0_67] : memref<4x32x32xf32, #tpu.memory_space<vmem>>, vector<4x32x32xf32>
    %c0_68 = arith.constant 0 : index
    %c0_69 = arith.constant 0 : index
    %c0_70 = arith.constant 0 : index
    %382 = vector.load %arg5[%c0_68, %c0_69, %c0_70] : memref<4x32x32xf32, #tpu.memory_space<vmem>>, vector<4x32x32xf32>
    %c0_71 = arith.constant 0 : index
    %c0_72 = arith.constant 0 : index
    %c0_73 = arith.constant 0 : index
    %383 = vector.load %arg6[%c0_71, %c0_72, %c0_73] : memref<4x1x32xf32, #tpu.memory_space<vmem>>, vector<4x1x32xf32>
    %384 = vector.shape_cast %380 : vector<2x8x32xf32> to vector<16x32xf32>
    %385 = vector.extract_strided_slice %381 {offsets = [0, 0, 0], sizes = [1, 32, 32], strides = [1, 1, 1]} : vector<4x32x32xf32> to vector<1x32x32xf32>
    %386 = vector.shape_cast %385 : vector<1x32x32xf32> to vector<32x32xf32>
    %cst_74 = arith.constant dense<0.000000e+00> : vector<16x32xf32>
    %387 = tpu.matmul %384, %386, %cst_74 {dimension_numbers = #tpu.dot_dimension_numbers<[1], [0], [0], [1], [0, 0, 1, 1], [], []>} : vector<16x32xf32>, vector<32x32xf32>, vector<16x32xf32> -> vector<16x32xf32>
    %388 = vector.extract_strided_slice %383 {offsets = [0, 0, 0], sizes = [1, 1, 32], strides = [1, 1, 1]} : vector<4x1x32xf32> to vector<1x1x32xf32>
    %389 = vector.shape_cast %388 : vector<1x1x32xf32> to vector<1x32xf32>
    %390 = vector.broadcast %389 : vector<1x32xf32> to vector<16x32xf32>
    %391 = arith.addf %387, %390 : vector<16x32xf32>
    %392 = vector.shape_cast %391 : vector<16x32xf32> to vector<2x8x32xf32>
    %393 = vector.extract_strided_slice %381 {offsets = [1, 0, 0], sizes = [1, 32, 32], strides = [1, 1, 1]} : vector<4x32x32xf32> to vector<1x32x32xf32>
    %394 = vector.shape_cast %393 : vector<1x32x32xf32> to vector<32x32xf32>
    %cst_75 = arith.constant dense<0.000000e+00> : vector<16x32xf32>
    %395 = tpu.matmul %384, %394, %cst_75 {dimension_numbers = #tpu.dot_dimension_numbers<[1], [0], [0], [1], [0, 0, 1, 1], [], []>} : vector<16x32xf32>, vector<32x32xf32>, vector<16x32xf32> -> vector<16x32xf32>
    %396 = vector.extract_strided_slice %383 {offsets = [1, 0, 0], sizes = [1, 1, 32], strides = [1, 1, 1]} : vector<4x1x32xf32> to vector<1x1x32xf32>
    %397 = vector.shape_cast %396 : vector<1x1x32xf32> to vector<1x32xf32>
    %398 = vector.broadcast %397 : vector<1x32xf32> to vector<16x32xf32>
    %399 = arith.addf %395, %398 : vector<16x32xf32>
    %400 = vector.shape_cast %399 : vector<16x32xf32> to vector<2x8x32xf32>
    %401 = vector.extract_strided_slice %381 {offsets = [2, 0, 0], sizes = [1, 32, 32], strides = [1, 1, 1]} : vector<4x32x32xf32> to vector<1x32x32xf32>
    %402 = vector.shape_cast %401 : vector<1x32x32xf32> to vector<32x32xf32>
    %cst_76 = arith.constant dense<0.000000e+00> : vector<16x32xf32>
    %403 = tpu.matmul %384, %402, %cst_76 {dimension_numbers = #tpu.dot_dimension_numbers<[1], [0], [0], [1], [0, 0, 1, 1], [], []>} : vector<16x32xf32>, vector<32x32xf32>, vector<16x32xf32> -> vector<16x32xf32>
    %404 = vector.extract_strided_slice %383 {offsets = [2, 0, 0], sizes = [1, 1, 32], strides = [1, 1, 1]} : vector<4x1x32xf32> to vector<1x1x32xf32>
    %405 = vector.shape_cast %404 : vector<1x1x32xf32> to vector<1x32xf32>
    %406 = vector.broadcast %405 : vector<1x32xf32> to vector<16x32xf32>
    %407 = arith.addf %403, %406 : vector<16x32xf32>
    %408 = vector.shape_cast %407 : vector<16x32xf32> to vector<2x8x32xf32>
    %409 = vector.extract_strided_slice %381 {offsets = [3, 0, 0], sizes = [1, 32, 32], strides = [1, 1, 1]} : vector<4x32x32xf32> to vector<1x32x32xf32>
    %410 = vector.shape_cast %409 : vector<1x32x32xf32> to vector<32x32xf32>
    %cst_77 = arith.constant dense<0.000000e+00> : vector<16x32xf32>
    %411 = tpu.matmul %384, %410, %cst_77 {dimension_numbers = #tpu.dot_dimension_numbers<[1], [0], [0], [1], [0, 0, 1, 1], [], []>} : vector<16x32xf32>, vector<32x32xf32>, vector<16x32xf32> -> vector<16x32xf32>
    %412 = vector.extract_strided_slice %383 {offsets = [3, 0, 0], sizes = [1, 1, 32], strides = [1, 1, 1]} : vector<4x1x32xf32> to vector<1x1x32xf32>
    %413 = vector.shape_cast %412 : vector<1x1x32xf32> to vector<1x32xf32>
    %414 = vector.broadcast %413 : vector<1x32xf32> to vector<16x32xf32>
    %415 = arith.addf %411, %414 : vector<16x32xf32>
    %416 = vector.shape_cast %415 : vector<16x32xf32> to vector<2x8x32xf32>
    %417 = vector.extract_strided_slice %392 {offsets = [0, 0, 0], sizes = [2, 1, 32], strides = [1, 1, 1]} : vector<2x8x32xf32> to vector<2x1x32xf32>
    %418 = vector.shape_cast %417 : vector<2x1x32xf32> to vector<2x32xf32>
    %419 = arith.negf %418 : vector<2x32xf32>
    %420 = math.exp %419 : vector<2x32xf32>
    %cst_78 = arith.constant 1.000000e+00 : f32
    %421 = vector.broadcast %cst_78 : f32 to vector<2x32xf32>
    %422 = arith.addf %421, %420 : vector<2x32xf32>
    %423 = arith.divf %421, %422 : vector<2x32xf32>
    %424 = vector.extract_strided_slice %408 {offsets = [0, 0, 0], sizes = [2, 1, 32], strides = [1, 1, 1]} : vector<2x8x32xf32> to vector<2x1x32xf32>
    %425 = vector.shape_cast %424 : vector<2x1x32xf32> to vector<2x32xf32>
    %426 = math.tanh %425 : vector<2x32xf32>
    %427 = arith.mulf %423, %426 : vector<2x32xf32>
    %428 = vector.extract_strided_slice %416 {offsets = [0, 0, 0], sizes = [2, 1, 32], strides = [1, 1, 1]} : vector<2x8x32xf32> to vector<2x1x32xf32>
    %429 = vector.shape_cast %428 : vector<2x1x32xf32> to vector<2x32xf32>
    %430 = arith.negf %429 : vector<2x32xf32>
    %431 = math.exp %430 : vector<2x32xf32>
    %cst_79 = arith.constant 1.000000e+00 : f32
    %432 = vector.broadcast %cst_79 : f32 to vector<2x32xf32>
    %433 = arith.addf %432, %431 : vector<2x32xf32>
    %434 = arith.divf %432, %433 : vector<2x32xf32>
    %435 = math.tanh %427 : vector<2x32xf32>
    %436 = arith.mulf %434, %435 : vector<2x32xf32>
    %437 = vector.extract_strided_slice %392 {offsets = [0, 1, 0], sizes = [2, 1, 32], strides = [1, 1, 1]} : vector<2x8x32xf32> to vector<2x1x32xf32>
    %438 = vector.shape_cast %437 : vector<2x1x32xf32> to vector<2x32xf32>
    %439 = vector.extract_strided_slice %382 {offsets = [0, 0, 0], sizes = [1, 32, 32], strides = [1, 1, 1]} : vector<4x32x32xf32> to vector<1x32x32xf32>
    %440 = vector.shape_cast %439 : vector<1x32x32xf32> to vector<32x32xf32>
    %cst_80 = arith.constant dense<0.000000e+00> : vector<2x32xf32>
    %441 = tpu.matmul %436, %440, %cst_80 {dimension_numbers = #tpu.dot_dimension_numbers<[1], [0], [0], [1], [0, 0, 1, 1], [], []>} : vector<2x32xf32>, vector<32x32xf32>, vector<2x32xf32> -> vector<2x32xf32>
    %442 = arith.addf %438, %441 : vector<2x32xf32>
    %443 = arith.negf %442 : vector<2x32xf32>
    %444 = math.exp %443 : vector<2x32xf32>
    %cst_81 = arith.constant 1.000000e+00 : f32
    %445 = vector.broadcast %cst_81 : f32 to vector<2x32xf32>
    %446 = arith.addf %445, %444 : vector<2x32xf32>
    %447 = arith.divf %445, %446 : vector<2x32xf32>
    %448 = vector.extract_strided_slice %400 {offsets = [0, 1, 0], sizes = [2, 1, 32], strides = [1, 1, 1]} : vector<2x8x32xf32> to vector<2x1x32xf32>
    %449 = vector.shape_cast %448 : vector<2x1x32xf32> to vector<2x32xf32>
    %450 = vector.extract_strided_slice %382 {offsets = [1, 0, 0], sizes = [1, 32, 32], strides = [1, 1, 1]} : vector<4x32x32xf32> to vector<1x32x32xf32>
    %451 = vector.shape_cast %450 : vector<1x32x32xf32> to vector<32x32xf32>
    %cst_82 = arith.constant dense<0.000000e+00> : vector<2x32xf32>
    %452 = tpu.matmul %436, %451, %cst_82 {dimension_numbers = #tpu.dot_dimension_numbers<[1], [0], [0], [1], [0, 0, 1, 1], [], []>} : vector<2x32xf32>, vector<32x32xf32>, vector<2x32xf32> -> vector<2x32xf32>
    %453 = arith.addf %449, %452 : vector<2x32xf32>
    %454 = arith.negf %453 : vector<2x32xf32>
    %455 = math.exp %454 : vector<2x32xf32>
    %cst_83 = arith.constant 1.000000e+00 : f32
    %456 = vector.broadcast %cst_83 : f32 to vector<2x32xf32>
    %457 = arith.addf %456, %455 : vector<2x32xf32>
    %458 = arith.divf %456, %457 : vector<2x32xf32>
    %459 = vector.extract_strided_slice %408 {offsets = [0, 1, 0], sizes = [2, 1, 32], strides = [1, 1, 1]} : vector<2x8x32xf32> to vector<2x1x32xf32>
    %460 = vector.shape_cast %459 : vector<2x1x32xf32> to vector<2x32xf32>
    %461 = vector.extract_strided_slice %382 {offsets = [2, 0, 0], sizes = [1, 32, 32], strides = [1, 1, 1]} : vector<4x32x32xf32> to vector<1x32x32xf32>
    %462 = vector.shape_cast %461 : vector<1x32x32xf32> to vector<32x32xf32>
    %cst_84 = arith.constant dense<0.000000e+00> : vector<2x32xf32>
    %463 = tpu.matmul %436, %462, %cst_84 {dimension_numbers = #tpu.dot_dimension_numbers<[1], [0], [0], [1], [0, 0, 1, 1], [], []>} : vector<2x32xf32>, vector<32x32xf32>, vector<2x32xf32> -> vector<2x32xf32>
    %464 = arith.addf %460, %463 : vector<2x32xf32>
    %465 = math.tanh %464 : vector<2x32xf32>
    %466 = vector.extract_strided_slice %416 {offsets = [0, 1, 0], sizes = [2, 1, 32], strides = [1, 1, 1]} : vector<2x8x32xf32> to vector<2x1x32xf32>
    %467 = vector.shape_cast %466 : vector<2x1x32xf32> to vector<2x32xf32>
    %468 = vector.extract_strided_slice %382 {offsets = [3, 0, 0], sizes = [1, 32, 32], strides = [1, 1, 1]} : vector<4x32x32xf32> to vector<1x32x32xf32>
    %469 = vector.shape_cast %468 : vector<1x32x32xf32> to vector<32x32xf32>
    %cst_85 = arith.constant dense<0.000000e+00> : vector<2x32xf32>
    %470 = tpu.matmul %436, %469, %cst_85 {dimension_numbers = #tpu.dot_dimension_numbers<[1], [0], [0], [1], [0, 0, 1, 1], [], []>} : vector<2x32xf32>, vector<32x32xf32>, vector<2x32xf32> -> vector<2x32xf32>
    %471 = arith.addf %467, %470 : vector<2x32xf32>
    %472 = arith.negf %471 : vector<2x32xf32>
    %473 = math.exp %472 : vector<2x32xf32>
    %cst_86 = arith.constant 1.000000e+00 : f32
    %474 = vector.broadcast %cst_86 : f32 to vector<2x32xf32>
    %475 = arith.addf %474, %473 : vector<2x32xf32>
    %476 = arith.divf %474, %475 : vector<2x32xf32>
    %477 = arith.mulf %458, %427 : vector<2x32xf32>
    %478 = arith.mulf %447, %465 : vector<2x32xf32>
    %479 = arith.addf %477, %478 : vector<2x32xf32>
    %480 = math.tanh %479 : vector<2x32xf32>
    %481 = arith.mulf %476, %480 : vector<2x32xf32>
    %482 = vector.extract_strided_slice %392 {offsets = [0, 2, 0], sizes = [2, 1, 32], strides = [1, 1, 1]} : vector<2x8x32xf32> to vector<2x1x32xf32>
    %483 = vector.shape_cast %482 : vector<2x1x32xf32> to vector<2x32xf32>
    %484 = vector.extract_strided_slice %382 {offsets = [0, 0, 0], sizes = [1, 32, 32], strides = [1, 1, 1]} : vector<4x32x32xf32> to vector<1x32x32xf32>
    %485 = vector.shape_cast %484 : vector<1x32x32xf32> to vector<32x32xf32>
    %cst_87 = arith.constant dense<0.000000e+00> : vector<2x32xf32>
    %486 = tpu.matmul %481, %485, %cst_87 {dimension_numbers = #tpu.dot_dimension_numbers<[1], [0], [0], [1], [0, 0, 1, 1], [], []>} : vector<2x32xf32>, vector<32x32xf32>, vector<2x32xf32> -> vector<2x32xf32>
    %487 = arith.addf %483, %486 : vector<2x32xf32>
    %488 = arith.negf %487 : vector<2x32xf32>
    %489 = math.exp %488 : vector<2x32xf32>
    %cst_88 = arith.constant 1.000000e+00 : f32
    %490 = vector.broadcast %cst_88 : f32 to vector<2x32xf32>
    %491 = arith.addf %490, %489 : vector<2x32xf32>
    %492 = arith.divf %490, %491 : vector<2x32xf32>
    %493 = vector.extract_strided_slice %400 {offsets = [0, 2, 0], sizes = [2, 1, 32], strides = [1, 1, 1]} : vector<2x8x32xf32> to vector<2x1x32xf32>
    %494 = vector.shape_cast %493 : vector<2x1x32xf32> to vector<2x32xf32>
    %495 = vector.extract_strided_slice %382 {offsets = [1, 0, 0], sizes = [1, 32, 32], strides = [1, 1, 1]} : vector<4x32x32xf32> to vector<1x32x32xf32>
    %496 = vector.shape_cast %495 : vector<1x32x32xf32> to vector<32x32xf32>
    %cst_89 = arith.constant dense<0.000000e+00> : vector<2x32xf32>
    %497 = tpu.matmul %481, %496, %cst_89 {dimension_numbers = #tpu.dot_dimension_numbers<[1], [0], [0], [1], [0, 0, 1, 1], [], []>} : vector<2x32xf32>, vector<32x32xf32>, vector<2x32xf32> -> vector<2x32xf32>
    %498 = arith.addf %494, %497 : vector<2x32xf32>
    %499 = arith.negf %498 : vector<2x32xf32>
    %500 = math.exp %499 : vector<2x32xf32>
    %cst_90 = arith.constant 1.000000e+00 : f32
    %501 = vector.broadcast %cst_90 : f32 to vector<2x32xf32>
    %502 = arith.addf %501, %500 : vector<2x32xf32>
    %503 = arith.divf %501, %502 : vector<2x32xf32>
    %504 = vector.extract_strided_slice %408 {offsets = [0, 2, 0], sizes = [2, 1, 32], strides = [1, 1, 1]} : vector<2x8x32xf32> to vector<2x1x32xf32>
    %505 = vector.shape_cast %504 : vector<2x1x32xf32> to vector<2x32xf32>
    %506 = vector.extract_strided_slice %382 {offsets = [2, 0, 0], sizes = [1, 32, 32], strides = [1, 1, 1]} : vector<4x32x32xf32> to vector<1x32x32xf32>
    %507 = vector.shape_cast %506 : vector<1x32x32xf32> to vector<32x32xf32>
    %cst_91 = arith.constant dense<0.000000e+00> : vector<2x32xf32>
    %508 = tpu.matmul %481, %507, %cst_91 {dimension_numbers = #tpu.dot_dimension_numbers<[1], [0], [0], [1], [0, 0, 1, 1], [], []>} : vector<2x32xf32>, vector<32x32xf32>, vector<2x32xf32> -> vector<2x32xf32>
    %509 = arith.addf %505, %508 : vector<2x32xf32>
    %510 = math.tanh %509 : vector<2x32xf32>
    %511 = vector.extract_strided_slice %416 {offsets = [0, 2, 0], sizes = [2, 1, 32], strides = [1, 1, 1]} : vector<2x8x32xf32> to vector<2x1x32xf32>
    %512 = vector.shape_cast %511 : vector<2x1x32xf32> to vector<2x32xf32>
    %513 = vector.extract_strided_slice %382 {offsets = [3, 0, 0], sizes = [1, 32, 32], strides = [1, 1, 1]} : vector<4x32x32xf32> to vector<1x32x32xf32>
    %514 = vector.shape_cast %513 : vector<1x32x32xf32> to vector<32x32xf32>
    %cst_92 = arith.constant dense<0.000000e+00> : vector<2x32xf32>
    %515 = tpu.matmul %481, %514, %cst_92 {dimension_numbers = #tpu.dot_dimension_numbers<[1], [0], [0], [1], [0, 0, 1, 1], [], []>} : vector<2x32xf32>, vector<32x32xf32>, vector<2x32xf32> -> vector<2x32xf32>
    %516 = arith.addf %512, %515 : vector<2x32xf32>
    %517 = arith.negf %516 : vector<2x32xf32>
    %518 = math.exp %517 : vector<2x32xf32>
    %cst_93 = arith.constant 1.000000e+00 : f32
    %519 = vector.broadcast %cst_93 : f32 to vector<2x32xf32>
    %520 = arith.addf %519, %518 : vector<2x32xf32>
    %521 = arith.divf %519, %520 : vector<2x32xf32>
    %522 = arith.mulf %503, %479 : vector<2x32xf32>
    %523 = arith.mulf %492, %510 : vector<2x32xf32>
    %524 = arith.addf %522, %523 : vector<2x32xf32>
    %525 = math.tanh %524 : vector<2x32xf32>
    %526 = arith.mulf %521, %525 : vector<2x32xf32>
    %527 = vector.extract_strided_slice %392 {offsets = [0, 3, 0], sizes = [2, 1, 32], strides = [1, 1, 1]} : vector<2x8x32xf32> to vector<2x1x32xf32>
    %528 = vector.shape_cast %527 : vector<2x1x32xf32> to vector<2x32xf32>
    %529 = vector.extract_strided_slice %382 {offsets = [0, 0, 0], sizes = [1, 32, 32], strides = [1, 1, 1]} : vector<4x32x32xf32> to vector<1x32x32xf32>
    %530 = vector.shape_cast %529 : vector<1x32x32xf32> to vector<32x32xf32>
    %cst_94 = arith.constant dense<0.000000e+00> : vector<2x32xf32>
    %531 = tpu.matmul %526, %530, %cst_94 {dimension_numbers = #tpu.dot_dimension_numbers<[1], [0], [0], [1], [0, 0, 1, 1], [], []>} : vector<2x32xf32>, vector<32x32xf32>, vector<2x32xf32> -> vector<2x32xf32>
    %532 = arith.addf %528, %531 : vector<2x32xf32>
    %533 = arith.negf %532 : vector<2x32xf32>
    %534 = math.exp %533 : vector<2x32xf32>
    %cst_95 = arith.constant 1.000000e+00 : f32
    %535 = vector.broadcast %cst_95 : f32 to vector<2x32xf32>
    %536 = arith.addf %535, %534 : vector<2x32xf32>
    %537 = arith.divf %535, %536 : vector<2x32xf32>
    %538 = vector.extract_strided_slice %400 {offsets = [0, 3, 0], sizes = [2, 1, 32], strides = [1, 1, 1]} : vector<2x8x32xf32> to vector<2x1x32xf32>
    %539 = vector.shape_cast %538 : vector<2x1x32xf32> to vector<2x32xf32>
    %540 = vector.extract_strided_slice %382 {offsets = [1, 0, 0], sizes = [1, 32, 32], strides = [1, 1, 1]} : vector<4x32x32xf32> to vector<1x32x32xf32>
    %541 = vector.shape_cast %540 : vector<1x32x32xf32> to vector<32x32xf32>
    %cst_96 = arith.constant dense<0.000000e+00> : vector<2x32xf32>
    %542 = tpu.matmul %526, %541, %cst_96 {dimension_numbers = #tpu.dot_dimension_numbers<[1], [0], [0], [1], [0, 0, 1, 1], [], []>} : vector<2x32xf32>, vector<32x32xf32>, vector<2x32xf32> -> vector<2x32xf32>
    %543 = arith.addf %539, %542 : vector<2x32xf32>
    %544 = arith.negf %543 : vector<2x32xf32>
    %545 = math.exp %544 : vector<2x32xf32>
    %cst_97 = arith.constant 1.000000e+00 : f32
    %546 = vector.broadcast %cst_97 : f32 to vector<2x32xf32>
    %547 = arith.addf %546, %545 : vector<2x32xf32>
    %548 = arith.divf %546, %547 : vector<2x32xf32>
    %549 = vector.extract_strided_slice %408 {offsets = [0, 3, 0], sizes = [2, 1, 32], strides = [1, 1, 1]} : vector<2x8x32xf32> to vector<2x1x32xf32>
    %550 = vector.shape_cast %549 : vector<2x1x32xf32> to vector<2x32xf32>
    %551 = vector.extract_strided_slice %382 {offsets = [2, 0, 0], sizes = [1, 32, 32], strides = [1, 1, 1]} : vector<4x32x32xf32> to vector<1x32x32xf32>
    %552 = vector.shape_cast %551 : vector<1x32x32xf32> to vector<32x32xf32>
    %cst_98 = arith.constant dense<0.000000e+00> : vector<2x32xf32>
    %553 = tpu.matmul %526, %552, %cst_98 {dimension_numbers = #tpu.dot_dimension_numbers<[1], [0], [0], [1], [0, 0, 1, 1], [], []>} : vector<2x32xf32>, vector<32x32xf32>, vector<2x32xf32> -> vector<2x32xf32>
    %554 = arith.addf %550, %553 : vector<2x32xf32>
    %555 = math.tanh %554 : vector<2x32xf32>
    %556 = vector.extract_strided_slice %416 {offsets = [0, 3, 0], sizes = [2, 1, 32], strides = [1, 1, 1]} : vector<2x8x32xf32> to vector<2x1x32xf32>
    %557 = vector.shape_cast %556 : vector<2x1x32xf32> to vector<2x32xf32>
    %558 = vector.extract_strided_slice %382 {offsets = [3, 0, 0], sizes = [1, 32, 32], strides = [1, 1, 1]} : vector<4x32x32xf32> to vector<1x32x32xf32>
    %559 = vector.shape_cast %558 : vector<1x32x32xf32> to vector<32x32xf32>
    %cst_99 = arith.constant dense<0.000000e+00> : vector<2x32xf32>
    %560 = tpu.matmul %526, %559, %cst_99 {dimension_numbers = #tpu.dot_dimension_numbers<[1], [0], [0], [1], [0, 0, 1, 1], [], []>} : vector<2x32xf32>, vector<32x32xf32>, vector<2x32xf32> -> vector<2x32xf32>
    %561 = arith.addf %557, %560 : vector<2x32xf32>
    %562 = arith.negf %561 : vector<2x32xf32>
    %563 = math.exp %562 : vector<2x32xf32>
    %cst_100 = arith.constant 1.000000e+00 : f32
    %564 = vector.broadcast %cst_100 : f32 to vector<2x32xf32>
    %565 = arith.addf %564, %563 : vector<2x32xf32>
    %566 = arith.divf %564, %565 : vector<2x32xf32>
    %567 = arith.mulf %548, %524 : vector<2x32xf32>
    %568 = arith.mulf %537, %555 : vector<2x32xf32>
    %569 = arith.addf %567, %568 : vector<2x32xf32>
    %570 = math.tanh %569 : vector<2x32xf32>
    %571 = arith.mulf %566, %570 : vector<2x32xf32>
    %572 = vector.extract_strided_slice %392 {offsets = [0, 4, 0], sizes = [2, 1, 32], strides = [1, 1, 1]} : vector<2x8x32xf32> to vector<2x1x32xf32>
    %573 = vector.shape_cast %572 : vector<2x1x32xf32> to vector<2x32xf32>
    %574 = vector.extract_strided_slice %382 {offsets = [0, 0, 0], sizes = [1, 32, 32], strides = [1, 1, 1]} : vector<4x32x32xf32> to vector<1x32x32xf32>
    %575 = vector.shape_cast %574 : vector<1x32x32xf32> to vector<32x32xf32>
    %cst_101 = arith.constant dense<0.000000e+00> : vector<2x32xf32>
    %576 = tpu.matmul %571, %575, %cst_101 {dimension_numbers = #tpu.dot_dimension_numbers<[1], [0], [0], [1], [0, 0, 1, 1], [], []>} : vector<2x32xf32>, vector<32x32xf32>, vector<2x32xf32> -> vector<2x32xf32>
    %577 = arith.addf %573, %576 : vector<2x32xf32>
    %578 = arith.negf %577 : vector<2x32xf32>
    %579 = math.exp %578 : vector<2x32xf32>
    %cst_102 = arith.constant 1.000000e+00 : f32
    %580 = vector.broadcast %cst_102 : f32 to vector<2x32xf32>
    %581 = arith.addf %580, %579 : vector<2x32xf32>
    %582 = arith.divf %580, %581 : vector<2x32xf32>
    %583 = vector.extract_strided_slice %400 {offsets = [0, 4, 0], sizes = [2, 1, 32], strides = [1, 1, 1]} : vector<2x8x32xf32> to vector<2x1x32xf32>
    %584 = vector.shape_cast %583 : vector<2x1x32xf32> to vector<2x32xf32>
    %585 = vector.extract_strided_slice %382 {offsets = [1, 0, 0], sizes = [1, 32, 32], strides = [1, 1, 1]} : vector<4x32x32xf32> to vector<1x32x32xf32>
    %586 = vector.shape_cast %585 : vector<1x32x32xf32> to vector<32x32xf32>
    %cst_103 = arith.constant dense<0.000000e+00> : vector<2x32xf32>
    %587 = tpu.matmul %571, %586, %cst_103 {dimension_numbers = #tpu.dot_dimension_numbers<[1], [0], [0], [1], [0, 0, 1, 1], [], []>} : vector<2x32xf32>, vector<32x32xf32>, vector<2x32xf32> -> vector<2x32xf32>
    %588 = arith.addf %584, %587 : vector<2x32xf32>
    %589 = arith.negf %588 : vector<2x32xf32>
    %590 = math.exp %589 : vector<2x32xf32>
    %cst_104 = arith.constant 1.000000e+00 : f32
    %591 = vector.broadcast %cst_104 : f32 to vector<2x32xf32>
    %592 = arith.addf %591, %590 : vector<2x32xf32>
    %593 = arith.divf %591, %592 : vector<2x32xf32>
    %594 = vector.extract_strided_slice %408 {offsets = [0, 4, 0], sizes = [2, 1, 32], strides = [1, 1, 1]} : vector<2x8x32xf32> to vector<2x1x32xf32>
    %595 = vector.shape_cast %594 : vector<2x1x32xf32> to vector<2x32xf32>
    %596 = vector.extract_strided_slice %382 {offsets = [2, 0, 0], sizes = [1, 32, 32], strides = [1, 1, 1]} : vector<4x32x32xf32> to vector<1x32x32xf32>
    %597 = vector.shape_cast %596 : vector<1x32x32xf32> to vector<32x32xf32>
    %cst_105 = arith.constant dense<0.000000e+00> : vector<2x32xf32>
    %598 = tpu.matmul %571, %597, %cst_105 {dimension_numbers = #tpu.dot_dimension_numbers<[1], [0], [0], [1], [0, 0, 1, 1], [], []>} : vector<2x32xf32>, vector<32x32xf32>, vector<2x32xf32> -> vector<2x32xf32>
    %599 = arith.addf %595, %598 : vector<2x32xf32>
    %600 = math.tanh %599 : vector<2x32xf32>
    %601 = vector.extract_strided_slice %416 {offsets = [0, 4, 0], sizes = [2, 1, 32], strides = [1, 1, 1]} : vector<2x8x32xf32> to vector<2x1x32xf32>
    %602 = vector.shape_cast %601 : vector<2x1x32xf32> to vector<2x32xf32>
    %603 = vector.extract_strided_slice %382 {offsets = [3, 0, 0], sizes = [1, 32, 32], strides = [1, 1, 1]} : vector<4x32x32xf32> to vector<1x32x32xf32>
    %604 = vector.shape_cast %603 : vector<1x32x32xf32> to vector<32x32xf32>
    %cst_106 = arith.constant dense<0.000000e+00> : vector<2x32xf32>
    %605 = tpu.matmul %571, %604, %cst_106 {dimension_numbers = #tpu.dot_dimension_numbers<[1], [0], [0], [1], [0, 0, 1, 1], [], []>} : vector<2x32xf32>, vector<32x32xf32>, vector<2x32xf32> -> vector<2x32xf32>
    %606 = arith.addf %602, %605 : vector<2x32xf32>
    %607 = arith.negf %606 : vector<2x32xf32>
    %608 = math.exp %607 : vector<2x32xf32>
    %cst_107 = arith.constant 1.000000e+00 : f32
    %609 = vector.broadcast %cst_107 : f32 to vector<2x32xf32>
    %610 = arith.addf %609, %608 : vector<2x32xf32>
    %611 = arith.divf %609, %610 : vector<2x32xf32>
    %612 = arith.mulf %593, %569 : vector<2x32xf32>
    %613 = arith.mulf %582, %600 : vector<2x32xf32>
    %614 = arith.addf %612, %613 : vector<2x32xf32>
    %615 = math.tanh %614 : vector<2x32xf32>
    %616 = arith.mulf %611, %615 : vector<2x32xf32>
    %617 = vector.extract_strided_slice %392 {offsets = [0, 5, 0], sizes = [2, 1, 32], strides = [1, 1, 1]} : vector<2x8x32xf32> to vector<2x1x32xf32>
    %618 = vector.shape_cast %617 : vector<2x1x32xf32> to vector<2x32xf32>
    %619 = vector.extract_strided_slice %382 {offsets = [0, 0, 0], sizes = [1, 32, 32], strides = [1, 1, 1]} : vector<4x32x32xf32> to vector<1x32x32xf32>
    %620 = vector.shape_cast %619 : vector<1x32x32xf32> to vector<32x32xf32>
    %cst_108 = arith.constant dense<0.000000e+00> : vector<2x32xf32>
    %621 = tpu.matmul %616, %620, %cst_108 {dimension_numbers = #tpu.dot_dimension_numbers<[1], [0], [0], [1], [0, 0, 1, 1], [], []>} : vector<2x32xf32>, vector<32x32xf32>, vector<2x32xf32> -> vector<2x32xf32>
    %622 = arith.addf %618, %621 : vector<2x32xf32>
    %623 = arith.negf %622 : vector<2x32xf32>
    %624 = math.exp %623 : vector<2x32xf32>
    %cst_109 = arith.constant 1.000000e+00 : f32
    %625 = vector.broadcast %cst_109 : f32 to vector<2x32xf32>
    %626 = arith.addf %625, %624 : vector<2x32xf32>
    %627 = arith.divf %625, %626 : vector<2x32xf32>
    %628 = vector.extract_strided_slice %400 {offsets = [0, 5, 0], sizes = [2, 1, 32], strides = [1, 1, 1]} : vector<2x8x32xf32> to vector<2x1x32xf32>
    %629 = vector.shape_cast %628 : vector<2x1x32xf32> to vector<2x32xf32>
    %630 = vector.extract_strided_slice %382 {offsets = [1, 0, 0], sizes = [1, 32, 32], strides = [1, 1, 1]} : vector<4x32x32xf32> to vector<1x32x32xf32>
    %631 = vector.shape_cast %630 : vector<1x32x32xf32> to vector<32x32xf32>
    %cst_110 = arith.constant dense<0.000000e+00> : vector<2x32xf32>
    %632 = tpu.matmul %616, %631, %cst_110 {dimension_numbers = #tpu.dot_dimension_numbers<[1], [0], [0], [1], [0, 0, 1, 1], [], []>} : vector<2x32xf32>, vector<32x32xf32>, vector<2x32xf32> -> vector<2x32xf32>
    %633 = arith.addf %629, %632 : vector<2x32xf32>
    %634 = arith.negf %633 : vector<2x32xf32>
    %635 = math.exp %634 : vector<2x32xf32>
    %cst_111 = arith.constant 1.000000e+00 : f32
    %636 = vector.broadcast %cst_111 : f32 to vector<2x32xf32>
    %637 = arith.addf %636, %635 : vector<2x32xf32>
    %638 = arith.divf %636, %637 : vector<2x32xf32>
    %639 = vector.extract_strided_slice %408 {offsets = [0, 5, 0], sizes = [2, 1, 32], strides = [1, 1, 1]} : vector<2x8x32xf32> to vector<2x1x32xf32>
    %640 = vector.shape_cast %639 : vector<2x1x32xf32> to vector<2x32xf32>
    %641 = vector.extract_strided_slice %382 {offsets = [2, 0, 0], sizes = [1, 32, 32], strides = [1, 1, 1]} : vector<4x32x32xf32> to vector<1x32x32xf32>
    %642 = vector.shape_cast %641 : vector<1x32x32xf32> to vector<32x32xf32>
    %cst_112 = arith.constant dense<0.000000e+00> : vector<2x32xf32>
    %643 = tpu.matmul %616, %642, %cst_112 {dimension_numbers = #tpu.dot_dimension_numbers<[1], [0], [0], [1], [0, 0, 1, 1], [], []>} : vector<2x32xf32>, vector<32x32xf32>, vector<2x32xf32> -> vector<2x32xf32>
    %644 = arith.addf %640, %643 : vector<2x32xf32>
    %645 = math.tanh %644 : vector<2x32xf32>
    %646 = vector.extract_strided_slice %416 {offsets = [0, 5, 0], sizes = [2, 1, 32], strides = [1, 1, 1]} : vector<2x8x32xf32> to vector<2x1x32xf32>
    %647 = vector.shape_cast %646 : vector<2x1x32xf32> to vector<2x32xf32>
    %648 = vector.extract_strided_slice %382 {offsets = [3, 0, 0], sizes = [1, 32, 32], strides = [1, 1, 1]} : vector<4x32x32xf32> to vector<1x32x32xf32>
    %649 = vector.shape_cast %648 : vector<1x32x32xf32> to vector<32x32xf32>
    %cst_113 = arith.constant dense<0.000000e+00> : vector<2x32xf32>
    %650 = tpu.matmul %616, %649, %cst_113 {dimension_numbers = #tpu.dot_dimension_numbers<[1], [0], [0], [1], [0, 0, 1, 1], [], []>} : vector<2x32xf32>, vector<32x32xf32>, vector<2x32xf32> -> vector<2x32xf32>
    %651 = arith.addf %647, %650 : vector<2x32xf32>
    %652 = arith.negf %651 : vector<2x32xf32>
    %653 = math.exp %652 : vector<2x32xf32>
    %cst_114 = arith.constant 1.000000e+00 : f32
    %654 = vector.broadcast %cst_114 : f32 to vector<2x32xf32>
    %655 = arith.addf %654, %653 : vector<2x32xf32>
    %656 = arith.divf %654, %655 : vector<2x32xf32>
    %657 = arith.mulf %638, %614 : vector<2x32xf32>
    %658 = arith.mulf %627, %645 : vector<2x32xf32>
    %659 = arith.addf %657, %658 : vector<2x32xf32>
    %660 = math.tanh %659 : vector<2x32xf32>
    %661 = arith.mulf %656, %660 : vector<2x32xf32>
    %662 = vector.extract_strided_slice %392 {offsets = [0, 6, 0], sizes = [2, 1, 32], strides = [1, 1, 1]} : vector<2x8x32xf32> to vector<2x1x32xf32>
    %663 = vector.shape_cast %662 : vector<2x1x32xf32> to vector<2x32xf32>
    %664 = vector.extract_strided_slice %382 {offsets = [0, 0, 0], sizes = [1, 32, 32], strides = [1, 1, 1]} : vector<4x32x32xf32> to vector<1x32x32xf32>
    %665 = vector.shape_cast %664 : vector<1x32x32xf32> to vector<32x32xf32>
    %cst_115 = arith.constant dense<0.000000e+00> : vector<2x32xf32>
    %666 = tpu.matmul %661, %665, %cst_115 {dimension_numbers = #tpu.dot_dimension_numbers<[1], [0], [0], [1], [0, 0, 1, 1], [], []>} : vector<2x32xf32>, vector<32x32xf32>, vector<2x32xf32> -> vector<2x32xf32>
    %667 = arith.addf %663, %666 : vector<2x32xf32>
    %668 = arith.negf %667 : vector<2x32xf32>
    %669 = math.exp %668 : vector<2x32xf32>
    %cst_116 = arith.constant 1.000000e+00 : f32
    %670 = vector.broadcast %cst_116 : f32 to vector<2x32xf32>
    %671 = arith.addf %670, %669 : vector<2x32xf32>
    %672 = arith.divf %670, %671 : vector<2x32xf32>
    %673 = vector.extract_strided_slice %400 {offsets = [0, 6, 0], sizes = [2, 1, 32], strides = [1, 1, 1]} : vector<2x8x32xf32> to vector<2x1x32xf32>
    %674 = vector.shape_cast %673 : vector<2x1x32xf32> to vector<2x32xf32>
    %675 = vector.extract_strided_slice %382 {offsets = [1, 0, 0], sizes = [1, 32, 32], strides = [1, 1, 1]} : vector<4x32x32xf32> to vector<1x32x32xf32>
    %676 = vector.shape_cast %675 : vector<1x32x32xf32> to vector<32x32xf32>
    %cst_117 = arith.constant dense<0.000000e+00> : vector<2x32xf32>
    %677 = tpu.matmul %661, %676, %cst_117 {dimension_numbers = #tpu.dot_dimension_numbers<[1], [0], [0], [1], [0, 0, 1, 1], [], []>} : vector<2x32xf32>, vector<32x32xf32>, vector<2x32xf32> -> vector<2x32xf32>
    %678 = arith.addf %674, %677 : vector<2x32xf32>
    %679 = arith.negf %678 : vector<2x32xf32>
    %680 = math.exp %679 : vector<2x32xf32>
    %cst_118 = arith.constant 1.000000e+00 : f32
    %681 = vector.broadcast %cst_118 : f32 to vector<2x32xf32>
    %682 = arith.addf %681, %680 : vector<2x32xf32>
    %683 = arith.divf %681, %682 : vector<2x32xf32>
    %684 = vector.extract_strided_slice %408 {offsets = [0, 6, 0], sizes = [2, 1, 32], strides = [1, 1, 1]} : vector<2x8x32xf32> to vector<2x1x32xf32>
    %685 = vector.shape_cast %684 : vector<2x1x32xf32> to vector<2x32xf32>
    %686 = vector.extract_strided_slice %382 {offsets = [2, 0, 0], sizes = [1, 32, 32], strides = [1, 1, 1]} : vector<4x32x32xf32> to vector<1x32x32xf32>
    %687 = vector.shape_cast %686 : vector<1x32x32xf32> to vector<32x32xf32>
    %cst_119 = arith.constant dense<0.000000e+00> : vector<2x32xf32>
    %688 = tpu.matmul %661, %687, %cst_119 {dimension_numbers = #tpu.dot_dimension_numbers<[1], [0], [0], [1], [0, 0, 1, 1], [], []>} : vector<2x32xf32>, vector<32x32xf32>, vector<2x32xf32> -> vector<2x32xf32>
    %689 = arith.addf %685, %688 : vector<2x32xf32>
    %690 = math.tanh %689 : vector<2x32xf32>
    %691 = vector.extract_strided_slice %416 {offsets = [0, 6, 0], sizes = [2, 1, 32], strides = [1, 1, 1]} : vector<2x8x32xf32> to vector<2x1x32xf32>
    %692 = vector.shape_cast %691 : vector<2x1x32xf32> to vector<2x32xf32>
    %693 = vector.extract_strided_slice %382 {offsets = [3, 0, 0], sizes = [1, 32, 32], strides = [1, 1, 1]} : vector<4x32x32xf32> to vector<1x32x32xf32>
    %694 = vector.shape_cast %693 : vector<1x32x32xf32> to vector<32x32xf32>
    %cst_120 = arith.constant dense<0.000000e+00> : vector<2x32xf32>
    %695 = tpu.matmul %661, %694, %cst_120 {dimension_numbers = #tpu.dot_dimension_numbers<[1], [0], [0], [1], [0, 0, 1, 1], [], []>} : vector<2x32xf32>, vector<32x32xf32>, vector<2x32xf32> -> vector<2x32xf32>
    %696 = arith.addf %692, %695 : vector<2x32xf32>
    %697 = arith.negf %696 : vector<2x32xf32>
    %698 = math.exp %697 : vector<2x32xf32>
    %cst_121 = arith.constant 1.000000e+00 : f32
    %699 = vector.broadcast %cst_121 : f32 to vector<2x32xf32>
    %700 = arith.addf %699, %698 : vector<2x32xf32>
    %701 = arith.divf %699, %700 : vector<2x32xf32>
    %702 = arith.mulf %683, %659 : vector<2x32xf32>
    %703 = arith.mulf %672, %690 : vector<2x32xf32>
    %704 = arith.addf %702, %703 : vector<2x32xf32>
    %705 = math.tanh %704 : vector<2x32xf32>
    %706 = arith.mulf %701, %705 : vector<2x32xf32>
    %707 = vector.extract_strided_slice %392 {offsets = [0, 7, 0], sizes = [2, 1, 32], strides = [1, 1, 1]} : vector<2x8x32xf32> to vector<2x1x32xf32>
    %708 = vector.shape_cast %707 : vector<2x1x32xf32> to vector<2x32xf32>
    %709 = vector.extract_strided_slice %382 {offsets = [0, 0, 0], sizes = [1, 32, 32], strides = [1, 1, 1]} : vector<4x32x32xf32> to vector<1x32x32xf32>
    %710 = vector.shape_cast %709 : vector<1x32x32xf32> to vector<32x32xf32>
    %cst_122 = arith.constant dense<0.000000e+00> : vector<2x32xf32>
    %711 = tpu.matmul %706, %710, %cst_122 {dimension_numbers = #tpu.dot_dimension_numbers<[1], [0], [0], [1], [0, 0, 1, 1], [], []>} : vector<2x32xf32>, vector<32x32xf32>, vector<2x32xf32> -> vector<2x32xf32>
    %712 = arith.addf %708, %711 : vector<2x32xf32>
    %713 = arith.negf %712 : vector<2x32xf32>
    %714 = math.exp %713 : vector<2x32xf32>
    %cst_123 = arith.constant 1.000000e+00 : f32
    %715 = vector.broadcast %cst_123 : f32 to vector<2x32xf32>
    %716 = arith.addf %715, %714 : vector<2x32xf32>
    %717 = arith.divf %715, %716 : vector<2x32xf32>
    %718 = vector.extract_strided_slice %400 {offsets = [0, 7, 0], sizes = [2, 1, 32], strides = [1, 1, 1]} : vector<2x8x32xf32> to vector<2x1x32xf32>
    %719 = vector.shape_cast %718 : vector<2x1x32xf32> to vector<2x32xf32>
    %720 = vector.extract_strided_slice %382 {offsets = [1, 0, 0], sizes = [1, 32, 32], strides = [1, 1, 1]} : vector<4x32x32xf32> to vector<1x32x32xf32>
    %721 = vector.shape_cast %720 : vector<1x32x32xf32> to vector<32x32xf32>
    %cst_124 = arith.constant dense<0.000000e+00> : vector<2x32xf32>
    %722 = tpu.matmul %706, %721, %cst_124 {dimension_numbers = #tpu.dot_dimension_numbers<[1], [0], [0], [1], [0, 0, 1, 1], [], []>} : vector<2x32xf32>, vector<32x32xf32>, vector<2x32xf32> -> vector<2x32xf32>
    %723 = arith.addf %719, %722 : vector<2x32xf32>
    %724 = arith.negf %723 : vector<2x32xf32>
    %725 = math.exp %724 : vector<2x32xf32>
    %cst_125 = arith.constant 1.000000e+00 : f32
    %726 = vector.broadcast %cst_125 : f32 to vector<2x32xf32>
    %727 = arith.addf %726, %725 : vector<2x32xf32>
    %728 = arith.divf %726, %727 : vector<2x32xf32>
    %729 = vector.extract_strided_slice %408 {offsets = [0, 7, 0], sizes = [2, 1, 32], strides = [1, 1, 1]} : vector<2x8x32xf32> to vector<2x1x32xf32>
    %730 = vector.shape_cast %729 : vector<2x1x32xf32> to vector<2x32xf32>
    %731 = vector.extract_strided_slice %382 {offsets = [2, 0, 0], sizes = [1, 32, 32], strides = [1, 1, 1]} : vector<4x32x32xf32> to vector<1x32x32xf32>
    %732 = vector.shape_cast %731 : vector<1x32x32xf32> to vector<32x32xf32>
    %cst_126 = arith.constant dense<0.000000e+00> : vector<2x32xf32>
    %733 = tpu.matmul %706, %732, %cst_126 {dimension_numbers = #tpu.dot_dimension_numbers<[1], [0], [0], [1], [0, 0, 1, 1], [], []>} : vector<2x32xf32>, vector<32x32xf32>, vector<2x32xf32> -> vector<2x32xf32>
    %734 = arith.addf %730, %733 : vector<2x32xf32>
    %735 = math.tanh %734 : vector<2x32xf32>
    %736 = vector.extract_strided_slice %416 {offsets = [0, 7, 0], sizes = [2, 1, 32], strides = [1, 1, 1]} : vector<2x8x32xf32> to vector<2x1x32xf32>
    %737 = vector.shape_cast %736 : vector<2x1x32xf32> to vector<2x32xf32>
    %738 = vector.extract_strided_slice %382 {offsets = [3, 0, 0], sizes = [1, 32, 32], strides = [1, 1, 1]} : vector<4x32x32xf32> to vector<1x32x32xf32>
    %739 = vector.shape_cast %738 : vector<1x32x32xf32> to vector<32x32xf32>
    %cst_127 = arith.constant dense<0.000000e+00> : vector<2x32xf32>
    %740 = tpu.matmul %706, %739, %cst_127 {dimension_numbers = #tpu.dot_dimension_numbers<[1], [0], [0], [1], [0, 0, 1, 1], [], []>} : vector<2x32xf32>, vector<32x32xf32>, vector<2x32xf32> -> vector<2x32xf32>
    %741 = arith.addf %737, %740 : vector<2x32xf32>
    %742 = arith.negf %741 : vector<2x32xf32>
    %743 = math.exp %742 : vector<2x32xf32>
    %cst_128 = arith.constant 1.000000e+00 : f32
    %744 = vector.broadcast %cst_128 : f32 to vector<2x32xf32>
    %745 = arith.addf %744, %743 : vector<2x32xf32>
    %746 = arith.divf %744, %745 : vector<2x32xf32>
    %747 = arith.mulf %728, %704 : vector<2x32xf32>
    %748 = arith.mulf %717, %735 : vector<2x32xf32>
    %749 = arith.addf %747, %748 : vector<2x32xf32>
    %750 = math.tanh %749 : vector<2x32xf32>
    %751 = arith.mulf %746, %750 : vector<2x32xf32>
    %752 = vector.shape_cast %436 : vector<2x32xf32> to vector<2x1x32xf32>
    %753 = vector.shape_cast %481 : vector<2x32xf32> to vector<2x1x32xf32>
    %754 = vector.shape_cast %526 : vector<2x32xf32> to vector<2x1x32xf32>
    %755 = vector.shape_cast %571 : vector<2x32xf32> to vector<2x1x32xf32>
    %756 = vector.shape_cast %616 : vector<2x32xf32> to vector<2x1x32xf32>
    %757 = vector.shape_cast %661 : vector<2x32xf32> to vector<2x1x32xf32>
    %758 = vector.shape_cast %706 : vector<2x32xf32> to vector<2x1x32xf32>
    %759 = vector.shape_cast %751 : vector<2x32xf32> to vector<2x1x32xf32>
    %760 = tpu.concatenate %752, %753, %754, %755, %756, %757, %758, %759 in 1 : vector<2x1x32xf32>, vector<2x1x32xf32>, vector<2x1x32xf32>, vector<2x1x32xf32>, vector<2x1x32xf32>, vector<2x1x32xf32>, vector<2x1x32xf32>, vector<2x1x32xf32> -> vector<2x8x32xf32>
    %c0_129 = arith.constant 0 : index
    %c0_130 = arith.constant 0 : index
    %c0_131 = arith.constant 0 : index
    %761 = vector.load %arg7[%c0_129, %c0_130, %c0_131] : memref<2x8x32xf32, #tpu.memory_space<vmem>>, vector<2x8x32xf32>
    tpu.vector_store %arg7[%c0_129, %c0_130, %c0_131], %760 {strides = array<i32>} : memref<2x8x32xf32, #tpu.memory_space<vmem>>, vector<2x8x32xf32>,
    return
  }
}

</mosaic_0001>

<llo_original>
// kernel: tpu_custom_call.1
$region0: #{tpu_custom_call.1}
  #allocation0 [shape = 'u32[]', space=smem, size = 0x4, offset = 0x4, fixed_abs, tag = 'smem constant byte address 0x4 - core index']
  #allocation1 [shape = 'u32[144,128]{1,0:T(1,128)}', space=vmem, size = 0x12000, scoped, tag = 'internal scratch']
  %s0 = inlined_call_operand.vmem [shape: f32[2,8,4], index: 0, kind: input, shape index: {}]
  %s1 = inlined_call_operand.vmem [shape: f32[4,4,32], index: 1, kind: input, shape index: {}]
  %s2 = inlined_call_operand.hbm [shape: f32[4,32,32], index: 2, kind: input, shape index: {}]
  %s3 = inlined_call_operand.vmem [shape: f32[4,1,32], index: 3, kind: input, shape index: {}]
  %s4 = inlined_call_operand.hbm [shape: f32[4,32,32], index: 4, kind: input, shape index: {}]
  %s5 = inlined_call_operand.hbm [shape: f32[4,32,32], index: 5, kind: input, shape index: {}]
  %s6 = inlined_call_operand.vmem [shape: f32[4,1,32], index: 6, kind: input, shape index: {}]
  %s7 = inlined_call_operand.hbm [shape: f32[2,8,32], index: 7, kind: output, shape index: {}]
  %s8 = sld [smem:[#allocation0]]
  $region50: #{tpu_custom_call.1} parent=0
    _
  %s10 = ssub.s32 1, %s8
  %s11 = scalar_select 0, %s10, %s8
  $region1: #{tpu_custom_call.1} parent=0
    #allocation2 [shape = 'u8[65536]{0}', space=vmem, size = 0x10000, scoped, tag = 'input window, operand 2, single buffered']
    #allocation3 [shape = 's32[1]{0}', space=sflag, size = 0x4, scoped, tag = 'scoped memory for tpu_custom_call.1']
    #allocation4 [shape = 's32[1]{0}', space=sflag, size = 0x4, scoped, tag = 'scoped memory for tpu_custom_call.1']
    #allocation5 [shape = 'u8[65536]{0}', space=vmem, size = 0x10000, scoped, tag = 'input window, operand 4, single buffered']
    #allocation6 [shape = 's32[1]{0}', space=sflag, size = 0x4, scoped, tag = 'scoped memory for tpu_custom_call.1']
    #allocation7 [shape = 'u8[65536]{0}', space=vmem, size = 0x10000, scoped, tag = 'input window, operand 5, single buffered']
    #allocation8 [shape = 'u8[8192]{0}', space=vmem, size = 0x2000, scoped, tag = 'output window, operand 0, single buffered']
    %12 = vsyncpa [#allocation3], 0
    %13 = vsyncpa [#allocation6], 0
    %14 = vsyncpa [#allocation4], 0
    // Predicated region
    $region2: #{tpu_custom_call.1} parent=1 // pred_check
      _
    $region3: #{tpu_custom_call.1} parent=1 // pred_check_branch
      %16 = sbr.rel (0) target = $region5
    $region4: #{tpu_custom_call.1} parent=1 // pred_region
      _
    $region5: #{tpu_custom_call.1} parent=1 // pred_fallthru
      _
    // Predicated region
    $region6: #{tpu_custom_call.1} parent=1 // pred_check
      _
    $region7: #{tpu_custom_call.1} parent=1 // pred_check_branch
      %18 = sbr.rel (0) target = $region9
    $region8: #{tpu_custom_call.1} parent=1 // pred_region
      _
    $region9: #{tpu_custom_call.1} parent=1 // pred_fallthru
      _
    // Predicated region
    $region10: #{tpu_custom_call.1} parent=1 // pred_check
      _
    $region11: #{tpu_custom_call.1} parent=1 // pred_check_branch
      %20 = sbr.rel (0) target = $region13
    $region12: #{tpu_custom_call.1} parent=1 // pred_region
      %s22 = ssub.s32 2048, 2048
      %23 = vsyncadd [#allocation3], %s22
      %s24 = sshll.u32 [#allocation2], 4
      %s25 = int_to_ptr.vmem [resolvable:$true] %s24
      %30 = dma.hbm_to_vmem [thread:$0]  %s2, 2048, %s25, [#allocation3], 128, 128, 8
    $region13: #{tpu_custom_call.1} parent=1 // pred_fallthru
      _
    // Predicated region
    $region14: #{tpu_custom_call.1} parent=1 // pred_check
      _
    $region15: #{tpu_custom_call.1} parent=1 // pred_check_branch
      %32 = sbr.rel (0) target = $region17
    $region16: #{tpu_custom_call.1} parent=1 // pred_region
      _
    $region17: #{tpu_custom_call.1} parent=1 // pred_fallthru
      _
    // Predicated region
    $region18: #{tpu_custom_call.1} parent=1 // pred_check
      _
    $region19: #{tpu_custom_call.1} parent=1 // pred_check_branch
      %34 = sbr.rel (0) target = $region21
    $region20: #{tpu_custom_call.1} parent=1 // pred_region
      %s36 = ssub.s32 2048, 2048
      %37 = vsyncadd [#allocation6], %s36
      %s38 = sshll.u32 [#allocation5], 4
      %s39 = int_to_ptr.vmem [resolvable:$true] %s38
      %44 = dma.hbm_to_vmem [thread:$0]  %s4, 2048, %s39, [#allocation6], 128, 128, 8
    $region21: #{tpu_custom_call.1} parent=1 // pred_fallthru
      _
    // Predicated region
    $region22: #{tpu_custom_call.1} parent=1 // pred_check
      _
    $region23: #{tpu_custom_call.1} parent=1 // pred_check_branch
      %46 = sbr.rel (0) target = $region25
    $region24: #{tpu_custom_call.1} parent=1 // pred_region
      %s48 = ssub.s32 2048, 2048
      %49 = vsyncadd [#allocation6], %s48
      %s50 = sshll.u32 [#allocation7], 4
      %s51 = int_to_ptr.vmem [resolvable:$true] %s50
      %56 = dma.hbm_to_vmem [thread:$0]  %s5, 2048, %s51, [#allocation6], 128, 128, 8
    $region25: #{tpu_custom_call.1} parent=1 // pred_fallthru
      _
    // Predicated region
    $region26: #{tpu_custom_call.1} parent=1 // pred_check
      _
    $region27: #{tpu_custom_call.1} parent=1 // pred_check_branch
      %58 = sbr.rel (0) target = $region29
    $region28: #{tpu_custom_call.1} parent=1 // pred_region
      _
    $region29: #{tpu_custom_call.1} parent=1 // pred_fallthru
      _
    // Predicated region
    $region30: #{tpu_custom_call.1} parent=1 // pred_check
      _
    $region31: #{tpu_custom_call.1} parent=1 // pred_check_branch
      %60 = sbr.rel (0) target = $region33
    $region32: #{tpu_custom_call.1} parent=1 // pred_region
      %61 = dma.done [#allocation3], 2048
    $region33: #{tpu_custom_call.1} parent=1 // pred_fallthru
      _
    // Predicated region
    $region34: #{tpu_custom_call.1} parent=1 // pred_check
      _
    $region35: #{tpu_custom_call.1} parent=1 // pred_check_branch
      %63 = sbr.rel (0) target = $region37
    $region36: #{tpu_custom_call.1} parent=1 // pred_region
      %64 = dma.done [#allocation6], 2048
    $region37: #{tpu_custom_call.1} parent=1 // pred_fallthru
      _
    // Predicated region
    $region38: #{tpu_custom_call.1} parent=1 // pred_check
      _
    $region39: #{tpu_custom_call.1} parent=1 // pred_check_branch
      %66 = sbr.rel (0) target = $region41
    $region40: #{tpu_custom_call.1} parent=1 // pred_region
      %67 = dma.done [#allocation6], 2048
    $region41: #{tpu_custom_call.1} parent=1 // pred_fallthru
      _
    %v68 = vld [vmem:[%s0] sm:$0xff]
    %v69 = vld [vmem:[%s0 + $0x8] sm:$0xff]
    %v70 = vld [vmem:[%s1] sm:$0xf]
    %v71 = vld [vmem:[%s1 + $0x4] sm:$0xf]
    %v72 = vld [vmem:[%s1 + $0x8] sm:$0xf]
    %v73 = vld [vmem:[%s1 + $0xc] sm:$0xf]
    %v74 = vld [vmem:[#allocation2] sm:$0xff]
    %v75 = vld [vmem:[#allocation2 + $0x8] sm:$0xff]
    %v76 = vld [vmem:[#allocation2 + $0x10] sm:$0xff]
    %v77 = vld [vmem:[#allocation2 + $0x18] sm:$0xff]
    %v78 = vld [vmem:[#allocation2 + $0x20] sm:$0xff]
    %v79 = vld [vmem:[#allocation2 + $0x28] sm:$0xff]
    %v80 = vld [vmem:[#allocation2 + $0x30] sm:$0xff]
    %v81 = vld [vmem:[#allocation2 + $0x38] sm:$0xff]
    %v82 = vld [vmem:[#allocation2 + $0x40] sm:$0xff]
    %v83 = vld [vmem:[#allocation2 + $0x48] sm:$0xff]
    %v84 = vld [vmem:[#allocation2 + $0x50] sm:$0xff]
    %v85 = vld [vmem:[#allocation2 + $0x58] sm:$0xff]
    %v86 = vld [vmem:[#allocation2 + $0x60] sm:$0xff]
    %v87 = vld [vmem:[#allocation2 + $0x68] sm:$0xff]
    %v88 = vld [vmem:[#allocation2 + $0x70] sm:$0xff]
    %v89 = vld [vmem:[#allocation2 + $0x78] sm:$0xff]
    %v90 = vld [vmem:[%s3] sm:$0x1]
    %v91 = vld [vmem:[%s3 + $0x1] sm:$0x1]
    %v92 = vld [vmem:[%s3 + $0x2] sm:$0x1]
    %v93 = vld [vmem:[%s3 + $0x3] sm:$0x1]
    %v95 = vlaneseq
    %v96 = vshrl.u32 %v95, 7
    %v97 = vsub.s32 0, %v96
    %v98 = vrot.slane %v90, %v97
    %vm100 = vcmask 31744
    %v102 = vsel %vm100, %v68, 0
    %v105 = vsel %vm100, %v69, 0
    %vm107 = vcmask 1043456
    %v109 = vsel %vm107, %v70, 0
    %111 = vmatprep.subr.mxu0 0.0
    %112 = vmatpush1.msra.mxu0 %v109
    %113 = vmatprep.subr.mxu0 0.0
    %114 = vmatpush1.msra.mxu0 0.0
    %115 = vmatprep.subr.mxu0 0.0
    %116 = vmatpush1.msra.mxu0 0.0
    %117 = vmatprep.subr.mxu0 0.0
    %118 = vmatpush1.msra.mxu0 0.0
    %119 = vmatprep.subr.mxu0 0.0
    %120 = vmatpush1.msra.mxu0 0.0
    %121 = vmatprep.subr.mxu0 0.0
    %122 = vmatpush1.msra.mxu0 0.0
    %123 = vmatprep.subr.mxu0 0.0
    %124 = vmatpush1.msra.mxu0 0.0
    %125 = vmatprep.subr.mxu0 0.0
    %126 = vmatpush1.msra.mxu0 0.0
    %127 = vmatprep.subr.mxu0 0.0
    %128 = vmatpush1.msra.mxu0 0.0
    %129 = vmatprep.subr.mxu0 0.0
    %130 = vmatpush1.msra.mxu0 0.0
    %131 = vmatprep.subr.mxu0 0.0
    %132 = vmatpush1.msra.mxu0 0.0
    %133 = vmatprep.subr.mxu0 0.0
    %134 = vmatpush1.msra.mxu0 0.0
    %135 = vmatprep.subr.mxu0 0.0
    %136 = vmatpush1.msra.mxu0 0.0
    %137 = vmatprep.subr.mxu0 0.0
    %138 = vmatpush1.msra.mxu0 0.0
    %139 = vmatprep.subr.mxu0 0.0
    %140 = vmatpush1.msra.mxu0 0.0
    %141 = vmatprep.subr.mxu0 0.0
    %142 = vmatpush1.msra.mxu0 0.0
    %143 = vmatprep.subr.mxu0 0.0
    %144 = vmatpush1.msra.mxu0 0.0
    %145 = vmatprep.subr.mxu0 0.0
    %146 = vmatpush1.msra.mxu0 0.0
    %147 = vmatprep.subr.mxu0 0.0
    %148 = vmatpush1.msra.mxu0 0.0
    %149 = vmatprep.subr.mxu0 0.0
    %150 = vmatpush1.msra.mxu0 0.0
    %151 = vmatprep.subr.mxu0 0.0
    %152 = vmatpush1.msra.mxu0 0.0
    %153 = vmatprep.subr.mxu0 0.0
    %154 = vmatpush1.msra.mxu0 0.0
    %155 = vmatprep.subr.mxu0 0.0
    %156 = vmatpush1.msra.mxu0 0.0
    %157 = vmatprep.subr.mxu0 0.0
    %158 = vmatpush1.msra.mxu0 0.0
    %159 = vmatprep.subr.mxu0 0.0
    %160 = vmatpush1.msra.mxu0 0.0
    %161 = vmatprep.subr.mxu0 0.0
    %162 = vmatpush1.msra.mxu0 0.0
    %163 = vmatprep.subr.mxu0 0.0
    %164 = vmatpush1.msra.mxu0 0.0
    %165 = vmatprep.subr.mxu0 0.0
    %166 = vmatpush1.msra.mxu0 0.0
    %167 = vmatprep.subr.mxu0 0.0
    %168 = vmatpush1.msra.mxu0 0.0
    %169 = vmatprep.subr.mxu0 0.0
    %170 = vmatpush1.msra.mxu0 0.0
    %171 = vmatprep.subr.mxu0 0.0
    %172 = vmatpush1.msra.mxu0 0.0
    %173 = vmatprep.subr.mxu0 0.0
    %174 = vmatpush1.msra.mxu0 0.0
    %175 = vmatprep.mubr.f32.mxu0 0.0
    %176 = vmatmul.mubr.f32.gmra.mrb[0].mxu0 %v102
    %v177 = vpop.f32.mrb[0].mxu0
    %v178 = vadd.f32 %v98, %v177
    %v179 = vpop.f32.mrb[0].mxu0
    %180 = vmatprep.mubr.f32.mxu0 0.0
    %181 = vmatmul.mubr.f32.gmra.mrb[0].mxu0 %v105
    %v182 = vpop.f32.mrb[0].mxu0
    %v183 = vadd.f32 %v98, %v182
    %v184 = vpop.f32.mrb[0].mxu0
    %185 = vdwg.mxu0
    %v187 = vlaneseq
    %v188 = vshrl.u32 %v187, 7
    %v189 = vsub.s32 0, %v188
    %v190 = vrot.slane %v91, %v189
    %v193 = vsel %vm107, %v71, 0
    %195 = vmatprep.subr.mxu0 0.0
    %196 = vmatpush1.msra.mxu0 %v193
    %197 = vmatprep.subr.mxu0 0.0
    %198 = vmatpush1.msra.mxu0 0.0
    %199 = vmatprep.subr.mxu0 0.0
    %200 = vmatpush1.msra.mxu0 0.0
    %201 = vmatprep.subr.mxu0 0.0
    %202 = vmatpush1.msra.mxu0 0.0
    %203 = vmatprep.subr.mxu0 0.0
    %204 = vmatpush1.msra.mxu0 0.0
    %205 = vmatprep.subr.mxu0 0.0
    %206 = vmatpush1.msra.mxu0 0.0
    %207 = vmatprep.subr.mxu0 0.0
    %208 = vmatpush1.msra.mxu0 0.0
    %209 = vmatprep.subr.mxu0 0.0
    %210 = vmatpush1.msra.mxu0 0.0
    %211 = vmatprep.subr.mxu0 0.0
    %212 = vmatpush1.msra.mxu0 0.0
    %213 = vmatprep.subr.mxu0 0.0
    %214 = vmatpush1.msra.mxu0 0.0
    %215 = vmatprep.subr.mxu0 0.0
    %216 = vmatpush1.msra.mxu0 0.0
    %217 = vmatprep.subr.mxu0 0.0
    %218 = vmatpush1.msra.mxu0 0.0
    %219 = vmatprep.subr.mxu0 0.0
    %220 = vmatpush1.msra.mxu0 0.0
    %221 = vmatprep.subr.mxu0 0.0
    %222 = vmatpush1.msra.mxu0 0.0
    %223 = vmatprep.subr.mxu0 0.0
    %224 = vmatpush1.msra.mxu0 0.0
    %225 = vmatprep.subr.mxu0 0.0
    %226 = vmatpush1.msra.mxu0 0.0
    %227 = vmatprep.subr.mxu0 0.0
    %228 = vmatpush1.msra.mxu0 0.0
    %229 = vmatprep.subr.mxu0 0.0
    %230 = vmatpush1.msra.mxu0 0.0
    %231 = vmatprep.subr.mxu0 0.0
    %232 = vmatpush1.msra.mxu0 0.0
    %233 = vmatprep.subr.mxu0 0.0
    %234 = vmatpush1.msra.mxu0 0.0
    %235 = vmatprep.subr.mxu0 0.0
    %236 = vmatpush1.msra.mxu0 0.0
    %237 = vmatprep.subr.mxu0 0.0
    %238 = vmatpush1.msra.mxu0 0.0
    %239 = vmatprep.subr.mxu0 0.0
    %240 = vmatpush1.msra.mxu0 0.0
    %241 = vmatprep.subr.mxu0 0.0
    %242 = vmatpush1.msra.mxu0 0.0
    %243 = vmatprep.subr.mxu0 0.0
    %244 = vmatpush1.msra.mxu0 0.0
    %245 = vmatprep.subr.mxu0 0.0
    %246 = vmatpush1.msra.mxu0 0.0
    %247 = vmatprep.subr.mxu0 0.0
    %248 = vmatpush1.msra.mxu0 0.0
    %249 = vmatprep.subr.mxu0 0.0
    %250 = vmatpush1.msra.mxu0 0.0
    %251 = vmatprep.subr.mxu0 0.0
    %252 = vmatpush1.msra.mxu0 0.0
    %253 = vmatprep.subr.mxu0 0.0
    %254 = vmatpush1.msra.mxu0 0.0
    %255 = vmatprep.subr.mxu0 0.0
    %256 = vmatpush1.msra.mxu0 0.0
    %257 = vmatprep.subr.mxu0 0.0
    %258 = vmatpush1.msra.mxu0 0.0
    %259 = vmatprep.mubr.f32.mxu0 0.0
    %260 = vmatmul.mubr.f32.gmra.mrb[0].mxu0 %v102
    %v261 = vpop.f32.mrb[0].mxu0
    %v262 = vadd.f32 %v190, %v261
    %v263 = vpop.f32.mrb[0].mxu0
    %264 = vmatprep.mubr.f32.mxu0 0.0
    %265 = vmatmul.mubr.f32.gmra.mrb[0].mxu0 %v105
    %v266 = vpop.f32.mrb[0].mxu0
    %v267 = vadd.f32 %v190, %v266
    %v268 = vpop.f32.mrb[0].mxu0
    %269 = vdwg.mxu0
    %v271 = vlaneseq
    %v272 = vshrl.u32 %v271, 7
    %v273 = vsub.s32 0, %v272
    %v274 = vrot.slane %v92, %v273
    %v277 = vsel %vm107, %v72, 0
    %279 = vmatprep.subr.mxu0 0.0
    %280 = vmatpush1.msra.mxu0 %v277
    %281 = vmatprep.subr.mxu0 0.0
    %282 = vmatpush1.msra.mxu0 0.0
    %283 = vmatprep.subr.mxu0 0.0
    %284 = vmatpush1.msra.mxu0 0.0
    %285 = vmatprep.subr.mxu0 0.0
    %286 = vmatpush1.msra.mxu0 0.0
    %287 = vmatprep.subr.mxu0 0.0
    %288 = vmatpush1.msra.mxu0 0.0
    %289 = vmatprep.subr.mxu0 0.0
    %290 = vmatpush1.msra.mxu0 0.0
    %291 = vmatprep.subr.mxu0 0.0
    %292 = vmatpush1.msra.mxu0 0.0
    %293 = vmatprep.subr.mxu0 0.0
    %294 = vmatpush1.msra.mxu0 0.0
    %295 = vmatprep.subr.mxu0 0.0
    %296 = vmatpush1.msra.mxu0 0.0
    %297 = vmatprep.subr.mxu0 0.0
    %298 = vmatpush1.msra.mxu0 0.0
    %299 = vmatprep.subr.mxu0 0.0
    %300 = vmatpush1.msra.mxu0 0.0
    %301 = vmatprep.subr.mxu0 0.0
    %302 = vmatpush1.msra.mxu0 0.0
    %303 = vmatprep.subr.mxu0 0.0
    %304 = vmatpush1.msra.mxu0 0.0
    %305 = vmatprep.subr.mxu0 0.0
    %306 = vmatpush1.msra.mxu0 0.0
    %307 = vmatprep.subr.mxu0 0.0
    %308 = vmatpush1.msra.mxu0 0.0
    %309 = vmatprep.subr.mxu0 0.0
    %310 = vmatpush1.msra.mxu0 0.0
    %311 = vmatprep.subr.mxu0 0.0
    %312 = vmatpush1.msra.mxu0 0.0
    %313 = vmatprep.subr.mxu0 0.0
    %314 = vmatpush1.msra.mxu0 0.0
    %315 = vmatprep.subr.mxu0 0.0
    %316 = vmatpush1.msra.mxu0 0.0
    %317 = vmatprep.subr.mxu0 0.0
    %318 = vmatpush1.msra.mxu0 0.0
    %319 = vmatprep.subr.mxu0 0.0
    %320 = vmatpush1.msra.mxu0 0.0
    %321 = vmatprep.subr.mxu0 0.0
    %322 = vmatpush1.msra.mxu0 0.0
    %323 = vmatprep.subr.mxu0 0.0
    %324 = vmatpush1.msra.mxu0 0.0
    %325 = vmatprep.subr.mxu0 0.0
    %326 = vmatpush1.msra.mxu0 0.0
    %327 = vmatprep.subr.mxu0 0.0
    %328 = vmatpush1.msra.mxu0 0.0
    %329 = vmatprep.subr.mxu0 0.0
    %330 = vmatpush1.msra.mxu0 0.0
    %331 = vmatprep.subr.mxu0 0.0
    %332 = vmatpush1.msra.mxu0 0.0
    %333 = vmatprep.subr.mxu0 0.0
    %334 = vmatpush1.msra.mxu0 0.0
    %335 = vmatprep.subr.mxu0 0.0
    %336 = vmatpush1.msra.mxu0 0.0
    %337 = vmatprep.subr.mxu0 0.0
    %338 = vmatpush1.msra.mxu0 0.0
    %339 = vmatprep.subr.mxu0 0.0
    %340 = vmatpush1.msra.mxu0 0.0
    %341 = vmatprep.subr.mxu0 0.0
    %342 = vmatpush1.msra.mxu0 0.0
    %343 = vmatprep.mubr.f32.mxu0 0.0
    %344 = vmatmul.mubr.f32.gmra.mrb[0].mxu0 %v102
    %v345 = vpop.f32.mrb[0].mxu0
    %v346 = vadd.f32 %v274, %v345
    %v347 = vpop.f32.mrb[0].mxu0
    %348 = vmatprep.mubr.f32.mxu0 0.0
    %349 = vmatmul.mubr.f32.gmra.mrb[0].mxu0 %v105
    %v350 = vpop.f32.mrb[0].mxu0
    %v351 = vadd.f32 %v274, %v350
    %v352 = vpop.f32.mrb[0].mxu0
    %353 = vdwg.mxu0
    %v355 = vlaneseq
    %v356 = vshrl.u32 %v355, 7
    %v357 = vsub.s32 0, %v356
    %v358 = vrot.slane %v93, %v357
    %v361 = vsel %vm107, %v73, 0
    %363 = vmatprep.subr.mxu0 0.0
    %364 = vmatpush1.msra.mxu0 %v361
    %365 = vmatprep.subr.mxu0 0.0
    %366 = vmatpush1.msra.mxu0 0.0
    %367 = vmatprep.subr.mxu0 0.0
    %368 = vmatpush1.msra.mxu0 0.0
    %369 = vmatprep.subr.mxu0 0.0
    %370 = vmatpush1.msra.mxu0 0.0
    %371 = vmatprep.subr.mxu0 0.0
    %372 = vmatpush1.msra.mxu0 0.0
    %373 = vmatprep.subr.mxu0 0.0
    %374 = vmatpush1.msra.mxu0 0.0
    %375 = vmatprep.subr.mxu0 0.0
    %376 = vmatpush1.msra.mxu0 0.0
    %377 = vmatprep.subr.mxu0 0.0
    %378 = vmatpush1.msra.mxu0 0.0
    %379 = vmatprep.subr.mxu0 0.0
    %380 = vmatpush1.msra.mxu0 0.0
    %381 = vmatprep.subr.mxu0 0.0
    %382 = vmatpush1.msra.mxu0 0.0
    %383 = vmatprep.subr.mxu0 0.0
    %384 = vmatpush1.msra.mxu0 0.0
    %385 = vmatprep.subr.mxu0 0.0
    %386 = vmatpush1.msra.mxu0 0.0
    %387 = vmatprep.subr.mxu0 0.0
    %388 = vmatpush1.msra.mxu0 0.0
    %389 = vmatprep.subr.mxu0 0.0
    %390 = vmatpush1.msra.mxu0 0.0
    %391 = vmatprep.subr.mxu0 0.0
    %392 = vmatpush1.msra.mxu0 0.0
    %393 = vmatprep.subr.mxu0 0.0
    %394 = vmatpush1.msra.mxu0 0.0
    %395 = vmatprep.subr.mxu0 0.0
    %396 = vmatpush1.msra.mxu0 0.0
    %397 = vmatprep.subr.mxu0 0.0
    %398 = vmatpush1.msra.mxu0 0.0
    %399 = vmatprep.subr.mxu0 0.0
    %400 = vmatpush1.msra.mxu0 0.0
    %401 = vmatprep.subr.mxu0 0.0
    %402 = vmatpush1.msra.mxu0 0.0
    %403 = vmatprep.subr.mxu0 0.0
    %404 = vmatpush1.msra.mxu0 0.0
    %405 = vmatprep.subr.mxu0 0.0
    %406 = vmatpush1.msra.mxu0 0.0
    %407 = vmatprep.subr.mxu0 0.0
    %408 = vmatpush1.msra.mxu0 0.0
    %409 = vmatprep.subr.mxu0 0.0
    %410 = vmatpush1.msra.mxu0 0.0
    %411 = vmatprep.subr.mxu0 0.0
    %412 = vmatpush1.msra.mxu0 0.0
    %413 = vmatprep.subr.mxu0 0.0
    %414 = vmatpush1.msra.mxu0 0.0
    %415 = vmatprep.subr.mxu0 0.0
    %416 = vmatpush1.msra.mxu0 0.0
    %417 = vmatprep.subr.mxu0 0.0
    %418 = vmatpush1.msra.mxu0 0.0
    %419 = vmatprep.subr.mxu0 0.0
    %420 = vmatpush1.msra.mxu0 0.0
    %421 = vmatprep.subr.mxu0 0.0
    %422 = vmatpush1.msra.mxu0 0.0
    %423 = vmatprep.subr.mxu0 0.0
    %424 = vmatpush1.msra.mxu0 0.0
    %425 = vmatprep.subr.mxu0 0.0
    %426 = vmatpush1.msra.mxu0 0.0
    %427 = vmatprep.mubr.f32.mxu0 0.0
    %428 = vmatmul.mubr.f32.gmra.mrb[0].mxu0 %v102
    %v429 = vpop.f32.mrb[0].mxu0
    %v430 = vadd.f32 %v358, %v429
    %v431 = vpop.f32.mrb[0].mxu0
    %432 = vmatprep.mubr.f32.mxu0 0.0
    %433 = vmatmul.mubr.f32.gmra.mrb[0].mxu0 %v105
    %v434 = vpop.f32.mrb[0].mxu0
    %v435 = vadd.f32 %v358, %v434
    %v436 = vpop.f32.mrb[0].mxu0
    %437 = vdwg.mxu0
    %v438 = vxor.u32 %v178, 2147483648
    %v439 = vxor.u32 %v183, 2147483648
    %v440 = vmul.f32 %v438, 1.442695
    %v441 = vpow.pop %v440
    %v442 = vmul.f32 %v439, 1.442695
    %v443 = vpow.pop %v442
    %v444 = vadd.f32 %v441, 1.0
    %v445 = vadd.f32 %v443, 1.0
    %v446 = vrcp.pop %v444
    %v447 = vmul.f32 1.0, %v446
    %v448 = vrcp.pop %v445
    %v449 = vmul.f32 1.0, %v448
    %v450 = vtanh.pop %v346
    %v451 = vtanh.pop %v351
    %v452 = vmul.f32 %v447, %v450
    %v453 = vmul.f32 %v449, %v451
    %v454 = vxor.u32 %v430, 2147483648
    %v455 = vxor.u32 %v435, 2147483648
    %v456 = vmul.f32 %v454, 1.442695
    %v457 = vpow.pop %v456
    %v458 = vmul.f32 %v455, 1.442695
    %v459 = vpow.pop %v458
    %v460 = vadd.f32 %v457, 1.0
    %v461 = vadd.f32 %v459, 1.0
    %v462 = vrcp.pop %v460
    %v463 = vmul.f32 1.0, %v462
    %v464 = vrcp.pop %v461
    %v465 = vmul.f32 1.0, %v464
    %v466 = vtanh.pop %v452
    %v467 = vtanh.pop %v453
    %v468 = vmul.f32 %v463, %v466
    %v469 = vmul.f32 %v465, %v467
    %v472 = vrot.slane %v469, 7
    %vm473 = vcmask 1041409
    %v474 = vsel %vm473, %v472, %v468
    %vm475 = vcmask 261120
    %v476 = vsel %vm475, %v474, 0
    %478 = vmatprep.subr.mxu0 0.0
    %479 = vmatpush1.msra.mxu0 %v74
    %480 = vmatprep.subr.mxu0 0.0
    %481 = vmatpush1.msra.mxu0 %v75
    %482 = vmatprep.subr.mxu0 0.0
    %483 = vmatpush1.msra.mxu0 %v76
    %484 = vmatprep.subr.mxu0 0.0
    %485 = vmatpush1.msra.mxu0 %v77
    %486 = vmatprep.subr.mxu0 0.0
    %487 = vmatpush1.msra.mxu0 0.0
    %488 = vmatprep.subr.mxu0 0.0
    %489 = vmatpush1.msra.mxu0 0.0
    %490 = vmatprep.subr.mxu0 0.0
    %491 = vmatpush1.msra.mxu0 0.0
    %492 = vmatprep.subr.mxu0 0.0
    %493 = vmatpush1.msra.mxu0 0.0
    %494 = vmatprep.subr.mxu0 0.0
    %495 = vmatpush1.msra.mxu0 0.0
    %496 = vmatprep.subr.mxu0 0.0
    %497 = vmatpush1.msra.mxu0 0.0
    %498 = vmatprep.subr.mxu0 0.0
    %499 = vmatpush1.msra.mxu0 0.0
    %500 = vmatprep.subr.mxu0 0.0
    %501 = vmatpush1.msra.mxu0 0.0
    %502 = vmatprep.subr.mxu0 0.0
    %503 = vmatpush1.msra.mxu0 0.0
    %504 = vmatprep.subr.mxu0 0.0
    %505 = vmatpush1.msra.mxu0 0.0
    %506 = vmatprep.subr.mxu0 0.0
    %507 = vmatpush1.msra.mxu0 0.0
    %508 = vmatprep.subr.mxu0 0.0
    %509 = vmatpush1.msra.mxu0 0.0
    %510 = vmatprep.subr.mxu0 0.0
    %511 = vmatpush1.msra.mxu0 0.0
    %512 = vmatprep.subr.mxu0 0.0
    %513 = vmatpush1.msra.mxu0 0.0
    %514 = vmatprep.subr.mxu0 0.0
    %515 = vmatpush1.msra.mxu0 0.0
    %516 = vmatprep.subr.mxu0 0.0
    %517 = vmatpush1.msra.mxu0 0.0
    %518 = vmatprep.subr.mxu0 0.0
    %519 = vmatpush1.msra.mxu0 0.0
    %520 = vmatprep.subr.mxu0 0.0
    %521 = vmatpush1.msra.mxu0 0.0
    %522 = vmatprep.subr.mxu0 0.0
    %523 = vmatpush1.msra.mxu0 0.0
    %524 = vmatprep.subr.mxu0 0.0
    %525 = vmatpush1.msra.mxu0 0.0
    %526 = vmatprep.subr.mxu0 0.0
    %527 = vmatpush1.msra.mxu0 0.0
    %528 = vmatprep.subr.mxu0 0.0
    %529 = vmatpush1.msra.mxu0 0.0
    %530 = vmatprep.subr.mxu0 0.0
    %531 = vmatpush1.msra.mxu0 0.0
    %532 = vmatprep.subr.mxu0 0.0
    %533 = vmatpush1.msra.mxu0 0.0
    %534 = vmatprep.subr.mxu0 0.0
    %535 = vmatpush1.msra.mxu0 0.0
    %536 = vmatprep.subr.mxu0 0.0
    %537 = vmatpush1.msra.mxu0 0.0
    %538 = vmatprep.subr.mxu0 0.0
    %539 = vmatpush1.msra.mxu0 0.0
    %540 = vmatprep.subr.mxu0 0.0
    %541 = vmatpush1.msra.mxu0 0.0
    %542 = vmatprep.mubr.f32.mxu0 0.0
    %543 = vmatmul.mubr.f32.gmra.mrb[0].mxu0 %v476
    %v544 = vpop.f32.mrb[0].mxu0
    %v545 = vadd.f32 0.0, %v544
    %v546 = vpop.f32.mrb[0].mxu0
    %547 = vdwg.mxu0
    %v549 = vrot.slane %v545, 7
    %v552 = vadd.f32 %v178, %v549
    %v553 = vadd.f32 %v183, %v545
    %v554 = vxor.u32 %v552, 2147483648
    %v555 = vxor.u32 %v553, 2147483648
    %v556 = vmul.f32 %v554, 1.442695
    %v557 = vpow.pop %v556
    %v558 = vmul.f32 %v555, 1.442695
    %v559 = vpow.pop %v558
    %v560 = vadd.f32 %v557, 1.0
    %v561 = vadd.f32 %v559, 1.0
    %v562 = vrcp.pop %v560
    %v563 = vmul.f32 1.0, %v562
    %v564 = vrcp.pop %v561
    %v565 = vmul.f32 1.0, %v564
    %566 = vmatprep.subr.mxu0 0.0
    %567 = vmatpush1.msra.mxu0 %v78
    %568 = vmatprep.subr.mxu0 0.0
    %569 = vmatpush1.msra.mxu0 %v79
    %570 = vmatprep.subr.mxu0 0.0
    %571 = vmatpush1.msra.mxu0 %v80
    %572 = vmatprep.subr.mxu0 0.0
    %573 = vmatpush1.msra.mxu0 %v81
    %574 = vmatprep.subr.mxu0 0.0
    %575 = vmatpush1.msra.mxu0 0.0
    %576 = vmatprep.subr.mxu0 0.0
    %577 = vmatpush1.msra.mxu0 0.0
    %578 = vmatprep.subr.mxu0 0.0
    %579 = vmatpush1.msra.mxu0 0.0
    %580 = vmatprep.subr.mxu0 0.0
    %581 = vmatpush1.msra.mxu0 0.0
    %582 = vmatprep.subr.mxu0 0.0
    %583 = vmatpush1.msra.mxu0 0.0
    %584 = vmatprep.subr.mxu0 0.0
    %585 = vmatpush1.msra.mxu0 0.0
    %586 = vmatprep.subr.mxu0 0.0
    %587 = vmatpush1.msra.mxu0 0.0
    %588 = vmatprep.subr.mxu0 0.0
    %589 = vmatpush1.msra.mxu0 0.0
    %590 = vmatprep.subr.mxu0 0.0
    %591 = vmatpush1.msra.mxu0 0.0
    %592 = vmatprep.subr.mxu0 0.0
    %593 = vmatpush1.msra.mxu0 0.0
    %594 = vmatprep.subr.mxu0 0.0
    %595 = vmatpush1.msra.mxu0 0.0
    %596 = vmatprep.subr.mxu0 0.0
    %597 = vmatpush1.msra.mxu0 0.0
    %598 = vmatprep.subr.mxu0 0.0
    %599 = vmatpush1.msra.mxu0 0.0
    %600 = vmatprep.subr.mxu0 0.0
    %601 = vmatpush1.msra.mxu0 0.0
    %602 = vmatprep.subr.mxu0 0.0
    %603 = vmatpush1.msra.mxu0 0.0
    %604 = vmatprep.subr.mxu0 0.0
    %605 = vmatpush1.msra.mxu0 0.0
    %606 = vmatprep.subr.mxu0 0.0
    %607 = vmatpush1.msra.mxu0 0.0
    %608 = vmatprep.subr.mxu0 0.0
    %609 = vmatpush1.msra.mxu0 0.0
    %610 = vmatprep.subr.mxu0 0.0
    %611 = vmatpush1.msra.mxu0 0.0
    %612 = vmatprep.subr.mxu0 0.0
    %613 = vmatpush1.msra.mxu0 0.0
    %614 = vmatprep.subr.mxu0 0.0
    %615 = vmatpush1.msra.mxu0 0.0
    %616 = vmatprep.subr.mxu0 0.0
    %617 = vmatpush1.msra.mxu0 0.0
    %618 = vmatprep.subr.mxu0 0.0
    %619 = vmatpush1.msra.mxu0 0.0
    %620 = vmatprep.subr.mxu0 0.0
    %621 = vmatpush1.msra.mxu0 0.0
    %622 = vmatprep.subr.mxu0 0.0
    %623 = vmatpush1.msra.mxu0 0.0
    %624 = vmatprep.subr.mxu0 0.0
    %625 = vmatpush1.msra.mxu0 0.0
    %626 = vmatprep.subr.mxu0 0.0
    %627 = vmatpush1.msra.mxu0 0.0
    %628 = vmatprep.subr.mxu0 0.0
    %629 = vmatpush1.msra.mxu0 0.0
    %630 = vmatprep.mubr.f32.mxu0 0.0
    %631 = vmatmul.mubr.f32.gmra.mrb[0].mxu0 %v476
    %v632 = vpop.f32.mrb[0].mxu0
    %v633 = vadd.f32 0.0, %v632
    %v634 = vpop.f32.mrb[0].mxu0
    %635 = vdwg.mxu0
    %v637 = vrot.slane %v633, 7
    %v640 = vadd.f32 %v262, %v637
    %v641 = vadd.f32 %v267, %v633
    %v642 = vxor.u32 %v640, 2147483648
    %v643 = vxor.u32 %v641, 2147483648
    %v644 = vmul.f32 %v642, 1.442695
    %v645 = vpow.pop %v644
    %v646 = vmul.f32 %v643, 1.442695
    %v647 = vpow.pop %v646
    %v648 = vadd.f32 %v645, 1.0
    %v649 = vadd.f32 %v647, 1.0
    %v650 = vrcp.pop %v648
    %v651 = vmul.f32 1.0, %v650
    %v652 = vrcp.pop %v649
    %v653 = vmul.f32 1.0, %v652
    %654 = vmatprep.subr.mxu0 0.0
    %655 = vmatpush1.msra.mxu0 %v82
    %656 = vmatprep.subr.mxu0 0.0
    %657 = vmatpush1.msra.mxu0 %v83
    %658 = vmatprep.subr.mxu0 0.0
    %659 = vmatpush1.msra.mxu0 %v84
    %660 = vmatprep.subr.mxu0 0.0
    %661 = vmatpush1.msra.mxu0 %v85
    %662 = vmatprep.subr.mxu0 0.0
    %663 = vmatpush1.msra.mxu0 0.0
    %664 = vmatprep.subr.mxu0 0.0
    %665 = vmatpush1.msra.mxu0 0.0
    %666 = vmatprep.subr.mxu0 0.0
    %667 = vmatpush1.msra.mxu0 0.0
    %668 = vmatprep.subr.mxu0 0.0
    %669 = vmatpush1.msra.mxu0 0.0
    %670 = vmatprep.subr.mxu0 0.0
    %671 = vmatpush1.msra.mxu0 0.0
    %672 = vmatprep.subr.mxu0 0.0
    %673 = vmatpush1.msra.mxu0 0.0
    %674 = vmatprep.subr.mxu0 0.0
    %675 = vmatpush1.msra.mxu0 0.0
    %676 = vmatprep.subr.mxu0 0.0
    %677 = vmatpush1.msra.mxu0 0.0
    %678 = vmatprep.subr.mxu0 0.0
    %679 = vmatpush1.msra.mxu0 0.0
    %680 = vmatprep.subr.mxu0 0.0
    %681 = vmatpush1.msra.mxu0 0.0
    %682 = vmatprep.subr.mxu0 0.0
    %683 = vmatpush1.msra.mxu0 0.0
    %684 = vmatprep.subr.mxu0 0.0
    %685 = vmatpush1.msra.mxu0 0.0
    %686 = vmatprep.subr.mxu0 0.0
    %687 = vmatpush1.msra.mxu0 0.0
    %688 = vmatprep.subr.mxu0 0.0
    %689 = vmatpush1.msra.mxu0 0.0
    %690 = vmatprep.subr.mxu0 0.0
    %691 = vmatpush1.msra.mxu0 0.0
    %692 = vmatprep.subr.mxu0 0.0
    %693 = vmatpush1.msra.mxu0 0.0
    %694 = vmatprep.subr.mxu0 0.0
    %695 = vmatpush1.msra.mxu0 0.0
    %696 = vmatprep.subr.mxu0 0.0
    %697 = vmatpush1.msra.mxu0 0.0
    %698 = vmatprep.subr.mxu0 0.0
    %699 = vmatpush1.msra.mxu0 0.0
    %700 = vmatprep.subr.mxu0 0.0
    %701 = vmatpush1.msra.mxu0 0.0
    %702 = vmatprep.subr.mxu0 0.0
    %703 = vmatpush1.msra.mxu0 0.0
    %704 = vmatprep.subr.mxu0 0.0
    %705 = vmatpush1.msra.mxu0 0.0
    %706 = vmatprep.subr.mxu0 0.0
    %707 = vmatpush1.msra.mxu0 0.0
    %708 = vmatprep.subr.mxu0 0.0
    %709 = vmatpush1.msra.mxu0 0.0
    %710 = vmatprep.subr.mxu0 0.0
    %711 = vmatpush1.msra.mxu0 0.0
    %712 = vmatprep.subr.mxu0 0.0
    %713 = vmatpush1.msra.mxu0 0.0
    %714 = vmatprep.subr.mxu0 0.0
    %715 = vmatpush1.msra.mxu0 0.0
    %716 = vmatprep.subr.mxu0 0.0
    %717 = vmatpush1.msra.mxu0 0.0
    %718 = vmatprep.mubr.f32.mxu0 0.0
    %719 = vmatmul.mubr.f32.gmra.mrb[0].mxu0 %v476
    %v720 = vpop.f32.mrb[0].mxu0
    %v721 = vadd.f32 0.0, %v720
    %v722 = vpop.f32.mrb[0].mxu0
    %723 = vdwg.mxu0
    %v725 = vrot.slane %v721, 7
    %v728 = vadd.f32 %v346, %v725
    %v729 = vadd.f32 %v351, %v721
    %v730 = vtanh.pop %v728
    %v731 = vtanh.pop %v729
    %732 = vmatprep.subr.mxu0 0.0
    %733 = vmatpush1.msra.mxu0 %v86
    %734 = vmatprep.subr.mxu0 0.0
    %735 = vmatpush1.msra.mxu0 %v87
    %736 = vmatprep.subr.mxu0 0.0
    %737 = vmatpush1.msra.mxu0 %v88
    %738 = vmatprep.subr.mxu0 0.0
    %739 = vmatpush1.msra.mxu0 %v89
    %740 = vmatprep.subr.mxu0 0.0
    %741 = vmatpush1.msra.mxu0 0.0
    %742 = vmatprep.subr.mxu0 0.0
    %743 = vmatpush1.msra.mxu0 0.0
    %744 = vmatprep.subr.mxu0 0.0
    %745 = vmatpush1.msra.mxu0 0.0
    %746 = vmatprep.subr.mxu0 0.0
    %747 = vmatpush1.msra.mxu0 0.0
    %748 = vmatprep.subr.mxu0 0.0
    %749 = vmatpush1.msra.mxu0 0.0
    %750 = vmatprep.subr.mxu0 0.0
    %751 = vmatpush1.msra.mxu0 0.0
    %752 = vmatprep.subr.mxu0 0.0
    %753 = vmatpush1.msra.mxu0 0.0
    %754 = vmatprep.subr.mxu0 0.0
    %755 = vmatpush1.msra.mxu0 0.0
    %756 = vmatprep.subr.mxu0 0.0
    %757 = vmatpush1.msra.mxu0 0.0
    %758 = vmatprep.subr.mxu0 0.0
    %759 = vmatpush1.msra.mxu0 0.0
    %760 = vmatprep.subr.mxu0 0.0
    %761 = vmatpush1.msra.mxu0 0.0
    %762 = vmatprep.subr.mxu0 0.0
    %763 = vmatpush1.msra.mxu0 0.0
    %764 = vmatprep.subr.mxu0 0.0
    %765 = vmatpush1.msra.mxu0 0.0
    %766 = vmatprep.subr.mxu0 0.0
    %767 = vmatpush1.msra.mxu0 0.0
    %768 = vmatprep.subr.mxu0 0.0
    %769 = vmatpush1.msra.mxu0 0.0
    %770 = vmatprep.subr.mxu0 0.0
    %771 = vmatpush1.msra.mxu0 0.0
    %772 = vmatprep.subr.mxu0 0.0
    %773 = vmatpush1.msra.mxu0 0.0
    %774 = vmatprep.subr.mxu0 0.0
    %775 = vmatpush1.msra.mxu0 0.0
    %776 = vmatprep.subr.mxu0 0.0
    %777 = vmatpush1.msra.mxu0 0.0
    %778 = vmatprep.subr.mxu0 0.0
    %779 = vmatpush1.msra.mxu0 0.0
    %780 = vmatprep.subr.mxu0 0.0
    %781 = vmatpush1.msra.mxu0 0.0
    %782 = vmatprep.subr.mxu0 0.0
    %783 = vmatpush1.msra.mxu0 0.0
    %784 = vmatprep.subr.mxu0 0.0
    %785 = vmatpush1.msra.mxu0 0.0
    %786 = vmatprep.subr.mxu0 0.0
    %787 = vmatpush1.msra.mxu0 0.0
    %788 = vmatprep.subr.mxu0 0.0
    %789 = vmatpush1.msra.mxu0 0.0
    %790 = vmatprep.subr.mxu0 0.0
    %791 = vmatpush1.msra.mxu0 0.0
    %792 = vmatprep.subr.mxu0 0.0
    %793 = vmatpush1.msra.mxu0 0.0
    %794 = vmatprep.subr.mxu0 0.0
    %795 = vmatpush1.msra.mxu0 0.0
    %796 = vmatprep.mubr.f32.mxu0 0.0
    %797 = vmatmul.mubr.f32.gmra.mrb[0].mxu0 %v476
    %v798 = vpop.f32.mrb[0].mxu0
    %v799 = vadd.f32 0.0, %v798
    %v800 = vpop.f32.mrb[0].mxu0
    %801 = vdwg.mxu0
    %v803 = vrot.slane %v799, 7
    %v806 = vadd.f32 %v430, %v803
    %v807 = vadd.f32 %v435, %v799
    %v808 = vxor.u32 %v806, 2147483648
    %v809 = vxor.u32 %v807, 2147483648
    %v810 = vmul.f32 %v808, 1.442695
    %v811 = vpow.pop %v810
    %v812 = vmul.f32 %v809, 1.442695
    %v813 = vpow.pop %v812
    %v814 = vadd.f32 %v811, 1.0
    %v815 = vadd.f32 %v813, 1.0
    %v816 = vrcp.pop %v814
    %v817 = vmul.f32 1.0, %v816
    %v818 = vrcp.pop %v815
    %v819 = vmul.f32 1.0, %v818
    %v822 = vrot.slane %v452, 7
    %v823 = vrot.slane %v453, 7
    %v826 = vmul.f32 %v651, %v822
    %v827 = vmul.f32 %v653, %v823
    %v828 = vmul.f32 %v563, %v730
    %v829 = vmul.f32 %v565, %v731
    %v830 = vadd.f32 %v826, %v828
    %v831 = vadd.f32 %v827, %v829
    %v832 = vtanh.pop %v830
    %v833 = vtanh.pop %v831
    %v834 = vmul.f32 %v817, %v832
    %v835 = vmul.f32 %v819, %v833
    %v838 = vrot.slane %v834, 1
    %v839 = vsel %vm473, %v835, %v838
    %v840 = vsel %vm475, %v839, 0
    %842 = vmatprep.subr.mxu0 0.0
    %843 = vmatpush1.msra.mxu0 %v74
    %844 = vmatprep.subr.mxu0 0.0
    %845 = vmatpush1.msra.mxu0 %v75
    %846 = vmatprep.subr.mxu0 0.0
    %847 = vmatpush1.msra.mxu0 %v76
    %848 = vmatprep.subr.mxu0 0.0
    %849 = vmatpush1.msra.mxu0 %v77
    %850 = vmatprep.subr.mxu0 0.0
    %851 = vmatpush1.msra.mxu0 0.0
    %852 = vmatprep.subr.mxu0 0.0
    %853 = vmatpush1.msra.mxu0 0.0
    %854 = vmatprep.subr.mxu0 0.0
    %855 = vmatpush1.msra.mxu0 0.0
    %856 = vmatprep.subr.mxu0 0.0
    %857 = vmatpush1.msra.mxu0 0.0
    %858 = vmatprep.subr.mxu0 0.0
    %859 = vmatpush1.msra.mxu0 0.0
    %860 = vmatprep.subr.mxu0 0.0
    %861 = vmatpush1.msra.mxu0 0.0
    %862 = vmatprep.subr.mxu0 0.0
    %863 = vmatpush1.msra.mxu0 0.0
    %864 = vmatprep.subr.mxu0 0.0
    %865 = vmatpush1.msra.mxu0 0.0
    %866 = vmatprep.subr.mxu0 0.0
    %867 = vmatpush1.msra.mxu0 0.0
    %868 = vmatprep.subr.mxu0 0.0
    %869 = vmatpush1.msra.mxu0 0.0
    %870 = vmatprep.subr.mxu0 0.0
    %871 = vmatpush1.msra.mxu0 0.0
    %872 = vmatprep.subr.mxu0 0.0
    %873 = vmatpush1.msra.mxu0 0.0
    %874 = vmatprep.subr.mxu0 0.0
    %875 = vmatpush1.msra.mxu0 0.0
    %876 = vmatprep.subr.mxu0 0.0
    %877 = vmatpush1.msra.mxu0 0.0
    %878 = vmatprep.subr.mxu0 0.0
    %879 = vmatpush1.msra.mxu0 0.0
    %880 = vmatprep.subr.mxu0 0.0
    %881 = vmatpush1.msra.mxu0 0.0
    %882 = vmatprep.subr.mxu0 0.0
    %883 = vmatpush1.msra.mxu0 0.0
    %884 = vmatprep.subr.mxu0 0.0
    %885 = vmatpush1.msra.mxu0 0.0
    %886 = vmatprep.subr.mxu0 0.0
    %887 = vmatpush1.msra.mxu0 0.0
    %888 = vmatprep.subr.mxu0 0.0
    %889 = vmatpush1.msra.mxu0 0.0
    %890 = vmatprep.subr.mxu0 0.0
    %891 = vmatpush1.msra.mxu0 0.0
    %892 = vmatprep.subr.mxu0 0.0
    %893 = vmatpush1.msra.mxu0 0.0
    %894 = vmatprep.subr.mxu0 0.0
    %895 = vmatpush1.msra.mxu0 0.0
    %896 = vmatprep.subr.mxu0 0.0
    %897 = vmatpush1.msra.mxu0 0.0
    %898 = vmatprep.subr.mxu0 0.0
    %899 = vmatpush1.msra.mxu0 0.0
    %900 = vmatprep.subr.mxu0 0.0
    %901 = vmatpush1.msra.mxu0 0.0
    %902 = vmatprep.subr.mxu0 0.0
    %903 = vmatpush1.msra.mxu0 0.0
    %904 = vmatprep.subr.mxu0 0.0
    %905 = vmatpush1.msra.mxu0 0.0
    %906 = vmatprep.mubr.f32.mxu0 0.0
    %907 = vmatmul.mubr.f32.gmra.mrb[0].mxu0 %v840
    %v908 = vpop.f32.mrb[0].mxu0
    %v909 = vadd.f32 0.0, %v908
    %v910 = vpop.f32.mrb[0].mxu0
    %911 = vdwg.mxu0
    %v913 = vrot.slane %v909, 6
    %v914 = vrot.slane %v909, 7
    %v917 = vadd.f32 %v178, %v913
    %v918 = vadd.f32 %v183, %v914
    %v919 = vxor.u32 %v917, 2147483648
    %v920 = vxor.u32 %v918, 2147483648
    %v921 = vmul.f32 %v919, 1.442695
    %v922 = vpow.pop %v921
    %v923 = vmul.f32 %v920, 1.442695
    %v924 = vpow.pop %v923
    %v925 = vadd.f32 %v922, 1.0
    %v926 = vadd.f32 %v924, 1.0
    %v927 = vrcp.pop %v925
    %v928 = vmul.f32 1.0, %v927
    %v929 = vrcp.pop %v926
    %v930 = vmul.f32 1.0, %v929
    %931 = vmatprep.subr.mxu0 0.0
    %932 = vmatpush1.msra.mxu0 %v78
    %933 = vmatprep.subr.mxu0 0.0
    %934 = vmatpush1.msra.mxu0 %v79
    %935 = vmatprep.subr.mxu0 0.0
    %936 = vmatpush1.msra.mxu0 %v80
    %937 = vmatprep.subr.mxu0 0.0
    %938 = vmatpush1.msra.mxu0 %v81
    %939 = vmatprep.subr.mxu0 0.0
    %940 = vmatpush1.msra.mxu0 0.0
    %941 = vmatprep.subr.mxu0 0.0
    %942 = vmatpush1.msra.mxu0 0.0
    %943 = vmatprep.subr.mxu0 0.0
    %944 = vmatpush1.msra.mxu0 0.0
    %945 = vmatprep.subr.mxu0 0.0
    %946 = vmatpush1.msra.mxu0 0.0
    %947 = vmatprep.subr.mxu0 0.0
    %948 = vmatpush1.msra.mxu0 0.0
    %949 = vmatprep.subr.mxu0 0.0
    %950 = vmatpush1.msra.mxu0 0.0
    %951 = vmatprep.subr.mxu0 0.0
    %952 = vmatpush1.msra.mxu0 0.0
    %953 = vmatprep.subr.mxu0 0.0
    %954 = vmatpush1.msra.mxu0 0.0
    %955 = vmatprep.subr.mxu0 0.0
    %956 = vmatpush1.msra.mxu0 0.0
    %957 = vmatprep.subr.mxu0 0.0
    %958 = vmatpush1.msra.mxu0 0.0
    %959 = vmatprep.subr.mxu0 0.0
    %960 = vmatpush1.msra.mxu0 0.0
    %961 = vmatprep.subr.mxu0 0.0
    %962 = vmatpush1.msra.mxu0 0.0
    %963 = vmatprep.subr.mxu0 0.0
    %964 = vmatpush1.msra.mxu0 0.0
    %965 = vmatprep.subr.mxu0 0.0
    %966 = vmatpush1.msra.mxu0 0.0
    %967 = vmatprep.subr.mxu0 0.0
    %968 = vmatpush1.msra.mxu0 0.0
    %969 = vmatprep.subr.mxu0 0.0
    %970 = vmatpush1.msra.mxu0 0.0
    %971 = vmatprep.subr.mxu0 0.0
    %972 = vmatpush1.msra.mxu0 0.0
    %973 = vmatprep.subr.mxu0 0.0
    %974 = vmatpush1.msra.mxu0 0.0
    %975 = vmatprep.subr.mxu0 0.0
    %976 = vmatpush1.msra.mxu0 0.0
    %977 = vmatprep.subr.mxu0 0.0
    %978 = vmatpush1.msra.mxu0 0.0
    %979 = vmatprep.subr.mxu0 0.0
    %980 = vmatpush1.msra.mxu0 0.0
    %981 = vmatprep.subr.mxu0 0.0
    %982 = vmatpush1.msra.mxu0 0.0
    %983 = vmatprep.subr.mxu0 0.0
    %984 = vmatpush1.msra.mxu0 0.0
    %985 = vmatprep.subr.mxu0 0.0
    %986 = vmatpush1.msra.mxu0 0.0
    %987 = vmatprep.subr.mxu0 0.0
    %988 = vmatpush1.msra.mxu0 0.0
    %989 = vmatprep.subr.mxu0 0.0
    %990 = vmatpush1.msra.mxu0 0.0
    %991 = vmatprep.subr.mxu0 0.0
    %992 = vmatpush1.msra.mxu0 0.0
    %993 = vmatprep.subr.mxu0 0.0
    %994 = vmatpush1.msra.mxu0 0.0
    %995 = vmatprep.mubr.f32.mxu0 0.0
    %996 = vmatmul.mubr.f32.gmra.mrb[0].mxu0 %v840
    %v997 = vpop.f32.mrb[0].mxu0
    %v998 = vadd.f32 0.0, %v997
    %v999 = vpop.f32.mrb[0].mxu0
    %1000 = vdwg.mxu0
    %v1002 = vrot.slane %v998, 6
    %v1003 = vrot.slane %v998, 7
    %v1006 = vadd.f32 %v262, %v1002
    %v1007 = vadd.f32 %v267, %v1003
    %v1008 = vxor.u32 %v1006, 2147483648
    %v1009 = vxor.u32 %v1007, 2147483648
    %v1010 = vmul.f32 %v1008, 1.442695
    %v1011 = vpow.pop %v1010
    %v1012 = vmul.f32 %v1009, 1.442695
    %v1013 = vpow.pop %v1012
    %v1014 = vadd.f32 %v1011, 1.0
    %v1015 = vadd.f32 %v1013, 1.0
    %v1016 = vrcp.pop %v1014
    %v1017 = vmul.f32 1.0, %v1016
    %v1018 = vrcp.pop %v1015
    %v1019 = vmul.f32 1.0, %v1018
    %1020 = vmatprep.subr.mxu0 0.0
    %1021 = vmatpush1.msra.mxu0 %v82
    %1022 = vmatprep.subr.mxu0 0.0
    %1023 = vmatpush1.msra.mxu0 %v83
    %1024 = vmatprep.subr.mxu0 0.0
    %1025 = vmatpush1.msra.mxu0 %v84
    %1026 = vmatprep.subr.mxu0 0.0
    %1027 = vmatpush1.msra.mxu0 %v85
    %1028 = vmatprep.subr.mxu0 0.0
    %1029 = vmatpush1.msra.mxu0 0.0
    %1030 = vmatprep.subr.mxu0 0.0
    %1031 = vmatpush1.msra.mxu0 0.0
    %1032 = vmatprep.subr.mxu0 0.0
    %1033 = vmatpush1.msra.mxu0 0.0
    %1034 = vmatprep.subr.mxu0 0.0
    %1035 = vmatpush1.msra.mxu0 0.0
    %1036 = vmatprep.subr.mxu0 0.0
    %1037 = vmatpush1.msra.mxu0 0.0
    %1038 = vmatprep.subr.mxu0 0.0
    %1039 = vmatpush1.msra.mxu0 0.0
    %1040 = vmatprep.subr.mxu0 0.0
    %1041 = vmatpush1.msra.mxu0 0.0
    %1042 = vmatprep.subr.mxu0 0.0
    %1043 = vmatpush1.msra.mxu0 0.0
    %1044 = vmatprep.subr.mxu0 0.0
    %1045 = vmatpush1.msra.mxu0 0.0
    %1046 = vmatprep.subr.mxu0 0.0
    %1047 = vmatpush1.msra.mxu0 0.0
    %1048 = vmatprep.subr.mxu0 0.0
    %1049 = vmatpush1.msra.mxu0 0.0
    %1050 = vmatprep.subr.mxu0 0.0
    %1051 = vmatpush1.msra.mxu0 0.0
    %1052 = vmatprep.subr.mxu0 0.0
    %1053 = vmatpush1.msra.mxu0 0.0
    %1054 = vmatprep.subr.mxu0 0.0
    %1055 = vmatpush1.msra.mxu0 0.0
    %1056 = vmatprep.subr.mxu0 0.0
    %1057 = vmatpush1.msra.mxu0 0.0
    %1058 = vmatprep.subr.mxu0 0.0
    %1059 = vmatpush1.msra.mxu0 0.0
    %1060 = vmatprep.subr.mxu0 0.0
    %1061 = vmatpush1.msra.mxu0 0.0
    %1062 = vmatprep.subr.mxu0 0.0
    %1063 = vmatpush1.msra.mxu0 0.0
    %1064 = vmatprep.subr.mxu0 0.0
    %1065 = vmatpush1.msra.mxu0 0.0
    %1066 = vmatprep.subr.mxu0 0.0
    %1067 = vmatpush1.msra.mxu0 0.0
    %1068 = vmatprep.subr.mxu0 0.0
    %1069 = vmatpush1.msra.mxu0 0.0
    %1070 = vmatprep.subr.mxu0 0.0
    %1071 = vmatpush1.msra.mxu0 0.0
    %1072 = vmatprep.subr.mxu0 0.0
    %1073 = vmatpush1.msra.mxu0 0.0
    %1074 = vmatprep.subr.mxu0 0.0
    %1075 = vmatpush1.msra.mxu0 0.0
    %1076 = vmatprep.subr.mxu0 0.0
    %1077 = vmatpush1.msra.mxu0 0.0
    %1078 = vmatprep.subr.mxu0 0.0
    %1079 = vmatpush1.msra.mxu0 0.0
    %1080 = vmatprep.subr.mxu0 0.0
    %1081 = vmatpush1.msra.mxu0 0.0
    %1082 = vmatprep.subr.mxu0 0.0
    %1083 = vmatpush1.msra.mxu0 0.0
    %1084 = vmatprep.mubr.f32.mxu0 0.0
    %1085 = vmatmul.mubr.f32.gmra.mrb[0].mxu0 %v840
    %v1086 = vpop.f32.mrb[0].mxu0
    %v1087 = vadd.f32 0.0, %v1086
    %v1088 = vpop.f32.mrb[0].mxu0
    %1089 = vdwg.mxu0
    %v1091 = vrot.slane %v1087, 6
    %v1092 = vrot.slane %v1087, 7
    %v1095 = vadd.f32 %v346, %v1091
    %v1096 = vadd.f32 %v351, %v1092
    %v1097 = vtanh.pop %v1095
    %v1098 = vtanh.pop %v1096
    %1099 = vmatprep.subr.mxu0 0.0
    %1100 = vmatpush1.msra.mxu0 %v86
    %1101 = vmatprep.subr.mxu0 0.0
    %1102 = vmatpush1.msra.mxu0 %v87
    %1103 = vmatprep.subr.mxu0 0.0
    %1104 = vmatpush1.msra.mxu0 %v88
    %1105 = vmatprep.subr.mxu0 0.0
    %1106 = vmatpush1.msra.mxu0 %v89
    %1107 = vmatprep.subr.mxu0 0.0
    %1108 = vmatpush1.msra.mxu0 0.0
    %1109 = vmatprep.subr.mxu0 0.0
    %1110 = vmatpush1.msra.mxu0 0.0
    %1111 = vmatprep.subr.mxu0 0.0
    %1112 = vmatpush1.msra.mxu0 0.0
    %1113 = vmatprep.subr.mxu0 0.0
    %1114 = vmatpush1.msra.mxu0 0.0
    %1115 = vmatprep.subr.mxu0 0.0
    %1116 = vmatpush1.msra.mxu0 0.0
    %1117 = vmatprep.subr.mxu0 0.0
    %1118 = vmatpush1.msra.mxu0 0.0
    %1119 = vmatprep.subr.mxu0 0.0
    %1120 = vmatpush1.msra.mxu0 0.0
    %1121 = vmatprep.subr.mxu0 0.0
    %1122 = vmatpush1.msra.mxu0 0.0
    %1123 = vmatprep.subr.mxu0 0.0
    %1124 = vmatpush1.msra.mxu0 0.0
    %1125 = vmatprep.subr.mxu0 0.0
    %1126 = vmatpush1.msra.mxu0 0.0
    %1127 = vmatprep.subr.mxu0 0.0
    %1128 = vmatpush1.msra.mxu0 0.0
    %1129 = vmatprep.subr.mxu0 0.0
    %1130 = vmatpush1.msra.mxu0 0.0
    %1131 = vmatprep.subr.mxu0 0.0
    %1132 = vmatpush1.msra.mxu0 0.0
    %1133 = vmatprep.subr.mxu0 0.0
    %1134 = vmatpush1.msra.mxu0 0.0
    %1135 = vmatprep.subr.mxu0 0.0
    %1136 = vmatpush1.msra.mxu0 0.0
    %1137 = vmatprep.subr.mxu0 0.0
    %1138 = vmatpush1.msra.mxu0 0.0
    %1139 = vmatprep.subr.mxu0 0.0
    %1140 = vmatpush1.msra.mxu0 0.0
    %1141 = vmatprep.subr.mxu0 0.0
    %1142 = vmatpush1.msra.mxu0 0.0
    %1143 = vmatprep.subr.mxu0 0.0
    %1144 = vmatpush1.msra.mxu0 0.0
    %1145 = vmatprep.subr.mxu0 0.0
    %1146 = vmatpush1.msra.mxu0 0.0
    %1147 = vmatprep.subr.mxu0 0.0
    %1148 = vmatpush1.msra.mxu0 0.0
    %1149 = vmatprep.subr.mxu0 0.0
    %1150 = vmatpush1.msra.mxu0 0.0
    %1151 = vmatprep.subr.mxu0 0.0
    %1152 = vmatpush1.msra.mxu0 0.0
    %1153 = vmatprep.subr.mxu0 0.0
    %1154 = vmatpush1.msra.mxu0 0.0
    %1155 = vmatprep.subr.mxu0 0.0
    %1156 = vmatpush1.msra.mxu0 0.0
    %1157 = vmatprep.subr.mxu0 0.0
    %1158 = vmatpush1.msra.mxu0 0.0
    %1159 = vmatprep.subr.mxu0 0.0
    %1160 = vmatpush1.msra.mxu0 0.0
    %1161 = vmatprep.subr.mxu0 0.0
    %1162 = vmatpush1.msra.mxu0 0.0
    %1163 = vmatprep.mubr.f32.mxu0 0.0
    %1164 = vmatmul.mubr.f32.gmra.mrb[0].mxu0 %v840
    %v1165 = vpop.f32.mrb[0].mxu0
    %v1166 = vadd.f32 0.0, %v1165
    %v1167 = vpop.f32.mrb[0].mxu0
    %1168 = vdwg.mxu0
    %v1170 = vrot.slane %v1166, 6
    %v1171 = vrot.slane %v1166, 7
    %v1174 = vadd.f32 %v430, %v1170
    %v1175 = vadd.f32 %v435, %v1171
    %v1176 = vxor.u32 %v1174, 2147483648
    %v1177 = vxor.u32 %v1175, 2147483648
    %v1178 = vmul.f32 %v1176, 1.442695
    %v1179 = vpow.pop %v1178
    %v1180 = vmul.f32 %v1177, 1.442695
    %v1181 = vpow.pop %v1180
    %v1182 = vadd.f32 %v1179, 1.0
    %v1183 = vadd.f32 %v1181, 1.0
    %v1184 = vrcp.pop %v1182
    %v1185 = vmul.f32 1.0, %v1184
    %v1186 = vrcp.pop %v1183
    %v1187 = vmul.f32 1.0, %v1186
    %v1190 = vrot.slane %v830, 7
    %v1191 = vrot.slane %v831, 7
    %v1194 = vmul.f32 %v1017, %v1190
    %v1195 = vmul.f32 %v1019, %v1191
    %v1196 = vmul.f32 %v928, %v1097
    %v1197 = vmul.f32 %v930, %v1098
    %v1198 = vadd.f32 %v1194, %v1196
    %v1199 = vadd.f32 %v1195, %v1197
    %v1200 = vtanh.pop %v1198
    %v1201 = vtanh.pop %v1199
    %v1202 = vmul.f32 %v1185, %v1200
    %v1203 = vmul.f32 %v1187, %v1201
    %v1206 = vrot.slane %v1202, 2
    %v1207 = vrot.slane %v1203, 1
    %v1208 = vsel %vm473, %v1207, %v1206
    %v1209 = vsel %vm475, %v1208, 0
    %1211 = vmatprep.subr.mxu0 0.0
    %1212 = vmatpush1.msra.mxu0 %v74
    %1213 = vmatprep.subr.mxu0 0.0
    %1214 = vmatpush1.msra.mxu0 %v75
    %1215 = vmatprep.subr.mxu0 0.0
    %1216 = vmatpush1.msra.mxu0 %v76
    %1217 = vmatprep.subr.mxu0 0.0
    %1218 = vmatpush1.msra.mxu0 %v77
    %1219 = vmatprep.subr.mxu0 0.0
    %1220 = vmatpush1.msra.mxu0 0.0
    %1221 = vmatprep.subr.mxu0 0.0
    %1222 = vmatpush1.msra.mxu0 0.0
    %1223 = vmatprep.subr.mxu0 0.0
    %1224 = vmatpush1.msra.mxu0 0.0
    %1225 = vmatprep.subr.mxu0 0.0
    %1226 = vmatpush1.msra.mxu0 0.0
    %1227 = vmatprep.subr.mxu0 0.0
    %1228 = vmatpush1.msra.mxu0 0.0
    %1229 = vmatprep.subr.mxu0 0.0
    %1230 = vmatpush1.msra.mxu0 0.0
    %1231 = vmatprep.subr.mxu0 0.0
    %1232 = vmatpush1.msra.mxu0 0.0
    %1233 = vmatprep.subr.mxu0 0.0
    %1234 = vmatpush1.msra.mxu0 0.0
    %1235 = vmatprep.subr.mxu0 0.0
    %1236 = vmatpush1.msra.mxu0 0.0
    %1237 = vmatprep.subr.mxu0 0.0
    %1238 = vmatpush1.msra.mxu0 0.0
    %1239 = vmatprep.subr.mxu0 0.0
    %1240 = vmatpush1.msra.mxu0 0.0
    %1241 = vmatprep.subr.mxu0 0.0
    %1242 = vmatpush1.msra.mxu0 0.0
    %1243 = vmatprep.subr.mxu0 0.0
    %1244 = vmatpush1.msra.mxu0 0.0
    %1245 = vmatprep.subr.mxu0 0.0
    %1246 = vmatpush1.msra.mxu0 0.0
    %1247 = vmatprep.subr.mxu0 0.0
    %1248 = vmatpush1.msra.mxu0 0.0
    %1249 = vmatprep.subr.mxu0 0.0
    %1250 = vmatpush1.msra.mxu0 0.0
    %1251 = vmatprep.subr.mxu0 0.0
    %1252 = vmatpush1.msra.mxu0 0.0
    %1253 = vmatprep.subr.mxu0 0.0
    %1254 = vmatpush1.msra.mxu0 0.0
    %1255 = vmatprep.subr.mxu0 0.0
    %1256 = vmatpush1.msra.mxu0 0.0
    %1257 = vmatprep.subr.mxu0 0.0
    %1258 = vmatpush1.msra.mxu0 0.0
    %1259 = vmatprep.subr.mxu0 0.0
    %1260 = vmatpush1.msra.mxu0 0.0
    %1261 = vmatprep.subr.mxu0 0.0
    %1262 = vmatpush1.msra.mxu0 0.0
    %1263 = vmatprep.subr.mxu0 0.0
    %1264 = vmatpush1.msra.mxu0 0.0
    %1265 = vmatprep.subr.mxu0 0.0
    %1266 = vmatpush1.msra.mxu0 0.0
    %1267 = vmatprep.subr.mxu0 0.0
    %1268 = vmatpush1.msra.mxu0 0.0
    %1269 = vmatprep.subr.mxu0 0.0
    %1270 = vmatpush1.msra.mxu0 0.0
    %1271 = vmatprep.subr.mxu0 0.0
    %1272 = vmatpush1.msra.mxu0 0.0
    %1273 = vmatprep.subr.mxu0 0.0
    %1274 = vmatpush1.msra.mxu0 0.0
    %1275 = vmatprep.mubr.f32.mxu0 0.0
    %1276 = vmatmul.mubr.f32.gmra.mrb[0].mxu0 %v1209
    %v1277 = vpop.f32.mrb[0].mxu0
    %v1278 = vadd.f32 0.0, %v1277
    %v1279 = vpop.f32.mrb[0].mxu0
    %1280 = vdwg.mxu0
    %v1282 = vrot.slane %v1278, 5
    %v1283 = vrot.slane %v1278, 6
    %v1286 = vadd.f32 %v178, %v1282
    %v1287 = vadd.f32 %v183, %v1283
    %v1288 = vxor.u32 %v1286, 2147483648
    %v1289 = vxor.u32 %v1287, 2147483648
    %v1290 = vmul.f32 %v1288, 1.442695
    %v1291 = vpow.pop %v1290
    %v1292 = vmul.f32 %v1289, 1.442695
    %v1293 = vpow.pop %v1292
    %v1294 = vadd.f32 %v1291, 1.0
    %v1295 = vadd.f32 %v1293, 1.0
    %v1296 = vrcp.pop %v1294
    %v1297 = vmul.f32 1.0, %v1296
    %v1298 = vrcp.pop %v1295
    %v1299 = vmul.f32 1.0, %v1298
    %1300 = vmatprep.subr.mxu0 0.0
    %1301 = vmatpush1.msra.mxu0 %v78
    %1302 = vmatprep.subr.mxu0 0.0
    %1303 = vmatpush1.msra.mxu0 %v79
    %1304 = vmatprep.subr.mxu0 0.0
    %1305 = vmatpush1.msra.mxu0 %v80
    %1306 = vmatprep.subr.mxu0 0.0
    %1307 = vmatpush1.msra.mxu0 %v81
    %1308 = vmatprep.subr.mxu0 0.0
    %1309 = vmatpush1.msra.mxu0 0.0
    %1310 = vmatprep.subr.mxu0 0.0
    %1311 = vmatpush1.msra.mxu0 0.0
    %1312 = vmatprep.subr.mxu0 0.0
    %1313 = vmatpush1.msra.mxu0 0.0
    %1314 = vmatprep.subr.mxu0 0.0
    %1315 = vmatpush1.msra.mxu0 0.0
    %1316 = vmatprep.subr.mxu0 0.0
    %1317 = vmatpush1.msra.mxu0 0.0
    %1318 = vmatprep.subr.mxu0 0.0
    %1319 = vmatpush1.msra.mxu0 0.0
    %1320 = vmatprep.subr.mxu0 0.0
    %1321 = vmatpush1.msra.mxu0 0.0
    %1322 = vmatprep.subr.mxu0 0.0
    %1323 = vmatpush1.msra.mxu0 0.0
    %1324 = vmatprep.subr.mxu0 0.0
    %1325 = vmatpush1.msra.mxu0 0.0
    %1326 = vmatprep.subr.mxu0 0.0
    %1327 = vmatpush1.msra.mxu0 0.0
    %1328 = vmatprep.subr.mxu0 0.0
    %1329 = vmatpush1.msra.mxu0 0.0
    %1330 = vmatprep.subr.mxu0 0.0
    %1331 = vmatpush1.msra.mxu0 0.0
    %1332 = vmatprep.subr.mxu0 0.0
    %1333 = vmatpush1.msra.mxu0 0.0
    %1334 = vmatprep.subr.mxu0 0.0
    %1335 = vmatpush1.msra.mxu0 0.0
    %1336 = vmatprep.subr.mxu0 0.0
    %1337 = vmatpush1.msra.mxu0 0.0
    %1338 = vmatprep.subr.mxu0 0.0
    %1339 = vmatpush1.msra.mxu0 0.0
    %1340 = vmatprep.subr.mxu0 0.0
    %1341 = vmatpush1.msra.mxu0 0.0
    %1342 = vmatprep.subr.mxu0 0.0
    %1343 = vmatpush1.msra.mxu0 0.0
    %1344 = vmatprep.subr.mxu0 0.0
    %1345 = vmatpush1.msra.mxu0 0.0
    %1346 = vmatprep.subr.mxu0 0.0
    %1347 = vmatpush1.msra.mxu0 0.0
    %1348 = vmatprep.subr.mxu0 0.0
    %1349 = vmatpush1.msra.mxu0 0.0
    %1350 = vmatprep.subr.mxu0 0.0
    %1351 = vmatpush1.msra.mxu0 0.0
    %1352 = vmatprep.subr.mxu0 0.0
    %1353 = vmatpush1.msra.mxu0 0.0
    %1354 = vmatprep.subr.mxu0 0.0
    %1355 = vmatpush1.msra.mxu0 0.0
    %1356 = vmatprep.subr.mxu0 0.0
    %1357 = vmatpush1.msra.mxu0 0.0
    %1358 = vmatprep.subr.mxu0 0.0
    %1359 = vmatpush1.msra.mxu0 0.0
    %1360 = vmatprep.subr.mxu0 0.0
    %1361 = vmatpush1.msra.mxu0 0.0
    %1362 = vmatprep.subr.mxu0 0.0
    %1363 = vmatpush1.msra.mxu0 0.0
    %1364 = vmatprep.mubr.f32.mxu0 0.0
    %1365 = vmatmul.mubr.f32.gmra.mrb[0].mxu0 %v1209
    %v1366 = vpop.f32.mrb[0].mxu0
    %v1367 = vadd.f32 0.0, %v1366
    %v1368 = vpop.f32.mrb[0].mxu0
    %1369 = vdwg.mxu0
    %v1371 = vrot.slane %v1367, 5
    %v1372 = vrot.slane %v1367, 6
    %v1375 = vadd.f32 %v262, %v1371
    %v1376 = vadd.f32 %v267, %v1372
    %v1377 = vxor.u32 %v1375, 2147483648
    %v1378 = vxor.u32 %v1376, 2147483648
    %v1379 = vmul.f32 %v1377, 1.442695
    %v1380 = vpow.pop %v1379
    %v1381 = vmul.f32 %v1378, 1.442695
    %v1382 = vpow.pop %v1381
    %v1383 = vadd.f32 %v1380, 1.0
    %v1384 = vadd.f32 %v1382, 1.0
    %v1385 = vrcp.pop %v1383
    %v1386 = vmul.f32 1.0, %v1385
    %v1387 = vrcp.pop %v1384
    %v1388 = vmul.f32 1.0, %v1387
    %1389 = vmatprep.subr.mxu0 0.0
    %1390 = vmatpush1.msra.mxu0 %v82
    %1391 = vmatprep.subr.mxu0 0.0
    %1392 = vmatpush1.msra.mxu0 %v83
    %1393 = vmatprep.subr.mxu0 0.0
    %1394 = vmatpush1.msra.mxu0 %v84
    %1395 = vmatprep.subr.mxu0 0.0
    %1396 = vmatpush1.msra.mxu0 %v85
    %1397 = vmatprep.subr.mxu0 0.0
    %1398 = vmatpush1.msra.mxu0 0.0
    %1399 = vmatprep.subr.mxu0 0.0
    %1400 = vmatpush1.msra.mxu0 0.0
    %1401 = vmatprep.subr.mxu0 0.0
    %1402 = vmatpush1.msra.mxu0 0.0
    %1403 = vmatprep.subr.mxu0 0.0
    %1404 = vmatpush1.msra.mxu0 0.0
    %1405 = vmatprep.subr.mxu0 0.0
    %1406 = vmatpush1.msra.mxu0 0.0
    %1407 = vmatprep.subr.mxu0 0.0
    %1408 = vmatpush1.msra.mxu0 0.0
    %1409 = vmatprep.subr.mxu0 0.0
    %1410 = vmatpush1.msra.mxu0 0.0
    %1411 = vmatprep.subr.mxu0 0.0
    %1412 = vmatpush1.msra.mxu0 0.0
    %1413 = vmatprep.subr.mxu0 0.0
    %1414 = vmatpush1.msra.mxu0 0.0
    %1415 = vmatprep.subr.mxu0 0.0
    %1416 = vmatpush1.msra.mxu0 0.0
    %1417 = vmatprep.subr.mxu0 0.0
    %1418 = vmatpush1.msra.mxu0 0.0
    %1419 = vmatprep.subr.mxu0 0.0
    %1420 = vmatpush1.msra.mxu0 0.0
    %1421 = vmatprep.subr.mxu0 0.0
    %1422 = vmatpush1.msra.mxu0 0.0
    %1423 = vmatprep.subr.mxu0 0.0
    %1424 = vmatpush1.msra.mxu0 0.0
    %1425 = vmatprep.subr.mxu0 0.0
    %1426 = vmatpush1.msra.mxu0 0.0
    %1427 = vmatprep.subr.mxu0 0.0
    %1428 = vmatpush1.msra.mxu0 0.0
    %1429 = vmatprep.subr.mxu0 0.0
    %1430 = vmatpush1.msra.mxu0 0.0
    %1431 = vmatprep.subr.mxu0 0.0
    %1432 = vmatpush1.msra.mxu0 0.0
    %1433 = vmatprep.subr.mxu0 0.0
    %1434 = vmatpush1.msra.mxu0 0.0
    %1435 = vmatprep.subr.mxu0 0.0
    %1436 = vmatpush1.msra.mxu0 0.0
    %1437 = vmatprep.subr.mxu0 0.0
    %1438 = vmatpush1.msra.mxu0 0.0
    %1439 = vmatprep.subr.mxu0 0.0
    %1440 = vmatpush1.msra.mxu0 0.0
    %1441 = vmatprep.subr.mxu0 0.0
    %1442 = vmatpush1.msra.mxu0 0.0
    %1443 = vmatprep.subr.mxu0 0.0
    %1444 = vmatpush1.msra.mxu0 0.0
    %1445 = vmatprep.subr.mxu0 0.0
    %1446 = vmatpush1.msra.mxu0 0.0
    %1447 = vmatprep.subr.mxu0 0.0
    %1448 = vmatpush1.msra.mxu0 0.0
    %1449 = vmatprep.subr.mxu0 0.0
    %1450 = vmatpush1.msra.mxu0 0.0
    %1451 = vmatprep.subr.mxu0 0.0
    %1452 = vmatpush1.msra.mxu0 0.0
    %1453 = vmatprep.mubr.f32.mxu0 0.0
    %1454 = vmatmul.mubr.f32.gmra.mrb[0].mxu0 %v1209
    %v1455 = vpop.f32.mrb[0].mxu0
    %v1456 = vadd.f32 0.0, %v1455
    %v1457 = vpop.f32.mrb[0].mxu0
    %1458 = vdwg.mxu0
    %v1460 = vrot.slane %v1456, 5
    %v1461 = vrot.slane %v1456, 6
    %v1464 = vadd.f32 %v346, %v1460
    %v1465 = vadd.f32 %v351, %v1461
    %v1466 = vtanh.pop %v1464
    %v1467 = vtanh.pop %v1465
    %1468 = vmatprep.subr.mxu0 0.0
    %1469 = vmatpush1.msra.mxu0 %v86
    %1470 = vmatprep.subr.mxu0 0.0
    %1471 = vmatpush1.msra.mxu0 %v87
    %1472 = vmatprep.subr.mxu0 0.0
    %1473 = vmatpush1.msra.mxu0 %v88
    %1474 = vmatprep.subr.mxu0 0.0
    %1475 = vmatpush1.msra.mxu0 %v89
    %1476 = vmatprep.subr.mxu0 0.0
    %1477 = vmatpush1.msra.mxu0 0.0
    %1478 = vmatprep.subr.mxu0 0.0
    %1479 = vmatpush1.msra.mxu0 0.0
    %1480 = vmatprep.subr.mxu0 0.0
    %1481 = vmatpush1.msra.mxu0 0.0
    %1482 = vmatprep.subr.mxu0 0.0
    %1483 = vmatpush1.msra.mxu0 0.0
    %1484 = vmatprep.subr.mxu0 0.0
    %1485 = vmatpush1.msra.mxu0 0.0
    %1486 = vmatprep.subr.mxu0 0.0
    %1487 = vmatpush1.msra.mxu0 0.0
    %1488 = vmatprep.subr.mxu0 0.0
    %1489 = vmatpush1.msra.mxu0 0.0
    %1490 = vmatprep.subr.mxu0 0.0
    %1491 = vmatpush1.msra.mxu0 0.0
    %1492 = vmatprep.subr.mxu0 0.0
    %1493 = vmatpush1.msra.mxu0 0.0
    %1494 = vmatprep.subr.mxu0 0.0
    %1495 = vmatpush1.msra.mxu0 0.0
    %1496 = vmatprep.subr.mxu0 0.0
    %1497 = vmatpush1.msra.mxu0 0.0
    %1498 = vmatprep.subr.mxu0 0.0
    %1499 = vmatpush1.msra.mxu0 0.0
    %1500 = vmatprep.subr.mxu0 0.0
    %1501 = vmatpush1.msra.mxu0 0.0
    %1502 = vmatprep.subr.mxu0 0.0
    %1503 = vmatpush1.msra.mxu0 0.0
    %1504 = vmatprep.subr.mxu0 0.0
    %1505 = vmatpush1.msra.mxu0 0.0
    %1506 = vmatprep.subr.mxu0 0.0
    %1507 = vmatpush1.msra.mxu0 0.0
    %1508 = vmatprep.subr.mxu0 0.0
    %1509 = vmatpush1.msra.mxu0 0.0
    %1510 = vmatprep.subr.mxu0 0.0
    %1511 = vmatpush1.msra.mxu0 0.0
    %1512 = vmatprep.subr.mxu0 0.0
    %1513 = vmatpush1.msra.mxu0 0.0
    %1514 = vmatprep.subr.mxu0 0.0
    %1515 = vmatpush1.msra.mxu0 0.0
    %1516 = vmatprep.subr.mxu0 0.0
    %1517 = vmatpush1.msra.mxu0 0.0
    %1518 = vmatprep.subr.mxu0 0.0
    %1519 = vmatpush1.msra.mxu0 0.0
    %1520 = vmatprep.subr.mxu0 0.0
    %1521 = vmatpush1.msra.mxu0 0.0
    %1522 = vmatprep.subr.mxu0 0.0
    %1523 = vmatpush1.msra.mxu0 0.0
    %1524 = vmatprep.subr.mxu0 0.0
    %1525 = vmatpush1.msra.mxu0 0.0
    %1526 = vmatprep.subr.mxu0 0.0
    %1527 = vmatpush1.msra.mxu0 0.0
    %1528 = vmatprep.subr.mxu0 0.0
    %1529 = vmatpush1.msra.mxu0 0.0
    %1530 = vmatprep.subr.mxu0 0.0
    %1531 = vmatpush1.msra.mxu0 0.0
    %1532 = vmatprep.mubr.f32.mxu0 0.0
    %1533 = vmatmul.mubr.f32.gmra.mrb[0].mxu0 %v1209
    %v1534 = vpop.f32.mrb[0].mxu0
    %v1535 = vadd.f32 0.0, %v1534
    %v1536 = vpop.f32.mrb[0].mxu0
    %1537 = vdwg.mxu0
    %v1539 = vrot.slane %v1535, 5
    %v1540 = vrot.slane %v1535, 6
    %v1543 = vadd.f32 %v430, %v1539
    %v1544 = vadd.f32 %v435, %v1540
    %v1545 = vxor.u32 %v1543, 2147483648
    %v1546 = vxor.u32 %v1544, 2147483648
    %v1547 = vmul.f32 %v1545, 1.442695
    %v1548 = vpow.pop %v1547
    %v1549 = vmul.f32 %v1546, 1.442695
    %v1550 = vpow.pop %v1549
    %v1551 = vadd.f32 %v1548, 1.0
    %v1552 = vadd.f32 %v1550, 1.0
    %v1553 = vrcp.pop %v1551
    %v1554 = vmul.f32 1.0, %v1553
    %v1555 = vrcp.pop %v1552
    %v1556 = vmul.f32 1.0, %v1555
    %v1559 = vrot.slane %v1198, 7
    %v1560 = vrot.slane %v1199, 7
    %v1563 = vmul.f32 %v1386, %v1559
    %v1564 = vmul.f32 %v1388, %v1560
    %v1565 = vmul.f32 %v1297, %v1466
    %v1566 = vmul.f32 %v1299, %v1467
    %v1567 = vadd.f32 %v1563, %v1565
    %v1568 = vadd.f32 %v1564, %v1566
    %v1569 = vtanh.pop %v1567
    %v1570 = vtanh.pop %v1568
    %v1571 = vmul.f32 %v1554, %v1569
    %v1572 = vmul.f32 %v1556, %v1570
    %v1575 = vrot.slane %v1571, 3
    %v1576 = vrot.slane %v1572, 2
    %v1577 = vsel %vm473, %v1576, %v1575
    %v1578 = vsel %vm475, %v1577, 0
    %1580 = vmatprep.subr.mxu0 0.0
    %1581 = vmatpush1.msra.mxu0 %v74
    %1582 = vmatprep.subr.mxu0 0.0
    %1583 = vmatpush1.msra.mxu0 %v75
    %1584 = vmatprep.subr.mxu0 0.0
    %1585 = vmatpush1.msra.mxu0 %v76
    %1586 = vmatprep.subr.mxu0 0.0
    %1587 = vmatpush1.msra.mxu0 %v77
    %1588 = vmatprep.subr.mxu0 0.0
    %1589 = vmatpush1.msra.mxu0 0.0
    %1590 = vmatprep.subr.mxu0 0.0
    %1591 = vmatpush1.msra.mxu0 0.0
    %1592 = vmatprep.subr.mxu0 0.0
    %1593 = vmatpush1.msra.mxu0 0.0
    %1594 = vmatprep.subr.mxu0 0.0
    %1595 = vmatpush1.msra.mxu0 0.0
    %1596 = vmatprep.subr.mxu0 0.0
    %1597 = vmatpush1.msra.mxu0 0.0
    %1598 = vmatprep.subr.mxu0 0.0
    %1599 = vmatpush1.msra.mxu0 0.0
    %1600 = vmatprep.subr.mxu0 0.0
    %1601 = vmatpush1.msra.mxu0 0.0
    %1602 = vmatprep.subr.mxu0 0.0
    %1603 = vmatpush1.msra.mxu0 0.0
    %1604 = vmatprep.subr.mxu0 0.0
    %1605 = vmatpush1.msra.mxu0 0.0
    %1606 = vmatprep.subr.mxu0 0.0
    %1607 = vmatpush1.msra.mxu0 0.0
    %1608 = vmatprep.subr.mxu0 0.0
    %1609 = vmatpush1.msra.mxu0 0.0
    %1610 = vmatprep.subr.mxu0 0.0
    %1611 = vmatpush1.msra.mxu0 0.0
    %1612 = vmatprep.subr.mxu0 0.0
    %1613 = vmatpush1.msra.mxu0 0.0
    %1614 = vmatprep.subr.mxu0 0.0
    %1615 = vmatpush1.msra.mxu0 0.0
    %1616 = vmatprep.subr.mxu0 0.0
    %1617 = vmatpush1.msra.mxu0 0.0
    %1618 = vmatprep.subr.mxu0 0.0
    %1619 = vmatpush1.msra.mxu0 0.0
    %1620 = vmatprep.subr.mxu0 0.0
    %1621 = vmatpush1.msra.mxu0 0.0
    %1622 = vmatprep.subr.mxu0 0.0
    %1623 = vmatpush1.msra.mxu0 0.0
    %1624 = vmatprep.subr.mxu0 0.0
    %1625 = vmatpush1.msra.mxu0 0.0
    %1626 = vmatprep.subr.mxu0 0.0
    %1627 = vmatpush1.msra.mxu0 0.0
    %1628 = vmatprep.subr.mxu0 0.0
    %1629 = vmatpush1.msra.mxu0 0.0
    %1630 = vmatprep.subr.mxu0 0.0
    %1631 = vmatpush1.msra.mxu0 0.0
    %1632 = vmatprep.subr.mxu0 0.0
    %1633 = vmatpush1.msra.mxu0 0.0
    %1634 = vmatprep.subr.mxu0 0.0
    %1635 = vmatpush1.msra.mxu0 0.0
    %1636 = vmatprep.subr.mxu0 0.0
    %1637 = vmatpush1.msra.mxu0 0.0
    %1638 = vmatprep.subr.mxu0 0.0
    %1639 = vmatpush1.msra.mxu0 0.0
    %1640 = vmatprep.subr.mxu0 0.0
    %1641 = vmatpush1.msra.mxu0 0.0
    %1642 = vmatprep.subr.mxu0 0.0
    %1643 = vmatpush1.msra.mxu0 0.0
    %1644 = vmatprep.mubr.f32.mxu0 0.0
    %1645 = vmatmul.mubr.f32.gmra.mrb[0].mxu0 %v1578
    %v1646 = vpop.f32.mrb[0].mxu0
    %v1647 = vadd.f32 0.0, %v1646
    %v1648 = vpop.f32.mrb[0].mxu0
    %1649 = vdwg.mxu0
    %v1651 = vrot.slane %v1647, 4
    %v1652 = vrot.slane %v1647, 5
    %v1655 = vadd.f32 %v178, %v1651
    %v1656 = vadd.f32 %v183, %v1652
    %v1657 = vxor.u32 %v1655, 2147483648
    %v1658 = vxor.u32 %v1656, 2147483648
    %v1659 = vmul.f32 %v1657, 1.442695
    %v1660 = vpow.pop %v1659
    %v1661 = vmul.f32 %v1658, 1.442695
    %v1662 = vpow.pop %v1661
    %v1663 = vadd.f32 %v1660, 1.0
    %v1664 = vadd.f32 %v1662, 1.0
    %v1665 = vrcp.pop %v1663
    %v1666 = vmul.f32 1.0, %v1665
    %v1667 = vrcp.pop %v1664
    %v1668 = vmul.f32 1.0, %v1667
    %1669 = vmatprep.subr.mxu0 0.0
    %1670 = vmatpush1.msra.mxu0 %v78
    %1671 = vmatprep.subr.mxu0 0.0
    %1672 = vmatpush1.msra.mxu0 %v79
    %1673 = vmatprep.subr.mxu0 0.0
    %1674 = vmatpush1.msra.mxu0 %v80
    %1675 = vmatprep.subr.mxu0 0.0
    %1676 = vmatpush1.msra.mxu0 %v81
    %1677 = vmatprep.subr.mxu0 0.0
    %1678 = vmatpush1.msra.mxu0 0.0
    %1679 = vmatprep.subr.mxu0 0.0
    %1680 = vmatpush1.msra.mxu0 0.0
    %1681 = vmatprep.subr.mxu0 0.0
    %1682 = vmatpush1.msra.mxu0 0.0
    %1683 = vmatprep.subr.mxu0 0.0
    %1684 = vmatpush1.msra.mxu0 0.0
    %1685 = vmatprep.subr.mxu0 0.0
    %1686 = vmatpush1.msra.mxu0 0.0
    %1687 = vmatprep.subr.mxu0 0.0
    %1688 = vmatpush1.msra.mxu0 0.0
    %1689 = vmatprep.subr.mxu0 0.0
    %1690 = vmatpush1.msra.mxu0 0.0
    %1691 = vmatprep.subr.mxu0 0.0
    %1692 = vmatpush1.msra.mxu0 0.0
    %1693 = vmatprep.subr.mxu0 0.0
    %1694 = vmatpush1.msra.mxu0 0.0
    %1695 = vmatprep.subr.mxu0 0.0
    %1696 = vmatpush1.msra.mxu0 0.0
    %1697 = vmatprep.subr.mxu0 0.0
    %1698 = vmatpush1.msra.mxu0 0.0
    %1699 = vmatprep.subr.mxu0 0.0
    %1700 = vmatpush1.msra.mxu0 0.0
    %1701 = vmatprep.subr.mxu0 0.0
    %1702 = vmatpush1.msra.mxu0 0.0
    %1703 = vmatprep.subr.mxu0 0.0
    %1704 = vmatpush1.msra.mxu0 0.0
    %1705 = vmatprep.subr.mxu0 0.0
    %1706 = vmatpush1.msra.mxu0 0.0
    %1707 = vmatprep.subr.mxu0 0.0
    %1708 = vmatpush1.msra.mxu0 0.0
    %1709 = vmatprep.subr.mxu0 0.0
    %1710 = vmatpush1.msra.mxu0 0.0
    %1711 = vmatprep.subr.mxu0 0.0
    %1712 = vmatpush1.msra.mxu0 0.0
    %1713 = vmatprep.subr.mxu0 0.0
    %1714 = vmatpush1.msra.mxu0 0.0
    %1715 = vmatprep.subr.mxu0 0.0
    %1716 = vmatpush1.msra.mxu0 0.0
    %1717 = vmatprep.subr.mxu0 0.0
    %1718 = vmatpush1.msra.mxu0 0.0
    %1719 = vmatprep.subr.mxu0 0.0
    %1720 = vmatpush1.msra.mxu0 0.0
    %1721 = vmatprep.subr.mxu0 0.0
    %1722 = vmatpush1.msra.mxu0 0.0
    %1723 = vmatprep.subr.mxu0 0.0
    %1724 = vmatpush1.msra.mxu0 0.0
    %1725 = vmatprep.subr.mxu0 0.0
    %1726 = vmatpush1.msra.mxu0 0.0
    %1727 = vmatprep.subr.mxu0 0.0
    %1728 = vmatpush1.msra.mxu0 0.0
    %1729 = vmatprep.subr.mxu0 0.0
    %1730 = vmatpush1.msra.mxu0 0.0
    %1731 = vmatprep.subr.mxu0 0.0
    %1732 = vmatpush1.msra.mxu0 0.0
    %1733 = vmatprep.mubr.f32.mxu0 0.0
    %1734 = vmatmul.mubr.f32.gmra.mrb[0].mxu0 %v1578
    %v1735 = vpop.f32.mrb[0].mxu0
    %v1736 = vadd.f32 0.0, %v1735
    %v1737 = vpop.f32.mrb[0].mxu0
    %1738 = vdwg.mxu0
    %v1740 = vrot.slane %v1736, 4
    %v1741 = vrot.slane %v1736, 5
    %v1744 = vadd.f32 %v262, %v1740
    %v1745 = vadd.f32 %v267, %v1741
    %v1746 = vxor.u32 %v1744, 2147483648
    %v1747 = vxor.u32 %v1745, 2147483648
    %v1748 = vmul.f32 %v1746, 1.442695
    %v1749 = vpow.pop %v1748
    %v1750 = vmul.f32 %v1747, 1.442695
    %v1751 = vpow.pop %v1750
    %v1752 = vadd.f32 %v1749, 1.0
    %v1753 = vadd.f32 %v1751, 1.0
    %v1754 = vrcp.pop %v1752
    %v1755 = vmul.f32 1.0, %v1754
    %v1756 = vrcp.pop %v1753
    %v1757 = vmul.f32 1.0, %v1756
    %1758 = vmatprep.subr.mxu0 0.0
    %1759 = vmatpush1.msra.mxu0 %v82
    %1760 = vmatprep.subr.mxu0 0.0
    %1761 = vmatpush1.msra.mxu0 %v83
    %1762 = vmatprep.subr.mxu0 0.0
    %1763 = vmatpush1.msra.mxu0 %v84
    %1764 = vmatprep.subr.mxu0 0.0
    %1765 = vmatpush1.msra.mxu0 %v85
    %1766 = vmatprep.subr.mxu0 0.0
    %1767 = vmatpush1.msra.mxu0 0.0
    %1768 = vmatprep.subr.mxu0 0.0
    %1769 = vmatpush1.msra.mxu0 0.0
    %1770 = vmatprep.subr.mxu0 0.0
    %1771 = vmatpush1.msra.mxu0 0.0
    %1772 = vmatprep.subr.mxu0 0.0
    %1773 = vmatpush1.msra.mxu0 0.0
    %1774 = vmatprep.subr.mxu0 0.0
    %1775 = vmatpush1.msra.mxu0 0.0
    %1776 = vmatprep.subr.mxu0 0.0
    %1777 = vmatpush1.msra.mxu0 0.0
    %1778 = vmatprep.subr.mxu0 0.0
    %1779 = vmatpush1.msra.mxu0 0.0
    %1780 = vmatprep.subr.mxu0 0.0
    %1781 = vmatpush1.msra.mxu0 0.0
    %1782 = vmatprep.subr.mxu0 0.0
    %1783 = vmatpush1.msra.mxu0 0.0
    %1784 = vmatprep.subr.mxu0 0.0
    %1785 = vmatpush1.msra.mxu0 0.0
    %1786 = vmatprep.subr.mxu0 0.0
    %1787 = vmatpush1.msra.mxu0 0.0
    %1788 = vmatprep.subr.mxu0 0.0
    %1789 = vmatpush1.msra.mxu0 0.0
    %1790 = vmatprep.subr.mxu0 0.0
    %1791 = vmatpush1.msra.mxu0 0.0
    %1792 = vmatprep.subr.mxu0 0.0
    %1793 = vmatpush1.msra.mxu0 0.0
    %1794 = vmatprep.subr.mxu0 0.0
    %1795 = vmatpush1.msra.mxu0 0.0
    %1796 = vmatprep.subr.mxu0 0.0
    %1797 = vmatpush1.msra.mxu0 0.0
    %1798 = vmatprep.subr.mxu0 0.0
    %1799 = vmatpush1.msra.mxu0 0.0
    %1800 = vmatprep.subr.mxu0 0.0
    %1801 = vmatpush1.msra.mxu0 0.0
    %1802 = vmatprep.subr.mxu0 0.0
    %1803 = vmatpush1.msra.mxu0 0.0
    %1804 = vmatprep.subr.mxu0 0.0
    %1805 = vmatpush1.msra.mxu0 0.0
    %1806 = vmatprep.subr.mxu0 0.0
    %1807 = vmatpush1.msra.mxu0 0.0
    %1808 = vmatprep.subr.mxu0 0.0
    %1809 = vmatpush1.msra.mxu0 0.0
    %1810 = vmatprep.subr.mxu0 0.0
    %1811 = vmatpush1.msra.mxu0 0.0
    %1812 = vmatprep.subr.mxu0 0.0
    %1813 = vmatpush1.msra.mxu0 0.0
    %1814 = vmatprep.subr.mxu0 0.0
    %1815 = vmatpush1.msra.mxu0 0.0
    %1816 = vmatprep.subr.mxu0 0.0
    %1817 = vmatpush1.msra.mxu0 0.0
    %1818 = vmatprep.subr.mxu0 0.0
    %1819 = vmatpush1.msra.mxu0 0.0
    %1820 = vmatprep.subr.mxu0 0.0
    %1821 = vmatpush1.msra.mxu0 0.0
    %1822 = vmatprep.mubr.f32.mxu0 0.0
    %1823 = vmatmul.mubr.f32.gmra.mrb[0].mxu0 %v1578
    %v1824 = vpop.f32.mrb[0].mxu0
    %v1825 = vadd.f32 0.0, %v1824
    %v1826 = vpop.f32.mrb[0].mxu0
    %1827 = vdwg.mxu0
    %v1829 = vrot.slane %v1825, 4
    %v1830 = vrot.slane %v1825, 5
    %v1833 = vadd.f32 %v346, %v1829
    %v1834 = vadd.f32 %v351, %v1830
    %v1835 = vtanh.pop %v1833
    %v1836 = vtanh.pop %v1834
    %1837 = vmatprep.subr.mxu0 0.0
    %1838 = vmatpush1.msra.mxu0 %v86
    %1839 = vmatprep.subr.mxu0 0.0
    %1840 = vmatpush1.msra.mxu0 %v87
    %1841 = vmatprep.subr.mxu0 0.0
    %1842 = vmatpush1.msra.mxu0 %v88
    %1843 = vmatprep.subr.mxu0 0.0
    %1844 = vmatpush1.msra.mxu0 %v89
    %1845 = vmatprep.subr.mxu0 0.0
    %1846 = vmatpush1.msra.mxu0 0.0
    %1847 = vmatprep.subr.mxu0 0.0
    %1848 = vmatpush1.msra.mxu0 0.0
    %1849 = vmatprep.subr.mxu0 0.0
    %1850 = vmatpush1.msra.mxu0 0.0
    %1851 = vmatprep.subr.mxu0 0.0
    %1852 = vmatpush1.msra.mxu0 0.0
    %1853 = vmatprep.subr.mxu0 0.0
    %1854 = vmatpush1.msra.mxu0 0.0
    %1855 = vmatprep.subr.mxu0 0.0
    %1856 = vmatpush1.msra.mxu0 0.0
    %1857 = vmatprep.subr.mxu0 0.0
    %1858 = vmatpush1.msra.mxu0 0.0
    %1859 = vmatprep.subr.mxu0 0.0
    %1860 = vmatpush1.msra.mxu0 0.0
    %1861 = vmatprep.subr.mxu0 0.0
    %1862 = vmatpush1.msra.mxu0 0.0
    %1863 = vmatprep.subr.mxu0 0.0
    %1864 = vmatpush1.msra.mxu0 0.0
    %1865 = vmatprep.subr.mxu0 0.0
    %1866 = vmatpush1.msra.mxu0 0.0
    %1867 = vmatprep.subr.mxu0 0.0
    %1868 = vmatpush1.msra.mxu0 0.0
    %1869 = vmatprep.subr.mxu0 0.0
    %1870 = vmatpush1.msra.mxu0 0.0
    %1871 = vmatprep.subr.mxu0 0.0
    %1872 = vmatpush1.msra.mxu0 0.0
    %1873 = vmatprep.subr.mxu0 0.0
    %1874 = vmatpush1.msra.mxu0 0.0
    %1875 = vmatprep.subr.mxu0 0.0
    %1876 = vmatpush1.msra.mxu0 0.0
    %1877 = vmatprep.subr.mxu0 0.0
    %1878 = vmatpush1.msra.mxu0 0.0
    %1879 = vmatprep.subr.mxu0 0.0
    %1880 = vmatpush1.msra.mxu0 0.0
    %1881 = vmatprep.subr.mxu0 0.0
    %1882 = vmatpush1.msra.mxu0 0.0
    %1883 = vmatprep.subr.mxu0 0.0
    %1884 = vmatpush1.msra.mxu0 0.0
    %1885 = vmatprep.subr.mxu0 0.0
    %1886 = vmatpush1.msra.mxu0 0.0
    %1887 = vmatprep.subr.mxu0 0.0
    %1888 = vmatpush1.msra.mxu0 0.0
    %1889 = vmatprep.subr.mxu0 0.0
    %1890 = vmatpush1.msra.mxu0 0.0
    %1891 = vmatprep.subr.mxu0 0.0
    %1892 = vmatpush1.msra.mxu0 0.0
    %1893 = vmatprep.subr.mxu0 0.0
    %1894 = vmatpush1.msra.mxu0 0.0
    %1895 = vmatprep.subr.mxu0 0.0
    %1896 = vmatpush1.msra.mxu0 0.0
    %1897 = vmatprep.subr.mxu0 0.0
    %1898 = vmatpush1.msra.mxu0 0.0
    %1899 = vmatprep.subr.mxu0 0.0
    %1900 = vmatpush1.msra.mxu0 0.0
    %1901 = vmatprep.mubr.f32.mxu0 0.0
    %1902 = vmatmul.mubr.f32.gmra.mrb[0].mxu0 %v1578
    %v1903 = vpop.f32.mrb[0].mxu0
    %v1904 = vadd.f32 0.0, %v1903
    %v1905 = vpop.f32.mrb[0].mxu0
    %1906 = vdwg.mxu0
    %v1908 = vrot.slane %v1904, 4
    %v1909 = vrot.slane %v1904, 5
    %v1912 = vadd.f32 %v430, %v1908
    %v1913 = vadd.f32 %v435, %v1909
    %v1914 = vxor.u32 %v1912, 2147483648
    %v1915 = vxor.u32 %v1913, 2147483648
    %v1916 = vmul.f32 %v1914, 1.442695
    %v1917 = vpow.pop %v1916
    %v1918 = vmul.f32 %v1915, 1.442695
    %v1919 = vpow.pop %v1918
    %v1920 = vadd.f32 %v1917, 1.0
    %v1921 = vadd.f32 %v1919, 1.0
    %v1922 = vrcp.pop %v1920
    %v1923 = vmul.f32 1.0, %v1922
    %v1924 = vrcp.pop %v1921
    %v1925 = vmul.f32 1.0, %v1924
    %v1928 = vrot.slane %v1567, 7
    %v1929 = vrot.slane %v1568, 7
    %v1932 = vmul.f32 %v1755, %v1928
    %v1933 = vmul.f32 %v1757, %v1929
    %v1934 = vmul.f32 %v1666, %v1835
    %v1935 = vmul.f32 %v1668, %v1836
    %v1936 = vadd.f32 %v1932, %v1934
    %v1937 = vadd.f32 %v1933, %v1935
    %v1938 = vtanh.pop %v1936
    %v1939 = vtanh.pop %v1937
    %v1940 = vmul.f32 %v1923, %v1938
    %v1941 = vmul.f32 %v1925, %v1939
    %v1944 = vrot.slane %v1940, 4
    %v1945 = vrot.slane %v1941, 3
    %v1946 = vsel %vm473, %v1945, %v1944
    %v1947 = vsel %vm475, %v1946, 0
    %1949 = vmatprep.subr.mxu0 0.0
    %1950 = vmatpush1.msra.mxu0 %v74
    %1951 = vmatprep.subr.mxu0 0.0
    %1952 = vmatpush1.msra.mxu0 %v75
    %1953 = vmatprep.subr.mxu0 0.0
    %1954 = vmatpush1.msra.mxu0 %v76
    %1955 = vmatprep.subr.mxu0 0.0
    %1956 = vmatpush1.msra.mxu0 %v77
    %1957 = vmatprep.subr.mxu0 0.0
    %1958 = vmatpush1.msra.mxu0 0.0
    %1959 = vmatprep.subr.mxu0 0.0
    %1960 = vmatpush1.msra.mxu0 0.0
    %1961 = vmatprep.subr.mxu0 0.0
    %1962 = vmatpush1.msra.mxu0 0.0
    %1963 = vmatprep.subr.mxu0 0.0
    %1964 = vmatpush1.msra.mxu0 0.0
    %1965 = vmatprep.subr.mxu0 0.0
    %1966 = vmatpush1.msra.mxu0 0.0
    %1967 = vmatprep.subr.mxu0 0.0
    %1968 = vmatpush1.msra.mxu0 0.0
    %1969 = vmatprep.subr.mxu0 0.0
    %1970 = vmatpush1.msra.mxu0 0.0
    %1971 = vmatprep.subr.mxu0 0.0
    %1972 = vmatpush1.msra.mxu0 0.0
    %1973 = vmatprep.subr.mxu0 0.0
    %1974 = vmatpush1.msra.mxu0 0.0
    %1975 = vmatprep.subr.mxu0 0.0
    %1976 = vmatpush1.msra.mxu0 0.0
    %1977 = vmatprep.subr.mxu0 0.0
    %1978 = vmatpush1.msra.mxu0 0.0
    %1979 = vmatprep.subr.mxu0 0.0
    %1980 = vmatpush1.msra.mxu0 0.0
    %1981 = vmatprep.subr.mxu0 0.0
    %1982 = vmatpush1.msra.mxu0 0.0
    %1983 = vmatprep.subr.mxu0 0.0
    %1984 = vmatpush1.msra.mxu0 0.0
    %1985 = vmatprep.subr.mxu0 0.0
    %1986 = vmatpush1.msra.mxu0 0.0
    %1987 = vmatprep.subr.mxu0 0.0
    %1988 = vmatpush1.msra.mxu0 0.0
    %1989 = vmatprep.subr.mxu0 0.0
    %1990 = vmatpush1.msra.mxu0 0.0
    %1991 = vmatprep.subr.mxu0 0.0
    %1992 = vmatpush1.msra.mxu0 0.0
    %1993 = vmatprep.subr.mxu0 0.0
    %1994 = vmatpush1.msra.mxu0 0.0
    %1995 = vmatprep.subr.mxu0 0.0
    %1996 = vmatpush1.msra.mxu0 0.0
    %1997 = vmatprep.subr.mxu0 0.0
    %1998 = vmatpush1.msra.mxu0 0.0
    %1999 = vmatprep.subr.mxu0 0.0
    %2000 = vmatpush1.msra.mxu0 0.0
    %2001 = vmatprep.subr.mxu0 0.0
    %2002 = vmatpush1.msra.mxu0 0.0
    %2003 = vmatprep.subr.mxu0 0.0
    %2004 = vmatpush1.msra.mxu0 0.0
    %2005 = vmatprep.subr.mxu0 0.0
    %2006 = vmatpush1.msra.mxu0 0.0
    %2007 = vmatprep.subr.mxu0 0.0
    %2008 = vmatpush1.msra.mxu0 0.0
    %2009 = vmatprep.subr.mxu0 0.0
    %2010 = vmatpush1.msra.mxu0 0.0
    %2011 = vmatprep.subr.mxu0 0.0
    %2012 = vmatpush1.msra.mxu0 0.0
    %2013 = vmatprep.mubr.f32.mxu0 0.0
    %2014 = vmatmul.mubr.f32.gmra.mrb[0].mxu0 %v1947
    %v2015 = vpop.f32.mrb[0].mxu0
    %v2016 = vadd.f32 0.0, %v2015
    %v2017 = vpop.f32.mrb[0].mxu0
    %2018 = vdwg.mxu0
    %v2020 = vrot.slane %v2016, 3
    %v2021 = vrot.slane %v2016, 4
    %v2024 = vadd.f32 %v178, %v2020
    %v2025 = vadd.f32 %v183, %v2021
    %v2026 = vxor.u32 %v2024, 2147483648
    %v2027 = vxor.u32 %v2025, 2147483648
    %v2028 = vmul.f32 %v2026, 1.442695
    %v2029 = vpow.pop %v2028
    %v2030 = vmul.f32 %v2027, 1.442695
    %v2031 = vpow.pop %v2030
    %v2032 = vadd.f32 %v2029, 1.0
    %v2033 = vadd.f32 %v2031, 1.0
    %v2034 = vrcp.pop %v2032
    %v2035 = vmul.f32 1.0, %v2034
    %v2036 = vrcp.pop %v2033
    %v2037 = vmul.f32 1.0, %v2036
    %2038 = vmatprep.subr.mxu0 0.0
    %2039 = vmatpush1.msra.mxu0 %v78
    %2040 = vmatprep.subr.mxu0 0.0
    %2041 = vmatpush1.msra.mxu0 %v79
    %2042 = vmatprep.subr.mxu0 0.0
    %2043 = vmatpush1.msra.mxu0 %v80
    %2044 = vmatprep.subr.mxu0 0.0
    %2045 = vmatpush1.msra.mxu0 %v81
    %2046 = vmatprep.subr.mxu0 0.0
    %2047 = vmatpush1.msra.mxu0 0.0
    %2048 = vmatprep.subr.mxu0 0.0
    %2049 = vmatpush1.msra.mxu0 0.0
    %2050 = vmatprep.subr.mxu0 0.0
    %2051 = vmatpush1.msra.mxu0 0.0
    %2052 = vmatprep.subr.mxu0 0.0
    %2053 = vmatpush1.msra.mxu0 0.0
    %2054 = vmatprep.subr.mxu0 0.0
    %2055 = vmatpush1.msra.mxu0 0.0
    %2056 = vmatprep.subr.mxu0 0.0
    %2057 = vmatpush1.msra.mxu0 0.0
    %2058 = vmatprep.subr.mxu0 0.0
    %2059 = vmatpush1.msra.mxu0 0.0
    %2060 = vmatprep.subr.mxu0 0.0
    %2061 = vmatpush1.msra.mxu0 0.0
    %2062 = vmatprep.subr.mxu0 0.0
    %2063 = vmatpush1.msra.mxu0 0.0
    %2064 = vmatprep.subr.mxu0 0.0
    %2065 = vmatpush1.msra.mxu0 0.0
    %2066 = vmatprep.subr.mxu0 0.0
    %2067 = vmatpush1.msra.mxu0 0.0
    %2068 = vmatprep.subr.mxu0 0.0
    %2069 = vmatpush1.msra.mxu0 0.0
    %2070 = vmatprep.subr.mxu0 0.0
    %2071 = vmatpush1.msra.mxu0 0.0
    %2072 = vmatprep.subr.mxu0 0.0
    %2073 = vmatpush1.msra.mxu0 0.0
    %2074 = vmatprep.subr.mxu0 0.0
    %2075 = vmatpush1.msra.mxu0 0.0
    %2076 = vmatprep.subr.mxu0 0.0
    %2077 = vmatpush1.msra.mxu0 0.0
    %2078 = vmatprep.subr.mxu0 0.0
    %2079 = vmatpush1.msra.mxu0 0.0
    %2080 = vmatprep.subr.mxu0 0.0
    %2081 = vmatpush1.msra.mxu0 0.0
    %2082 = vmatprep.subr.mxu0 0.0
    %2083 = vmatpush1.msra.mxu0 0.0
    %2084 = vmatprep.subr.mxu0 0.0
    %2085 = vmatpush1.msra.mxu0 0.0
    %2086 = vmatprep.subr.mxu0 0.0
    %2087 = vmatpush1.msra.mxu0 0.0
    %2088 = vmatprep.subr.mxu0 0.0
    %2089 = vmatpush1.msra.mxu0 0.0
    %2090 = vmatprep.subr.mxu0 0.0
    %2091 = vmatpush1.msra.mxu0 0.0
    %2092 = vmatprep.subr.mxu0 0.0
    %2093 = vmatpush1.msra.mxu0 0.0
    %2094 = vmatprep.subr.mxu0 0.0
    %2095 = vmatpush1.msra.mxu0 0.0
    %2096 = vmatprep.subr.mxu0 0.0
    %2097 = vmatpush1.msra.mxu0 0.0
    %2098 = vmatprep.subr.mxu0 0.0
    %2099 = vmatpush1.msra.mxu0 0.0
    %2100 = vmatprep.subr.mxu0 0.0
    %2101 = vmatpush1.msra.mxu0 0.0
    %2102 = vmatprep.mubr.f32.mxu0 0.0
    %2103 = vmatmul.mubr.f32.gmra.mrb[0].mxu0 %v1947
    %v2104 = vpop.f32.mrb[0].mxu0
    %v2105 = vadd.f32 0.0, %v2104
    %v2106 = vpop.f32.mrb[0].mxu0
    %2107 = vdwg.mxu0
    %v2109 = vrot.slane %v2105, 3
    %v2110 = vrot.slane %v2105, 4
    %v2113 = vadd.f32 %v262, %v2109
    %v2114 = vadd.f32 %v267, %v2110
    %v2115 = vxor.u32 %v2113, 2147483648
    %v2116 = vxor.u32 %v2114, 2147483648
    %v2117 = vmul.f32 %v2115, 1.442695
    %v2118 = vpow.pop %v2117
    %v2119 = vmul.f32 %v2116, 1.442695
    %v2120 = vpow.pop %v2119
    %v2121 = vadd.f32 %v2118, 1.0
    %v2122 = vadd.f32 %v2120, 1.0
    %v2123 = vrcp.pop %v2121
    %v2124 = vmul.f32 1.0, %v2123
    %v2125 = vrcp.pop %v2122
    %v2126 = vmul.f32 1.0, %v2125
    %2127 = vmatprep.subr.mxu0 0.0
    %2128 = vmatpush1.msra.mxu0 %v82
    %2129 = vmatprep.subr.mxu0 0.0
    %2130 = vmatpush1.msra.mxu0 %v83
    %2131 = vmatprep.subr.mxu0 0.0
    %2132 = vmatpush1.msra.mxu0 %v84
    %2133 = vmatprep.subr.mxu0 0.0
    %2134 = vmatpush1.msra.mxu0 %v85
    %2135 = vmatprep.subr.mxu0 0.0
    %2136 = vmatpush1.msra.mxu0 0.0
    %2137 = vmatprep.subr.mxu0 0.0
    %2138 = vmatpush1.msra.mxu0 0.0
    %2139 = vmatprep.subr.mxu0 0.0
    %2140 = vmatpush1.msra.mxu0 0.0
    %2141 = vmatprep.subr.mxu0 0.0
    %2142 = vmatpush1.msra.mxu0 0.0
    %2143 = vmatprep.subr.mxu0 0.0
    %2144 = vmatpush1.msra.mxu0 0.0
    %2145 = vmatprep.subr.mxu0 0.0
    %2146 = vmatpush1.msra.mxu0 0.0
    %2147 = vmatprep.subr.mxu0 0.0
    %2148 = vmatpush1.msra.mxu0 0.0
    %2149 = vmatprep.subr.mxu0 0.0
    %2150 = vmatpush1.msra.mxu0 0.0
    %2151 = vmatprep.subr.mxu0 0.0
    %2152 = vmatpush1.msra.mxu0 0.0
    %2153 = vmatprep.subr.mxu0 0.0
    %2154 = vmatpush1.msra.mxu0 0.0
    %2155 = vmatprep.subr.mxu0 0.0
    %2156 = vmatpush1.msra.mxu0 0.0
    %2157 = vmatprep.subr.mxu0 0.0
    %2158 = vmatpush1.msra.mxu0 0.0
    %2159 = vmatprep.subr.mxu0 0.0
    %2160 = vmatpush1.msra.mxu0 0.0
    %2161 = vmatprep.subr.mxu0 0.0
    %2162 = vmatpush1.msra.mxu0 0.0
    %2163 = vmatprep.subr.mxu0 0.0
    %2164 = vmatpush1.msra.mxu0 0.0
    %2165 = vmatprep.subr.mxu0 0.0
    %2166 = vmatpush1.msra.mxu0 0.0
    %2167 = vmatprep.subr.mxu0 0.0
    %2168 = vmatpush1.msra.mxu0 0.0
    %2169 = vmatprep.subr.mxu0 0.0
    %2170 = vmatpush1.msra.mxu0 0.0
    %2171 = vmatprep.subr.mxu0 0.0
    %2172 = vmatpush1.msra.mxu0 0.0
    %2173 = vmatprep.subr.mxu0 0.0
    %2174 = vmatpush1.msra.mxu0 0.0
    %2175 = vmatprep.subr.mxu0 0.0
    %2176 = vmatpush1.msra.mxu0 0.0
    %2177 = vmatprep.subr.mxu0 0.0
    %2178 = vmatpush1.msra.mxu0 0.0
    %2179 = vmatprep.subr.mxu0 0.0
    %2180 = vmatpush1.msra.mxu0 0.0
    %2181 = vmatprep.subr.mxu0 0.0
    %2182 = vmatpush1.msra.mxu0 0.0
    %2183 = vmatprep.subr.mxu0 0.0
    %2184 = vmatpush1.msra.mxu0 0.0
    %2185 = vmatprep.subr.mxu0 0.0
    %2186 = vmatpush1.msra.mxu0 0.0
    %2187 = vmatprep.subr.mxu0 0.0
    %2188 = vmatpush1.msra.mxu0 0.0
    %2189 = vmatprep.subr.mxu0 0.0
    %2190 = vmatpush1.msra.mxu0 0.0
    %2191 = vmatprep.mubr.f32.mxu0 0.0
    %2192 = vmatmul.mubr.f32.gmra.mrb[0].mxu0 %v1947
    %v2193 = vpop.f32.mrb[0].mxu0
    %v2194 = vadd.f32 0.0, %v2193
    %v2195 = vpop.f32.mrb[0].mxu0
    %2196 = vdwg.mxu0
    %v2198 = vrot.slane %v2194, 3
    %v2199 = vrot.slane %v2194, 4
    %v2202 = vadd.f32 %v346, %v2198
    %v2203 = vadd.f32 %v351, %v2199
    %v2204 = vtanh.pop %v2202
    %v2205 = vtanh.pop %v2203
    %2206 = vmatprep.subr.mxu0 0.0
    %2207 = vmatpush1.msra.mxu0 %v86
    %2208 = vmatprep.subr.mxu0 0.0
    %2209 = vmatpush1.msra.mxu0 %v87
    %2210 = vmatprep.subr.mxu0 0.0
    %2211 = vmatpush1.msra.mxu0 %v88
    %2212 = vmatprep.subr.mxu0 0.0
    %2213 = vmatpush1.msra.mxu0 %v89
    %2214 = vmatprep.subr.mxu0 0.0
    %2215 = vmatpush1.msra.mxu0 0.0
    %2216 = vmatprep.subr.mxu0 0.0
    %2217 = vmatpush1.msra.mxu0 0.0
    %2218 = vmatprep.subr.mxu0 0.0
    %2219 = vmatpush1.msra.mxu0 0.0
    %2220 = vmatprep.subr.mxu0 0.0
    %2221 = vmatpush1.msra.mxu0 0.0
    %2222 = vmatprep.subr.mxu0 0.0
    %2223 = vmatpush1.msra.mxu0 0.0
    %2224 = vmatprep.subr.mxu0 0.0
    %2225 = vmatpush1.msra.mxu0 0.0
    %2226 = vmatprep.subr.mxu0 0.0
    %2227 = vmatpush1.msra.mxu0 0.0
    %2228 = vmatprep.subr.mxu0 0.0
    %2229 = vmatpush1.msra.mxu0 0.0
    %2230 = vmatprep.subr.mxu0 0.0
    %2231 = vmatpush1.msra.mxu0 0.0
    %2232 = vmatprep.subr.mxu0 0.0
    %2233 = vmatpush1.msra.mxu0 0.0
    %2234 = vmatprep.subr.mxu0 0.0
    %2235 = vmatpush1.msra.mxu0 0.0
    %2236 = vmatprep.subr.mxu0 0.0
    %2237 = vmatpush1.msra.mxu0 0.0
    %2238 = vmatprep.subr.mxu0 0.0
    %2239 = vmatpush1.msra.mxu0 0.0
    %2240 = vmatprep.subr.mxu0 0.0
    %2241 = vmatpush1.msra.mxu0 0.0
    %2242 = vmatprep.subr.mxu0 0.0
    %2243 = vmatpush1.msra.mxu0 0.0
    %2244 = vmatprep.subr.mxu0 0.0
    %2245 = vmatpush1.msra.mxu0 0.0
    %2246 = vmatprep.subr.mxu0 0.0
    %2247 = vmatpush1.msra.mxu0 0.0
    %2248 = vmatprep.subr.mxu0 0.0
    %2249 = vmatpush1.msra.mxu0 0.0
    %2250 = vmatprep.subr.mxu0 0.0
    %2251 = vmatpush1.msra.mxu0 0.0
    %2252 = vmatprep.subr.mxu0 0.0
    %2253 = vmatpush1.msra.mxu0 0.0
    %2254 = vmatprep.subr.mxu0 0.0
    %2255 = vmatpush1.msra.mxu0 0.0
    %2256 = vmatprep.subr.mxu0 0.0
    %2257 = vmatpush1.msra.mxu0 0.0
    %2258 = vmatprep.subr.mxu0 0.0
    %2259 = vmatpush1.msra.mxu0 0.0
    %2260 = vmatprep.subr.mxu0 0.0
    %2261 = vmatpush1.msra.mxu0 0.0
    %2262 = vmatprep.subr.mxu0 0.0
    %2263 = vmatpush1.msra.mxu0 0.0
    %2264 = vmatprep.subr.mxu0 0.0
    %2265 = vmatpush1.msra.mxu0 0.0
    %2266 = vmatprep.subr.mxu0 0.0
    %2267 = vmatpush1.msra.mxu0 0.0
    %2268 = vmatprep.subr.mxu0 0.0
    %2269 = vmatpush1.msra.mxu0 0.0
    %2270 = vmatprep.mubr.f32.mxu0 0.0
    %2271 = vmatmul.mubr.f32.gmra.mrb[0].mxu0 %v1947
    %v2272 = vpop.f32.mrb[0].mxu0
    %v2273 = vadd.f32 0.0, %v2272
    %v2274 = vpop.f32.mrb[0].mxu0
    %2275 = vdwg.mxu0
    %v2277 = vrot.slane %v2273, 3
    %v2278 = vrot.slane %v2273, 4
    %v2281 = vadd.f32 %v430, %v2277
    %v2282 = vadd.f32 %v435, %v2278
    %v2283 = vxor.u32 %v2281, 2147483648
    %v2284 = vxor.u32 %v2282, 2147483648
    %v2285 = vmul.f32 %v2283, 1.442695
    %v2286 = vpow.pop %v2285
    %v2287 = vmul.f32 %v2284, 1.442695
    %v2288 = vpow.pop %v2287
    %v2289 = vadd.f32 %v2286, 1.0
    %v2290 = vadd.f32 %v2288, 1.0
    %v2291 = vrcp.pop %v2289
    %v2292 = vmul.f32 1.0, %v2291
    %v2293 = vrcp.pop %v2290
    %v2294 = vmul.f32 1.0, %v2293
    %v2297 = vrot.slane %v1936, 7
    %v2298 = vrot.slane %v1937, 7
    %v2301 = vmul.f32 %v2124, %v2297
    %v2302 = vmul.f32 %v2126, %v2298
    %v2303 = vmul.f32 %v2035, %v2204
    %v2304 = vmul.f32 %v2037, %v2205
    %v2305 = vadd.f32 %v2301, %v2303
    %v2306 = vadd.f32 %v2302, %v2304
    %v2307 = vtanh.pop %v2305
    %v2308 = vtanh.pop %v2306
    %v2309 = vmul.f32 %v2292, %v2307
    %v2310 = vmul.f32 %v2294, %v2308
    %v2313 = vrot.slane %v2309, 5
    %v2314 = vrot.slane %v2310, 4
    %v2315 = vsel %vm473, %v2314, %v2313
    %v2316 = vsel %vm475, %v2315, 0
    %2318 = vmatprep.subr.mxu0 0.0
    %2319 = vmatpush1.msra.mxu0 %v74
    %2320 = vmatprep.subr.mxu0 0.0
    %2321 = vmatpush1.msra.mxu0 %v75
    %2322 = vmatprep.subr.mxu0 0.0
    %2323 = vmatpush1.msra.mxu0 %v76
    %2324 = vmatprep.subr.mxu0 0.0
    %2325 = vmatpush1.msra.mxu0 %v77
    %2326 = vmatprep.subr.mxu0 0.0
    %2327 = vmatpush1.msra.mxu0 0.0
    %2328 = vmatprep.subr.mxu0 0.0
    %2329 = vmatpush1.msra.mxu0 0.0
    %2330 = vmatprep.subr.mxu0 0.0
    %2331 = vmatpush1.msra.mxu0 0.0
    %2332 = vmatprep.subr.mxu0 0.0
    %2333 = vmatpush1.msra.mxu0 0.0
    %2334 = vmatprep.subr.mxu0 0.0
    %2335 = vmatpush1.msra.mxu0 0.0
    %2336 = vmatprep.subr.mxu0 0.0
    %2337 = vmatpush1.msra.mxu0 0.0
    %2338 = vmatprep.subr.mxu0 0.0
    %2339 = vmatpush1.msra.mxu0 0.0
    %2340 = vmatprep.subr.mxu0 0.0
    %2341 = vmatpush1.msra.mxu0 0.0
    %2342 = vmatprep.subr.mxu0 0.0
    %2343 = vmatpush1.msra.mxu0 0.0
    %2344 = vmatprep.subr.mxu0 0.0
    %2345 = vmatpush1.msra.mxu0 0.0
    %2346 = vmatprep.subr.mxu0 0.0
    %2347 = vmatpush1.msra.mxu0 0.0
    %2348 = vmatprep.subr.mxu0 0.0
    %2349 = vmatpush1.msra.mxu0 0.0
    %2350 = vmatprep.subr.mxu0 0.0
    %2351 = vmatpush1.msra.mxu0 0.0
    %2352 = vmatprep.subr.mxu0 0.0
    %2353 = vmatpush1.msra.mxu0 0.0
    %2354 = vmatprep.subr.mxu0 0.0
    %2355 = vmatpush1.msra.mxu0 0.0
    %2356 = vmatprep.subr.mxu0 0.0
    %2357 = vmatpush1.msra.mxu0 0.0
    %2358 = vmatprep.subr.mxu0 0.0
    %2359 = vmatpush1.msra.mxu0 0.0
    %2360 = vmatprep.subr.mxu0 0.0
    %2361 = vmatpush1.msra.mxu0 0.0
    %2362 = vmatprep.subr.mxu0 0.0
    %2363 = vmatpush1.msra.mxu0 0.0
    %2364 = vmatprep.subr.mxu0 0.0
    %2365 = vmatpush1.msra.mxu0 0.0
    %2366 = vmatprep.subr.mxu0 0.0
    %2367 = vmatpush1.msra.mxu0 0.0
    %2368 = vmatprep.subr.mxu0 0.0
    %2369 = vmatpush1.msra.mxu0 0.0
    %2370 = vmatprep.subr.mxu0 0.0
    %2371 = vmatpush1.msra.mxu0 0.0
    %2372 = vmatprep.subr.mxu0 0.0
    %2373 = vmatpush1.msra.mxu0 0.0
    %2374 = vmatprep.subr.mxu0 0.0
    %2375 = vmatpush1.msra.mxu0 0.0
    %2376 = vmatprep.subr.mxu0 0.0
    %2377 = vmatpush1.msra.mxu0 0.0
    %2378 = vmatprep.subr.mxu0 0.0
    %2379 = vmatpush1.msra.mxu0 0.0
    %2380 = vmatprep.subr.mxu0 0.0
    %2381 = vmatpush1.msra.mxu0 0.0
    %2382 = vmatprep.mubr.f32.mxu0 0.0
    %2383 = vmatmul.mubr.f32.gmra.mrb[0].mxu0 %v2316
    %v2384 = vpop.f32.mrb[0].mxu0
    %v2385 = vadd.f32 0.0, %v2384
    %v2386 = vpop.f32.mrb[0].mxu0
    %2387 = vdwg.mxu0
    %v2389 = vrot.slane %v2385, 2
    %v2390 = vrot.slane %v2385, 3
    %v2393 = vadd.f32 %v178, %v2389
    %v2394 = vadd.f32 %v183, %v2390
    %v2395 = vxor.u32 %v2393, 2147483648
    %v2396 = vxor.u32 %v2394, 2147483648
    %v2397 = vmul.f32 %v2395, 1.442695
    %v2398 = vpow.pop %v2397
    %v2399 = vmul.f32 %v2396, 1.442695
    %v2400 = vpow.pop %v2399
    %v2401 = vadd.f32 %v2398, 1.0
    %v2402 = vadd.f32 %v2400, 1.0
    %v2403 = vrcp.pop %v2401
    %v2404 = vmul.f32 1.0, %v2403
    %v2405 = vrcp.pop %v2402
    %v2406 = vmul.f32 1.0, %v2405
    %2407 = vmatprep.subr.mxu0 0.0
    %2408 = vmatpush1.msra.mxu0 %v78
    %2409 = vmatprep.subr.mxu0 0.0
    %2410 = vmatpush1.msra.mxu0 %v79
    %2411 = vmatprep.subr.mxu0 0.0
    %2412 = vmatpush1.msra.mxu0 %v80
    %2413 = vmatprep.subr.mxu0 0.0
    %2414 = vmatpush1.msra.mxu0 %v81
    %2415 = vmatprep.subr.mxu0 0.0
    %2416 = vmatpush1.msra.mxu0 0.0
    %2417 = vmatprep.subr.mxu0 0.0
    %2418 = vmatpush1.msra.mxu0 0.0
    %2419 = vmatprep.subr.mxu0 0.0
    %2420 = vmatpush1.msra.mxu0 0.0
    %2421 = vmatprep.subr.mxu0 0.0
    %2422 = vmatpush1.msra.mxu0 0.0
    %2423 = vmatprep.subr.mxu0 0.0
    %2424 = vmatpush1.msra.mxu0 0.0
    %2425 = vmatprep.subr.mxu0 0.0
    %2426 = vmatpush1.msra.mxu0 0.0
    %2427 = vmatprep.subr.mxu0 0.0
    %2428 = vmatpush1.msra.mxu0 0.0
    %2429 = vmatprep.subr.mxu0 0.0
    %2430 = vmatpush1.msra.mxu0 0.0
    %2431 = vmatprep.subr.mxu0 0.0
    %2432 = vmatpush1.msra.mxu0 0.0
    %2433 = vmatprep.subr.mxu0 0.0
    %2434 = vmatpush1.msra.mxu0 0.0
    %2435 = vmatprep.subr.mxu0 0.0
    %2436 = vmatpush1.msra.mxu0 0.0
    %2437 = vmatprep.subr.mxu0 0.0
    %2438 = vmatpush1.msra.mxu0 0.0
    %2439 = vmatprep.subr.mxu0 0.0
    %2440 = vmatpush1.msra.mxu0 0.0
    %2441 = vmatprep.subr.mxu0 0.0
    %2442 = vmatpush1.msra.mxu0 0.0
    %2443 = vmatprep.subr.mxu0 0.0
    %2444 = vmatpush1.msra.mxu0 0.0
    %2445 = vmatprep.subr.mxu0 0.0
    %2446 = vmatpush1.msra.mxu0 0.0
    %2447 = vmatprep.subr.mxu0 0.0
    %2448 = vmatpush1.msra.mxu0 0.0
    %2449 = vmatprep.subr.mxu0 0.0
    %2450 = vmatpush1.msra.mxu0 0.0
    %2451 = vmatprep.subr.mxu0 0.0
    %2452 = vmatpush1.msra.mxu0 0.0
    %2453 = vmatprep.subr.mxu0 0.0
    %2454 = vmatpush1.msra.mxu0 0.0
    %2455 = vmatprep.subr.mxu0 0.0
    %2456 = vmatpush1.msra.mxu0 0.0
    %2457 = vmatprep.subr.mxu0 0.0
    %2458 = vmatpush1.msra.mxu0 0.0
    %2459 = vmatprep.subr.mxu0 0.0
    %2460 = vmatpush1.msra.mxu0 0.0
    %2461 = vmatprep.subr.mxu0 0.0
    %2462 = vmatpush1.msra.mxu0 0.0
    %2463 = vmatprep.subr.mxu0 0.0
    %2464 = vmatpush1.msra.mxu0 0.0
    %2465 = vmatprep.subr.mxu0 0.0
    %2466 = vmatpush1.msra.mxu0 0.0
    %2467 = vmatprep.subr.mxu0 0.0
    %2468 = vmatpush1.msra.mxu0 0.0
    %2469 = vmatprep.subr.mxu0 0.0
    %2470 = vmatpush1.msra.mxu0 0.0
    %2471 = vmatprep.mubr.f32.mxu0 0.0
    %2472 = vmatmul.mubr.f32.gmra.mrb[0].mxu0 %v2316
    %v2473 = vpop.f32.mrb[0].mxu0
    %v2474 = vadd.f32 0.0, %v2473
    %v2475 = vpop.f32.mrb[0].mxu0
    %2476 = vdwg.mxu0
    %v2478 = vrot.slane %v2474, 2
    %v2479 = vrot.slane %v2474, 3
    %v2482 = vadd.f32 %v262, %v2478
    %v2483 = vadd.f32 %v267, %v2479
    %v2484 = vxor.u32 %v2482, 2147483648
    %v2485 = vxor.u32 %v2483, 2147483648
    %v2486 = vmul.f32 %v2484, 1.442695
    %v2487 = vpow.pop %v2486
    %v2488 = vmul.f32 %v2485, 1.442695
    %v2489 = vpow.pop %v2488
    %v2490 = vadd.f32 %v2487, 1.0
    %v2491 = vadd.f32 %v2489, 1.0
    %v2492 = vrcp.pop %v2490
    %v2493 = vmul.f32 1.0, %v2492
    %v2494 = vrcp.pop %v2491
    %v2495 = vmul.f32 1.0, %v2494
    %2496 = vmatprep.subr.mxu0 0.0
    %2497 = vmatpush1.msra.mxu0 %v82
    %2498 = vmatprep.subr.mxu0 0.0
    %2499 = vmatpush1.msra.mxu0 %v83
    %2500 = vmatprep.subr.mxu0 0.0
    %2501 = vmatpush1.msra.mxu0 %v84
    %2502 = vmatprep.subr.mxu0 0.0
    %2503 = vmatpush1.msra.mxu0 %v85
    %2504 = vmatprep.subr.mxu0 0.0
    %2505 = vmatpush1.msra.mxu0 0.0
    %2506 = vmatprep.subr.mxu0 0.0
    %2507 = vmatpush1.msra.mxu0 0.0
    %2508 = vmatprep.subr.mxu0 0.0
    %2509 = vmatpush1.msra.mxu0 0.0
    %2510 = vmatprep.subr.mxu0 0.0
    %2511 = vmatpush1.msra.mxu0 0.0
    %2512 = vmatprep.subr.mxu0 0.0
    %2513 = vmatpush1.msra.mxu0 0.0
    %2514 = vmatprep.subr.mxu0 0.0
    %2515 = vmatpush1.msra.mxu0 0.0
    %2516 = vmatprep.subr.mxu0 0.0
    %2517 = vmatpush1.msra.mxu0 0.0
    %2518 = vmatprep.subr.mxu0 0.0
    %2519 = vmatpush1.msra.mxu0 0.0
    %2520 = vmatprep.subr.mxu0 0.0
    %2521 = vmatpush1.msra.mxu0 0.0
    %2522 = vmatprep.subr.mxu0 0.0
    %2523 = vmatpush1.msra.mxu0 0.0
    %2524 = vmatprep.subr.mxu0 0.0
    %2525 = vmatpush1.msra.mxu0 0.0
    %2526 = vmatprep.subr.mxu0 0.0
    %2527 = vmatpush1.msra.mxu0 0.0
    %2528 = vmatprep.subr.mxu0 0.0
    %2529 = vmatpush1.msra.mxu0 0.0
    %2530 = vmatprep.subr.mxu0 0.0
    %2531 = vmatpush1.msra.mxu0 0.0
    %2532 = vmatprep.subr.mxu0 0.0
    %2533 = vmatpush1.msra.mxu0 0.0
    %2534 = vmatprep.subr.mxu0 0.0
    %2535 = vmatpush1.msra.mxu0 0.0
    %2536 = vmatprep.subr.mxu0 0.0
    %2537 = vmatpush1.msra.mxu0 0.0
    %2538 = vmatprep.subr.mxu0 0.0
    %2539 = vmatpush1.msra.mxu0 0.0
    %2540 = vmatprep.subr.mxu0 0.0
    %2541 = vmatpush1.msra.mxu0 0.0
    %2542 = vmatprep.subr.mxu0 0.0
    %2543 = vmatpush1.msra.mxu0 0.0
    %2544 = vmatprep.subr.mxu0 0.0
    %2545 = vmatpush1.msra.mxu0 0.0
    %2546 = vmatprep.subr.mxu0 0.0
    %2547 = vmatpush1.msra.mxu0 0.0
    %2548 = vmatprep.subr.mxu0 0.0
    %2549 = vmatpush1.msra.mxu0 0.0
    %2550 = vmatprep.subr.mxu0 0.0
    %2551 = vmatpush1.msra.mxu0 0.0
    %2552 = vmatprep.subr.mxu0 0.0
    %2553 = vmatpush1.msra.mxu0 0.0
    %2554 = vmatprep.subr.mxu0 0.0
    %2555 = vmatpush1.msra.mxu0 0.0
    %2556 = vmatprep.subr.mxu0 0.0
    %2557 = vmatpush1.msra.mxu0 0.0
    %2558 = vmatprep.subr.mxu0 0.0
    %2559 = vmatpush1.msra.mxu0 0.0
    %2560 = vmatprep.mubr.f32.mxu0 0.0
    %2561 = vmatmul.mubr.f32.gmra.mrb[0].mxu0 %v2316
    %v2562 = vpop.f32.mrb[0].mxu0
    %v2563 = vadd.f32 0.0, %v2562
    %v2564 = vpop.f32.mrb[0].mxu0
    %2565 = vdwg.mxu0
    %v2567 = vrot.slane %v2563, 2
    %v2568 = vrot.slane %v2563, 3
    %v2571 = vadd.f32 %v346, %v2567
    %v2572 = vadd.f32 %v351, %v2568
    %v2573 = vtanh.pop %v2571
    %v2574 = vtanh.pop %v2572
    %2575 = vmatprep.subr.mxu0 0.0
    %2576 = vmatpush1.msra.mxu0 %v86
    %2577 = vmatprep.subr.mxu0 0.0
    %2578 = vmatpush1.msra.mxu0 %v87
    %2579 = vmatprep.subr.mxu0 0.0
    %2580 = vmatpush1.msra.mxu0 %v88
    %2581 = vmatprep.subr.mxu0 0.0
    %2582 = vmatpush1.msra.mxu0 %v89
    %2583 = vmatprep.subr.mxu0 0.0
    %2584 = vmatpush1.msra.mxu0 0.0
    %2585 = vmatprep.subr.mxu0 0.0
    %2586 = vmatpush1.msra.mxu0 0.0
    %2587 = vmatprep.subr.mxu0 0.0
    %2588 = vmatpush1.msra.mxu0 0.0
    %2589 = vmatprep.subr.mxu0 0.0
    %2590 = vmatpush1.msra.mxu0 0.0
    %2591 = vmatprep.subr.mxu0 0.0
    %2592 = vmatpush1.msra.mxu0 0.0
    %2593 = vmatprep.subr.mxu0 0.0
    %2594 = vmatpush1.msra.mxu0 0.0
    %2595 = vmatprep.subr.mxu0 0.0
    %2596 = vmatpush1.msra.mxu0 0.0
    %2597 = vmatprep.subr.mxu0 0.0
    %2598 = vmatpush1.msra.mxu0 0.0
    %2599 = vmatprep.subr.mxu0 0.0
    %2600 = vmatpush1.msra.mxu0 0.0
    %2601 = vmatprep.subr.mxu0 0.0
    %2602 = vmatpush1.msra.mxu0 0.0
    %2603 = vmatprep.subr.mxu0 0.0
    %2604 = vmatpush1.msra.mxu0 0.0
    %2605 = vmatprep.subr.mxu0 0.0
    %2606 = vmatpush1.msra.mxu0 0.0
    %2607 = vmatprep.subr.mxu0 0.0
    %2608 = vmatpush1.msra.mxu0 0.0
    %2609 = vmatprep.subr.mxu0 0.0
    %2610 = vmatpush1.msra.mxu0 0.0
    %2611 = vmatprep.subr.mxu0 0.0
    %2612 = vmatpush1.msra.mxu0 0.0
    %2613 = vmatprep.subr.mxu0 0.0
    %2614 = vmatpush1.msra.mxu0 0.0
    %2615 = vmatprep.subr.mxu0 0.0
    %2616 = vmatpush1.msra.mxu0 0.0
    %2617 = vmatprep.subr.mxu0 0.0
    %2618 = vmatpush1.msra.mxu0 0.0
    %2619 = vmatprep.subr.mxu0 0.0
    %2620 = vmatpush1.msra.mxu0 0.0
    %2621 = vmatprep.subr.mxu0 0.0
    %2622 = vmatpush1.msra.mxu0 0.0
    %2623 = vmatprep.subr.mxu0 0.0
    %2624 = vmatpush1.msra.mxu0 0.0
    %2625 = vmatprep.subr.mxu0 0.0
    %2626 = vmatpush1.msra.mxu0 0.0
    %2627 = vmatprep.subr.mxu0 0.0
    %2628 = vmatpush1.msra.mxu0 0.0
    %2629 = vmatprep.subr.mxu0 0.0
    %2630 = vmatpush1.msra.mxu0 0.0
    %2631 = vmatprep.subr.mxu0 0.0
    %2632 = vmatpush1.msra.mxu0 0.0
    %2633 = vmatprep.subr.mxu0 0.0
    %2634 = vmatpush1.msra.mxu0 0.0
    %2635 = vmatprep.subr.mxu0 0.0
    %2636 = vmatpush1.msra.mxu0 0.0
    %2637 = vmatprep.subr.mxu0 0.0
    %2638 = vmatpush1.msra.mxu0 0.0
    %2639 = vmatprep.mubr.f32.mxu0 0.0
    %2640 = vmatmul.mubr.f32.gmra.mrb[0].mxu0 %v2316
    %v2641 = vpop.f32.mrb[0].mxu0
    %v2642 = vadd.f32 0.0, %v2641
    %v2643 = vpop.f32.mrb[0].mxu0
    %2644 = vdwg.mxu0
    %v2646 = vrot.slane %v2642, 2
    %v2647 = vrot.slane %v2642, 3
    %v2650 = vadd.f32 %v430, %v2646
    %v2651 = vadd.f32 %v435, %v2647
    %v2652 = vxor.u32 %v2650, 2147483648
    %v2653 = vxor.u32 %v2651, 2147483648
    %v2654 = vmul.f32 %v2652, 1.442695
    %v2655 = vpow.pop %v2654
    %v2656 = vmul.f32 %v2653, 1.442695
    %v2657 = vpow.pop %v2656
    %v2658 = vadd.f32 %v2655, 1.0
    %v2659 = vadd.f32 %v2657, 1.0
    %v2660 = vrcp.pop %v2658
    %v2661 = vmul.f32 1.0, %v2660
    %v2662 = vrcp.pop %v2659
    %v2663 = vmul.f32 1.0, %v2662
    %v2666 = vrot.slane %v2305, 7
    %v2667 = vrot.slane %v2306, 7
    %v2670 = vmul.f32 %v2493, %v2666
    %v2671 = vmul.f32 %v2495, %v2667
    %v2672 = vmul.f32 %v2404, %v2573
    %v2673 = vmul.f32 %v2406, %v2574
    %v2674 = vadd.f32 %v2670, %v2672
    %v2675 = vadd.f32 %v2671, %v2673
    %v2676 = vtanh.pop %v2674
    %v2677 = vtanh.pop %v2675
    %v2678 = vmul.f32 %v2661, %v2676
    %v2679 = vmul.f32 %v2663, %v2677
    %v2682 = vrot.slane %v2678, 6
    %v2683 = vrot.slane %v2679, 5
    %v2684 = vsel %vm473, %v2683, %v2682
    %v2685 = vsel %vm475, %v2684, 0
    %2687 = vmatprep.subr.mxu0 0.0
    %2688 = vmatpush1.msra.mxu0 %v74
    %2689 = vmatprep.subr.mxu0 0.0
    %2690 = vmatpush1.msra.mxu0 %v75
    %2691 = vmatprep.subr.mxu0 0.0
    %2692 = vmatpush1.msra.mxu0 %v76
    %2693 = vmatprep.subr.mxu0 0.0
    %2694 = vmatpush1.msra.mxu0 %v77
    %2695 = vmatprep.subr.mxu0 0.0
    %2696 = vmatpush1.msra.mxu0 0.0
    %2697 = vmatprep.subr.mxu0 0.0
    %2698 = vmatpush1.msra.mxu0 0.0
    %2699 = vmatprep.subr.mxu0 0.0
    %2700 = vmatpush1.msra.mxu0 0.0
    %2701 = vmatprep.subr.mxu0 0.0
    %2702 = vmatpush1.msra.mxu0 0.0
    %2703 = vmatprep.subr.mxu0 0.0
    %2704 = vmatpush1.msra.mxu0 0.0
    %2705 = vmatprep.subr.mxu0 0.0
    %2706 = vmatpush1.msra.mxu0 0.0
    %2707 = vmatprep.subr.mxu0 0.0
    %2708 = vmatpush1.msra.mxu0 0.0
    %2709 = vmatprep.subr.mxu0 0.0
    %2710 = vmatpush1.msra.mxu0 0.0
    %2711 = vmatprep.subr.mxu0 0.0
    %2712 = vmatpush1.msra.mxu0 0.0
    %2713 = vmatprep.subr.mxu0 0.0
    %2714 = vmatpush1.msra.mxu0 0.0
    %2715 = vmatprep.subr.mxu0 0.0
    %2716 = vmatpush1.msra.mxu0 0.0
    %2717 = vmatprep.subr.mxu0 0.0
    %2718 = vmatpush1.msra.mxu0 0.0
    %2719 = vmatprep.subr.mxu0 0.0
    %2720 = vmatpush1.msra.mxu0 0.0
    %2721 = vmatprep.subr.mxu0 0.0
    %2722 = vmatpush1.msra.mxu0 0.0
    %2723 = vmatprep.subr.mxu0 0.0
    %2724 = vmatpush1.msra.mxu0 0.0
    %2725 = vmatprep.subr.mxu0 0.0
    %2726 = vmatpush1.msra.mxu0 0.0
    %2727 = vmatprep.subr.mxu0 0.0
    %2728 = vmatpush1.msra.mxu0 0.0
    %2729 = vmatprep.subr.mxu0 0.0
    %2730 = vmatpush1.msra.mxu0 0.0
    %2731 = vmatprep.subr.mxu0 0.0
    %2732 = vmatpush1.msra.mxu0 0.0
    %2733 = vmatprep.subr.mxu0 0.0
    %2734 = vmatpush1.msra.mxu0 0.0
    %2735 = vmatprep.subr.mxu0 0.0
    %2736 = vmatpush1.msra.mxu0 0.0
    %2737 = vmatprep.subr.mxu0 0.0
    %2738 = vmatpush1.msra.mxu0 0.0
    %2739 = vmatprep.subr.mxu0 0.0
    %2740 = vmatpush1.msra.mxu0 0.0
    %2741 = vmatprep.subr.mxu0 0.0
    %2742 = vmatpush1.msra.mxu0 0.0
    %2743 = vmatprep.subr.mxu0 0.0
    %2744 = vmatpush1.msra.mxu0 0.0
    %2745 = vmatprep.subr.mxu0 0.0
    %2746 = vmatpush1.msra.mxu0 0.0
    %2747 = vmatprep.subr.mxu0 0.0
    %2748 = vmatpush1.msra.mxu0 0.0
    %2749 = vmatprep.subr.mxu0 0.0
    %2750 = vmatpush1.msra.mxu0 0.0
    %2751 = vmatprep.mubr.f32.mxu0 0.0
    %2752 = vmatmul.mubr.f32.gmra.mrb[0].mxu0 %v2685
    %v2753 = vpop.f32.mrb[0].mxu0
    %v2754 = vadd.f32 0.0, %v2753
    %v2755 = vpop.f32.mrb[0].mxu0
    %2756 = vdwg.mxu0
    %v2758 = vrot.slane %v2754, 1
    %v2759 = vrot.slane %v2754, 2
    %v2762 = vadd.f32 %v178, %v2758
    %v2763 = vadd.f32 %v183, %v2759
    %v2764 = vxor.u32 %v2762, 2147483648
    %v2765 = vxor.u32 %v2763, 2147483648
    %v2766 = vmul.f32 %v2764, 1.442695
    %v2767 = vpow.pop %v2766
    %v2768 = vmul.f32 %v2765, 1.442695
    %v2769 = vpow.pop %v2768
    %v2770 = vadd.f32 %v2767, 1.0
    %v2771 = vadd.f32 %v2769, 1.0
    %v2772 = vrcp.pop %v2770
    %v2773 = vmul.f32 1.0, %v2772
    %v2774 = vrcp.pop %v2771
    %v2775 = vmul.f32 1.0, %v2774
    %2776 = vmatprep.subr.mxu0 0.0
    %2777 = vmatpush1.msra.mxu0 %v78
    %2778 = vmatprep.subr.mxu0 0.0
    %2779 = vmatpush1.msra.mxu0 %v79
    %2780 = vmatprep.subr.mxu0 0.0
    %2781 = vmatpush1.msra.mxu0 %v80
    %2782 = vmatprep.subr.mxu0 0.0
    %2783 = vmatpush1.msra.mxu0 %v81
    %2784 = vmatprep.subr.mxu0 0.0
    %2785 = vmatpush1.msra.mxu0 0.0
    %2786 = vmatprep.subr.mxu0 0.0
    %2787 = vmatpush1.msra.mxu0 0.0
    %2788 = vmatprep.subr.mxu0 0.0
    %2789 = vmatpush1.msra.mxu0 0.0
    %2790 = vmatprep.subr.mxu0 0.0
    %2791 = vmatpush1.msra.mxu0 0.0
    %2792 = vmatprep.subr.mxu0 0.0
    %2793 = vmatpush1.msra.mxu0 0.0
    %2794 = vmatprep.subr.mxu0 0.0
    %2795 = vmatpush1.msra.mxu0 0.0
    %2796 = vmatprep.subr.mxu0 0.0
    %2797 = vmatpush1.msra.mxu0 0.0
    %2798 = vmatprep.subr.mxu0 0.0
    %2799 = vmatpush1.msra.mxu0 0.0
    %2800 = vmatprep.subr.mxu0 0.0
    %2801 = vmatpush1.msra.mxu0 0.0
    %2802 = vmatprep.subr.mxu0 0.0
    %2803 = vmatpush1.msra.mxu0 0.0
    %2804 = vmatprep.subr.mxu0 0.0
    %2805 = vmatpush1.msra.mxu0 0.0
    %2806 = vmatprep.subr.mxu0 0.0
    %2807 = vmatpush1.msra.mxu0 0.0
    %2808 = vmatprep.subr.mxu0 0.0
    %2809 = vmatpush1.msra.mxu0 0.0
    %2810 = vmatprep.subr.mxu0 0.0
    %2811 = vmatpush1.msra.mxu0 0.0
    %2812 = vmatprep.subr.mxu0 0.0
    %2813 = vmatpush1.msra.mxu0 0.0
    %2814 = vmatprep.subr.mxu0 0.0
    %2815 = vmatpush1.msra.mxu0 0.0
    %2816 = vmatprep.subr.mxu0 0.0
    %2817 = vmatpush1.msra.mxu0 0.0
    %2818 = vmatprep.subr.mxu0 0.0
    %2819 = vmatpush1.msra.mxu0 0.0
    %2820 = vmatprep.subr.mxu0 0.0
    %2821 = vmatpush1.msra.mxu0 0.0
    %2822 = vmatprep.subr.mxu0 0.0
    %2823 = vmatpush1.msra.mxu0 0.0
    %2824 = vmatprep.subr.mxu0 0.0
    %2825 = vmatpush1.msra.mxu0 0.0
    %2826 = vmatprep.subr.mxu0 0.0
    %2827 = vmatpush1.msra.mxu0 0.0
    %2828 = vmatprep.subr.mxu0 0.0
    %2829 = vmatpush1.msra.mxu0 0.0
    %2830 = vmatprep.subr.mxu0 0.0
    %2831 = vmatpush1.msra.mxu0 0.0
    %2832 = vmatprep.subr.mxu0 0.0
    %2833 = vmatpush1.msra.mxu0 0.0
    %2834 = vmatprep.subr.mxu0 0.0
    %2835 = vmatpush1.msra.mxu0 0.0
    %2836 = vmatprep.subr.mxu0 0.0
    %2837 = vmatpush1.msra.mxu0 0.0
    %2838 = vmatprep.subr.mxu0 0.0
    %2839 = vmatpush1.msra.mxu0 0.0
    %2840 = vmatprep.mubr.f32.mxu0 0.0
    %2841 = vmatmul.mubr.f32.gmra.mrb[0].mxu0 %v2685
    %v2842 = vpop.f32.mrb[0].mxu0
    %v2843 = vadd.f32 0.0, %v2842
    %v2844 = vpop.f32.mrb[0].mxu0
    %2845 = vdwg.mxu0
    %v2847 = vrot.slane %v2843, 1
    %v2848 = vrot.slane %v2843, 2
    %v2851 = vadd.f32 %v262, %v2847
    %v2852 = vadd.f32 %v267, %v2848
    %v2853 = vxor.u32 %v2851, 2147483648
    %v2854 = vxor.u32 %v2852, 2147483648
    %v2855 = vmul.f32 %v2853, 1.442695
    %v2856 = vpow.pop %v2855
    %v2857 = vmul.f32 %v2854, 1.442695
    %v2858 = vpow.pop %v2857
    %v2859 = vadd.f32 %v2856, 1.0
    %v2860 = vadd.f32 %v2858, 1.0
    %v2861 = vrcp.pop %v2859
    %v2862 = vmul.f32 1.0, %v2861
    %v2863 = vrcp.pop %v2860
    %v2864 = vmul.f32 1.0, %v2863
    %2865 = vmatprep.subr.mxu0 0.0
    %2866 = vmatpush1.msra.mxu0 %v82
    %2867 = vmatprep.subr.mxu0 0.0
    %2868 = vmatpush1.msra.mxu0 %v83
    %2869 = vmatprep.subr.mxu0 0.0
    %2870 = vmatpush1.msra.mxu0 %v84
    %2871 = vmatprep.subr.mxu0 0.0
    %2872 = vmatpush1.msra.mxu0 %v85
    %2873 = vmatprep.subr.mxu0 0.0
    %2874 = vmatpush1.msra.mxu0 0.0
    %2875 = vmatprep.subr.mxu0 0.0
    %2876 = vmatpush1.msra.mxu0 0.0
    %2877 = vmatprep.subr.mxu0 0.0
    %2878 = vmatpush1.msra.mxu0 0.0
    %2879 = vmatprep.subr.mxu0 0.0
    %2880 = vmatpush1.msra.mxu0 0.0
    %2881 = vmatprep.subr.mxu0 0.0
    %2882 = vmatpush1.msra.mxu0 0.0
    %2883 = vmatprep.subr.mxu0 0.0
    %2884 = vmatpush1.msra.mxu0 0.0
    %2885 = vmatprep.subr.mxu0 0.0
    %2886 = vmatpush1.msra.mxu0 0.0
    %2887 = vmatprep.subr.mxu0 0.0
    %2888 = vmatpush1.msra.mxu0 0.0
    %2889 = vmatprep.subr.mxu0 0.0
    %2890 = vmatpush1.msra.mxu0 0.0
    %2891 = vmatprep.subr.mxu0 0.0
    %2892 = vmatpush1.msra.mxu0 0.0
    %2893 = vmatprep.subr.mxu0 0.0
    %2894 = vmatpush1.msra.mxu0 0.0
    %2895 = vmatprep.subr.mxu0 0.0
    %2896 = vmatpush1.msra.mxu0 0.0
    %2897 = vmatprep.subr.mxu0 0.0
    %2898 = vmatpush1.msra.mxu0 0.0
    %2899 = vmatprep.subr.mxu0 0.0
    %2900 = vmatpush1.msra.mxu0 0.0
    %2901 = vmatprep.subr.mxu0 0.0
    %2902 = vmatpush1.msra.mxu0 0.0
    %2903 = vmatprep.subr.mxu0 0.0
    %2904 = vmatpush1.msra.mxu0 0.0
    %2905 = vmatprep.subr.mxu0 0.0
    %2906 = vmatpush1.msra.mxu0 0.0
    %2907 = vmatprep.subr.mxu0 0.0
    %2908 = vmatpush1.msra.mxu0 0.0
    %2909 = vmatprep.subr.mxu0 0.0
    %2910 = vmatpush1.msra.mxu0 0.0
    %2911 = vmatprep.subr.mxu0 0.0
    %2912 = vmatpush1.msra.mxu0 0.0
    %2913 = vmatprep.subr.mxu0 0.0
    %2914 = vmatpush1.msra.mxu0 0.0
    %2915 = vmatprep.subr.mxu0 0.0
    %2916 = vmatpush1.msra.mxu0 0.0
    %2917 = vmatprep.subr.mxu0 0.0
    %2918 = vmatpush1.msra.mxu0 0.0
    %2919 = vmatprep.subr.mxu0 0.0
    %2920 = vmatpush1.msra.mxu0 0.0
    %2921 = vmatprep.subr.mxu0 0.0
    %2922 = vmatpush1.msra.mxu0 0.0
    %2923 = vmatprep.subr.mxu0 0.0
    %2924 = vmatpush1.msra.mxu0 0.0
    %2925 = vmatprep.subr.mxu0 0.0
    %2926 = vmatpush1.msra.mxu0 0.0
    %2927 = vmatprep.subr.mxu0 0.0
    %2928 = vmatpush1.msra.mxu0 0.0
    %2929 = vmatprep.mubr.f32.mxu0 0.0
    %2930 = vmatmul.mubr.f32.gmra.mrb[0].mxu0 %v2685
    %v2931 = vpop.f32.mrb[0].mxu0
    %v2932 = vadd.f32 0.0, %v2931
    %v2933 = vpop.f32.mrb[0].mxu0
    %2934 = vdwg.mxu0
    %v2936 = vrot.slane %v2932, 1
    %v2937 = vrot.slane %v2932, 2
    %v2940 = vadd.f32 %v346, %v2936
    %v2941 = vadd.f32 %v351, %v2937
    %v2942 = vtanh.pop %v2940
    %v2943 = vtanh.pop %v2941
    %2944 = vmatprep.subr.mxu0 0.0
    %2945 = vmatpush1.msra.mxu0 %v86
    %2946 = vmatprep.subr.mxu0 0.0
    %2947 = vmatpush1.msra.mxu0 %v87
    %2948 = vmatprep.subr.mxu0 0.0
    %2949 = vmatpush1.msra.mxu0 %v88
    %2950 = vmatprep.subr.mxu0 0.0
    %2951 = vmatpush1.msra.mxu0 %v89
    %2952 = vmatprep.subr.mxu0 0.0
    %2953 = vmatpush1.msra.mxu0 0.0
    %2954 = vmatprep.subr.mxu0 0.0
    %2955 = vmatpush1.msra.mxu0 0.0
    %2956 = vmatprep.subr.mxu0 0.0
    %2957 = vmatpush1.msra.mxu0 0.0
    %2958 = vmatprep.subr.mxu0 0.0
    %2959 = vmatpush1.msra.mxu0 0.0
    %2960 = vmatprep.subr.mxu0 0.0
    %2961 = vmatpush1.msra.mxu0 0.0
    %2962 = vmatprep.subr.mxu0 0.0
    %2963 = vmatpush1.msra.mxu0 0.0
    %2964 = vmatprep.subr.mxu0 0.0
    %2965 = vmatpush1.msra.mxu0 0.0
    %2966 = vmatprep.subr.mxu0 0.0
    %2967 = vmatpush1.msra.mxu0 0.0
    %2968 = vmatprep.subr.mxu0 0.0
    %2969 = vmatpush1.msra.mxu0 0.0
    %2970 = vmatprep.subr.mxu0 0.0
    %2971 = vmatpush1.msra.mxu0 0.0
    %2972 = vmatprep.subr.mxu0 0.0
    %2973 = vmatpush1.msra.mxu0 0.0
    %2974 = vmatprep.subr.mxu0 0.0
    %2975 = vmatpush1.msra.mxu0 0.0
    %2976 = vmatprep.subr.mxu0 0.0
    %2977 = vmatpush1.msra.mxu0 0.0
    %2978 = vmatprep.subr.mxu0 0.0
    %2979 = vmatpush1.msra.mxu0 0.0
    %2980 = vmatprep.subr.mxu0 0.0
    %2981 = vmatpush1.msra.mxu0 0.0
    %2982 = vmatprep.subr.mxu0 0.0
    %2983 = vmatpush1.msra.mxu0 0.0
    %2984 = vmatprep.subr.mxu0 0.0
    %2985 = vmatpush1.msra.mxu0 0.0
    %2986 = vmatprep.subr.mxu0 0.0
    %2987 = vmatpush1.msra.mxu0 0.0
    %2988 = vmatprep.subr.mxu0 0.0
    %2989 = vmatpush1.msra.mxu0 0.0
    %2990 = vmatprep.subr.mxu0 0.0
    %2991 = vmatpush1.msra.mxu0 0.0
    %2992 = vmatprep.subr.mxu0 0.0
    %2993 = vmatpush1.msra.mxu0 0.0
    %2994 = vmatprep.subr.mxu0 0.0
    %2995 = vmatpush1.msra.mxu0 0.0
    %2996 = vmatprep.subr.mxu0 0.0
    %2997 = vmatpush1.msra.mxu0 0.0
    %2998 = vmatprep.subr.mxu0 0.0
    %2999 = vmatpush1.msra.mxu0 0.0
    %3000 = vmatprep.subr.mxu0 0.0
    %3001 = vmatpush1.msra.mxu0 0.0
    %3002 = vmatprep.subr.mxu0 0.0
    %3003 = vmatpush1.msra.mxu0 0.0
    %3004 = vmatprep.subr.mxu0 0.0
    %3005 = vmatpush1.msra.mxu0 0.0
    %3006 = vmatprep.subr.mxu0 0.0
    %3007 = vmatpush1.msra.mxu0 0.0
    %3008 = vmatprep.mubr.f32.mxu0 0.0
    %3009 = vmatmul.mubr.f32.gmra.mrb[0].mxu0 %v2685
    %v3010 = vpop.f32.mrb[0].mxu0
    %v3011 = vadd.f32 0.0, %v3010
    %v3012 = vpop.f32.mrb[0].mxu0
    %3013 = vdwg.mxu0
    %v3015 = vrot.slane %v3011, 1
    %v3016 = vrot.slane %v3011, 2
    %v3019 = vadd.f32 %v430, %v3015
    %v3020 = vadd.f32 %v435, %v3016
    %v3021 = vxor.u32 %v3019, 2147483648
    %v3022 = vxor.u32 %v3020, 2147483648
    %v3023 = vmul.f32 %v3021, 1.442695
    %v3024 = vpow.pop %v3023
    %v3025 = vmul.f32 %v3022, 1.442695
    %v3026 = vpow.pop %v3025
    %v3027 = vadd.f32 %v3024, 1.0
    %v3028 = vadd.f32 %v3026, 1.0
    %v3029 = vrcp.pop %v3027
    %v3030 = vmul.f32 1.0, %v3029
    %v3031 = vrcp.pop %v3028
    %v3032 = vmul.f32 1.0, %v3031
    %v3035 = vrot.slane %v2674, 7
    %v3036 = vrot.slane %v2675, 7
    %v3039 = vmul.f32 %v2862, %v3035
    %v3040 = vmul.f32 %v2864, %v3036
    %v3041 = vmul.f32 %v2773, %v2942
    %v3042 = vmul.f32 %v2775, %v2943
    %v3043 = vadd.f32 %v3039, %v3041
    %v3044 = vadd.f32 %v3040, %v3042
    %v3045 = vtanh.pop %v3043
    %v3046 = vtanh.pop %v3044
    %v3047 = vmul.f32 %v3030, %v3045
    %v3048 = vmul.f32 %v3032, %v3046
    %vm3049 = vcmask 1040384
    %v3050 = vsel %vm3049, %v468, %v834
    %v3051 = vsel %vm3049, %v469, %v835
    %vm3052 = vcmask 1041408
    %v3053 = vsel %vm3052, %v3050, %v1202
    %v3054 = vsel %vm3052, %v3051, %v1203
    %vm3055 = vcmask 1042432
    %v3056 = vsel %vm3055, %v3053, %v1571
    %v3057 = vsel %vm3055, %v3054, %v1572
    %v3058 = vsel %vm107, %v3056, %v1940
    %v3059 = vsel %vm107, %v3057, %v1941
    %vm3060 = vcmask 1044480
    %v3061 = vsel %vm3060, %v3058, %v2309
    %v3062 = vsel %vm3060, %v3059, %v2310
    %vm3063 = vcmask 1045504
    %v3064 = vsel %vm3063, %v3061, %v2678
    %v3065 = vsel %vm3063, %v3062, %v2679
    %vm3066 = vcmask 1046528
    %v3067 = vsel %vm3066, %v3064, %v3047
    %v3068 = vsel %vm3066, %v3065, %v3048
    %v3069 = vld [vmem:[#allocation5] sm:$0xff]
    %v3070 = vld [vmem:[#allocation5 + $0x8] sm:$0xff]
    %v3071 = vld [vmem:[#allocation5 + $0x10] sm:$0xff]
    %v3072 = vld [vmem:[#allocation5 + $0x18] sm:$0xff]
    %v3073 = vld [vmem:[#allocation5 + $0x20] sm:$0xff]
    %v3074 = vld [vmem:[#allocation5 + $0x28] sm:$0xff]
    %v3075 = vld [vmem:[#allocation5 + $0x30] sm:$0xff]
    %v3076 = vld [vmem:[#allocation5 + $0x38] sm:$0xff]
    %v3077 = vld [vmem:[#allocation5 + $0x40] sm:$0xff]
    %v3078 = vld [vmem:[#allocation5 + $0x48] sm:$0xff]
    %v3079 = vld [vmem:[#allocation5 + $0x50] sm:$0xff]
    %v3080 = vld [vmem:[#allocation5 + $0x58] sm:$0xff]
    %v3081 = vld [vmem:[#allocation5 + $0x60] sm:$0xff]
    %v3082 = vld [vmem:[#allocation5 + $0x68] sm:$0xff]
    %v3083 = vld [vmem:[#allocation5 + $0x70] sm:$0xff]
    %v3084 = vld [vmem:[#allocation5 + $0x78] sm:$0xff]
    %v3085 = vld [vmem:[#allocation7] sm:$0xff]
    %v3086 = vld [vmem:[#allocation7 + $0x8] sm:$0xff]
    %v3087 = vld [vmem:[#allocation7 + $0x10] sm:$0xff]
    %v3088 = vld [vmem:[#allocation7 + $0x18] sm:$0xff]
    %v3089 = vld [vmem:[#allocation7 + $0x20] sm:$0xff]
    %v3090 = vld [vmem:[#allocation7 + $0x28] sm:$0xff]
    %v3091 = vld [vmem:[#allocation7 + $0x30] sm:$0xff]
    %v3092 = vld [vmem:[#allocation7 + $0x38] sm:$0xff]
    %v3093 = vld [vmem:[#allocation7 + $0x40] sm:$0xff]
    %v3094 = vld [vmem:[#allocation7 + $0x48] sm:$0xff]
    %v3095 = vld [vmem:[#allocation7 + $0x50] sm:$0xff]
    %v3096 = vld [vmem:[#allocation7 + $0x58] sm:$0xff]
    %v3097 = vld [vmem:[#allocation7 + $0x60] sm:$0xff]
    %v3098 = vld [vmem:[#allocation7 + $0x68] sm:$0xff]
    %v3099 = vld [vmem:[#allocation7 + $0x70] sm:$0xff]
    %v3100 = vld [vmem:[#allocation7 + $0x78] sm:$0xff]
    %v3101 = vld [vmem:[%s6] sm:$0x1]
    %v3102 = vld [vmem:[%s6 + $0x1] sm:$0x1]
    %v3103 = vld [vmem:[%s6 + $0x2] sm:$0x1]
    %v3104 = vld [vmem:[%s6 + $0x3] sm:$0x1]
    %v3106 = vlaneseq
    %v3107 = vshrl.u32 %v3106, 7
    %v3108 = vsub.s32 0, %v3107
    %v3109 = vrot.slane %v3101, %v3108
    %v3112 = vsel %vm475, %v3067, 0
    %v3115 = vsel %vm475, %v3068, 0
    %3117 = vmatprep.subr.mxu0 0.0
    %3118 = vmatpush1.msra.mxu0 %v3069
    %3119 = vmatprep.subr.mxu0 0.0
    %3120 = vmatpush1.msra.mxu0 %v3070
    %3121 = vmatprep.subr.mxu0 0.0
    %3122 = vmatpush1.msra.mxu0 %v3071
    %3123 = vmatprep.subr.mxu0 0.0
    %3124 = vmatpush1.msra.mxu0 %v3072
    %3125 = vmatprep.subr.mxu0 0.0
    %3126 = vmatpush1.msra.mxu0 0.0
    %3127 = vmatprep.subr.mxu0 0.0
    %3128 = vmatpush1.msra.mxu0 0.0
    %3129 = vmatprep.subr.mxu0 0.0
    %3130 = vmatpush1.msra.mxu0 0.0
    %3131 = vmatprep.subr.mxu0 0.0
    %3132 = vmatpush1.msra.mxu0 0.0
    %3133 = vmatprep.subr.mxu0 0.0
    %3134 = vmatpush1.msra.mxu0 0.0
    %3135 = vmatprep.subr.mxu0 0.0
    %3136 = vmatpush1.msra.mxu0 0.0
    %3137 = vmatprep.subr.mxu0 0.0
    %3138 = vmatpush1.msra.mxu0 0.0
    %3139 = vmatprep.subr.mxu0 0.0
    %3140 = vmatpush1.msra.mxu0 0.0
    %3141 = vmatprep.subr.mxu0 0.0
    %3142 = vmatpush1.msra.mxu0 0.0
    %3143 = vmatprep.subr.mxu0 0.0
    %3144 = vmatpush1.msra.mxu0 0.0
    %3145 = vmatprep.subr.mxu0 0.0
    %3146 = vmatpush1.msra.mxu0 0.0
    %3147 = vmatprep.subr.mxu0 0.0
    %3148 = vmatpush1.msra.mxu0 0.0
    %3149 = vmatprep.subr.mxu0 0.0
    %3150 = vmatpush1.msra.mxu0 0.0
    %3151 = vmatprep.subr.mxu0 0.0
    %3152 = vmatpush1.msra.mxu0 0.0
    %3153 = vmatprep.subr.mxu0 0.0
    %3154 = vmatpush1.msra.mxu0 0.0
    %3155 = vmatprep.subr.mxu0 0.0
    %3156 = vmatpush1.msra.mxu0 0.0
    %3157 = vmatprep.subr.mxu0 0.0
    %3158 = vmatpush1.msra.mxu0 0.0
    %3159 = vmatprep.subr.mxu0 0.0
    %3160 = vmatpush1.msra.mxu0 0.0
    %3161 = vmatprep.subr.mxu0 0.0
    %3162 = vmatpush1.msra.mxu0 0.0
    %3163 = vmatprep.subr.mxu0 0.0
    %3164 = vmatpush1.msra.mxu0 0.0
    %3165 = vmatprep.subr.mxu0 0.0
    %3166 = vmatpush1.msra.mxu0 0.0
    %3167 = vmatprep.subr.mxu0 0.0
    %3168 = vmatpush1.msra.mxu0 0.0
    %3169 = vmatprep.subr.mxu0 0.0
    %3170 = vmatpush1.msra.mxu0 0.0
    %3171 = vmatprep.subr.mxu0 0.0
    %3172 = vmatpush1.msra.mxu0 0.0
    %3173 = vmatprep.subr.mxu0 0.0
    %3174 = vmatpush1.msra.mxu0 0.0
    %3175 = vmatprep.subr.mxu0 0.0
    %3176 = vmatpush1.msra.mxu0 0.0
    %3177 = vmatprep.subr.mxu0 0.0
    %3178 = vmatpush1.msra.mxu0 0.0
    %3179 = vmatprep.subr.mxu0 0.0
    %3180 = vmatpush1.msra.mxu0 0.0
    %3181 = vmatprep.mubr.f32.mxu0 0.0
    %3182 = vmatmul.mubr.f32.gmra.mrb[0].mxu0 %v3112
    %v3183 = vpop.f32.mrb[0].mxu0
    %v3184 = vadd.f32 %v3109, %v3183
    %v3185 = vpop.f32.mrb[0].mxu0
    %3186 = vmatprep.mubr.f32.mxu0 0.0
    %3187 = vmatmul.mubr.f32.gmra.mrb[0].mxu0 %v3115
    %v3188 = vpop.f32.mrb[0].mxu0
    %v3189 = vadd.f32 %v3109, %v3188
    %v3190 = vpop.f32.mrb[0].mxu0
    %3191 = vdwg.mxu0
    %v3193 = vlaneseq
    %v3194 = vshrl.u32 %v3193, 7
    %v3195 = vsub.s32 0, %v3194
    %v3196 = vrot.slane %v3102, %v3195
    %3198 = vmatprep.subr.mxu0 0.0
    %3199 = vmatpush1.msra.mxu0 %v3073
    %3200 = vmatprep.subr.mxu0 0.0
    %3201 = vmatpush1.msra.mxu0 %v3074
    %3202 = vmatprep.subr.mxu0 0.0
    %3203 = vmatpush1.msra.mxu0 %v3075
    %3204 = vmatprep.subr.mxu0 0.0
    %3205 = vmatpush1.msra.mxu0 %v3076
    %3206 = vmatprep.subr.mxu0 0.0
    %3207 = vmatpush1.msra.mxu0 0.0
    %3208 = vmatprep.subr.mxu0 0.0
    %3209 = vmatpush1.msra.mxu0 0.0
    %3210 = vmatprep.subr.mxu0 0.0
    %3211 = vmatpush1.msra.mxu0 0.0
    %3212 = vmatprep.subr.mxu0 0.0
    %3213 = vmatpush1.msra.mxu0 0.0
    %3214 = vmatprep.subr.mxu0 0.0
    %3215 = vmatpush1.msra.mxu0 0.0
    %3216 = vmatprep.subr.mxu0 0.0
    %3217 = vmatpush1.msra.mxu0 0.0
    %3218 = vmatprep.subr.mxu0 0.0
    %3219 = vmatpush1.msra.mxu0 0.0
    %3220 = vmatprep.subr.mxu0 0.0
    %3221 = vmatpush1.msra.mxu0 0.0
    %3222 = vmatprep.subr.mxu0 0.0
    %3223 = vmatpush1.msra.mxu0 0.0
    %3224 = vmatprep.subr.mxu0 0.0
    %3225 = vmatpush1.msra.mxu0 0.0
    %3226 = vmatprep.subr.mxu0 0.0
    %3227 = vmatpush1.msra.mxu0 0.0
    %3228 = vmatprep.subr.mxu0 0.0
    %3229 = vmatpush1.msra.mxu0 0.0
    %3230 = vmatprep.subr.mxu0 0.0
    %3231 = vmatpush1.msra.mxu0 0.0
    %3232 = vmatprep.subr.mxu0 0.0
    %3233 = vmatpush1.msra.mxu0 0.0
    %3234 = vmatprep.subr.mxu0 0.0
    %3235 = vmatpush1.msra.mxu0 0.0
    %3236 = vmatprep.subr.mxu0 0.0
    %3237 = vmatpush1.msra.mxu0 0.0
    %3238 = vmatprep.subr.mxu0 0.0
    %3239 = vmatpush1.msra.mxu0 0.0
    %3240 = vmatprep.subr.mxu0 0.0
    %3241 = vmatpush1.msra.mxu0 0.0
    %3242 = vmatprep.subr.mxu0 0.0
    %3243 = vmatpush1.msra.mxu0 0.0
    %3244 = vmatprep.subr.mxu0 0.0
    %3245 = vmatpush1.msra.mxu0 0.0
    %3246 = vmatprep.subr.mxu0 0.0
    %3247 = vmatpush1.msra.mxu0 0.0
    %3248 = vmatprep.subr.mxu0 0.0
    %3249 = vmatpush1.msra.mxu0 0.0
    %3250 = vmatprep.subr.mxu0 0.0
    %3251 = vmatpush1.msra.mxu0 0.0
    %3252 = vmatprep.subr.mxu0 0.0
    %3253 = vmatpush1.msra.mxu0 0.0
    %3254 = vmatprep.subr.mxu0 0.0
    %3255 = vmatpush1.msra.mxu0 0.0
    %3256 = vmatprep.subr.mxu0 0.0
    %3257 = vmatpush1.msra.mxu0 0.0
    %3258 = vmatprep.subr.mxu0 0.0
    %3259 = vmatpush1.msra.mxu0 0.0
    %3260 = vmatprep.subr.mxu0 0.0
    %3261 = vmatpush1.msra.mxu0 0.0
    %3262 = vmatprep.mubr.f32.mxu0 0.0
    %3263 = vmatmul.mubr.f32.gmra.mrb[0].mxu0 %v3112
    %v3264 = vpop.f32.mrb[0].mxu0
    %v3265 = vadd.f32 %v3196, %v3264
    %v3266 = vpop.f32.mrb[0].mxu0
    %3267 = vmatprep.mubr.f32.mxu0 0.0
    %3268 = vmatmul.mubr.f32.gmra.mrb[0].mxu0 %v3115
    %v3269 = vpop.f32.mrb[0].mxu0
    %v3270 = vadd.f32 %v3196, %v3269
    %v3271 = vpop.f32.mrb[0].mxu0
    %3272 = vdwg.mxu0
    %v3274 = vlaneseq
    %v3275 = vshrl.u32 %v3274, 7
    %v3276 = vsub.s32 0, %v3275
    %v3277 = vrot.slane %v3103, %v3276
    %3279 = vmatprep.subr.mxu0 0.0
    %3280 = vmatpush1.msra.mxu0 %v3077
    %3281 = vmatprep.subr.mxu0 0.0
    %3282 = vmatpush1.msra.mxu0 %v3078
    %3283 = vmatprep.subr.mxu0 0.0
    %3284 = vmatpush1.msra.mxu0 %v3079
    %3285 = vmatprep.subr.mxu0 0.0
    %3286 = vmatpush1.msra.mxu0 %v3080
    %3287 = vmatprep.subr.mxu0 0.0
    %3288 = vmatpush1.msra.mxu0 0.0
    %3289 = vmatprep.subr.mxu0 0.0
    %3290 = vmatpush1.msra.mxu0 0.0
    %3291 = vmatprep.subr.mxu0 0.0
    %3292 = vmatpush1.msra.mxu0 0.0
    %3293 = vmatprep.subr.mxu0 0.0
    %3294 = vmatpush1.msra.mxu0 0.0
    %3295 = vmatprep.subr.mxu0 0.0
    %3296 = vmatpush1.msra.mxu0 0.0
    %3297 = vmatprep.subr.mxu0 0.0
    %3298 = vmatpush1.msra.mxu0 0.0
    %3299 = vmatprep.subr.mxu0 0.0
    %3300 = vmatpush1.msra.mxu0 0.0
    %3301 = vmatprep.subr.mxu0 0.0
    %3302 = vmatpush1.msra.mxu0 0.0
    %3303 = vmatprep.subr.mxu0 0.0
    %3304 = vmatpush1.msra.mxu0 0.0
    %3305 = vmatprep.subr.mxu0 0.0
    %3306 = vmatpush1.msra.mxu0 0.0
    %3307 = vmatprep.subr.mxu0 0.0
    %3308 = vmatpush1.msra.mxu0 0.0
    %3309 = vmatprep.subr.mxu0 0.0
    %3310 = vmatpush1.msra.mxu0 0.0
    %3311 = vmatprep.subr.mxu0 0.0
    %3312 = vmatpush1.msra.mxu0 0.0
    %3313 = vmatprep.subr.mxu0 0.0
    %3314 = vmatpush1.msra.mxu0 0.0
    %3315 = vmatprep.subr.mxu0 0.0
    %3316 = vmatpush1.msra.mxu0 0.0
    %3317 = vmatprep.subr.mxu0 0.0
    %3318 = vmatpush1.msra.mxu0 0.0
    %3319 = vmatprep.subr.mxu0 0.0
    %3320 = vmatpush1.msra.mxu0 0.0
    %3321 = vmatprep.subr.mxu0 0.0
    %3322 = vmatpush1.msra.mxu0 0.0
    %3323 = vmatprep.subr.mxu0 0.0
    %3324 = vmatpush1.msra.mxu0 0.0
    %3325 = vmatprep.subr.mxu0 0.0
    %3326 = vmatpush1.msra.mxu0 0.0
    %3327 = vmatprep.subr.mxu0 0.0
    %3328 = vmatpush1.msra.mxu0 0.0
    %3329 = vmatprep.subr.mxu0 0.0
    %3330 = vmatpush1.msra.mxu0 0.0
    %3331 = vmatprep.subr.mxu0 0.0
    %3332 = vmatpush1.msra.mxu0 0.0
    %3333 = vmatprep.subr.mxu0 0.0
    %3334 = vmatpush1.msra.mxu0 0.0
    %3335 = vmatprep.subr.mxu0 0.0
    %3336 = vmatpush1.msra.mxu0 0.0
    %3337 = vmatprep.subr.mxu0 0.0
    %3338 = vmatpush1.msra.mxu0 0.0
    %3339 = vmatprep.subr.mxu0 0.0
    %3340 = vmatpush1.msra.mxu0 0.0
    %3341 = vmatprep.subr.mxu0 0.0
    %3342 = vmatpush1.msra.mxu0 0.0
    %3343 = vmatprep.mubr.f32.mxu0 0.0
    %3344 = vmatmul.mubr.f32.gmra.mrb[0].mxu0 %v3112
    %v3345 = vpop.f32.mrb[0].mxu0
    %v3346 = vadd.f32 %v3277, %v3345
    %v3347 = vpop.f32.mrb[0].mxu0
    %3348 = vmatprep.mubr.f32.mxu0 0.0
    %3349 = vmatmul.mubr.f32.gmra.mrb[0].mxu0 %v3115
    %v3350 = vpop.f32.mrb[0].mxu0
    %v3351 = vadd.f32 %v3277, %v3350
    %v3352 = vpop.f32.mrb[0].mxu0
    %3353 = vdwg.mxu0
    %v3355 = vlaneseq
    %v3356 = vshrl.u32 %v3355, 7
    %v3357 = vsub.s32 0, %v3356
    %v3358 = vrot.slane %v3104, %v3357
    %3360 = vmatprep.subr.mxu0 0.0
    %3361 = vmatpush1.msra.mxu0 %v3081
    %3362 = vmatprep.subr.mxu0 0.0
    %3363 = vmatpush1.msra.mxu0 %v3082
    %3364 = vmatprep.subr.mxu0 0.0
    %3365 = vmatpush1.msra.mxu0 %v3083
    %3366 = vmatprep.subr.mxu0 0.0
    %3367 = vmatpush1.msra.mxu0 %v3084
    %3368 = vmatprep.subr.mxu0 0.0
    %3369 = vmatpush1.msra.mxu0 0.0
    %3370 = vmatprep.subr.mxu0 0.0
    %3371 = vmatpush1.msra.mxu0 0.0
    %3372 = vmatprep.subr.mxu0 0.0
    %3373 = vmatpush1.msra.mxu0 0.0
    %3374 = vmatprep.subr.mxu0 0.0
    %3375 = vmatpush1.msra.mxu0 0.0
    %3376 = vmatprep.subr.mxu0 0.0
    %3377 = vmatpush1.msra.mxu0 0.0
    %3378 = vmatprep.subr.mxu0 0.0
    %3379 = vmatpush1.msra.mxu0 0.0
    %3380 = vmatprep.subr.mxu0 0.0
    %3381 = vmatpush1.msra.mxu0 0.0
    %3382 = vmatprep.subr.mxu0 0.0
    %3383 = vmatpush1.msra.mxu0 0.0
    %3384 = vmatprep.subr.mxu0 0.0
    %3385 = vmatpush1.msra.mxu0 0.0
    %3386 = vmatprep.subr.mxu0 0.0
    %3387 = vmatpush1.msra.mxu0 0.0
    %3388 = vmatprep.subr.mxu0 0.0
    %3389 = vmatpush1.msra.mxu0 0.0
    %3390 = vmatprep.subr.mxu0 0.0
    %3391 = vmatpush1.msra.mxu0 0.0
    %3392 = vmatprep.subr.mxu0 0.0
    %3393 = vmatpush1.msra.mxu0 0.0
    %3394 = vmatprep.subr.mxu0 0.0
    %3395 = vmatpush1.msra.mxu0 0.0
    %3396 = vmatprep.subr.mxu0 0.0
    %3397 = vmatpush1.msra.mxu0 0.0
    %3398 = vmatprep.subr.mxu0 0.0
    %3399 = vmatpush1.msra.mxu0 0.0
    %3400 = vmatprep.subr.mxu0 0.0
    %3401 = vmatpush1.msra.mxu0 0.0
    %3402 = vmatprep.subr.mxu0 0.0
    %3403 = vmatpush1.msra.mxu0 0.0
    %3404 = vmatprep.subr.mxu0 0.0
    %3405 = vmatpush1.msra.mxu0 0.0
    %3406 = vmatprep.subr.mxu0 0.0
    %3407 = vmatpush1.msra.mxu0 0.0
    %3408 = vmatprep.subr.mxu0 0.0
    %3409 = vmatpush1.msra.mxu0 0.0
    %3410 = vmatprep.subr.mxu0 0.0
    %3411 = vmatpush1.msra.mxu0 0.0
    %3412 = vmatprep.subr.mxu0 0.0
    %3413 = vmatpush1.msra.mxu0 0.0
    %3414 = vmatprep.subr.mxu0 0.0
    %3415 = vmatpush1.msra.mxu0 0.0
    %3416 = vmatprep.subr.mxu0 0.0
    %3417 = vmatpush1.msra.mxu0 0.0
    %3418 = vmatprep.subr.mxu0 0.0
    %3419 = vmatpush1.msra.mxu0 0.0
    %3420 = vmatprep.subr.mxu0 0.0
    %3421 = vmatpush1.msra.mxu0 0.0
    %3422 = vmatprep.subr.mxu0 0.0
    %3423 = vmatpush1.msra.mxu0 0.0
    %3424 = vmatprep.mubr.f32.mxu0 0.0
    %3425 = vmatmul.mubr.f32.gmra.mrb[0].mxu0 %v3112
    %v3426 = vpop.f32.mrb[0].mxu0
    %v3427 = vadd.f32 %v3358, %v3426
    %v3428 = vpop.f32.mrb[0].mxu0
    %3429 = vmatprep.mubr.f32.mxu0 0.0
    %3430 = vmatmul.mubr.f32.gmra.mrb[0].mxu0 %v3115
    %v3431 = vpop.f32.mrb[0].mxu0
    %v3432 = vadd.f32 %v3358, %v3431
    %v3433 = vpop.f32.mrb[0].mxu0
    %3434 = vdwg.mxu0
    %v3435 = vxor.u32 %v3184, 2147483648
    %v3436 = vxor.u32 %v3189, 2147483648
    %v3437 = vmul.f32 %v3435, 1.442695
    %v3438 = vpow.pop %v3437
    %v3439 = vmul.f32 %v3436, 1.442695
    %v3440 = vpow.pop %v3439
    %v3441 = vadd.f32 %v3438, 1.0
    %v3442 = vadd.f32 %v3440, 1.0
    %v3443 = vrcp.pop %v3441
    %v3444 = vmul.f32 1.0, %v3443
    %v3445 = vrcp.pop %v3442
    %v3446 = vmul.f32 1.0, %v3445
    %v3447 = vtanh.pop %v3346
    %v3448 = vtanh.pop %v3351
    %v3449 = vmul.f32 %v3444, %v3447
    %v3450 = vmul.f32 %v3446, %v3448
    %v3451 = vxor.u32 %v3427, 2147483648
    %v3452 = vxor.u32 %v3432, 2147483648
    %v3453 = vmul.f32 %v3451, 1.442695
    %v3454 = vpow.pop %v3453
    %v3455 = vmul.f32 %v3452, 1.442695
    %v3456 = vpow.pop %v3455
    %v3457 = vadd.f32 %v3454, 1.0
    %v3458 = vadd.f32 %v3456, 1.0
    %v3459 = vrcp.pop %v3457
    %v3460 = vmul.f32 1.0, %v3459
    %v3461 = vrcp.pop %v3458
    %v3462 = vmul.f32 1.0, %v3461
    %v3463 = vtanh.pop %v3449
    %v3464 = vtanh.pop %v3450
    %v3465 = vmul.f32 %v3460, %v3463
    %v3466 = vmul.f32 %v3462, %v3464
    %v3469 = vrot.slane %v3466, 7
    %v3470 = vsel %vm473, %v3469, %v3465
    %v3471 = vsel %vm475, %v3470, 0
    %3473 = vmatprep.subr.mxu0 0.0
    %3474 = vmatpush1.msra.mxu0 %v3085
    %3475 = vmatprep.subr.mxu0 0.0
    %3476 = vmatpush1.msra.mxu0 %v3086
    %3477 = vmatprep.subr.mxu0 0.0
    %3478 = vmatpush1.msra.mxu0 %v3087
    %3479 = vmatprep.subr.mxu0 0.0
    %3480 = vmatpush1.msra.mxu0 %v3088
    %3481 = vmatprep.subr.mxu0 0.0
    %3482 = vmatpush1.msra.mxu0 0.0
    %3483 = vmatprep.subr.mxu0 0.0
    %3484 = vmatpush1.msra.mxu0 0.0
    %3485 = vmatprep.subr.mxu0 0.0
    %3486 = vmatpush1.msra.mxu0 0.0
    %3487 = vmatprep.subr.mxu0 0.0
    %3488 = vmatpush1.msra.mxu0 0.0
    %3489 = vmatprep.subr.mxu0 0.0
    %3490 = vmatpush1.msra.mxu0 0.0
    %3491 = vmatprep.subr.mxu0 0.0
    %3492 = vmatpush1.msra.mxu0 0.0
    %3493 = vmatprep.subr.mxu0 0.0
    %3494 = vmatpush1.msra.mxu0 0.0
    %3495 = vmatprep.subr.mxu0 0.0
    %3496 = vmatpush1.msra.mxu0 0.0
    %3497 = vmatprep.subr.mxu0 0.0
    %3498 = vmatpush1.msra.mxu0 0.0
    %3499 = vmatprep.subr.mxu0 0.0
    %3500 = vmatpush1.msra.mxu0 0.0
    %3501 = vmatprep.subr.mxu0 0.0
    %3502 = vmatpush1.msra.mxu0 0.0
    %3503 = vmatprep.subr.mxu0 0.0
    %3504 = vmatpush1.msra.mxu0 0.0
    %3505 = vmatprep.subr.mxu0 0.0
    %3506 = vmatpush1.msra.mxu0 0.0
    %3507 = vmatprep.subr.mxu0 0.0
    %3508 = vmatpush1.msra.mxu0 0.0
    %3509 = vmatprep.subr.mxu0 0.0
    %3510 = vmatpush1.msra.mxu0 0.0
    %3511 = vmatprep.subr.mxu0 0.0
    %3512 = vmatpush1.msra.mxu0 0.0
    %3513 = vmatprep.subr.mxu0 0.0
    %3514 = vmatpush1.msra.mxu0 0.0
    %3515 = vmatprep.subr.mxu0 0.0
    %3516 = vmatpush1.msra.mxu0 0.0
    %3517 = vmatprep.subr.mxu0 0.0
    %3518 = vmatpush1.msra.mxu0 0.0
    %3519 = vmatprep.subr.mxu0 0.0
    %3520 = vmatpush1.msra.mxu0 0.0
    %3521 = vmatprep.subr.mxu0 0.0
    %3522 = vmatpush1.msra.mxu0 0.0
    %3523 = vmatprep.subr.mxu0 0.0
    %3524 = vmatpush1.msra.mxu0 0.0
    %3525 = vmatprep.subr.mxu0 0.0
    %3526 = vmatpush1.msra.mxu0 0.0
    %3527 = vmatprep.subr.mxu0 0.0
    %3528 = vmatpush1.msra.mxu0 0.0
    %3529 = vmatprep.subr.mxu0 0.0
    %3530 = vmatpush1.msra.mxu0 0.0
    %3531 = vmatprep.subr.mxu0 0.0
    %3532 = vmatpush1.msra.mxu0 0.0
    %3533 = vmatprep.subr.mxu0 0.0
    %3534 = vmatpush1.msra.mxu0 0.0
    %3535 = vmatprep.subr.mxu0 0.0
    %3536 = vmatpush1.msra.mxu0 0.0
    %3537 = vmatprep.mubr.f32.mxu0 0.0
    %3538 = vmatmul.mubr.f32.gmra.mrb[0].mxu0 %v3471
    %v3539 = vpop.f32.mrb[0].mxu0
    %v3540 = vadd.f32 0.0, %v3539
    %v3541 = vpop.f32.mrb[0].mxu0
    %3542 = vdwg.mxu0
    %v3544 = vrot.slane %v3540, 7
    %v3547 = vadd.f32 %v3184, %v3544
    %v3548 = vadd.f32 %v3189, %v3540
    %v3549 = vxor.u32 %v3547, 2147483648
    %v3550 = vxor.u32 %v3548, 2147483648
    %v3551 = vmul.f32 %v3549, 1.442695
    %v3552 = vpow.pop %v3551
    %v3553 = vmul.f32 %v3550, 1.442695
    %v3554 = vpow.pop %v3553
    %v3555 = vadd.f32 %v3552, 1.0
    %v3556 = vadd.f32 %v3554, 1.0
    %v3557 = vrcp.pop %v3555
    %v3558 = vmul.f32 1.0, %v3557
    %v3559 = vrcp.pop %v3556
    %v3560 = vmul.f32 1.0, %v3559
    %3561 = vmatprep.subr.mxu0 0.0
    %3562 = vmatpush1.msra.mxu0 %v3089
    %3563 = vmatprep.subr.mxu0 0.0
    %3564 = vmatpush1.msra.mxu0 %v3090
    %3565 = vmatprep.subr.mxu0 0.0
    %3566 = vmatpush1.msra.mxu0 %v3091
    %3567 = vmatprep.subr.mxu0 0.0
    %3568 = vmatpush1.msra.mxu0 %v3092
    %3569 = vmatprep.subr.mxu0 0.0
    %3570 = vmatpush1.msra.mxu0 0.0
    %3571 = vmatprep.subr.mxu0 0.0
    %3572 = vmatpush1.msra.mxu0 0.0
    %3573 = vmatprep.subr.mxu0 0.0
    %3574 = vmatpush1.msra.mxu0 0.0
    %3575 = vmatprep.subr.mxu0 0.0
    %3576 = vmatpush1.msra.mxu0 0.0
    %3577 = vmatprep.subr.mxu0 0.0
    %3578 = vmatpush1.msra.mxu0 0.0
    %3579 = vmatprep.subr.mxu0 0.0
    %3580 = vmatpush1.msra.mxu0 0.0
    %3581 = vmatprep.subr.mxu0 0.0
    %3582 = vmatpush1.msra.mxu0 0.0
    %3583 = vmatprep.subr.mxu0 0.0
    %3584 = vmatpush1.msra.mxu0 0.0
    %3585 = vmatprep.subr.mxu0 0.0
    %3586 = vmatpush1.msra.mxu0 0.0
    %3587 = vmatprep.subr.mxu0 0.0
    %3588 = vmatpush1.msra.mxu0 0.0
    %3589 = vmatprep.subr.mxu0 0.0
    %3590 = vmatpush1.msra.mxu0 0.0
    %3591 = vmatprep.subr.mxu0 0.0
    %3592 = vmatpush1.msra.mxu0 0.0
    %3593 = vmatprep.subr.mxu0 0.0
    %3594 = vmatpush1.msra.mxu0 0.0
    %3595 = vmatprep.subr.mxu0 0.0
    %3596 = vmatpush1.msra.mxu0 0.0
    %3597 = vmatprep.subr.mxu0 0.0
    %3598 = vmatpush1.msra.mxu0 0.0
    %3599 = vmatprep.subr.mxu0 0.0
    %3600 = vmatpush1.msra.mxu0 0.0
    %3601 = vmatprep.subr.mxu0 0.0
    %3602 = vmatpush1.msra.mxu0 0.0
    %3603 = vmatprep.subr.mxu0 0.0
    %3604 = vmatpush1.msra.mxu0 0.0
    %3605 = vmatprep.subr.mxu0 0.0
    %3606 = vmatpush1.msra.mxu0 0.0
    %3607 = vmatprep.subr.mxu0 0.0
    %3608 = vmatpush1.msra.mxu0 0.0
    %3609 = vmatprep.subr.mxu0 0.0
    %3610 = vmatpush1.msra.mxu0 0.0
    %3611 = vmatprep.subr.mxu0 0.0
    %3612 = vmatpush1.msra.mxu0 0.0
    %3613 = vmatprep.subr.mxu0 0.0
    %3614 = vmatpush1.msra.mxu0 0.0
    %3615 = vmatprep.subr.mxu0 0.0
    %3616 = vmatpush1.msra.mxu0 0.0
    %3617 = vmatprep.subr.mxu0 0.0
    %3618 = vmatpush1.msra.mxu0 0.0
    %3619 = vmatprep.subr.mxu0 0.0
    %3620 = vmatpush1.msra.mxu0 0.0
    %3621 = vmatprep.subr.mxu0 0.0
    %3622 = vmatpush1.msra.mxu0 0.0
    %3623 = vmatprep.subr.mxu0 0.0
    %3624 = vmatpush1.msra.mxu0 0.0
    %3625 = vmatprep.mubr.f32.mxu0 0.0
    %3626 = vmatmul.mubr.f32.gmra.mrb[0].mxu0 %v3471
    %v3627 = vpop.f32.mrb[0].mxu0
    %v3628 = vadd.f32 0.0, %v3627
    %v3629 = vpop.f32.mrb[0].mxu0
    %3630 = vdwg.mxu0
    %v3632 = vrot.slane %v3628, 7
    %v3635 = vadd.f32 %v3265, %v3632
    %v3636 = vadd.f32 %v3270, %v3628
    %v3637 = vxor.u32 %v3635, 2147483648
    %v3638 = vxor.u32 %v3636, 2147483648
    %v3639 = vmul.f32 %v3637, 1.442695
    %v3640 = vpow.pop %v3639
    %v3641 = vmul.f32 %v3638, 1.442695
    %v3642 = vpow.pop %v3641
    %v3643 = vadd.f32 %v3640, 1.0
    %v3644 = vadd.f32 %v3642, 1.0
    %v3645 = vrcp.pop %v3643
    %v3646 = vmul.f32 1.0, %v3645
    %v3647 = vrcp.pop %v3644
    %v3648 = vmul.f32 1.0, %v3647
    %3649 = vmatprep.subr.mxu0 0.0
    %3650 = vmatpush1.msra.mxu0 %v3093
    %3651 = vmatprep.subr.mxu0 0.0
    %3652 = vmatpush1.msra.mxu0 %v3094
    %3653 = vmatprep.subr.mxu0 0.0
    %3654 = vmatpush1.msra.mxu0 %v3095
    %3655 = vmatprep.subr.mxu0 0.0
    %3656 = vmatpush1.msra.mxu0 %v3096
    %3657 = vmatprep.subr.mxu0 0.0
    %3658 = vmatpush1.msra.mxu0 0.0
    %3659 = vmatprep.subr.mxu0 0.0
    %3660 = vmatpush1.msra.mxu0 0.0
    %3661 = vmatprep.subr.mxu0 0.0
    %3662 = vmatpush1.msra.mxu0 0.0
    %3663 = vmatprep.subr.mxu0 0.0
    %3664 = vmatpush1.msra.mxu0 0.0
    %3665 = vmatprep.subr.mxu0 0.0
    %3666 = vmatpush1.msra.mxu0 0.0
    %3667 = vmatprep.subr.mxu0 0.0
    %3668 = vmatpush1.msra.mxu0 0.0
    %3669 = vmatprep.subr.mxu0 0.0
    %3670 = vmatpush1.msra.mxu0 0.0
    %3671 = vmatprep.subr.mxu0 0.0
    %3672 = vmatpush1.msra.mxu0 0.0
    %3673 = vmatprep.subr.mxu0 0.0
    %3674 = vmatpush1.msra.mxu0 0.0
    %3675 = vmatprep.subr.mxu0 0.0
    %3676 = vmatpush1.msra.mxu0 0.0
    %3677 = vmatprep.subr.mxu0 0.0
    %3678 = vmatpush1.msra.mxu0 0.0
    %3679 = vmatprep.subr.mxu0 0.0
    %3680 = vmatpush1.msra.mxu0 0.0
    %3681 = vmatprep.subr.mxu0 0.0
    %3682 = vmatpush1.msra.mxu0 0.0
    %3683 = vmatprep.subr.mxu0 0.0
    %3684 = vmatpush1.msra.mxu0 0.0
    %3685 = vmatprep.subr.mxu0 0.0
    %3686 = vmatpush1.msra.mxu0 0.0
    %3687 = vmatprep.subr.mxu0 0.0
    %3688 = vmatpush1.msra.mxu0 0.0
    %3689 = vmatprep.subr.mxu0 0.0
    %3690 = vmatpush1.msra.mxu0 0.0
    %3691 = vmatprep.subr.mxu0 0.0
    %3692 = vmatpush1.msra.mxu0 0.0
    %3693 = vmatprep.subr.mxu0 0.0
    %3694 = vmatpush1.msra.mxu0 0.0
    %3695 = vmatprep.subr.mxu0 0.0
    %3696 = vmatpush1.msra.mxu0 0.0
    %3697 = vmatprep.subr.mxu0 0.0
    %3698 = vmatpush1.msra.mxu0 0.0
    %3699 = vmatprep.subr.mxu0 0.0
    %3700 = vmatpush1.msra.mxu0 0.0
    %3701 = vmatprep.subr.mxu0 0.0
    %3702 = vmatpush1.msra.mxu0 0.0
    %3703 = vmatprep.subr.mxu0 0.0
    %3704 = vmatpush1.msra.mxu0 0.0
    %3705 = vmatprep.subr.mxu0 0.0
    %3706 = vmatpush1.msra.mxu0 0.0
    %3707 = vmatprep.subr.mxu0 0.0
    %3708 = vmatpush1.msra.mxu0 0.0
    %3709 = vmatprep.subr.mxu0 0.0
    %3710 = vmatpush1.msra.mxu0 0.0
    %3711 = vmatprep.subr.mxu0 0.0
    %3712 = vmatpush1.msra.mxu0 0.0
    %3713 = vmatprep.mubr.f32.mxu0 0.0
    %3714 = vmatmul.mubr.f32.gmra.mrb[0].mxu0 %v3471
    %v3715 = vpop.f32.mrb[0].mxu0
    %v3716 = vadd.f32 0.0, %v3715
    %v3717 = vpop.f32.mrb[0].mxu0
    %3718 = vdwg.mxu0
    %v3720 = vrot.slane %v3716, 7
    %v3723 = vadd.f32 %v3346, %v3720
    %v3724 = vadd.f32 %v3351, %v3716
    %v3725 = vtanh.pop %v3723
    %v3726 = vtanh.pop %v3724
    %3727 = vmatprep.subr.mxu0 0.0
    %3728 = vmatpush1.msra.mxu0 %v3097
    %3729 = vmatprep.subr.mxu0 0.0
    %3730 = vmatpush1.msra.mxu0 %v3098
    %3731 = vmatprep.subr.mxu0 0.0
    %3732 = vmatpush1.msra.mxu0 %v3099
    %3733 = vmatprep.subr.mxu0 0.0
    %3734 = vmatpush1.msra.mxu0 %v3100
    %3735 = vmatprep.subr.mxu0 0.0
    %3736 = vmatpush1.msra.mxu0 0.0
    %3737 = vmatprep.subr.mxu0 0.0
    %3738 = vmatpush1.msra.mxu0 0.0
    %3739 = vmatprep.subr.mxu0 0.0
    %3740 = vmatpush1.msra.mxu0 0.0
    %3741 = vmatprep.subr.mxu0 0.0
    %3742 = vmatpush1.msra.mxu0 0.0
    %3743 = vmatprep.subr.mxu0 0.0
    %3744 = vmatpush1.msra.mxu0 0.0
    %3745 = vmatprep.subr.mxu0 0.0
    %3746 = vmatpush1.msra.mxu0 0.0
    %3747 = vmatprep.subr.mxu0 0.0
    %3748 = vmatpush1.msra.mxu0 0.0
    %3749 = vmatprep.subr.mxu0 0.0
    %3750 = vmatpush1.msra.mxu0 0.0
    %3751 = vmatprep.subr.mxu0 0.0
    %3752 = vmatpush1.msra.mxu0 0.0
    %3753 = vmatprep.subr.mxu0 0.0
    %3754 = vmatpush1.msra.mxu0 0.0
    %3755 = vmatprep.subr.mxu0 0.0
    %3756 = vmatpush1.msra.mxu0 0.0
    %3757 = vmatprep.subr.mxu0 0.0
    %3758 = vmatpush1.msra.mxu0 0.0
    %3759 = vmatprep.subr.mxu0 0.0
    %3760 = vmatpush1.msra.mxu0 0.0
    %3761 = vmatprep.subr.mxu0 0.0
    %3762 = vmatpush1.msra.mxu0 0.0
    %3763 = vmatprep.subr.mxu0 0.0
    %3764 = vmatpush1.msra.mxu0 0.0
    %3765 = vmatprep.subr.mxu0 0.0
    %3766 = vmatpush1.msra.mxu0 0.0
    %3767 = vmatprep.subr.mxu0 0.0
    %3768 = vmatpush1.msra.mxu0 0.0
    %3769 = vmatprep.subr.mxu0 0.0
    %3770 = vmatpush1.msra.mxu0 0.0
    %3771 = vmatprep.subr.mxu0 0.0
    %3772 = vmatpush1.msra.mxu0 0.0
    %3773 = vmatprep.subr.mxu0 0.0
    %3774 = vmatpush1.msra.mxu0 0.0
    %3775 = vmatprep.subr.mxu0 0.0
    %3776 = vmatpush1.msra.mxu0 0.0
    %3777 = vmatprep.subr.mxu0 0.0
    %3778 = vmatpush1.msra.mxu0 0.0
    %3779 = vmatprep.subr.mxu0 0.0
    %3780 = vmatpush1.msra.mxu0 0.0
    %3781 = vmatprep.subr.mxu0 0.0
    %3782 = vmatpush1.msra.mxu0 0.0
    %3783 = vmatprep.subr.mxu0 0.0
    %3784 = vmatpush1.msra.mxu0 0.0
    %3785 = vmatprep.subr.mxu0 0.0
    %3786 = vmatpush1.msra.mxu0 0.0
    %3787 = vmatprep.subr.mxu0 0.0
    %3788 = vmatpush1.msra.mxu0 0.0
    %3789 = vmatprep.subr.mxu0 0.0
    %3790 = vmatpush1.msra.mxu0 0.0
    %3791 = vmatprep.mubr.f32.mxu0 0.0
    %3792 = vmatmul.mubr.f32.gmra.mrb[0].mxu0 %v3471
    %v3793 = vpop.f32.mrb[0].mxu0
    %v3794 = vadd.f32 0.0, %v3793
    %v3795 = vpop.f32.mrb[0].mxu0
    %3796 = vdwg.mxu0
    %v3798 = vrot.slane %v3794, 7
    %v3801 = vadd.f32 %v3427, %v3798
    %v3802 = vadd.f32 %v3432, %v3794
    %v3803 = vxor.u32 %v3801, 2147483648
    %v3804 = vxor.u32 %v3802, 2147483648
    %v3805 = vmul.f32 %v3803, 1.442695
    %v3806 = vpow.pop %v3805
    %v3807 = vmul.f32 %v3804, 1.442695
    %v3808 = vpow.pop %v3807
    %v3809 = vadd.f32 %v3806, 1.0
    %v3810 = vadd.f32 %v3808, 1.0
    %v3811 = vrcp.pop %v3809
    %v3812 = vmul.f32 1.0, %v3811
    %v3813 = vrcp.pop %v3810
    %v3814 = vmul.f32 1.0, %v3813
    %v3817 = vrot.slane %v3449, 7
    %v3818 = vrot.slane %v3450, 7
    %v3821 = vmul.f32 %v3646, %v3817
    %v3822 = vmul.f32 %v3648, %v3818
    %v3823 = vmul.f32 %v3558, %v3725
    %v3824 = vmul.f32 %v3560, %v3726
    %v3825 = vadd.f32 %v3821, %v3823
    %v3826 = vadd.f32 %v3822, %v3824
    %v3827 = vtanh.pop %v3825
    %v3828 = vtanh.pop %v3826
    %v3829 = vmul.f32 %v3812, %v3827
    %v3830 = vmul.f32 %v3814, %v3828
    %v3833 = vrot.slane %v3829, 1
    %v3834 = vsel %vm473, %v3830, %v3833
    %v3835 = vsel %vm475, %v3834, 0
    %3837 = vmatprep.subr.mxu0 0.0
    %3838 = vmatpush1.msra.mxu0 %v3085
    %3839 = vmatprep.subr.mxu0 0.0
    %3840 = vmatpush1.msra.mxu0 %v3086
    %3841 = vmatprep.subr.mxu0 0.0
    %3842 = vmatpush1.msra.mxu0 %v3087
    %3843 = vmatprep.subr.mxu0 0.0
    %3844 = vmatpush1.msra.mxu0 %v3088
    %3845 = vmatprep.subr.mxu0 0.0
    %3846 = vmatpush1.msra.mxu0 0.0
    %3847 = vmatprep.subr.mxu0 0.0
    %3848 = vmatpush1.msra.mxu0 0.0
    %3849 = vmatprep.subr.mxu0 0.0
    %3850 = vmatpush1.msra.mxu0 0.0
    %3851 = vmatprep.subr.mxu0 0.0
    %3852 = vmatpush1.msra.mxu0 0.0
    %3853 = vmatprep.subr.mxu0 0.0
    %3854 = vmatpush1.msra.mxu0 0.0
    %3855 = vmatprep.subr.mxu0 0.0
    %3856 = vmatpush1.msra.mxu0 0.0
    %3857 = vmatprep.subr.mxu0 0.0
    %3858 = vmatpush1.msra.mxu0 0.0
    %3859 = vmatprep.subr.mxu0 0.0
    %3860 = vmatpush1.msra.mxu0 0.0
    %3861 = vmatprep.subr.mxu0 0.0
    %3862 = vmatpush1.msra.mxu0 0.0
    %3863 = vmatprep.subr.mxu0 0.0
    %3864 = vmatpush1.msra.mxu0 0.0
    %3865 = vmatprep.subr.mxu0 0.0
    %3866 = vmatpush1.msra.mxu0 0.0
    %3867 = vmatprep.subr.mxu0 0.0
    %3868 = vmatpush1.msra.mxu0 0.0
    %3869 = vmatprep.subr.mxu0 0.0
    %3870 = vmatpush1.msra.mxu0 0.0
    %3871 = vmatprep.subr.mxu0 0.0
    %3872 = vmatpush1.msra.mxu0 0.0
    %3873 = vmatprep.subr.mxu0 0.0
    %3874 = vmatpush1.msra.mxu0 0.0
    %3875 = vmatprep.subr.mxu0 0.0
    %3876 = vmatpush1.msra.mxu0 0.0
    %3877 = vmatprep.subr.mxu0 0.0
    %3878 = vmatpush1.msra.mxu0 0.0
    %3879 = vmatprep.subr.mxu0 0.0
    %3880 = vmatpush1.msra.mxu0 0.0
    %3881 = vmatprep.subr.mxu0 0.0
    %3882 = vmatpush1.msra.mxu0 0.0
    %3883 = vmatprep.subr.mxu0 0.0
    %3884 = vmatpush1.msra.mxu0 0.0
    %3885 = vmatprep.subr.mxu0 0.0
    %3886 = vmatpush1.msra.mxu0 0.0
    %3887 = vmatprep.subr.mxu0 0.0
    %3888 = vmatpush1.msra.mxu0 0.0
    %3889 = vmatprep.subr.mxu0 0.0
    %3890 = vmatpush1.msra.mxu0 0.0
    %3891 = vmatprep.subr.mxu0 0.0
    %3892 = vmatpush1.msra.mxu0 0.0
    %3893 = vmatprep.subr.mxu0 0.0
    %3894 = vmatpush1.msra.mxu0 0.0
    %3895 = vmatprep.subr.mxu0 0.0
    %3896 = vmatpush1.msra.mxu0 0.0
    %3897 = vmatprep.subr.mxu0 0.0
    %3898 = vmatpush1.msra.mxu0 0.0
    %3899 = vmatprep.subr.mxu0 0.0
    %3900 = vmatpush1.msra.mxu0 0.0
    %3901 = vmatprep.mubr.f32.mxu0 0.0
    %3902 = vmatmul.mubr.f32.gmra.mrb[0].mxu0 %v3835
    %v3903 = vpop.f32.mrb[0].mxu0
    %v3904 = vadd.f32 0.0, %v3903
    %v3905 = vpop.f32.mrb[0].mxu0
    %3906 = vdwg.mxu0
    %v3908 = vrot.slane %v3904, 6
    %v3909 = vrot.slane %v3904, 7
    %v3912 = vadd.f32 %v3184, %v3908
    %v3913 = vadd.f32 %v3189, %v3909
    %v3914 = vxor.u32 %v3912, 2147483648
    %v3915 = vxor.u32 %v3913, 2147483648
    %v3916 = vmul.f32 %v3914, 1.442695
    %v3917 = vpow.pop %v3916
    %v3918 = vmul.f32 %v3915, 1.442695
    %v3919 = vpow.pop %v3918
    %v3920 = vadd.f32 %v3917, 1.0
    %v3921 = vadd.f32 %v3919, 1.0
    %v3922 = vrcp.pop %v3920
    %v3923 = vmul.f32 1.0, %v3922
    %v3924 = vrcp.pop %v3921
    %v3925 = vmul.f32 1.0, %v3924
    %3926 = vmatprep.subr.mxu0 0.0
    %3927 = vmatpush1.msra.mxu0 %v3089
    %3928 = vmatprep.subr.mxu0 0.0
    %3929 = vmatpush1.msra.mxu0 %v3090
    %3930 = vmatprep.subr.mxu0 0.0
    %3931 = vmatpush1.msra.mxu0 %v3091
    %3932 = vmatprep.subr.mxu0 0.0
    %3933 = vmatpush1.msra.mxu0 %v3092
    %3934 = vmatprep.subr.mxu0 0.0
    %3935 = vmatpush1.msra.mxu0 0.0
    %3936 = vmatprep.subr.mxu0 0.0
    %3937 = vmatpush1.msra.mxu0 0.0
    %3938 = vmatprep.subr.mxu0 0.0
    %3939 = vmatpush1.msra.mxu0 0.0
    %3940 = vmatprep.subr.mxu0 0.0
    %3941 = vmatpush1.msra.mxu0 0.0
    %3942 = vmatprep.subr.mxu0 0.0
    %3943 = vmatpush1.msra.mxu0 0.0
    %3944 = vmatprep.subr.mxu0 0.0
    %3945 = vmatpush1.msra.mxu0 0.0
    %3946 = vmatprep.subr.mxu0 0.0
    %3947 = vmatpush1.msra.mxu0 0.0
    %3948 = vmatprep.subr.mxu0 0.0
    %3949 = vmatpush1.msra.mxu0 0.0
    %3950 = vmatprep.subr.mxu0 0.0
    %3951 = vmatpush1.msra.mxu0 0.0
    %3952 = vmatprep.subr.mxu0 0.0
    %3953 = vmatpush1.msra.mxu0 0.0
    %3954 = vmatprep.subr.mxu0 0.0
    %3955 = vmatpush1.msra.mxu0 0.0
    %3956 = vmatprep.subr.mxu0 0.0
    %3957 = vmatpush1.msra.mxu0 0.0
    %3958 = vmatprep.subr.mxu0 0.0
    %3959 = vmatpush1.msra.mxu0 0.0
    %3960 = vmatprep.subr.mxu0 0.0
    %3961 = vmatpush1.msra.mxu0 0.0
    %3962 = vmatprep.subr.mxu0 0.0
    %3963 = vmatpush1.msra.mxu0 0.0
    %3964 = vmatprep.subr.mxu0 0.0
    %3965 = vmatpush1.msra.mxu0 0.0
    %3966 = vmatprep.subr.mxu0 0.0
    %3967 = vmatpush1.msra.mxu0 0.0
    %3968 = vmatprep.subr.mxu0 0.0
    %3969 = vmatpush1.msra.mxu0 0.0
    %3970 = vmatprep.subr.mxu0 0.0
    %3971 = vmatpush1.msra.mxu0 0.0
    %3972 = vmatprep.subr.mxu0 0.0
    %3973 = vmatpush1.msra.mxu0 0.0
    %3974 = vmatprep.subr.mxu0 0.0
    %3975 = vmatpush1.msra.mxu0 0.0
    %3976 = vmatprep.subr.mxu0 0.0
    %3977 = vmatpush1.msra.mxu0 0.0
    %3978 = vmatprep.subr.mxu0 0.0
    %3979 = vmatpush1.msra.mxu0 0.0
    %3980 = vmatprep.subr.mxu0 0.0
    %3981 = vmatpush1.msra.mxu0 0.0
    %3982 = vmatprep.subr.mxu0 0.0
    %3983 = vmatpush1.msra.mxu0 0.0
    %3984 = vmatprep.subr.mxu0 0.0
    %3985 = vmatpush1.msra.mxu0 0.0
    %3986 = vmatprep.subr.mxu0 0.0
    %3987 = vmatpush1.msra.mxu0 0.0
    %3988 = vmatprep.subr.mxu0 0.0
    %3989 = vmatpush1.msra.mxu0 0.0
    %3990 = vmatprep.mubr.f32.mxu0 0.0
    %3991 = vmatmul.mubr.f32.gmra.mrb[0].mxu0 %v3835
    %v3992 = vpop.f32.mrb[0].mxu0
    %v3993 = vadd.f32 0.0, %v3992
    %v3994 = vpop.f32.mrb[0].mxu0
    %3995 = vdwg.mxu0
    %v3997 = vrot.slane %v3993, 6
    %v3998 = vrot.slane %v3993, 7
    %v4001 = vadd.f32 %v3265, %v3997
    %v4002 = vadd.f32 %v3270, %v3998
    %v4003 = vxor.u32 %v4001, 2147483648
    %v4004 = vxor.u32 %v4002, 2147483648
    %v4005 = vmul.f32 %v4003, 1.442695
    %v4006 = vpow.pop %v4005
    %v4007 = vmul.f32 %v4004, 1.442695
    %v4008 = vpow.pop %v4007
    %v4009 = vadd.f32 %v4006, 1.0
    %v4010 = vadd.f32 %v4008, 1.0
    %v4011 = vrcp.pop %v4009
    %v4012 = vmul.f32 1.0, %v4011
    %v4013 = vrcp.pop %v4010
    %v4014 = vmul.f32 1.0, %v4013
    %4015 = vmatprep.subr.mxu0 0.0
    %4016 = vmatpush1.msra.mxu0 %v3093
    %4017 = vmatprep.subr.mxu0 0.0
    %4018 = vmatpush1.msra.mxu0 %v3094
    %4019 = vmatprep.subr.mxu0 0.0
    %4020 = vmatpush1.msra.mxu0 %v3095
    %4021 = vmatprep.subr.mxu0 0.0
    %4022 = vmatpush1.msra.mxu0 %v3096
    %4023 = vmatprep.subr.mxu0 0.0
    %4024 = vmatpush1.msra.mxu0 0.0
    %4025 = vmatprep.subr.mxu0 0.0
    %4026 = vmatpush1.msra.mxu0 0.0
    %4027 = vmatprep.subr.mxu0 0.0
    %4028 = vmatpush1.msra.mxu0 0.0
    %4029 = vmatprep.subr.mxu0 0.0
    %4030 = vmatpush1.msra.mxu0 0.0
    %4031 = vmatprep.subr.mxu0 0.0
    %4032 = vmatpush1.msra.mxu0 0.0
    %4033 = vmatprep.subr.mxu0 0.0
    %4034 = vmatpush1.msra.mxu0 0.0
    %4035 = vmatprep.subr.mxu0 0.0
    %4036 = vmatpush1.msra.mxu0 0.0
    %4037 = vmatprep.subr.mxu0 0.0
    %4038 = vmatpush1.msra.mxu0 0.0
    %4039 = vmatprep.subr.mxu0 0.0
    %4040 = vmatpush1.msra.mxu0 0.0
    %4041 = vmatprep.subr.mxu0 0.0
    %4042 = vmatpush1.msra.mxu0 0.0
    %4043 = vmatprep.subr.mxu0 0.0
    %4044 = vmatpush1.msra.mxu0 0.0
    %4045 = vmatprep.subr.mxu0 0.0
    %4046 = vmatpush1.msra.mxu0 0.0
    %4047 = vmatprep.subr.mxu0 0.0
    %4048 = vmatpush1.msra.mxu0 0.0
    %4049 = vmatprep.subr.mxu0 0.0
    %4050 = vmatpush1.msra.mxu0 0.0
    %4051 = vmatprep.subr.mxu0 0.0
    %4052 = vmatpush1.msra.mxu0 0.0
    %4053 = vmatprep.subr.mxu0 0.0
    %4054 = vmatpush1.msra.mxu0 0.0
    %4055 = vmatprep.subr.mxu0 0.0
    %4056 = vmatpush1.msra.mxu0 0.0
    %4057 = vmatprep.subr.mxu0 0.0
    %4058 = vmatpush1.msra.mxu0 0.0
    %4059 = vmatprep.subr.mxu0 0.0
    %4060 = vmatpush1.msra.mxu0 0.0
    %4061 = vmatprep.subr.mxu0 0.0
    %4062 = vmatpush1.msra.mxu0 0.0
    %4063 = vmatprep.subr.mxu0 0.0
    %4064 = vmatpush1.msra.mxu0 0.0
    %4065 = vmatprep.subr.mxu0 0.0
    %4066 = vmatpush1.msra.mxu0 0.0
    %4067 = vmatprep.subr.mxu0 0.0
    %4068 = vmatpush1.msra.mxu0 0.0
    %4069 = vmatprep.subr.mxu0 0.0
    %4070 = vmatpush1.msra.mxu0 0.0
    %4071 = vmatprep.subr.mxu0 0.0
    %4072 = vmatpush1.msra.mxu0 0.0
    %4073 = vmatprep.subr.mxu0 0.0
    %4074 = vmatpush1.msra.mxu0 0.0
    %4075 = vmatprep.subr.mxu0 0.0
    %4076 = vmatpush1.msra.mxu0 0.0
    %4077 = vmatprep.subr.mxu0 0.0
    %4078 = vmatpush1.msra.mxu0 0.0
    %4079 = vmatprep.mubr.f32.mxu0 0.0
    %4080 = vmatmul.mubr.f32.gmra.mrb[0].mxu0 %v3835
    %v4081 = vpop.f32.mrb[0].mxu0
    %v4082 = vadd.f32 0.0, %v4081
    %v4083 = vpop.f32.mrb[0].mxu0
    %4084 = vdwg.mxu0
    %v4086 = vrot.slane %v4082, 6
    %v4087 = vrot.slane %v4082, 7
    %v4090 = vadd.f32 %v3346, %v4086
    %v4091 = vadd.f32 %v3351, %v4087
    %v4092 = vtanh.pop %v4090
    %v4093 = vtanh.pop %v4091
    %4094 = vmatprep.subr.mxu0 0.0
    %4095 = vmatpush1.msra.mxu0 %v3097
    %4096 = vmatprep.subr.mxu0 0.0
    %4097 = vmatpush1.msra.mxu0 %v3098
    %4098 = vmatprep.subr.mxu0 0.0
    %4099 = vmatpush1.msra.mxu0 %v3099
    %4100 = vmatprep.subr.mxu0 0.0
    %4101 = vmatpush1.msra.mxu0 %v3100
    %4102 = vmatprep.subr.mxu0 0.0
    %4103 = vmatpush1.msra.mxu0 0.0
    %4104 = vmatprep.subr.mxu0 0.0
    %4105 = vmatpush1.msra.mxu0 0.0
    %4106 = vmatprep.subr.mxu0 0.0
    %4107 = vmatpush1.msra.mxu0 0.0
    %4108 = vmatprep.subr.mxu0 0.0
    %4109 = vmatpush1.msra.mxu0 0.0
    %4110 = vmatprep.subr.mxu0 0.0
    %4111 = vmatpush1.msra.mxu0 0.0
    %4112 = vmatprep.subr.mxu0 0.0
    %4113 = vmatpush1.msra.mxu0 0.0
    %4114 = vmatprep.subr.mxu0 0.0
    %4115 = vmatpush1.msra.mxu0 0.0
    %4116 = vmatprep.subr.mxu0 0.0
    %4117 = vmatpush1.msra.mxu0 0.0
    %4118 = vmatprep.subr.mxu0 0.0
    %4119 = vmatpush1.msra.mxu0 0.0
    %4120 = vmatprep.subr.mxu0 0.0
    %4121 = vmatpush1.msra.mxu0 0.0
    %4122 = vmatprep.subr.mxu0 0.0
    %4123 = vmatpush1.msra.mxu0 0.0
    %4124 = vmatprep.subr.mxu0 0.0
    %4125 = vmatpush1.msra.mxu0 0.0
    %4126 = vmatprep.subr.mxu0 0.0
    %4127 = vmatpush1.msra.mxu0 0.0
    %4128 = vmatprep.subr.mxu0 0.0
    %4129 = vmatpush1.msra.mxu0 0.0
    %4130 = vmatprep.subr.mxu0 0.0
    %4131 = vmatpush1.msra.mxu0 0.0
    %4132 = vmatprep.subr.mxu0 0.0
    %4133 = vmatpush1.msra.mxu0 0.0
    %4134 = vmatprep.subr.mxu0 0.0
    %4135 = vmatpush1.msra.mxu0 0.0
    %4136 = vmatprep.subr.mxu0 0.0
    %4137 = vmatpush1.msra.mxu0 0.0
    %4138 = vmatprep.subr.mxu0 0.0
    %4139 = vmatpush1.msra.mxu0 0.0
    %4140 = vmatprep.subr.mxu0 0.0
    %4141 = vmatpush1.msra.mxu0 0.0
    %4142 = vmatprep.subr.mxu0 0.0
    %4143 = vmatpush1.msra.mxu0 0.0
    %4144 = vmatprep.subr.mxu0 0.0
    %4145 = vmatpush1.msra.mxu0 0.0
    %4146 = vmatprep.subr.mxu0 0.0
    %4147 = vmatpush1.msra.mxu0 0.0
    %4148 = vmatprep.subr.mxu0 0.0
    %4149 = vmatpush1.msra.mxu0 0.0
    %4150 = vmatprep.subr.mxu0 0.0
    %4151 = vmatpush1.msra.mxu0 0.0
    %4152 = vmatprep.subr.mxu0 0.0
    %4153 = vmatpush1.msra.mxu0 0.0
    %4154 = vmatprep.subr.mxu0 0.0
    %4155 = vmatpush1.msra.mxu0 0.0
    %4156 = vmatprep.subr.mxu0 0.0
    %4157 = vmatpush1.msra.mxu0 0.0
    %4158 = vmatprep.mubr.f32.mxu0 0.0
    %4159 = vmatmul.mubr.f32.gmra.mrb[0].mxu0 %v3835
    %v4160 = vpop.f32.mrb[0].mxu0
    %v4161 = vadd.f32 0.0, %v4160
    %v4162 = vpop.f32.mrb[0].mxu0
    %4163 = vdwg.mxu0
    %v4165 = vrot.slane %v4161, 6
    %v4166 = vrot.slane %v4161, 7
    %v4169 = vadd.f32 %v3427, %v4165
    %v4170 = vadd.f32 %v3432, %v4166
    %v4171 = vxor.u32 %v4169, 2147483648
    %v4172 = vxor.u32 %v4170, 2147483648
    %v4173 = vmul.f32 %v4171, 1.442695
    %v4174 = vpow.pop %v4173
    %v4175 = vmul.f32 %v4172, 1.442695
    %v4176 = vpow.pop %v4175
    %v4177 = vadd.f32 %v4174, 1.0
    %v4178 = vadd.f32 %v4176, 1.0
    %v4179 = vrcp.pop %v4177
    %v4180 = vmul.f32 1.0, %v4179
    %v4181 = vrcp.pop %v4178
    %v4182 = vmul.f32 1.0, %v4181
    %v4185 = vrot.slane %v3825, 7
    %v4186 = vrot.slane %v3826, 7
    %v4189 = vmul.f32 %v4012, %v4185
    %v4190 = vmul.f32 %v4014, %v4186
    %v4191 = vmul.f32 %v3923, %v4092
    %v4192 = vmul.f32 %v3925, %v4093
    %v4193 = vadd.f32 %v4189, %v4191
    %v4194 = vadd.f32 %v4190, %v4192
    %v4195 = vtanh.pop %v4193
    %v4196 = vtanh.pop %v4194
    %v4197 = vmul.f32 %v4180, %v4195
    %v4198 = vmul.f32 %v4182, %v4196
    %v4201 = vrot.slane %v4197, 2
    %v4202 = vrot.slane %v4198, 1
    %v4203 = vsel %vm473, %v4202, %v4201
    %v4204 = vsel %vm475, %v4203, 0
    %4206 = vmatprep.subr.mxu0 0.0
    %4207 = vmatpush1.msra.mxu0 %v3085
    %4208 = vmatprep.subr.mxu0 0.0
    %4209 = vmatpush1.msra.mxu0 %v3086
    %4210 = vmatprep.subr.mxu0 0.0
    %4211 = vmatpush1.msra.mxu0 %v3087
    %4212 = vmatprep.subr.mxu0 0.0
    %4213 = vmatpush1.msra.mxu0 %v3088
    %4214 = vmatprep.subr.mxu0 0.0
    %4215 = vmatpush1.msra.mxu0 0.0
    %4216 = vmatprep.subr.mxu0 0.0
    %4217 = vmatpush1.msra.mxu0 0.0
    %4218 = vmatprep.subr.mxu0 0.0
    %4219 = vmatpush1.msra.mxu0 0.0
    %4220 = vmatprep.subr.mxu0 0.0
    %4221 = vmatpush1.msra.mxu0 0.0
    %4222 = vmatprep.subr.mxu0 0.0
    %4223 = vmatpush1.msra.mxu0 0.0
    %4224 = vmatprep.subr.mxu0 0.0
    %4225 = vmatpush1.msra.mxu0 0.0
    %4226 = vmatprep.subr.mxu0 0.0
    %4227 = vmatpush1.msra.mxu0 0.0
    %4228 = vmatprep.subr.mxu0 0.0
    %4229 = vmatpush1.msra.mxu0 0.0
    %4230 = vmatprep.subr.mxu0 0.0
    %4231 = vmatpush1.msra.mxu0 0.0
    %4232 = vmatprep.subr.mxu0 0.0
    %4233 = vmatpush1.msra.mxu0 0.0
    %4234 = vmatprep.subr.mxu0 0.0
    %4235 = vmatpush1.msra.mxu0 0.0
    %4236 = vmatprep.subr.mxu0 0.0
    %4237 = vmatpush1.msra.mxu0 0.0
    %4238 = vmatprep.subr.mxu0 0.0
    %4239 = vmatpush1.msra.mxu0 0.0
    %4240 = vmatprep.subr.mxu0 0.0
    %4241 = vmatpush1.msra.mxu0 0.0
    %4242 = vmatprep.subr.mxu0 0.0
    %4243 = vmatpush1.msra.mxu0 0.0
    %4244 = vmatprep.subr.mxu0 0.0
    %4245 = vmatpush1.msra.mxu0 0.0
    %4246 = vmatprep.subr.mxu0 0.0
    %4247 = vmatpush1.msra.mxu0 0.0
    %4248 = vmatprep.subr.mxu0 0.0
    %4249 = vmatpush1.msra.mxu0 0.0
    %4250 = vmatprep.subr.mxu0 0.0
    %4251 = vmatpush1.msra.mxu0 0.0
    %4252 = vmatprep.subr.mxu0 0.0
    %4253 = vmatpush1.msra.mxu0 0.0
    %4254 = vmatprep.subr.mxu0 0.0
    %4255 = vmatpush1.msra.mxu0 0.0
    %4256 = vmatprep.subr.mxu0 0.0
    %4257 = vmatpush1.msra.mxu0 0.0
    %4258 = vmatprep.subr.mxu0 0.0
    %4259 = vmatpush1.msra.mxu0 0.0
    %4260 = vmatprep.subr.mxu0 0.0
    %4261 = vmatpush1.msra.mxu0 0.0
    %4262 = vmatprep.subr.mxu0 0.0
    %4263 = vmatpush1.msra.mxu0 0.0
    %4264 = vmatprep.subr.mxu0 0.0
    %4265 = vmatpush1.msra.mxu0 0.0
    %4266 = vmatprep.subr.mxu0 0.0
    %4267 = vmatpush1.msra.mxu0 0.0
    %4268 = vmatprep.subr.mxu0 0.0
    %4269 = vmatpush1.msra.mxu0 0.0
    %4270 = vmatprep.mubr.f32.mxu0 0.0
    %4271 = vmatmul.mubr.f32.gmra.mrb[0].mxu0 %v4204
    %v4272 = vpop.f32.mrb[0].mxu0
    %v4273 = vadd.f32 0.0, %v4272
    %v4274 = vpop.f32.mrb[0].mxu0
    %4275 = vdwg.mxu0
    %v4277 = vrot.slane %v4273, 5
    %v4278 = vrot.slane %v4273, 6
    %v4281 = vadd.f32 %v3184, %v4277
    %v4282 = vadd.f32 %v3189, %v4278
    %v4283 = vxor.u32 %v4281, 2147483648
    %v4284 = vxor.u32 %v4282, 2147483648
    %v4285 = vmul.f32 %v4283, 1.442695
    %v4286 = vpow.pop %v4285
    %v4287 = vmul.f32 %v4284, 1.442695
    %v4288 = vpow.pop %v4287
    %v4289 = vadd.f32 %v4286, 1.0
    %v4290 = vadd.f32 %v4288, 1.0
    %v4291 = vrcp.pop %v4289
    %v4292 = vmul.f32 1.0, %v4291
    %v4293 = vrcp.pop %v4290
    %v4294 = vmul.f32 1.0, %v4293
    %4295 = vmatprep.subr.mxu0 0.0
    %4296 = vmatpush1.msra.mxu0 %v3089
    %4297 = vmatprep.subr.mxu0 0.0
    %4298 = vmatpush1.msra.mxu0 %v3090
    %4299 = vmatprep.subr.mxu0 0.0
    %4300 = vmatpush1.msra.mxu0 %v3091
    %4301 = vmatprep.subr.mxu0 0.0
    %4302 = vmatpush1.msra.mxu0 %v3092
    %4303 = vmatprep.subr.mxu0 0.0
    %4304 = vmatpush1.msra.mxu0 0.0
    %4305 = vmatprep.subr.mxu0 0.0
    %4306 = vmatpush1.msra.mxu0 0.0
    %4307 = vmatprep.subr.mxu0 0.0
    %4308 = vmatpush1.msra.mxu0 0.0
    %4309 = vmatprep.subr.mxu0 0.0
    %4310 = vmatpush1.msra.mxu0 0.0
    %4311 = vmatprep.subr.mxu0 0.0
    %4312 = vmatpush1.msra.mxu0 0.0
    %4313 = vmatprep.subr.mxu0 0.0
    %4314 = vmatpush1.msra.mxu0 0.0
    %4315 = vmatprep.subr.mxu0 0.0
    %4316 = vmatpush1.msra.mxu0 0.0
    %4317 = vmatprep.subr.mxu0 0.0
    %4318 = vmatpush1.msra.mxu0 0.0
    %4319 = vmatprep.subr.mxu0 0.0
    %4320 = vmatpush1.msra.mxu0 0.0
    %4321 = vmatprep.subr.mxu0 0.0
    %4322 = vmatpush1.msra.mxu0 0.0
    %4323 = vmatprep.subr.mxu0 0.0
    %4324 = vmatpush1.msra.mxu0 0.0
    %4325 = vmatprep.subr.mxu0 0.0
    %4326 = vmatpush1.msra.mxu0 0.0
    %4327 = vmatprep.subr.mxu0 0.0
    %4328 = vmatpush1.msra.mxu0 0.0
    %4329 = vmatprep.subr.mxu0 0.0
    %4330 = vmatpush1.msra.mxu0 0.0
    %4331 = vmatprep.subr.mxu0 0.0
    %4332 = vmatpush1.msra.mxu0 0.0
    %4333 = vmatprep.subr.mxu0 0.0
    %4334 = vmatpush1.msra.mxu0 0.0
    %4335 = vmatprep.subr.mxu0 0.0
    %4336 = vmatpush1.msra.mxu0 0.0
    %4337 = vmatprep.subr.mxu0 0.0
    %4338 = vmatpush1.msra.mxu0 0.0
    %4339 = vmatprep.subr.mxu0 0.0
    %4340 = vmatpush1.msra.mxu0 0.0
    %4341 = vmatprep.subr.mxu0 0.0
    %4342 = vmatpush1.msra.mxu0 0.0
    %4343 = vmatprep.subr.mxu0 0.0
    %4344 = vmatpush1.msra.mxu0 0.0
    %4345 = vmatprep.subr.mxu0 0.0
    %4346 = vmatpush1.msra.mxu0 0.0
    %4347 = vmatprep.subr.mxu0 0.0
    %4348 = vmatpush1.msra.mxu0 0.0
    %4349 = vmatprep.subr.mxu0 0.0
    %4350 = vmatpush1.msra.mxu0 0.0
    %4351 = vmatprep.subr.mxu0 0.0
    %4352 = vmatpush1.msra.mxu0 0.0
    %4353 = vmatprep.subr.mxu0 0.0
    %4354 = vmatpush1.msra.mxu0 0.0
    %4355 = vmatprep.subr.mxu0 0.0
    %4356 = vmatpush1.msra.mxu0 0.0
    %4357 = vmatprep.subr.mxu0 0.0
    %4358 = vmatpush1.msra.mxu0 0.0
    %4359 = vmatprep.mubr.f32.mxu0 0.0
    %4360 = vmatmul.mubr.f32.gmra.mrb[0].mxu0 %v4204
    %v4361 = vpop.f32.mrb[0].mxu0
    %v4362 = vadd.f32 0.0, %v4361
    %v4363 = vpop.f32.mrb[0].mxu0
    %4364 = vdwg.mxu0
    %v4366 = vrot.slane %v4362, 5
    %v4367 = vrot.slane %v4362, 6
    %v4370 = vadd.f32 %v3265, %v4366
    %v4371 = vadd.f32 %v3270, %v4367
    %v4372 = vxor.u32 %v4370, 2147483648
    %v4373 = vxor.u32 %v4371, 2147483648
    %v4374 = vmul.f32 %v4372, 1.442695
    %v4375 = vpow.pop %v4374
    %v4376 = vmul.f32 %v4373, 1.442695
    %v4377 = vpow.pop %v4376
    %v4378 = vadd.f32 %v4375, 1.0
    %v4379 = vadd.f32 %v4377, 1.0
    %v4380 = vrcp.pop %v4378
    %v4381 = vmul.f32 1.0, %v4380
    %v4382 = vrcp.pop %v4379
    %v4383 = vmul.f32 1.0, %v4382
    %4384 = vmatprep.subr.mxu0 0.0
    %4385 = vmatpush1.msra.mxu0 %v3093
    %4386 = vmatprep.subr.mxu0 0.0
    %4387 = vmatpush1.msra.mxu0 %v3094
    %4388 = vmatprep.subr.mxu0 0.0
    %4389 = vmatpush1.msra.mxu0 %v3095
    %4390 = vmatprep.subr.mxu0 0.0
    %4391 = vmatpush1.msra.mxu0 %v3096
    %4392 = vmatprep.subr.mxu0 0.0
    %4393 = vmatpush1.msra.mxu0 0.0
    %4394 = vmatprep.subr.mxu0 0.0
    %4395 = vmatpush1.msra.mxu0 0.0
    %4396 = vmatprep.subr.mxu0 0.0
    %4397 = vmatpush1.msra.mxu0 0.0
    %4398 = vmatprep.subr.mxu0 0.0
    %4399 = vmatpush1.msra.mxu0 0.0
    %4400 = vmatprep.subr.mxu0 0.0
    %4401 = vmatpush1.msra.mxu0 0.0
    %4402 = vmatprep.subr.mxu0 0.0
    %4403 = vmatpush1.msra.mxu0 0.0
    %4404 = vmatprep.subr.mxu0 0.0
    %4405 = vmatpush1.msra.mxu0 0.0
    %4406 = vmatprep.subr.mxu0 0.0
    %4407 = vmatpush1.msra.mxu0 0.0
    %4408 = vmatprep.subr.mxu0 0.0
    %4409 = vmatpush1.msra.mxu0 0.0
    %4410 = vmatprep.subr.mxu0 0.0
    %4411 = vmatpush1.msra.mxu0 0.0
    %4412 = vmatprep.subr.mxu0 0.0
    %4413 = vmatpush1.msra.mxu0 0.0
    %4414 = vmatprep.subr.mxu0 0.0
    %4415 = vmatpush1.msra.mxu0 0.0
    %4416 = vmatprep.subr.mxu0 0.0
    %4417 = vmatpush1.msra.mxu0 0.0
    %4418 = vmatprep.subr.mxu0 0.0
    %4419 = vmatpush1.msra.mxu0 0.0
    %4420 = vmatprep.subr.mxu0 0.0
    %4421 = vmatpush1.msra.mxu0 0.0
    %4422 = vmatprep.subr.mxu0 0.0
    %4423 = vmatpush1.msra.mxu0 0.0
    %4424 = vmatprep.subr.mxu0 0.0
    %4425 = vmatpush1.msra.mxu0 0.0
    %4426 = vmatprep.subr.mxu0 0.0
    %4427 = vmatpush1.msra.mxu0 0.0
    %4428 = vmatprep.subr.mxu0 0.0
    %4429 = vmatpush1.msra.mxu0 0.0
    %4430 = vmatprep.subr.mxu0 0.0
    %4431 = vmatpush1.msra.mxu0 0.0
    %4432 = vmatprep.subr.mxu0 0.0
    %4433 = vmatpush1.msra.mxu0 0.0
    %4434 = vmatprep.subr.mxu0 0.0
    %4435 = vmatpush1.msra.mxu0 0.0
    %4436 = vmatprep.subr.mxu0 0.0
    %4437 = vmatpush1.msra.mxu0 0.0
    %4438 = vmatprep.subr.mxu0 0.0
    %4439 = vmatpush1.msra.mxu0 0.0
    %4440 = vmatprep.subr.mxu0 0.0
    %4441 = vmatpush1.msra.mxu0 0.0
    %4442 = vmatprep.subr.mxu0 0.0
    %4443 = vmatpush1.msra.mxu0 0.0
    %4444 = vmatprep.subr.mxu0 0.0
    %4445 = vmatpush1.msra.mxu0 0.0
    %4446 = vmatprep.subr.mxu0 0.0
    %4447 = vmatpush1.msra.mxu0 0.0
    %4448 = vmatprep.mubr.f32.mxu0 0.0
    %4449 = vmatmul.mubr.f32.gmra.mrb[0].mxu0 %v4204
    %v4450 = vpop.f32.mrb[0].mxu0
    %v4451 = vadd.f32 0.0, %v4450
    %v4452 = vpop.f32.mrb[0].mxu0
    %4453 = vdwg.mxu0
    %v4455 = vrot.slane %v4451, 5
    %v4456 = vrot.slane %v4451, 6
    %v4459 = vadd.f32 %v3346, %v4455
    %v4460 = vadd.f32 %v3351, %v4456
    %v4461 = vtanh.pop %v4459
    %v4462 = vtanh.pop %v4460
    %4463 = vmatprep.subr.mxu0 0.0
    %4464 = vmatpush1.msra.mxu0 %v3097
    %4465 = vmatprep.subr.mxu0 0.0
    %4466 = vmatpush1.msra.mxu0 %v3098
    %4467 = vmatprep.subr.mxu0 0.0
    %4468 = vmatpush1.msra.mxu0 %v3099
    %4469 = vmatprep.subr.mxu0 0.0
    %4470 = vmatpush1.msra.mxu0 %v3100
    %4471 = vmatprep.subr.mxu0 0.0
    %4472 = vmatpush1.msra.mxu0 0.0
    %4473 = vmatprep.subr.mxu0 0.0
    %4474 = vmatpush1.msra.mxu0 0.0
    %4475 = vmatprep.subr.mxu0 0.0
    %4476 = vmatpush1.msra.mxu0 0.0
    %4477 = vmatprep.subr.mxu0 0.0
    %4478 = vmatpush1.msra.mxu0 0.0
    %4479 = vmatprep.subr.mxu0 0.0
    %4480 = vmatpush1.msra.mxu0 0.0
    %4481 = vmatprep.subr.mxu0 0.0
    %4482 = vmatpush1.msra.mxu0 0.0
    %4483 = vmatprep.subr.mxu0 0.0
    %4484 = vmatpush1.msra.mxu0 0.0
    %4485 = vmatprep.subr.mxu0 0.0
    %4486 = vmatpush1.msra.mxu0 0.0
    %4487 = vmatprep.subr.mxu0 0.0
    %4488 = vmatpush1.msra.mxu0 0.0
    %4489 = vmatprep.subr.mxu0 0.0
    %4490 = vmatpush1.msra.mxu0 0.0
    %4491 = vmatprep.subr.mxu0 0.0
    %4492 = vmatpush1.msra.mxu0 0.0
    %4493 = vmatprep.subr.mxu0 0.0
    %4494 = vmatpush1.msra.mxu0 0.0
    %4495 = vmatprep.subr.mxu0 0.0
    %4496 = vmatpush1.msra.mxu0 0.0
    %4497 = vmatprep.subr.mxu0 0.0
    %4498 = vmatpush1.msra.mxu0 0.0
    %4499 = vmatprep.subr.mxu0 0.0
    %4500 = vmatpush1.msra.mxu0 0.0
    %4501 = vmatprep.subr.mxu0 0.0
    %4502 = vmatpush1.msra.mxu0 0.0
    %4503 = vmatprep.subr.mxu0 0.0
    %4504 = vmatpush1.msra.mxu0 0.0
    %4505 = vmatprep.subr.mxu0 0.0
    %4506 = vmatpush1.msra.mxu0 0.0
    %4507 = vmatprep.subr.mxu0 0.0
    %4508 = vmatpush1.msra.mxu0 0.0
    %4509 = vmatprep.subr.mxu0 0.0
    %4510 = vmatpush1.msra.mxu0 0.0
    %4511 = vmatprep.subr.mxu0 0.0
    %4512 = vmatpush1.msra.mxu0 0.0
    %4513 = vmatprep.subr.mxu0 0.0
    %4514 = vmatpush1.msra.mxu0 0.0
    %4515 = vmatprep.subr.mxu0 0.0
    %4516 = vmatpush1.msra.mxu0 0.0
    %4517 = vmatprep.subr.mxu0 0.0
    %4518 = vmatpush1.msra.mxu0 0.0
    %4519 = vmatprep.subr.mxu0 0.0
    %4520 = vmatpush1.msra.mxu0 0.0
    %4521 = vmatprep.subr.mxu0 0.0
    %4522 = vmatpush1.msra.mxu0 0.0
    %4523 = vmatprep.subr.mxu0 0.0
    %4524 = vmatpush1.msra.mxu0 0.0
    %4525 = vmatprep.subr.mxu0 0.0
    %4526 = vmatpush1.msra.mxu0 0.0
    %4527 = vmatprep.mubr.f32.mxu0 0.0
    %4528 = vmatmul.mubr.f32.gmra.mrb[0].mxu0 %v4204
    %v4529 = vpop.f32.mrb[0].mxu0
    %v4530 = vadd.f32 0.0, %v4529
    %v4531 = vpop.f32.mrb[0].mxu0
    %4532 = vdwg.mxu0
    %v4534 = vrot.slane %v4530, 5
    %v4535 = vrot.slane %v4530, 6
    %v4538 = vadd.f32 %v3427, %v4534
    %v4539 = vadd.f32 %v3432, %v4535
    %v4540 = vxor.u32 %v4538, 2147483648
    %v4541 = vxor.u32 %v4539, 2147483648
    %v4542 = vmul.f32 %v4540, 1.442695
    %v4543 = vpow.pop %v4542
    %v4544 = vmul.f32 %v4541, 1.442695
    %v4545 = vpow.pop %v4544
    %v4546 = vadd.f32 %v4543, 1.0
    %v4547 = vadd.f32 %v4545, 1.0
    %v4548 = vrcp.pop %v4546
    %v4549 = vmul.f32 1.0, %v4548
    %v4550 = vrcp.pop %v4547
    %v4551 = vmul.f32 1.0, %v4550
    %v4554 = vrot.slane %v4193, 7
    %v4555 = vrot.slane %v4194, 7
    %v4558 = vmul.f32 %v4381, %v4554
    %v4559 = vmul.f32 %v4383, %v4555
    %v4560 = vmul.f32 %v4292, %v4461
    %v4561 = vmul.f32 %v4294, %v4462
    %v4562 = vadd.f32 %v4558, %v4560
    %v4563 = vadd.f32 %v4559, %v4561
    %v4564 = vtanh.pop %v4562
    %v4565 = vtanh.pop %v4563
    %v4566 = vmul.f32 %v4549, %v4564
    %v4567 = vmul.f32 %v4551, %v4565
    %v4570 = vrot.slane %v4566, 3
    %v4571 = vrot.slane %v4567, 2
    %v4572 = vsel %vm473, %v4571, %v4570
    %v4573 = vsel %vm475, %v4572, 0
    %4575 = vmatprep.subr.mxu0 0.0
    %4576 = vmatpush1.msra.mxu0 %v3085
    %4577 = vmatprep.subr.mxu0 0.0
    %4578 = vmatpush1.msra.mxu0 %v3086
    %4579 = vmatprep.subr.mxu0 0.0
    %4580 = vmatpush1.msra.mxu0 %v3087
    %4581 = vmatprep.subr.mxu0 0.0
    %4582 = vmatpush1.msra.mxu0 %v3088
    %4583 = vmatprep.subr.mxu0 0.0
    %4584 = vmatpush1.msra.mxu0 0.0
    %4585 = vmatprep.subr.mxu0 0.0
    %4586 = vmatpush1.msra.mxu0 0.0
    %4587 = vmatprep.subr.mxu0 0.0
    %4588 = vmatpush1.msra.mxu0 0.0
    %4589 = vmatprep.subr.mxu0 0.0
    %4590 = vmatpush1.msra.mxu0 0.0
    %4591 = vmatprep.subr.mxu0 0.0
    %4592 = vmatpush1.msra.mxu0 0.0
    %4593 = vmatprep.subr.mxu0 0.0
    %4594 = vmatpush1.msra.mxu0 0.0
    %4595 = vmatprep.subr.mxu0 0.0
    %4596 = vmatpush1.msra.mxu0 0.0
    %4597 = vmatprep.subr.mxu0 0.0
    %4598 = vmatpush1.msra.mxu0 0.0
    %4599 = vmatprep.subr.mxu0 0.0
    %4600 = vmatpush1.msra.mxu0 0.0
    %4601 = vmatprep.subr.mxu0 0.0
    %4602 = vmatpush1.msra.mxu0 0.0
    %4603 = vmatprep.subr.mxu0 0.0
    %4604 = vmatpush1.msra.mxu0 0.0
    %4605 = vmatprep.subr.mxu0 0.0
    %4606 = vmatpush1.msra.mxu0 0.0
    %4607 = vmatprep.subr.mxu0 0.0
    %4608 = vmatpush1.msra.mxu0 0.0
    %4609 = vmatprep.subr.mxu0 0.0
    %4610 = vmatpush1.msra.mxu0 0.0
    %4611 = vmatprep.subr.mxu0 0.0
    %4612 = vmatpush1.msra.mxu0 0.0
    %4613 = vmatprep.subr.mxu0 0.0
    %4614 = vmatpush1.msra.mxu0 0.0
    %4615 = vmatprep.subr.mxu0 0.0
    %4616 = vmatpush1.msra.mxu0 0.0
    %4617 = vmatprep.subr.mxu0 0.0
    %4618 = vmatpush1.msra.mxu0 0.0
    %4619 = vmatprep.subr.mxu0 0.0
    %4620 = vmatpush1.msra.mxu0 0.0
    %4621 = vmatprep.subr.mxu0 0.0
    %4622 = vmatpush1.msra.mxu0 0.0
    %4623 = vmatprep.subr.mxu0 0.0
    %4624 = vmatpush1.msra.mxu0 0.0
    %4625 = vmatprep.subr.mxu0 0.0
    %4626 = vmatpush1.msra.mxu0 0.0
    %4627 = vmatprep.subr.mxu0 0.0
    %4628 = vmatpush1.msra.mxu0 0.0
    %4629 = vmatprep.subr.mxu0 0.0
    %4630 = vmatpush1.msra.mxu0 0.0
    %4631 = vmatprep.subr.mxu0 0.0
    %4632 = vmatpush1.msra.mxu0 0.0
    %4633 = vmatprep.subr.mxu0 0.0
    %4634 = vmatpush1.msra.mxu0 0.0
    %4635 = vmatprep.subr.mxu0 0.0
    %4636 = vmatpush1.msra.mxu0 0.0
    %4637 = vmatprep.subr.mxu0 0.0
    %4638 = vmatpush1.msra.mxu0 0.0
    %4639 = vmatprep.mubr.f32.mxu0 0.0
    %4640 = vmatmul.mubr.f32.gmra.mrb[0].mxu0 %v4573
    %v4641 = vpop.f32.mrb[0].mxu0
    %v4642 = vadd.f32 0.0, %v4641
    %v4643 = vpop.f32.mrb[0].mxu0
    %4644 = vdwg.mxu0
    %v4646 = vrot.slane %v4642, 4
    %v4647 = vrot.slane %v4642, 5
    %v4650 = vadd.f32 %v3184, %v4646
    %v4651 = vadd.f32 %v3189, %v4647
    %v4652 = vxor.u32 %v4650, 2147483648
    %v4653 = vxor.u32 %v4651, 2147483648
    %v4654 = vmul.f32 %v4652, 1.442695
    %v4655 = vpow.pop %v4654
    %v4656 = vmul.f32 %v4653, 1.442695
    %v4657 = vpow.pop %v4656
    %v4658 = vadd.f32 %v4655, 1.0
    %v4659 = vadd.f32 %v4657, 1.0
    %v4660 = vrcp.pop %v4658
    %v4661 = vmul.f32 1.0, %v4660
    %v4662 = vrcp.pop %v4659
    %v4663 = vmul.f32 1.0, %v4662
    %4664 = vmatprep.subr.mxu0 0.0
    %4665 = vmatpush1.msra.mxu0 %v3089
    %4666 = vmatprep.subr.mxu0 0.0
    %4667 = vmatpush1.msra.mxu0 %v3090
    %4668 = vmatprep.subr.mxu0 0.0
    %4669 = vmatpush1.msra.mxu0 %v3091
    %4670 = vmatprep.subr.mxu0 0.0
    %4671 = vmatpush1.msra.mxu0 %v3092
    %4672 = vmatprep.subr.mxu0 0.0
    %4673 = vmatpush1.msra.mxu0 0.0
    %4674 = vmatprep.subr.mxu0 0.0
    %4675 = vmatpush1.msra.mxu0 0.0
    %4676 = vmatprep.subr.mxu0 0.0
    %4677 = vmatpush1.msra.mxu0 0.0
    %4678 = vmatprep.subr.mxu0 0.0
    %4679 = vmatpush1.msra.mxu0 0.0
    %4680 = vmatprep.subr.mxu0 0.0
    %4681 = vmatpush1.msra.mxu0 0.0
    %4682 = vmatprep.subr.mxu0 0.0
    %4683 = vmatpush1.msra.mxu0 0.0
    %4684 = vmatprep.subr.mxu0 0.0
    %4685 = vmatpush1.msra.mxu0 0.0
    %4686 = vmatprep.subr.mxu0 0.0
    %4687 = vmatpush1.msra.mxu0 0.0
    %4688 = vmatprep.subr.mxu0 0.0
    %4689 = vmatpush1.msra.mxu0 0.0
    %4690 = vmatprep.subr.mxu0 0.0
    %4691 = vmatpush1.msra.mxu0 0.0
    %4692 = vmatprep.subr.mxu0 0.0
    %4693 = vmatpush1.msra.mxu0 0.0
    %4694 = vmatprep.subr.mxu0 0.0
    %4695 = vmatpush1.msra.mxu0 0.0
    %4696 = vmatprep.subr.mxu0 0.0
    %4697 = vmatpush1.msra.mxu0 0.0
    %4698 = vmatprep.subr.mxu0 0.0
    %4699 = vmatpush1.msra.mxu0 0.0
    %4700 = vmatprep.subr.mxu0 0.0
    %4701 = vmatpush1.msra.mxu0 0.0
    %4702 = vmatprep.subr.mxu0 0.0
    %4703 = vmatpush1.msra.mxu0 0.0
    %4704 = vmatprep.subr.mxu0 0.0
    %4705 = vmatpush1.msra.mxu0 0.0
    %4706 = vmatprep.subr.mxu0 0.0
    %4707 = vmatpush1.msra.mxu0 0.0
    %4708 = vmatprep.subr.mxu0 0.0
    %4709 = vmatpush1.msra.mxu0 0.0
    %4710 = vmatprep.subr.mxu0 0.0
    %4711 = vmatpush1.msra.mxu0 0.0
    %4712 = vmatprep.subr.mxu0 0.0
    %4713 = vmatpush1.msra.mxu0 0.0
    %4714 = vmatprep.subr.mxu0 0.0
    %4715 = vmatpush1.msra.mxu0 0.0
    %4716 = vmatprep.subr.mxu0 0.0
    %4717 = vmatpush1.msra.mxu0 0.0
    %4718 = vmatprep.subr.mxu0 0.0
    %4719 = vmatpush1.msra.mxu0 0.0
    %4720 = vmatprep.subr.mxu0 0.0
    %4721 = vmatpush1.msra.mxu0 0.0
    %4722 = vmatprep.subr.mxu0 0.0
    %4723 = vmatpush1.msra.mxu0 0.0
    %4724 = vmatprep.subr.mxu0 0.0
    %4725 = vmatpush1.msra.mxu0 0.0
    %4726 = vmatprep.subr.mxu0 0.0
    %4727 = vmatpush1.msra.mxu0 0.0
    %4728 = vmatprep.mubr.f32.mxu0 0.0
    %4729 = vmatmul.mubr.f32.gmra.mrb[0].mxu0 %v4573
    %v4730 = vpop.f32.mrb[0].mxu0
    %v4731 = vadd.f32 0.0, %v4730
    %v4732 = vpop.f32.mrb[0].mxu0
    %4733 = vdwg.mxu0
    %v4735 = vrot.slane %v4731, 4
    %v4736 = vrot.slane %v4731, 5
    %v4739 = vadd.f32 %v3265, %v4735
    %v4740 = vadd.f32 %v3270, %v4736
    %v4741 = vxor.u32 %v4739, 2147483648
    %v4742 = vxor.u32 %v4740, 2147483648
    %v4743 = vmul.f32 %v4741, 1.442695
    %v4744 = vpow.pop %v4743
    %v4745 = vmul.f32 %v4742, 1.442695
    %v4746 = vpow.pop %v4745
    %v4747 = vadd.f32 %v4744, 1.0
    %v4748 = vadd.f32 %v4746, 1.0
    %v4749 = vrcp.pop %v4747
    %v4750 = vmul.f32 1.0, %v4749
    %v4751 = vrcp.pop %v4748
    %v4752 = vmul.f32 1.0, %v4751
    %4753 = vmatprep.subr.mxu0 0.0
    %4754 = vmatpush1.msra.mxu0 %v3093
    %4755 = vmatprep.subr.mxu0 0.0
    %4756 = vmatpush1.msra.mxu0 %v3094
    %4757 = vmatprep.subr.mxu0 0.0
    %4758 = vmatpush1.msra.mxu0 %v3095
    %4759 = vmatprep.subr.mxu0 0.0
    %4760 = vmatpush1.msra.mxu0 %v3096
    %4761 = vmatprep.subr.mxu0 0.0
    %4762 = vmatpush1.msra.mxu0 0.0
    %4763 = vmatprep.subr.mxu0 0.0
    %4764 = vmatpush1.msra.mxu0 0.0
    %4765 = vmatprep.subr.mxu0 0.0
    %4766 = vmatpush1.msra.mxu0 0.0
    %4767 = vmatprep.subr.mxu0 0.0
    %4768 = vmatpush1.msra.mxu0 0.0
    %4769 = vmatprep.subr.mxu0 0.0
    %4770 = vmatpush1.msra.mxu0 0.0
    %4771 = vmatprep.subr.mxu0 0.0
    %4772 = vmatpush1.msra.mxu0 0.0
    %4773 = vmatprep.subr.mxu0 0.0
    %4774 = vmatpush1.msra.mxu0 0.0
    %4775 = vmatprep.subr.mxu0 0.0
    %4776 = vmatpush1.msra.mxu0 0.0
    %4777 = vmatprep.subr.mxu0 0.0
    %4778 = vmatpush1.msra.mxu0 0.0
    %4779 = vmatprep.subr.mxu0 0.0
    %4780 = vmatpush1.msra.mxu0 0.0
    %4781 = vmatprep.subr.mxu0 0.0
    %4782 = vmatpush1.msra.mxu0 0.0
    %4783 = vmatprep.subr.mxu0 0.0
    %4784 = vmatpush1.msra.mxu0 0.0
    %4785 = vmatprep.subr.mxu0 0.0
    %4786 = vmatpush1.msra.mxu0 0.0
    %4787 = vmatprep.subr.mxu0 0.0
    %4788 = vmatpush1.msra.mxu0 0.0
    %4789 = vmatprep.subr.mxu0 0.0
    %4790 = vmatpush1.msra.mxu0 0.0
    %4791 = vmatprep.subr.mxu0 0.0
    %4792 = vmatpush1.msra.mxu0 0.0
    %4793 = vmatprep.subr.mxu0 0.0
    %4794 = vmatpush1.msra.mxu0 0.0
    %4795 = vmatprep.subr.mxu0 0.0
    %4796 = vmatpush1.msra.mxu0 0.0
    %4797 = vmatprep.subr.mxu0 0.0
    %4798 = vmatpush1.msra.mxu0 0.0
    %4799 = vmatprep.subr.mxu0 0.0
    %4800 = vmatpush1.msra.mxu0 0.0
    %4801 = vmatprep.subr.mxu0 0.0
    %4802 = vmatpush1.msra.mxu0 0.0
    %4803 = vmatprep.subr.mxu0 0.0
    %4804 = vmatpush1.msra.mxu0 0.0
    %4805 = vmatprep.subr.mxu0 0.0
    %4806 = vmatpush1.msra.mxu0 0.0
    %4807 = vmatprep.subr.mxu0 0.0
    %4808 = vmatpush1.msra.mxu0 0.0
    %4809 = vmatprep.subr.mxu0 0.0
    %4810 = vmatpush1.msra.mxu0 0.0
    %4811 = vmatprep.subr.mxu0 0.0
    %4812 = vmatpush1.msra.mxu0 0.0
    %4813 = vmatprep.subr.mxu0 0.0
    %4814 = vmatpush1.msra.mxu0 0.0
    %4815 = vmatprep.subr.mxu0 0.0
    %4816 = vmatpush1.msra.mxu0 0.0
    %4817 = vmatprep.mubr.f32.mxu0 0.0
    %4818 = vmatmul.mubr.f32.gmra.mrb[0].mxu0 %v4573
    %v4819 = vpop.f32.mrb[0].mxu0
    %v4820 = vadd.f32 0.0, %v4819
    %v4821 = vpop.f32.mrb[0].mxu0
    %4822 = vdwg.mxu0
    %v4824 = vrot.slane %v4820, 4
    %v4825 = vrot.slane %v4820, 5
    %v4828 = vadd.f32 %v3346, %v4824
    %v4829 = vadd.f32 %v3351, %v4825
    %v4830 = vtanh.pop %v4828
    %v4831 = vtanh.pop %v4829
    %4832 = vmatprep.subr.mxu0 0.0
    %4833 = vmatpush1.msra.mxu0 %v3097
    %4834 = vmatprep.subr.mxu0 0.0
    %4835 = vmatpush1.msra.mxu0 %v3098
    %4836 = vmatprep.subr.mxu0 0.0
    %4837 = vmatpush1.msra.mxu0 %v3099
    %4838 = vmatprep.subr.mxu0 0.0
    %4839 = vmatpush1.msra.mxu0 %v3100
    %4840 = vmatprep.subr.mxu0 0.0
    %4841 = vmatpush1.msra.mxu0 0.0
    %4842 = vmatprep.subr.mxu0 0.0
    %4843 = vmatpush1.msra.mxu0 0.0
    %4844 = vmatprep.subr.mxu0 0.0
    %4845 = vmatpush1.msra.mxu0 0.0
    %4846 = vmatprep.subr.mxu0 0.0
    %4847 = vmatpush1.msra.mxu0 0.0
    %4848 = vmatprep.subr.mxu0 0.0
    %4849 = vmatpush1.msra.mxu0 0.0
    %4850 = vmatprep.subr.mxu0 0.0
    %4851 = vmatpush1.msra.mxu0 0.0
    %4852 = vmatprep.subr.mxu0 0.0
    %4853 = vmatpush1.msra.mxu0 0.0
    %4854 = vmatprep.subr.mxu0 0.0
    %4855 = vmatpush1.msra.mxu0 0.0
    %4856 = vmatprep.subr.mxu0 0.0
    %4857 = vmatpush1.msra.mxu0 0.0
    %4858 = vmatprep.subr.mxu0 0.0
    %4859 = vmatpush1.msra.mxu0 0.0
    %4860 = vmatprep.subr.mxu0 0.0
    %4861 = vmatpush1.msra.mxu0 0.0
    %4862 = vmatprep.subr.mxu0 0.0
    %4863 = vmatpush1.msra.mxu0 0.0
    %4864 = vmatprep.subr.mxu0 0.0
    %4865 = vmatpush1.msra.mxu0 0.0
    %4866 = vmatprep.subr.mxu0 0.0
    %4867 = vmatpush1.msra.mxu0 0.0
    %4868 = vmatprep.subr.mxu0 0.0
    %4869 = vmatpush1.msra.mxu0 0.0
    %4870 = vmatprep.subr.mxu0 0.0
    %4871 = vmatpush1.msra.mxu0 0.0
    %4872 = vmatprep.subr.mxu0 0.0
    %4873 = vmatpush1.msra.mxu0 0.0
    %4874 = vmatprep.subr.mxu0 0.0
    %4875 = vmatpush1.msra.mxu0 0.0
    %4876 = vmatprep.subr.mxu0 0.0
    %4877 = vmatpush1.msra.mxu0 0.0
    %4878 = vmatprep.subr.mxu0 0.0
    %4879 = vmatpush1.msra.mxu0 0.0
    %4880 = vmatprep.subr.mxu0 0.0
    %4881 = vmatpush1.msra.mxu0 0.0
    %4882 = vmatprep.subr.mxu0 0.0
    %4883 = vmatpush1.msra.mxu0 0.0
    %4884 = vmatprep.subr.mxu0 0.0
    %4885 = vmatpush1.msra.mxu0 0.0
    %4886 = vmatprep.subr.mxu0 0.0
    %4887 = vmatpush1.msra.mxu0 0.0
    %4888 = vmatprep.subr.mxu0 0.0
    %4889 = vmatpush1.msra.mxu0 0.0
    %4890 = vmatprep.subr.mxu0 0.0
    %4891 = vmatpush1.msra.mxu0 0.0
    %4892 = vmatprep.subr.mxu0 0.0
    %4893 = vmatpush1.msra.mxu0 0.0
    %4894 = vmatprep.subr.mxu0 0.0
    %4895 = vmatpush1.msra.mxu0 0.0
    %4896 = vmatprep.mubr.f32.mxu0 0.0
    %4897 = vmatmul.mubr.f32.gmra.mrb[0].mxu0 %v4573
    %v4898 = vpop.f32.mrb[0].mxu0
    %v4899 = vadd.f32 0.0, %v4898
    %v4900 = vpop.f32.mrb[0].mxu0
    %4901 = vdwg.mxu0
    %v4903 = vrot.slane %v4899, 4
    %v4904 = vrot.slane %v4899, 5
    %v4907 = vadd.f32 %v3427, %v4903
    %v4908 = vadd.f32 %v3432, %v4904
    %v4909 = vxor.u32 %v4907, 2147483648
    %v4910 = vxor.u32 %v4908, 2147483648
    %v4911 = vmul.f32 %v4909, 1.442695
    %v4912 = vpow.pop %v4911
    %v4913 = vmul.f32 %v4910, 1.442695
    %v4914 = vpow.pop %v4913
    %v4915 = vadd.f32 %v4912, 1.0
    %v4916 = vadd.f32 %v4914, 1.0
    %v4917 = vrcp.pop %v4915
    %v4918 = vmul.f32 1.0, %v4917
    %v4919 = vrcp.pop %v4916
    %v4920 = vmul.f32 1.0, %v4919
    %v4923 = vrot.slane %v4562, 7
    %v4924 = vrot.slane %v4563, 7
    %v4927 = vmul.f32 %v4750, %v4923
    %v4928 = vmul.f32 %v4752, %v4924
    %v4929 = vmul.f32 %v4661, %v4830
    %v4930 = vmul.f32 %v4663, %v4831
    %v4931 = vadd.f32 %v4927, %v4929
    %v4932 = vadd.f32 %v4928, %v4930
    %v4933 = vtanh.pop %v4931
    %v4934 = vtanh.pop %v4932
    %v4935 = vmul.f32 %v4918, %v4933
    %v4936 = vmul.f32 %v4920, %v4934
    %v4939 = vrot.slane %v4935, 4
    %v4940 = vrot.slane %v4936, 3
    %v4941 = vsel %vm473, %v4940, %v4939
    %v4942 = vsel %vm475, %v4941, 0
    %4944 = vmatprep.subr.mxu0 0.0
    %4945 = vmatpush1.msra.mxu0 %v3085
    %4946 = vmatprep.subr.mxu0 0.0
    %4947 = vmatpush1.msra.mxu0 %v3086
    %4948 = vmatprep.subr.mxu0 0.0
    %4949 = vmatpush1.msra.mxu0 %v3087
    %4950 = vmatprep.subr.mxu0 0.0
    %4951 = vmatpush1.msra.mxu0 %v3088
    %4952 = vmatprep.subr.mxu0 0.0
    %4953 = vmatpush1.msra.mxu0 0.0
    %4954 = vmatprep.subr.mxu0 0.0
    %4955 = vmatpush1.msra.mxu0 0.0
    %4956 = vmatprep.subr.mxu0 0.0
    %4957 = vmatpush1.msra.mxu0 0.0
    %4958 = vmatprep.subr.mxu0 0.0
    %4959 = vmatpush1.msra.mxu0 0.0
    %4960 = vmatprep.subr.mxu0 0.0
    %4961 = vmatpush1.msra.mxu0 0.0
    %4962 = vmatprep.subr.mxu0 0.0
    %4963 = vmatpush1.msra.mxu0 0.0
    %4964 = vmatprep.subr.mxu0 0.0
    %4965 = vmatpush1.msra.mxu0 0.0
    %4966 = vmatprep.subr.mxu0 0.0
    %4967 = vmatpush1.msra.mxu0 0.0
    %4968 = vmatprep.subr.mxu0 0.0
    %4969 = vmatpush1.msra.mxu0 0.0
    %4970 = vmatprep.subr.mxu0 0.0
    %4971 = vmatpush1.msra.mxu0 0.0
    %4972 = vmatprep.subr.mxu0 0.0
    %4973 = vmatpush1.msra.mxu0 0.0
    %4974 = vmatprep.subr.mxu0 0.0
    %4975 = vmatpush1.msra.mxu0 0.0
    %4976 = vmatprep.subr.mxu0 0.0
    %4977 = vmatpush1.msra.mxu0 0.0
    %4978 = vmatprep.subr.mxu0 0.0
    %4979 = vmatpush1.msra.mxu0 0.0
    %4980 = vmatprep.subr.mxu0 0.0
    %4981 = vmatpush1.msra.mxu0 0.0
    %4982 = vmatprep.subr.mxu0 0.0
    %4983 = vmatpush1.msra.mxu0 0.0
    %4984 = vmatprep.subr.mxu0 0.0
    %4985 = vmatpush1.msra.mxu0 0.0
    %4986 = vmatprep.subr.mxu0 0.0
    %4987 = vmatpush1.msra.mxu0 0.0
    %4988 = vmatprep.subr.mxu0 0.0
    %4989 = vmatpush1.msra.mxu0 0.0
    %4990 = vmatprep.subr.mxu0 0.0
    %4991 = vmatpush1.msra.mxu0 0.0
    %4992 = vmatprep.subr.mxu0 0.0
    %4993 = vmatpush1.msra.mxu0 0.0
    %4994 = vmatprep.subr.mxu0 0.0
    %4995 = vmatpush1.msra.mxu0 0.0
    %4996 = vmatprep.subr.mxu0 0.0
    %4997 = vmatpush1.msra.mxu0 0.0
    %4998 = vmatprep.subr.mxu0 0.0
    %4999 = vmatpush1.msra.mxu0 0.0
    %5000 = vmatprep.subr.mxu0 0.0
    %5001 = vmatpush1.msra.mxu0 0.0
    %5002 = vmatprep.subr.mxu0 0.0
    %5003 = vmatpush1.msra.mxu0 0.0
    %5004 = vmatprep.subr.mxu0 0.0
    %5005 = vmatpush1.msra.mxu0 0.0
    %5006 = vmatprep.subr.mxu0 0.0
    %5007 = vmatpush1.msra.mxu0 0.0
    %5008 = vmatprep.mubr.f32.mxu0 0.0
    %5009 = vmatmul.mubr.f32.gmra.mrb[0].mxu0 %v4942
    %v5010 = vpop.f32.mrb[0].mxu0
    %v5011 = vadd.f32 0.0, %v5010
    %v5012 = vpop.f32.mrb[0].mxu0
    %5013 = vdwg.mxu0
    %v5015 = vrot.slane %v5011, 3
    %v5016 = vrot.slane %v5011, 4
    %v5019 = vadd.f32 %v3184, %v5015
    %v5020 = vadd.f32 %v3189, %v5016
    %v5021 = vxor.u32 %v5019, 2147483648
    %v5022 = vxor.u32 %v5020, 2147483648
    %v5023 = vmul.f32 %v5021, 1.442695
    %v5024 = vpow.pop %v5023
    %v5025 = vmul.f32 %v5022, 1.442695
    %v5026 = vpow.pop %v5025
    %v5027 = vadd.f32 %v5024, 1.0
    %v5028 = vadd.f32 %v5026, 1.0
    %v5029 = vrcp.pop %v5027
    %v5030 = vmul.f32 1.0, %v5029
    %v5031 = vrcp.pop %v5028
    %v5032 = vmul.f32 1.0, %v5031
    %5033 = vmatprep.subr.mxu0 0.0
    %5034 = vmatpush1.msra.mxu0 %v3089
    %5035 = vmatprep.subr.mxu0 0.0
    %5036 = vmatpush1.msra.mxu0 %v3090
    %5037 = vmatprep.subr.mxu0 0.0
    %5038 = vmatpush1.msra.mxu0 %v3091
    %5039 = vmatprep.subr.mxu0 0.0
    %5040 = vmatpush1.msra.mxu0 %v3092
    %5041 = vmatprep.subr.mxu0 0.0
    %5042 = vmatpush1.msra.mxu0 0.0
    %5043 = vmatprep.subr.mxu0 0.0
    %5044 = vmatpush1.msra.mxu0 0.0
    %5045 = vmatprep.subr.mxu0 0.0
    %5046 = vmatpush1.msra.mxu0 0.0
    %5047 = vmatprep.subr.mxu0 0.0
    %5048 = vmatpush1.msra.mxu0 0.0
    %5049 = vmatprep.subr.mxu0 0.0
    %5050 = vmatpush1.msra.mxu0 0.0
    %5051 = vmatprep.subr.mxu0 0.0
    %5052 = vmatpush1.msra.mxu0 0.0
    %5053 = vmatprep.subr.mxu0 0.0
    %5054 = vmatpush1.msra.mxu0 0.0
    %5055 = vmatprep.subr.mxu0 0.0
    %5056 = vmatpush1.msra.mxu0 0.0
    %5057 = vmatprep.subr.mxu0 0.0
    %5058 = vmatpush1.msra.mxu0 0.0
    %5059 = vmatprep.subr.mxu0 0.0
    %5060 = vmatpush1.msra.mxu0 0.0
    %5061 = vmatprep.subr.mxu0 0.0
    %5062 = vmatpush1.msra.mxu0 0.0
    %5063 = vmatprep.subr.mxu0 0.0
    %5064 = vmatpush1.msra.mxu0 0.0
    %5065 = vmatprep.subr.mxu0 0.0
    %5066 = vmatpush1.msra.mxu0 0.0
    %5067 = vmatprep.subr.mxu0 0.0
    %5068 = vmatpush1.msra.mxu0 0.0
    %5069 = vmatprep.subr.mxu0 0.0
    %5070 = vmatpush1.msra.mxu0 0.0
    %5071 = vmatprep.subr.mxu0 0.0
    %5072 = vmatpush1.msra.mxu0 0.0
    %5073 = vmatprep.subr.mxu0 0.0
    %5074 = vmatpush1.msra.mxu0 0.0
    %5075 = vmatprep.subr.mxu0 0.0
    %5076 = vmatpush1.msra.mxu0 0.0
    %5077 = vmatprep.subr.mxu0 0.0
    %5078 = vmatpush1.msra.mxu0 0.0
    %5079 = vmatprep.subr.mxu0 0.0
    %5080 = vmatpush1.msra.mxu0 0.0
    %5081 = vmatprep.subr.mxu0 0.0
    %5082 = vmatpush1.msra.mxu0 0.0
    %5083 = vmatprep.subr.mxu0 0.0
    %5084 = vmatpush1.msra.mxu0 0.0
    %5085 = vmatprep.subr.mxu0 0.0
    %5086 = vmatpush1.msra.mxu0 0.0
    %5087 = vmatprep.subr.mxu0 0.0
    %5088 = vmatpush1.msra.mxu0 0.0
    %5089 = vmatprep.subr.mxu0 0.0
    %5090 = vmatpush1.msra.mxu0 0.0
    %5091 = vmatprep.subr.mxu0 0.0
    %5092 = vmatpush1.msra.mxu0 0.0
    %5093 = vmatprep.subr.mxu0 0.0
    %5094 = vmatpush1.msra.mxu0 0.0
    %5095 = vmatprep.subr.mxu0 0.0
    %5096 = vmatpush1.msra.mxu0 0.0
    %5097 = vmatprep.mubr.f32.mxu0 0.0
    %5098 = vmatmul.mubr.f32.gmra.mrb[0].mxu0 %v4942
    %v5099 = vpop.f32.mrb[0].mxu0
    %v5100 = vadd.f32 0.0, %v5099
    %v5101 = vpop.f32.mrb[0].mxu0
    %5102 = vdwg.mxu0
    %v5104 = vrot.slane %v5100, 3
    %v5105 = vrot.slane %v5100, 4
    %v5108 = vadd.f32 %v3265, %v5104
    %v5109 = vadd.f32 %v3270, %v5105
    %v5110 = vxor.u32 %v5108, 2147483648
    %v5111 = vxor.u32 %v5109, 2147483648
    %v5112 = vmul.f32 %v5110, 1.442695
    %v5113 = vpow.pop %v5112
    %v5114 = vmul.f32 %v5111, 1.442695
    %v5115 = vpow.pop %v5114
    %v5116 = vadd.f32 %v5113, 1.0
    %v5117 = vadd.f32 %v5115, 1.0
    %v5118 = vrcp.pop %v5116
    %v5119 = vmul.f32 1.0, %v5118
    %v5120 = vrcp.pop %v5117
    %v5121 = vmul.f32 1.0, %v5120
    %5122 = vmatprep.subr.mxu0 0.0
    %5123 = vmatpush1.msra.mxu0 %v3093
    %5124 = vmatprep.subr.mxu0 0.0
    %5125 = vmatpush1.msra.mxu0 %v3094
    %5126 = vmatprep.subr.mxu0 0.0
    %5127 = vmatpush1.msra.mxu0 %v3095
    %5128 = vmatprep.subr.mxu0 0.0
    %5129 = vmatpush1.msra.mxu0 %v3096
    %5130 = vmatprep.subr.mxu0 0.0
    %5131 = vmatpush1.msra.mxu0 0.0
    %5132 = vmatprep.subr.mxu0 0.0
    %5133 = vmatpush1.msra.mxu0 0.0
    %5134 = vmatprep.subr.mxu0 0.0
    %5135 = vmatpush1.msra.mxu0 0.0
    %5136 = vmatprep.subr.mxu0 0.0
    %5137 = vmatpush1.msra.mxu0 0.0
    %5138 = vmatprep.subr.mxu0 0.0
    %5139 = vmatpush1.msra.mxu0 0.0
    %5140 = vmatprep.subr.mxu0 0.0
    %5141 = vmatpush1.msra.mxu0 0.0
    %5142 = vmatprep.subr.mxu0 0.0
    %5143 = vmatpush1.msra.mxu0 0.0
    %5144 = vmatprep.subr.mxu0 0.0
    %5145 = vmatpush1.msra.mxu0 0.0
    %5146 = vmatprep.subr.mxu0 0.0
    %5147 = vmatpush1.msra.mxu0 0.0
    %5148 = vmatprep.subr.mxu0 0.0
    %5149 = vmatpush1.msra.mxu0 0.0
    %5150 = vmatprep.subr.mxu0 0.0
    %5151 = vmatpush1.msra.mxu0 0.0
    %5152 = vmatprep.subr.mxu0 0.0
    %5153 = vmatpush1.msra.mxu0 0.0
    %5154 = vmatprep.subr.mxu0 0.0
    %5155 = vmatpush1.msra.mxu0 0.0
    %5156 = vmatprep.subr.mxu0 0.0
    %5157 = vmatpush1.msra.mxu0 0.0
    %5158 = vmatprep.subr.mxu0 0.0
    %5159 = vmatpush1.msra.mxu0 0.0
    %5160 = vmatprep.subr.mxu0 0.0
    %5161 = vmatpush1.msra.mxu0 0.0
    %5162 = vmatprep.subr.mxu0 0.0
    %5163 = vmatpush1.msra.mxu0 0.0
    %5164 = vmatprep.subr.mxu0 0.0
    %5165 = vmatpush1.msra.mxu0 0.0
    %5166 = vmatprep.subr.mxu0 0.0
    %5167 = vmatpush1.msra.mxu0 0.0
    %5168 = vmatprep.subr.mxu0 0.0
    %5169 = vmatpush1.msra.mxu0 0.0
    %5170 = vmatprep.subr.mxu0 0.0
    %5171 = vmatpush1.msra.mxu0 0.0
    %5172 = vmatprep.subr.mxu0 0.0
    %5173 = vmatpush1.msra.mxu0 0.0
    %5174 = vmatprep.subr.mxu0 0.0
    %5175 = vmatpush1.msra.mxu0 0.0
    %5176 = vmatprep.subr.mxu0 0.0
    %5177 = vmatpush1.msra.mxu0 0.0
    %5178 = vmatprep.subr.mxu0 0.0
    %5179 = vmatpush1.msra.mxu0 0.0
    %5180 = vmatprep.subr.mxu0 0.0
    %5181 = vmatpush1.msra.mxu0 0.0
    %5182 = vmatprep.subr.mxu0 0.0
    %5183 = vmatpush1.msra.mxu0 0.0
    %5184 = vmatprep.subr.mxu0 0.0
    %5185 = vmatpush1.msra.mxu0 0.0
    %5186 = vmatprep.mubr.f32.mxu0 0.0
    %5187 = vmatmul.mubr.f32.gmra.mrb[0].mxu0 %v4942
    %v5188 = vpop.f32.mrb[0].mxu0
    %v5189 = vadd.f32 0.0, %v5188
    %v5190 = vpop.f32.mrb[0].mxu0
    %5191 = vdwg.mxu0
    %v5193 = vrot.slane %v5189, 3
    %v5194 = vrot.slane %v5189, 4
    %v5197 = vadd.f32 %v3346, %v5193
    %v5198 = vadd.f32 %v3351, %v5194
    %v5199 = vtanh.pop %v5197
    %v5200 = vtanh.pop %v5198
    %5201 = vmatprep.subr.mxu0 0.0
    %5202 = vmatpush1.msra.mxu0 %v3097
    %5203 = vmatprep.subr.mxu0 0.0
    %5204 = vmatpush1.msra.mxu0 %v3098
    %5205 = vmatprep.subr.mxu0 0.0
    %5206 = vmatpush1.msra.mxu0 %v3099
    %5207 = vmatprep.subr.mxu0 0.0
    %5208 = vmatpush1.msra.mxu0 %v3100
    %5209 = vmatprep.subr.mxu0 0.0
    %5210 = vmatpush1.msra.mxu0 0.0
    %5211 = vmatprep.subr.mxu0 0.0
    %5212 = vmatpush1.msra.mxu0 0.0
    %5213 = vmatprep.subr.mxu0 0.0
    %5214 = vmatpush1.msra.mxu0 0.0
    %5215 = vmatprep.subr.mxu0 0.0
    %5216 = vmatpush1.msra.mxu0 0.0
    %5217 = vmatprep.subr.mxu0 0.0
    %5218 = vmatpush1.msra.mxu0 0.0
    %5219 = vmatprep.subr.mxu0 0.0
    %5220 = vmatpush1.msra.mxu0 0.0
    %5221 = vmatprep.subr.mxu0 0.0
    %5222 = vmatpush1.msra.mxu0 0.0
    %5223 = vmatprep.subr.mxu0 0.0
    %5224 = vmatpush1.msra.mxu0 0.0
    %5225 = vmatprep.subr.mxu0 0.0
    %5226 = vmatpush1.msra.mxu0 0.0
    %5227 = vmatprep.subr.mxu0 0.0
    %5228 = vmatpush1.msra.mxu0 0.0
    %5229 = vmatprep.subr.mxu0 0.0
    %5230 = vmatpush1.msra.mxu0 0.0
    %5231 = vmatprep.subr.mxu0 0.0
    %5232 = vmatpush1.msra.mxu0 0.0
    %5233 = vmatprep.subr.mxu0 0.0
    %5234 = vmatpush1.msra.mxu0 0.0
    %5235 = vmatprep.subr.mxu0 0.0
    %5236 = vmatpush1.msra.mxu0 0.0
    %5237 = vmatprep.subr.mxu0 0.0
    %5238 = vmatpush1.msra.mxu0 0.0
    %5239 = vmatprep.subr.mxu0 0.0
    %5240 = vmatpush1.msra.mxu0 0.0
    %5241 = vmatprep.subr.mxu0 0.0
    %5242 = vmatpush1.msra.mxu0 0.0
    %5243 = vmatprep.subr.mxu0 0.0
    %5244 = vmatpush1.msra.mxu0 0.0
    %5245 = vmatprep.subr.mxu0 0.0
    %5246 = vmatpush1.msra.mxu0 0.0
    %5247 = vmatprep.subr.mxu0 0.0
    %5248 = vmatpush1.msra.mxu0 0.0
    %5249 = vmatprep.subr.mxu0 0.0
    %5250 = vmatpush1.msra.mxu0 0.0
    %5251 = vmatprep.subr.mxu0 0.0
    %5252 = vmatpush1.msra.mxu0 0.0
    %5253 = vmatprep.subr.mxu0 0.0
    %5254 = vmatpush1.msra.mxu0 0.0
    %5255 = vmatprep.subr.mxu0 0.0
    %5256 = vmatpush1.msra.mxu0 0.0
    %5257 = vmatprep.subr.mxu0 0.0
    %5258 = vmatpush1.msra.mxu0 0.0
    %5259 = vmatprep.subr.mxu0 0.0
    %5260 = vmatpush1.msra.mxu0 0.0
    %5261 = vmatprep.subr.mxu0 0.0
    %5262 = vmatpush1.msra.mxu0 0.0
    %5263 = vmatprep.subr.mxu0 0.0
    %5264 = vmatpush1.msra.mxu0 0.0
    %5265 = vmatprep.mubr.f32.mxu0 0.0
    %5266 = vmatmul.mubr.f32.gmra.mrb[0].mxu0 %v4942
    %v5267 = vpop.f32.mrb[0].mxu0
    %v5268 = vadd.f32 0.0, %v5267
    %v5269 = vpop.f32.mrb[0].mxu0
    %5270 = vdwg.mxu0
    %v5272 = vrot.slane %v5268, 3
    %v5273 = vrot.slane %v5268, 4
    %v5276 = vadd.f32 %v3427, %v5272
    %v5277 = vadd.f32 %v3432, %v5273
    %v5278 = vxor.u32 %v5276, 2147483648
    %v5279 = vxor.u32 %v5277, 2147483648
    %v5280 = vmul.f32 %v5278, 1.442695
    %v5281 = vpow.pop %v5280
    %v5282 = vmul.f32 %v5279, 1.442695
    %v5283 = vpow.pop %v5282
    %v5284 = vadd.f32 %v5281, 1.0
    %v5285 = vadd.f32 %v5283, 1.0
    %v5286 = vrcp.pop %v5284
    %v5287 = vmul.f32 1.0, %v5286
    %v5288 = vrcp.pop %v5285
    %v5289 = vmul.f32 1.0, %v5288
    %v5292 = vrot.slane %v4931, 7
    %v5293 = vrot.slane %v4932, 7
    %v5296 = vmul.f32 %v5119, %v5292
    %v5297 = vmul.f32 %v5121, %v5293
    %v5298 = vmul.f32 %v5030, %v5199
    %v5299 = vmul.f32 %v5032, %v5200
    %v5300 = vadd.f32 %v5296, %v5298
    %v5301 = vadd.f32 %v5297, %v5299
    %v5302 = vtanh.pop %v5300
    %v5303 = vtanh.pop %v5301
    %v5304 = vmul.f32 %v5287, %v5302
    %v5305 = vmul.f32 %v5289, %v5303
    %v5308 = vrot.slane %v5304, 5
    %v5309 = vrot.slane %v5305, 4
    %v5310 = vsel %vm473, %v5309, %v5308
    %v5311 = vsel %vm475, %v5310, 0
    %5313 = vmatprep.subr.mxu0 0.0
    %5314 = vmatpush1.msra.mxu0 %v3085
    %5315 = vmatprep.subr.mxu0 0.0
    %5316 = vmatpush1.msra.mxu0 %v3086
    %5317 = vmatprep.subr.mxu0 0.0
    %5318 = vmatpush1.msra.mxu0 %v3087
    %5319 = vmatprep.subr.mxu0 0.0
    %5320 = vmatpush1.msra.mxu0 %v3088
    %5321 = vmatprep.subr.mxu0 0.0
    %5322 = vmatpush1.msra.mxu0 0.0
    %5323 = vmatprep.subr.mxu0 0.0
    %5324 = vmatpush1.msra.mxu0 0.0
    %5325 = vmatprep.subr.mxu0 0.0
    %5326 = vmatpush1.msra.mxu0 0.0
    %5327 = vmatprep.subr.mxu0 0.0
    %5328 = vmatpush1.msra.mxu0 0.0
    %5329 = vmatprep.subr.mxu0 0.0
    %5330 = vmatpush1.msra.mxu0 0.0
    %5331 = vmatprep.subr.mxu0 0.0
    %5332 = vmatpush1.msra.mxu0 0.0
    %5333 = vmatprep.subr.mxu0 0.0
    %5334 = vmatpush1.msra.mxu0 0.0
    %5335 = vmatprep.subr.mxu0 0.0
    %5336 = vmatpush1.msra.mxu0 0.0
    %5337 = vmatprep.subr.mxu0 0.0
    %5338 = vmatpush1.msra.mxu0 0.0
    %5339 = vmatprep.subr.mxu0 0.0
    %5340 = vmatpush1.msra.mxu0 0.0
    %5341 = vmatprep.subr.mxu0 0.0
    %5342 = vmatpush1.msra.mxu0 0.0
    %5343 = vmatprep.subr.mxu0 0.0
    %5344 = vmatpush1.msra.mxu0 0.0
    %5345 = vmatprep.subr.mxu0 0.0
    %5346 = vmatpush1.msra.mxu0 0.0
    %5347 = vmatprep.subr.mxu0 0.0
    %5348 = vmatpush1.msra.mxu0 0.0
    %5349 = vmatprep.subr.mxu0 0.0
    %5350 = vmatpush1.msra.mxu0 0.0
    %5351 = vmatprep.subr.mxu0 0.0
    %5352 = vmatpush1.msra.mxu0 0.0
    %5353 = vmatprep.subr.mxu0 0.0
    %5354 = vmatpush1.msra.mxu0 0.0
    %5355 = vmatprep.subr.mxu0 0.0
    %5356 = vmatpush1.msra.mxu0 0.0
    %5357 = vmatprep.subr.mxu0 0.0
    %5358 = vmatpush1.msra.mxu0 0.0
    %5359 = vmatprep.subr.mxu0 0.0
    %5360 = vmatpush1.msra.mxu0 0.0
    %5361 = vmatprep.subr.mxu0 0.0
    %5362 = vmatpush1.msra.mxu0 0.0
    %5363 = vmatprep.subr.mxu0 0.0
    %5364 = vmatpush1.msra.mxu0 0.0
    %5365 = vmatprep.subr.mxu0 0.0
    %5366 = vmatpush1.msra.mxu0 0.0
    %5367 = vmatprep.subr.mxu0 0.0
    %5368 = vmatpush1.msra.mxu0 0.0
    %5369 = vmatprep.subr.mxu0 0.0
    %5370 = vmatpush1.msra.mxu0 0.0
    %5371 = vmatprep.subr.mxu0 0.0
    %5372 = vmatpush1.msra.mxu0 0.0
    %5373 = vmatprep.subr.mxu0 0.0
    %5374 = vmatpush1.msra.mxu0 0.0
    %5375 = vmatprep.subr.mxu0 0.0
    %5376 = vmatpush1.msra.mxu0 0.0
    %5377 = vmatprep.mubr.f32.mxu0 0.0
    %5378 = vmatmul.mubr.f32.gmra.mrb[0].mxu0 %v5311
    %v5379 = vpop.f32.mrb[0].mxu0
    %v5380 = vadd.f32 0.0, %v5379
    %v5381 = vpop.f32.mrb[0].mxu0
    %5382 = vdwg.mxu0
    %v5384 = vrot.slane %v5380, 2
    %v5385 = vrot.slane %v5380, 3
    %v5388 = vadd.f32 %v3184, %v5384
    %v5389 = vadd.f32 %v3189, %v5385
    %v5390 = vxor.u32 %v5388, 2147483648
    %v5391 = vxor.u32 %v5389, 2147483648
    %v5392 = vmul.f32 %v5390, 1.442695
    %v5393 = vpow.pop %v5392
    %v5394 = vmul.f32 %v5391, 1.442695
    %v5395 = vpow.pop %v5394
    %v5396 = vadd.f32 %v5393, 1.0
    %v5397 = vadd.f32 %v5395, 1.0
    %v5398 = vrcp.pop %v5396
    %v5399 = vmul.f32 1.0, %v5398
    %v5400 = vrcp.pop %v5397
    %v5401 = vmul.f32 1.0, %v5400
    %5402 = vmatprep.subr.mxu0 0.0
    %5403 = vmatpush1.msra.mxu0 %v3089
    %5404 = vmatprep.subr.mxu0 0.0
    %5405 = vmatpush1.msra.mxu0 %v3090
    %5406 = vmatprep.subr.mxu0 0.0
    %5407 = vmatpush1.msra.mxu0 %v3091
    %5408 = vmatprep.subr.mxu0 0.0
    %5409 = vmatpush1.msra.mxu0 %v3092
    %5410 = vmatprep.subr.mxu0 0.0
    %5411 = vmatpush1.msra.mxu0 0.0
    %5412 = vmatprep.subr.mxu0 0.0
    %5413 = vmatpush1.msra.mxu0 0.0
    %5414 = vmatprep.subr.mxu0 0.0
    %5415 = vmatpush1.msra.mxu0 0.0
    %5416 = vmatprep.subr.mxu0 0.0
    %5417 = vmatpush1.msra.mxu0 0.0
    %5418 = vmatprep.subr.mxu0 0.0
    %5419 = vmatpush1.msra.mxu0 0.0
    %5420 = vmatprep.subr.mxu0 0.0
    %5421 = vmatpush1.msra.mxu0 0.0
    %5422 = vmatprep.subr.mxu0 0.0
    %5423 = vmatpush1.msra.mxu0 0.0
    %5424 = vmatprep.subr.mxu0 0.0
    %5425 = vmatpush1.msra.mxu0 0.0
    %5426 = vmatprep.subr.mxu0 0.0
    %5427 = vmatpush1.msra.mxu0 0.0
    %5428 = vmatprep.subr.mxu0 0.0
    %5429 = vmatpush1.msra.mxu0 0.0
    %5430 = vmatprep.subr.mxu0 0.0
    %5431 = vmatpush1.msra.mxu0 0.0
    %5432 = vmatprep.subr.mxu0 0.0
    %5433 = vmatpush1.msra.mxu0 0.0
    %5434 = vmatprep.subr.mxu0 0.0
    %5435 = vmatpush1.msra.mxu0 0.0
    %5436 = vmatprep.subr.mxu0 0.0
    %5437 = vmatpush1.msra.mxu0 0.0
    %5438 = vmatprep.subr.mxu0 0.0
    %5439 = vmatpush1.msra.mxu0 0.0
    %5440 = vmatprep.subr.mxu0 0.0
    %5441 = vmatpush1.msra.mxu0 0.0
    %5442 = vmatprep.subr.mxu0 0.0
    %5443 = vmatpush1.msra.mxu0 0.0
    %5444 = vmatprep.subr.mxu0 0.0
    %5445 = vmatpush1.msra.mxu0 0.0
    %5446 = vmatprep.subr.mxu0 0.0
    %5447 = vmatpush1.msra.mxu0 0.0
    %5448 = vmatprep.subr.mxu0 0.0
    %5449 = vmatpush1.msra.mxu0 0.0
    %5450 = vmatprep.subr.mxu0 0.0
    %5451 = vmatpush1.msra.mxu0 0.0
    %5452 = vmatprep.subr.mxu0 0.0
    %5453 = vmatpush1.msra.mxu0 0.0
    %5454 = vmatprep.subr.mxu0 0.0
    %5455 = vmatpush1.msra.mxu0 0.0
    %5456 = vmatprep.subr.mxu0 0.0
    %5457 = vmatpush1.msra.mxu0 0.0
    %5458 = vmatprep.subr.mxu0 0.0
    %5459 = vmatpush1.msra.mxu0 0.0
    %5460 = vmatprep.subr.mxu0 0.0
    %5461 = vmatpush1.msra.mxu0 0.0
    %5462 = vmatprep.subr.mxu0 0.0
    %5463 = vmatpush1.msra.mxu0 0.0
    %5464 = vmatprep.subr.mxu0 0.0
    %5465 = vmatpush1.msra.mxu0 0.0
    %5466 = vmatprep.mubr.f32.mxu0 0.0
    %5467 = vmatmul.mubr.f32.gmra.mrb[0].mxu0 %v5311
    %v5468 = vpop.f32.mrb[0].mxu0
    %v5469 = vadd.f32 0.0, %v5468
    %v5470 = vpop.f32.mrb[0].mxu0
    %5471 = vdwg.mxu0
    %v5473 = vrot.slane %v5469, 2
    %v5474 = vrot.slane %v5469, 3
    %v5477 = vadd.f32 %v3265, %v5473
    %v5478 = vadd.f32 %v3270, %v5474
    %v5479 = vxor.u32 %v5477, 2147483648
    %v5480 = vxor.u32 %v5478, 2147483648
    %v5481 = vmul.f32 %v5479, 1.442695
    %v5482 = vpow.pop %v5481
    %v5483 = vmul.f32 %v5480, 1.442695
    %v5484 = vpow.pop %v5483
    %v5485 = vadd.f32 %v5482, 1.0
    %v5486 = vadd.f32 %v5484, 1.0
    %v5487 = vrcp.pop %v5485
    %v5488 = vmul.f32 1.0, %v5487
    %v5489 = vrcp.pop %v5486
    %v5490 = vmul.f32 1.0, %v5489
    %5491 = vmatprep.subr.mxu0 0.0
    %5492 = vmatpush1.msra.mxu0 %v3093
    %5493 = vmatprep.subr.mxu0 0.0
    %5494 = vmatpush1.msra.mxu0 %v3094
    %5495 = vmatprep.subr.mxu0 0.0
    %5496 = vmatpush1.msra.mxu0 %v3095
    %5497 = vmatprep.subr.mxu0 0.0
    %5498 = vmatpush1.msra.mxu0 %v3096
    %5499 = vmatprep.subr.mxu0 0.0
    %5500 = vmatpush1.msra.mxu0 0.0
    %5501 = vmatprep.subr.mxu0 0.0
    %5502 = vmatpush1.msra.mxu0 0.0
    %5503 = vmatprep.subr.mxu0 0.0
    %5504 = vmatpush1.msra.mxu0 0.0
    %5505 = vmatprep.subr.mxu0 0.0
    %5506 = vmatpush1.msra.mxu0 0.0
    %5507 = vmatprep.subr.mxu0 0.0
    %5508 = vmatpush1.msra.mxu0 0.0
    %5509 = vmatprep.subr.mxu0 0.0
    %5510 = vmatpush1.msra.mxu0 0.0
    %5511 = vmatprep.subr.mxu0 0.0
    %5512 = vmatpush1.msra.mxu0 0.0
    %5513 = vmatprep.subr.mxu0 0.0
    %5514 = vmatpush1.msra.mxu0 0.0
    %5515 = vmatprep.subr.mxu0 0.0
    %5516 = vmatpush1.msra.mxu0 0.0
    %5517 = vmatprep.subr.mxu0 0.0
    %5518 = vmatpush1.msra.mxu0 0.0
    %5519 = vmatprep.subr.mxu0 0.0
    %5520 = vmatpush1.msra.mxu0 0.0
    %5521 = vmatprep.subr.mxu0 0.0
    %5522 = vmatpush1.msra.mxu0 0.0
    %5523 = vmatprep.subr.mxu0 0.0
    %5524 = vmatpush1.msra.mxu0 0.0
    %5525 = vmatprep.subr.mxu0 0.0
    %5526 = vmatpush1.msra.mxu0 0.0
    %5527 = vmatprep.subr.mxu0 0.0
    %5528 = vmatpush1.msra.mxu0 0.0
    %5529 = vmatprep.subr.mxu0 0.0
    %5530 = vmatpush1.msra.mxu0 0.0
    %5531 = vmatprep.subr.mxu0 0.0
    %5532 = vmatpush1.msra.mxu0 0.0
    %5533 = vmatprep.subr.mxu0 0.0
    %5534 = vmatpush1.msra.mxu0 0.0
    %5535 = vmatprep.subr.mxu0 0.0
    %5536 = vmatpush1.msra.mxu0 0.0
    %5537 = vmatprep.subr.mxu0 0.0
    %5538 = vmatpush1.msra.mxu0 0.0
    %5539 = vmatprep.subr.mxu0 0.0
    %5540 = vmatpush1.msra.mxu0 0.0
    %5541 = vmatprep.subr.mxu0 0.0
    %5542 = vmatpush1.msra.mxu0 0.0
    %5543 = vmatprep.subr.mxu0 0.0
    %5544 = vmatpush1.msra.mxu0 0.0
    %5545 = vmatprep.subr.mxu0 0.0
    %5546 = vmatpush1.msra.mxu0 0.0
    %5547 = vmatprep.subr.mxu0 0.0
    %5548 = vmatpush1.msra.mxu0 0.0
    %5549 = vmatprep.subr.mxu0 0.0
    %5550 = vmatpush1.msra.mxu0 0.0
    %5551 = vmatprep.subr.mxu0 0.0
    %5552 = vmatpush1.msra.mxu0 0.0
    %5553 = vmatprep.subr.mxu0 0.0
    %5554 = vmatpush1.msra.mxu0 0.0
    %5555 = vmatprep.mubr.f32.mxu0 0.0
    %5556 = vmatmul.mubr.f32.gmra.mrb[0].mxu0 %v5311
    %v5557 = vpop.f32.mrb[0].mxu0
    %v5558 = vadd.f32 0.0, %v5557
    %v5559 = vpop.f32.mrb[0].mxu0
    %5560 = vdwg.mxu0
    %v5562 = vrot.slane %v5558, 2
    %v5563 = vrot.slane %v5558, 3
    %v5566 = vadd.f32 %v3346, %v5562
    %v5567 = vadd.f32 %v3351, %v5563
    %v5568 = vtanh.pop %v5566
    %v5569 = vtanh.pop %v5567
    %5570 = vmatprep.subr.mxu0 0.0
    %5571 = vmatpush1.msra.mxu0 %v3097
    %5572 = vmatprep.subr.mxu0 0.0
    %5573 = vmatpush1.msra.mxu0 %v3098
    %5574 = vmatprep.subr.mxu0 0.0
    %5575 = vmatpush1.msra.mxu0 %v3099
    %5576 = vmatprep.subr.mxu0 0.0
    %5577 = vmatpush1.msra.mxu0 %v3100
    %5578 = vmatprep.subr.mxu0 0.0
    %5579 = vmatpush1.msra.mxu0 0.0
    %5580 = vmatprep.subr.mxu0 0.0
    %5581 = vmatpush1.msra.mxu0 0.0
    %5582 = vmatprep.subr.mxu0 0.0
    %5583 = vmatpush1.msra.mxu0 0.0
    %5584 = vmatprep.subr.mxu0 0.0
    %5585 = vmatpush1.msra.mxu0 0.0
    %5586 = vmatprep.subr.mxu0 0.0
    %5587 = vmatpush1.msra.mxu0 0.0
    %5588 = vmatprep.subr.mxu0 0.0
    %5589 = vmatpush1.msra.mxu0 0.0
    %5590 = vmatprep.subr.mxu0 0.0
    %5591 = vmatpush1.msra.mxu0 0.0
    %5592 = vmatprep.subr.mxu0 0.0
    %5593 = vmatpush1.msra.mxu0 0.0
    %5594 = vmatprep.subr.mxu0 0.0
    %5595 = vmatpush1.msra.mxu0 0.0
    %5596 = vmatprep.subr.mxu0 0.0
    %5597 = vmatpush1.msra.mxu0 0.0
    %5598 = vmatprep.subr.mxu0 0.0
    %5599 = vmatpush1.msra.mxu0 0.0
    %5600 = vmatprep.subr.mxu0 0.0
    %5601 = vmatpush1.msra.mxu0 0.0
    %5602 = vmatprep.subr.mxu0 0.0
    %5603 = vmatpush1.msra.mxu0 0.0
    %5604 = vmatprep.subr.mxu0 0.0
    %5605 = vmatpush1.msra.mxu0 0.0
    %5606 = vmatprep.subr.mxu0 0.0
    %5607 = vmatpush1.msra.mxu0 0.0
    %5608 = vmatprep.subr.mxu0 0.0
    %5609 = vmatpush1.msra.mxu0 0.0
    %5610 = vmatprep.subr.mxu0 0.0
    %5611 = vmatpush1.msra.mxu0 0.0
    %5612 = vmatprep.subr.mxu0 0.0
    %5613 = vmatpush1.msra.mxu0 0.0
    %5614 = vmatprep.subr.mxu0 0.0
    %5615 = vmatpush1.msra.mxu0 0.0
    %5616 = vmatprep.subr.mxu0 0.0
    %5617 = vmatpush1.msra.mxu0 0.0
    %5618 = vmatprep.subr.mxu0 0.0
    %5619 = vmatpush1.msra.mxu0 0.0
    %5620 = vmatprep.subr.mxu0 0.0
    %5621 = vmatpush1.msra.mxu0 0.0
    %5622 = vmatprep.subr.mxu0 0.0
    %5623 = vmatpush1.msra.mxu0 0.0
    %5624 = vmatprep.subr.mxu0 0.0
    %5625 = vmatpush1.msra.mxu0 0.0
    %5626 = vmatprep.subr.mxu0 0.0
    %5627 = vmatpush1.msra.mxu0 0.0
    %5628 = vmatprep.subr.mxu0 0.0
    %5629 = vmatpush1.msra.mxu0 0.0
    %5630 = vmatprep.subr.mxu0 0.0
    %5631 = vmatpush1.msra.mxu0 0.0
    %5632 = vmatprep.subr.mxu0 0.0
    %5633 = vmatpush1.msra.mxu0 0.0
    %5634 = vmatprep.mubr.f32.mxu0 0.0
    %5635 = vmatmul.mubr.f32.gmra.mrb[0].mxu0 %v5311
    %v5636 = vpop.f32.mrb[0].mxu0
    %v5637 = vadd.f32 0.0, %v5636
    %v5638 = vpop.f32.mrb[0].mxu0
    %5639 = vdwg.mxu0
    %v5641 = vrot.slane %v5637, 2
    %v5642 = vrot.slane %v5637, 3
    %v5645 = vadd.f32 %v3427, %v5641
    %v5646 = vadd.f32 %v3432, %v5642
    %v5647 = vxor.u32 %v5645, 2147483648
    %v5648 = vxor.u32 %v5646, 2147483648
    %v5649 = vmul.f32 %v5647, 1.442695
    %v5650 = vpow.pop %v5649
    %v5651 = vmul.f32 %v5648, 1.442695
    %v5652 = vpow.pop %v5651
    %v5653 = vadd.f32 %v5650, 1.0
    %v5654 = vadd.f32 %v5652, 1.0
    %v5655 = vrcp.pop %v5653
    %v5656 = vmul.f32 1.0, %v5655
    %v5657 = vrcp.pop %v5654
    %v5658 = vmul.f32 1.0, %v5657
    %v5661 = vrot.slane %v5300, 7
    %v5662 = vrot.slane %v5301, 7
    %v5665 = vmul.f32 %v5488, %v5661
    %v5666 = vmul.f32 %v5490, %v5662
    %v5667 = vmul.f32 %v5399, %v5568
    %v5668 = vmul.f32 %v5401, %v5569
    %v5669 = vadd.f32 %v5665, %v5667
    %v5670 = vadd.f32 %v5666, %v5668
    %v5671 = vtanh.pop %v5669
    %v5672 = vtanh.pop %v5670
    %v5673 = vmul.f32 %v5656, %v5671
    %v5674 = vmul.f32 %v5658, %v5672
    %v5677 = vrot.slane %v5673, 6
    %v5678 = vrot.slane %v5674, 5
    %v5679 = vsel %vm473, %v5678, %v5677
    %v5680 = vsel %vm475, %v5679, 0
    %5682 = vmatprep.subr.mxu0 0.0
    %5683 = vmatpush1.msra.mxu0 %v3085
    %5684 = vmatprep.subr.mxu0 0.0
    %5685 = vmatpush1.msra.mxu0 %v3086
    %5686 = vmatprep.subr.mxu0 0.0
    %5687 = vmatpush1.msra.mxu0 %v3087
    %5688 = vmatprep.subr.mxu0 0.0
    %5689 = vmatpush1.msra.mxu0 %v3088
    %5690 = vmatprep.subr.mxu0 0.0
    %5691 = vmatpush1.msra.mxu0 0.0
    %5692 = vmatprep.subr.mxu0 0.0
    %5693 = vmatpush1.msra.mxu0 0.0
    %5694 = vmatprep.subr.mxu0 0.0
    %5695 = vmatpush1.msra.mxu0 0.0
    %5696 = vmatprep.subr.mxu0 0.0
    %5697 = vmatpush1.msra.mxu0 0.0
    %5698 = vmatprep.subr.mxu0 0.0
    %5699 = vmatpush1.msra.mxu0 0.0
    %5700 = vmatprep.subr.mxu0 0.0
    %5701 = vmatpush1.msra.mxu0 0.0
    %5702 = vmatprep.subr.mxu0 0.0
    %5703 = vmatpush1.msra.mxu0 0.0
    %5704 = vmatprep.subr.mxu0 0.0
    %5705 = vmatpush1.msra.mxu0 0.0
    %5706 = vmatprep.subr.mxu0 0.0
    %5707 = vmatpush1.msra.mxu0 0.0
    %5708 = vmatprep.subr.mxu0 0.0
    %5709 = vmatpush1.msra.mxu0 0.0
    %5710 = vmatprep.subr.mxu0 0.0
    %5711 = vmatpush1.msra.mxu0 0.0
    %5712 = vmatprep.subr.mxu0 0.0
    %5713 = vmatpush1.msra.mxu0 0.0
    %5714 = vmatprep.subr.mxu0 0.0
    %5715 = vmatpush1.msra.mxu0 0.0
    %5716 = vmatprep.subr.mxu0 0.0
    %5717 = vmatpush1.msra.mxu0 0.0
    %5718 = vmatprep.subr.mxu0 0.0
    %5719 = vmatpush1.msra.mxu0 0.0
    %5720 = vmatprep.subr.mxu0 0.0
    %5721 = vmatpush1.msra.mxu0 0.0
    %5722 = vmatprep.subr.mxu0 0.0
    %5723 = vmatpush1.msra.mxu0 0.0
    %5724 = vmatprep.subr.mxu0 0.0
    %5725 = vmatpush1.msra.mxu0 0.0
    %5726 = vmatprep.subr.mxu0 0.0
    %5727 = vmatpush1.msra.mxu0 0.0
    %5728 = vmatprep.subr.mxu0 0.0
    %5729 = vmatpush1.msra.mxu0 0.0
    %5730 = vmatprep.subr.mxu0 0.0
    %5731 = vmatpush1.msra.mxu0 0.0
    %5732 = vmatprep.subr.mxu0 0.0
    %5733 = vmatpush1.msra.mxu0 0.0
    %5734 = vmatprep.subr.mxu0 0.0
    %5735 = vmatpush1.msra.mxu0 0.0
    %5736 = vmatprep.subr.mxu0 0.0
    %5737 = vmatpush1.msra.mxu0 0.0
    %5738 = vmatprep.subr.mxu0 0.0
    %5739 = vmatpush1.msra.mxu0 0.0
    %5740 = vmatprep.subr.mxu0 0.0
    %5741 = vmatpush1.msra.mxu0 0.0
    %5742 = vmatprep.subr.mxu0 0.0
    %5743 = vmatpush1.msra.mxu0 0.0
    %5744 = vmatprep.subr.mxu0 0.0
    %5745 = vmatpush1.msra.mxu0 0.0
    %5746 = vmatprep.mubr.f32.mxu0 0.0
    %5747 = vmatmul.mubr.f32.gmra.mrb[0].mxu0 %v5680
    %v5748 = vpop.f32.mrb[0].mxu0
    %v5749 = vadd.f32 0.0, %v5748
    %v5750 = vpop.f32.mrb[0].mxu0
    %5751 = vdwg.mxu0
    %v5753 = vrot.slane %v5749, 1
    %v5754 = vrot.slane %v5749, 2
    %v5757 = vadd.f32 %v3184, %v5753
    %v5758 = vadd.f32 %v3189, %v5754
    %v5759 = vxor.u32 %v5757, 2147483648
    %v5760 = vxor.u32 %v5758, 2147483648
    %v5761 = vmul.f32 %v5759, 1.442695
    %v5762 = vpow.pop %v5761
    %v5763 = vmul.f32 %v5760, 1.442695
    %v5764 = vpow.pop %v5763
    %v5765 = vadd.f32 %v5762, 1.0
    %v5766 = vadd.f32 %v5764, 1.0
    %v5767 = vrcp.pop %v5765
    %v5768 = vmul.f32 1.0, %v5767
    %v5769 = vrcp.pop %v5766
    %v5770 = vmul.f32 1.0, %v5769
    %5771 = vmatprep.subr.mxu0 0.0
    %5772 = vmatpush1.msra.mxu0 %v3089
    %5773 = vmatprep.subr.mxu0 0.0
    %5774 = vmatpush1.msra.mxu0 %v3090
    %5775 = vmatprep.subr.mxu0 0.0
    %5776 = vmatpush1.msra.mxu0 %v3091
    %5777 = vmatprep.subr.mxu0 0.0
    %5778 = vmatpush1.msra.mxu0 %v3092
    %5779 = vmatprep.subr.mxu0 0.0
    %5780 = vmatpush1.msra.mxu0 0.0
    %5781 = vmatprep.subr.mxu0 0.0
    %5782 = vmatpush1.msra.mxu0 0.0
    %5783 = vmatprep.subr.mxu0 0.0
    %5784 = vmatpush1.msra.mxu0 0.0
    %5785 = vmatprep.subr.mxu0 0.0
    %5786 = vmatpush1.msra.mxu0 0.0
    %5787 = vmatprep.subr.mxu0 0.0
    %5788 = vmatpush1.msra.mxu0 0.0
    %5789 = vmatprep.subr.mxu0 0.0
    %5790 = vmatpush1.msra.mxu0 0.0
    %5791 = vmatprep.subr.mxu0 0.0
    %5792 = vmatpush1.msra.mxu0 0.0
    %5793 = vmatprep.subr.mxu0 0.0
    %5794 = vmatpush1.msra.mxu0 0.0
    %5795 = vmatprep.subr.mxu0 0.0
    %5796 = vmatpush1.msra.mxu0 0.0
    %5797 = vmatprep.subr.mxu0 0.0
    %5798 = vmatpush1.msra.mxu0 0.0
    %5799 = vmatprep.subr.mxu0 0.0
    %5800 = vmatpush1.msra.mxu0 0.0
    %5801 = vmatprep.subr.mxu0 0.0
    %5802 = vmatpush1.msra.mxu0 0.0
    %5803 = vmatprep.subr.mxu0 0.0
    %5804 = vmatpush1.msra.mxu0 0.0
    %5805 = vmatprep.subr.mxu0 0.0
    %5806 = vmatpush1.msra.mxu0 0.0
    %5807 = vmatprep.subr.mxu0 0.0
    %5808 = vmatpush1.msra.mxu0 0.0
    %5809 = vmatprep.subr.mxu0 0.0
    %5810 = vmatpush1.msra.mxu0 0.0
    %5811 = vmatprep.subr.mxu0 0.0
    %5812 = vmatpush1.msra.mxu0 0.0
    %5813 = vmatprep.subr.mxu0 0.0
    %5814 = vmatpush1.msra.mxu0 0.0
    %5815 = vmatprep.subr.mxu0 0.0
    %5816 = vmatpush1.msra.mxu0 0.0
    %5817 = vmatprep.subr.mxu0 0.0
    %5818 = vmatpush1.msra.mxu0 0.0
    %5819 = vmatprep.subr.mxu0 0.0
    %5820 = vmatpush1.msra.mxu0 0.0
    %5821 = vmatprep.subr.mxu0 0.0
    %5822 = vmatpush1.msra.mxu0 0.0
    %5823 = vmatprep.subr.mxu0 0.0
    %5824 = vmatpush1.msra.mxu0 0.0
    %5825 = vmatprep.subr.mxu0 0.0
    %5826 = vmatpush1.msra.mxu0 0.0
    %5827 = vmatprep.subr.mxu0 0.0
    %5828 = vmatpush1.msra.mxu0 0.0
    %5829 = vmatprep.subr.mxu0 0.0
    %5830 = vmatpush1.msra.mxu0 0.0
    %5831 = vmatprep.subr.mxu0 0.0
    %5832 = vmatpush1.msra.mxu0 0.0
    %5833 = vmatprep.subr.mxu0 0.0
    %5834 = vmatpush1.msra.mxu0 0.0
    %5835 = vmatprep.mubr.f32.mxu0 0.0
    %5836 = vmatmul.mubr.f32.gmra.mrb[0].mxu0 %v5680
    %v5837 = vpop.f32.mrb[0].mxu0
    %v5838 = vadd.f32 0.0, %v5837
    %v5839 = vpop.f32.mrb[0].mxu0
    %5840 = vdwg.mxu0
    %v5842 = vrot.slane %v5838, 1
    %v5843 = vrot.slane %v5838, 2
    %v5846 = vadd.f32 %v3265, %v5842
    %v5847 = vadd.f32 %v3270, %v5843
    %v5848 = vxor.u32 %v5846, 2147483648
    %v5849 = vxor.u32 %v5847, 2147483648
    %v5850 = vmul.f32 %v5848, 1.442695
    %v5851 = vpow.pop %v5850
    %v5852 = vmul.f32 %v5849, 1.442695
    %v5853 = vpow.pop %v5852
    %v5854 = vadd.f32 %v5851, 1.0
    %v5855 = vadd.f32 %v5853, 1.0
    %v5856 = vrcp.pop %v5854
    %v5857 = vmul.f32 1.0, %v5856
    %v5858 = vrcp.pop %v5855
    %v5859 = vmul.f32 1.0, %v5858
    %5860 = vmatprep.subr.mxu0 0.0
    %5861 = vmatpush1.msra.mxu0 %v3093
    %5862 = vmatprep.subr.mxu0 0.0
    %5863 = vmatpush1.msra.mxu0 %v3094
    %5864 = vmatprep.subr.mxu0 0.0
    %5865 = vmatpush1.msra.mxu0 %v3095
    %5866 = vmatprep.subr.mxu0 0.0
    %5867 = vmatpush1.msra.mxu0 %v3096
    %5868 = vmatprep.subr.mxu0 0.0
    %5869 = vmatpush1.msra.mxu0 0.0
    %5870 = vmatprep.subr.mxu0 0.0
    %5871 = vmatpush1.msra.mxu0 0.0
    %5872 = vmatprep.subr.mxu0 0.0
    %5873 = vmatpush1.msra.mxu0 0.0
    %5874 = vmatprep.subr.mxu0 0.0
    %5875 = vmatpush1.msra.mxu0 0.0
    %5876 = vmatprep.subr.mxu0 0.0
    %5877 = vmatpush1.msra.mxu0 0.0
    %5878 = vmatprep.subr.mxu0 0.0
    %5879 = vmatpush1.msra.mxu0 0.0
    %5880 = vmatprep.subr.mxu0 0.0
    %5881 = vmatpush1.msra.mxu0 0.0
    %5882 = vmatprep.subr.mxu0 0.0
    %5883 = vmatpush1.msra.mxu0 0.0
    %5884 = vmatprep.subr.mxu0 0.0
    %5885 = vmatpush1.msra.mxu0 0.0
    %5886 = vmatprep.subr.mxu0 0.0
    %5887 = vmatpush1.msra.mxu0 0.0
    %5888 = vmatprep.subr.mxu0 0.0
    %5889 = vmatpush1.msra.mxu0 0.0
    %5890 = vmatprep.subr.mxu0 0.0
    %5891 = vmatpush1.msra.mxu0 0.0
    %5892 = vmatprep.subr.mxu0 0.0
    %5893 = vmatpush1.msra.mxu0 0.0
    %5894 = vmatprep.subr.mxu0 0.0
    %5895 = vmatpush1.msra.mxu0 0.0
    %5896 = vmatprep.subr.mxu0 0.0
    %5897 = vmatpush1.msra.mxu0 0.0
    %5898 = vmatprep.subr.mxu0 0.0
    %5899 = vmatpush1.msra.mxu0 0.0
    %5900 = vmatprep.subr.mxu0 0.0
    %5901 = vmatpush1.msra.mxu0 0.0
    %5902 = vmatprep.subr.mxu0 0.0
    %5903 = vmatpush1.msra.mxu0 0.0
    %5904 = vmatprep.subr.mxu0 0.0
    %5905 = vmatpush1.msra.mxu0 0.0
    %5906 = vmatprep.subr.mxu0 0.0
    %5907 = vmatpush1.msra.mxu0 0.0
    %5908 = vmatprep.subr.mxu0 0.0
    %5909 = vmatpush1.msra.mxu0 0.0
    %5910 = vmatprep.subr.mxu0 0.0
    %5911 = vmatpush1.msra.mxu0 0.0
    %5912 = vmatprep.subr.mxu0 0.0
    %5913 = vmatpush1.msra.mxu0 0.0
    %5914 = vmatprep.subr.mxu0 0.0
    %5915 = vmatpush1.msra.mxu0 0.0
    %5916 = vmatprep.subr.mxu0 0.0
    %5917 = vmatpush1.msra.mxu0 0.0
    %5918 = vmatprep.subr.mxu0 0.0
    %5919 = vmatpush1.msra.mxu0 0.0
    %5920 = vmatprep.subr.mxu0 0.0
    %5921 = vmatpush1.msra.mxu0 0.0
    %5922 = vmatprep.subr.mxu0 0.0
    %5923 = vmatpush1.msra.mxu0 0.0
    %5924 = vmatprep.mubr.f32.mxu0 0.0
    %5925 = vmatmul.mubr.f32.gmra.mrb[0].mxu0 %v5680
    %v5926 = vpop.f32.mrb[0].mxu0
    %v5927 = vadd.f32 0.0, %v5926
    %v5928 = vpop.f32.mrb[0].mxu0
    %5929 = vdwg.mxu0
    %v5931 = vrot.slane %v5927, 1
    %v5932 = vrot.slane %v5927, 2
    %v5935 = vadd.f32 %v3346, %v5931
    %v5936 = vadd.f32 %v3351, %v5932
    %v5937 = vtanh.pop %v5935
    %v5938 = vtanh.pop %v5936
    %5939 = vmatprep.subr.mxu0 0.0
    %5940 = vmatpush1.msra.mxu0 %v3097
    %5941 = vmatprep.subr.mxu0 0.0
    %5942 = vmatpush1.msra.mxu0 %v3098
    %5943 = vmatprep.subr.mxu0 0.0
    %5944 = vmatpush1.msra.mxu0 %v3099
    %5945 = vmatprep.subr.mxu0 0.0
    %5946 = vmatpush1.msra.mxu0 %v3100
    %5947 = vmatprep.subr.mxu0 0.0
    %5948 = vmatpush1.msra.mxu0 0.0
    %5949 = vmatprep.subr.mxu0 0.0
    %5950 = vmatpush1.msra.mxu0 0.0
    %5951 = vmatprep.subr.mxu0 0.0
    %5952 = vmatpush1.msra.mxu0 0.0
    %5953 = vmatprep.subr.mxu0 0.0
    %5954 = vmatpush1.msra.mxu0 0.0
    %5955 = vmatprep.subr.mxu0 0.0
    %5956 = vmatpush1.msra.mxu0 0.0
    %5957 = vmatprep.subr.mxu0 0.0
    %5958 = vmatpush1.msra.mxu0 0.0
    %5959 = vmatprep.subr.mxu0 0.0
    %5960 = vmatpush1.msra.mxu0 0.0
    %5961 = vmatprep.subr.mxu0 0.0
    %5962 = vmatpush1.msra.mxu0 0.0
    %5963 = vmatprep.subr.mxu0 0.0
    %5964 = vmatpush1.msra.mxu0 0.0
    %5965 = vmatprep.subr.mxu0 0.0
    %5966 = vmatpush1.msra.mxu0 0.0
    %5967 = vmatprep.subr.mxu0 0.0
    %5968 = vmatpush1.msra.mxu0 0.0
    %5969 = vmatprep.subr.mxu0 0.0
    %5970 = vmatpush1.msra.mxu0 0.0
    %5971 = vmatprep.subr.mxu0 0.0
    %5972 = vmatpush1.msra.mxu0 0.0
    %5973 = vmatprep.subr.mxu0 0.0
    %5974 = vmatpush1.msra.mxu0 0.0
    %5975 = vmatprep.subr.mxu0 0.0
    %5976 = vmatpush1.msra.mxu0 0.0
    %5977 = vmatprep.subr.mxu0 0.0
    %5978 = vmatpush1.msra.mxu0 0.0
    %5979 = vmatprep.subr.mxu0 0.0
    %5980 = vmatpush1.msra.mxu0 0.0
    %5981 = vmatprep.subr.mxu0 0.0
    %5982 = vmatpush1.msra.mxu0 0.0
    %5983 = vmatprep.subr.mxu0 0.0
    %5984 = vmatpush1.msra.mxu0 0.0
    %5985 = vmatprep.subr.mxu0 0.0
    %5986 = vmatpush1.msra.mxu0 0.0
    %5987 = vmatprep.subr.mxu0 0.0
    %5988 = vmatpush1.msra.mxu0 0.0
    %5989 = vmatprep.subr.mxu0 0.0
    %5990 = vmatpush1.msra.mxu0 0.0
    %5991 = vmatprep.subr.mxu0 0.0
    %5992 = vmatpush1.msra.mxu0 0.0
    %5993 = vmatprep.subr.mxu0 0.0
    %5994 = vmatpush1.msra.mxu0 0.0
    %5995 = vmatprep.subr.mxu0 0.0
    %5996 = vmatpush1.msra.mxu0 0.0
    %5997 = vmatprep.subr.mxu0 0.0
    %5998 = vmatpush1.msra.mxu0 0.0
    %5999 = vmatprep.subr.mxu0 0.0
    %6000 = vmatpush1.msra.mxu0 0.0
    %6001 = vmatprep.subr.mxu0 0.0
    %6002 = vmatpush1.msra.mxu0 0.0
    %6003 = vmatprep.mubr.f32.mxu0 0.0
    %6004 = vmatmul.mubr.f32.gmra.mrb[0].mxu0 %v5680
    %v6005 = vpop.f32.mrb[0].mxu0
    %v6006 = vadd.f32 0.0, %v6005
    %v6007 = vpop.f32.mrb[0].mxu0
    %6008 = vdwg.mxu0
    %v6010 = vrot.slane %v6006, 1
    %v6011 = vrot.slane %v6006, 2
    %v6014 = vadd.f32 %v3427, %v6010
    %v6015 = vadd.f32 %v3432, %v6011
    %v6016 = vxor.u32 %v6014, 2147483648
    %v6017 = vxor.u32 %v6015, 2147483648
    %v6018 = vmul.f32 %v6016, 1.442695
    %v6019 = vpow.pop %v6018
    %v6020 = vmul.f32 %v6017, 1.442695
    %v6021 = vpow.pop %v6020
    %v6022 = vadd.f32 %v6019, 1.0
    %v6023 = vadd.f32 %v6021, 1.0
    %v6024 = vrcp.pop %v6022
    %v6025 = vmul.f32 1.0, %v6024
    %v6026 = vrcp.pop %v6023
    %v6027 = vmul.f32 1.0, %v6026
    %v6030 = vrot.slane %v5669, 7
    %v6031 = vrot.slane %v5670, 7
    %v6034 = vmul.f32 %v5857, %v6030
    %v6035 = vmul.f32 %v5859, %v6031
    %v6036 = vmul.f32 %v5768, %v5937
    %v6037 = vmul.f32 %v5770, %v5938
    %v6038 = vadd.f32 %v6034, %v6036
    %v6039 = vadd.f32 %v6035, %v6037
    %v6040 = vtanh.pop %v6038
    %v6041 = vtanh.pop %v6039
    %v6042 = vmul.f32 %v6025, %v6040
    %v6043 = vmul.f32 %v6027, %v6041
    %v6044 = vsel %vm3049, %v3465, %v3829
    %v6045 = vsel %vm3049, %v3466, %v3830
    %v6046 = vsel %vm3052, %v6044, %v4197
    %v6047 = vsel %vm3052, %v6045, %v4198
    %v6048 = vsel %vm3055, %v6046, %v4566
    %v6049 = vsel %vm3055, %v6047, %v4567
    %v6050 = vsel %vm107, %v6048, %v4935
    %v6051 = vsel %vm107, %v6049, %v4936
    %v6052 = vsel %vm3060, %v6050, %v5304
    %v6053 = vsel %vm3060, %v6051, %v5305
    %v6054 = vsel %vm3063, %v6052, %v5673
    %v6055 = vsel %vm3063, %v6053, %v5674
    %v6056 = vsel %vm3066, %v6054, %v6042
    %v6057 = vsel %vm3066, %v6055, %v6043
    %6058 = vst.msk [vmem:[#allocation8] sm:$0xff] %vm475, %v6056
    %6059 = vst.msk [vmem:[#allocation8 + $0x8] sm:$0xff] %vm475, %v6057
    // Predicated region
    $region42: #{tpu_custom_call.1} parent=1 // pred_check
      _
    $region43: #{tpu_custom_call.1} parent=1 // pred_check_branch
      %6061 = sbr.rel (0) target = $region45
    $region44: #{tpu_custom_call.1} parent=1 // pred_region
      %s6063 = ssub.s32 256, 256
      %6064 = vsyncadd [#allocation4], %s6063
      %s6065 = sshll.u32 [#allocation8], 4
      %s6066 = int_to_ptr.vmem [resolvable:$true] %s6065
      %6071 = dma.vmem_to_hbm [thread:$0]  %s6066, 256, %s7, [#allocation4], 128, 128, 8
    $region45: #{tpu_custom_call.1} parent=1 // pred_fallthru
      _
    // Predicated region
    $region46: #{tpu_custom_call.1} parent=1 // pred_check
      _
    $region47: #{tpu_custom_call.1} parent=1 // pred_check_branch
      %6073 = sbr.rel (0) target = $region49
    $region48: #{tpu_custom_call.1} parent=1 // pred_region
      %6074 = dma.done [#allocation4], 256
    $region49: #{tpu_custom_call.1} parent=1 // pred_fallthru
      _
    %6075 = vsyncpa [#allocation3], 1
    %6076 = vsyncpa [#allocation6], 1
    %6077 = vsyncpa [#allocation4], 1

</llo_original>
